<compile_context>
chip_gen: v5e
topology: v5e:2x2
jax: 0.10.0
libtpu: 0.0.40
codegen_flags: <defaults>
</compile_context>

<pallas_src>
import functools
import math

import jax
import jax.numpy as jnp
from jax.experimental import pallas as pl
from jax.experimental.pallas import tpu as pltpu

NUM_HEADS = 12
HEAD_DIM = 64
EMBED_DIM = NUM_HEADS * HEAD_DIM  # 768

_VMEM_LIMIT = 48 * 1024 * 1024  # <= v7x's 64 MiB physical VMEM


def _round_up(x, m):
    return (x + m - 1) // m * m


# ----------------------------------------------------------------------------
# Pallas kernel 1: tiled matmul with fused bias epilogue
#   operands: bf16 (MXU-native), accumulation + bias + output: f32
# ----------------------------------------------------------------------------
def _mm_bias_kernel(a_ref, w_ref, b_ref, o_ref):
    y = jnp.dot(a_ref[...], w_ref[...], preferred_element_type=jnp.float32)
    o_ref[...] = (y + b_ref[...]).astype(o_ref.dtype)


def matmul_bias(a, w, bias):
    """a:(M,K) @ w:(K,N) + bias:(N,) -> (M,N) float32."""
    M, K = a.shape
    Kw, N = w.shape
    assert K == Kw
    Kp = _round_up(K, 128)
    Np = _round_up(N, 128)
    Mp = _round_up(max(M, 8), 8)

    # M tile: prefer >=2 parallel tiles (2 TCs on v7x); 256-wide when M is large
    # to match the v6e/v7x 256-wide MXU.
    if Mp >= 512 and Mp % 256 == 0:
        tm = 256
    elif Mp >= 256 and Mp % 128 == 0:
        tm = 128
    else:
        tm = Mp
    Mp = _round_up(Mp, tm)
    tn = 256 if Np % 256 == 0 else 128

    a_p = jnp.zeros((Mp, Kp), jnp.bfloat16).at[:M, :K].set(a.astype(jnp.bfloat16))
    w_p = jnp.zeros((Kp, Np), jnp.bfloat16).at[:K, :N].set(w.astype(jnp.bfloat16))
    b_p = jnp.zeros((1, Np), jnp.float32).at[0, :N].set(bias.astype(jnp.float32))

    out = pl.pallas_call(
        _mm_bias_kernel,
        out_shape=jax.ShapeDtypeStruct((Mp, Np), jnp.float32),
        grid_spec=pl.GridSpec(
            grid=(Mp // tm, Np // tn),
            in_specs=[
                pl.BlockSpec((tm, Kp), lambda i, j: (i, 0)),
                pl.BlockSpec((Kp, tn), lambda i, j: (0, j)),
                pl.BlockSpec((1, tn), lambda i, j: (0, j)),
            ],
            out_specs=pl.BlockSpec((tm, tn), lambda i, j: (i, j)),
        ),
        compiler_params=pltpu.CompilerParams(
            dimension_semantics=("parallel", "parallel"),
            vmem_limit_bytes=_VMEM_LIMIT,
        ),
    )(a_p, w_p, b_p)
    return out[:M, :N]


# ----------------------------------------------------------------------------
# Pallas kernel 2: multi-head scaled-dot-product attention
#   one grid step handles a block of `hb` (batch*head) slices; scores/softmax
#   stay in f32, the two matmuls run on the MXU with bf16 operands.
# ----------------------------------------------------------------------------
def _attn_kernel(q_ref, k_ref, v_ref, o_ref, *, scale, s_real):
    q = q_ref[...]                                   # (hb, Sp, Dp) bf16
    k = k_ref[...]
    v = v_ref[...]
    s = jnp.einsum("bqd,bkd->bqk", q, k,
                   preferred_element_type=jnp.float32) * scale
    col = jax.lax.broadcasted_iota(jnp.int32, s.shape, 2)
    s = jnp.where(col < s_real, s, -1e30)            # mask padded keys (f32)
    s = s - jnp.max(s, axis=-1, keepdims=True)
    p = jnp.exp(s)
    p = p / jnp.sum(p, axis=-1, keepdims=True)
    o_ref[...] = jnp.einsum("bqk,bkd->bqd", p.astype(v.dtype), v,
                            preferred_element_type=jnp.float32)


def multihead_attention(q, k, v, head_dim):
    """q,k,v: (B*H, S, Dh) -> context (B*H, S, Dh), float32."""
    BH, S, Dh = q.shape
    Sp = _round_up(max(S, 8), 128)
    Dp = _round_up(Dh, 128)        # pad head dim to 128 -> lane-dense load/store

    # head-block size: largest divisor of BH <= 8 (keeps >=2 parallel grid steps
    # for any realistic batch while filling sublanes within a step).
    hb = 1
    for c in range(min(8, BH), 0, -1):
        if BH % c == 0:
            hb = c
            break

    def pad(t):
        return jnp.zeros((BH, Sp, Dp), jnp.bfloat16).at[:, :S, :Dh].set(
            t.astype(jnp.bfloat16))

    out = pl.pallas_call(
        functools.partial(_attn_kernel, scale=1.0 / math.sqrt(head_dim), s_real=S),
        out_shape=jax.ShapeDtypeStruct((BH, Sp, Dp), jnp.float32),
        grid_spec=pl.GridSpec(
            grid=(BH // hb,),
            in_specs=[
                pl.BlockSpec((hb, Sp, Dp), lambda h: (h, 0, 0)),
                pl.BlockSpec((hb, Sp, Dp), lambda h: (h, 0, 0)),
                pl.BlockSpec((hb, Sp, Dp), lambda h: (h, 0, 0)),
            ],
            out_specs=pl.BlockSpec((hb, Sp, Dp), lambda h: (h, 0, 0)),
        ),
        compiler_params=pltpu.CompilerParams(
            dimension_semantics=("parallel",),
            vmem_limit_bytes=_VMEM_LIMIT,
        ),
    )(pad(q), pad(k), pad(v))
    return out[:, :S, :Dh]


# ----------------------------------------------------------------------------
# SelfAttention forward (matches the PyTorch module in eval mode)
# ----------------------------------------------------------------------------
def self_attention_forward(params, hidden_states):
    B, S, E = hidden_states.shape
    assert E == EMBED_DIM
    x2d = hidden_states.reshape(B * S, E)

    # Fused QKV projection: one matmul with N = 3*768.
    w_qkv = jnp.concatenate([params["q_w"], params["k_w"], params["v_w"]], axis=1)
    b_qkv = jnp.concatenate([params["q_b"], params["k_b"], params["v_b"]], axis=0)
    qkv = matmul_bias(x2d, w_qkv, b_qkv)                      # (B*S, 3E)

    def split_heads(t):  # (B*S, E) -> (B*H, S, Dh)
        return t.reshape(B, S, NUM_HEADS, HEAD_DIM).transpose(0, 2, 1, 3).reshape(
            B * NUM_HEADS, S, HEAD_DIM)

    q = split_heads(qkv[:, :E])
    k = split_heads(qkv[:, E:2 * E])
    v = split_heads(qkv[:, 2 * E:])

    ctx = multihead_attention(q, k, v, HEAD_DIM)              # (B*H, S, Dh)
    ctx = ctx.reshape(B, NUM_HEADS, S, HEAD_DIM).transpose(0, 2, 1, 3).reshape(
        B * S, E)

    out = matmul_bias(ctx, params["o_w"], params["o_b"])      # output projection
    # attn_dropout / proj_dropout have p=0 -> identity (eval mode).
    attention_output = out.reshape(B, S, E)
    weights = None  # vis=False in the reference module
    return attention_output, weights


# ----------------------------------------------------------------------------
# deterministic parameter init (nn.Linear-style shapes, synthetic values)
# ----------------------------------------------------------------------------
def init_params(key, embed=EMBED_DIM):
    ks = jax.random.split(key, 8)

    def lin_w(k, fin, fout):
        return jax.random.normal(k, (fin, fout), jnp.float32) * math.sqrt(1.0 / fin)

    def lin_b(k, fout):
        return jax.random.normal(k, (fout,), jnp.float32) * 0.02

    return {
        "q_w": lin_w(ks[0], embed, embed), "q_b": lin_b(ks[1], embed),
        "k_w": lin_w(ks[2], embed, embed), "k_b": lin_b(ks[3], embed),
        "v_w": lin_w(ks[4], embed, embed), "v_b": lin_b(ks[5], embed),
        "o_w": lin_w(ks[6], embed, embed), "o_b": lin_b(ks[7], embed),
    }


# ----------------------------------------------------------------------------
if __name__ == "__main__":
    key = jax.random.PRNGKey(0)
    k_param, k_x = jax.random.split(key)

    # Small sequence/batch; embed dim (768) and head layout (12 x 64) are fixed
    # by the module definition.
    B, S = 2, 128
    params = init_params(k_param)
    hidden_states = jax.random.normal(k_x, (B, S, EMBED_DIM), jnp.float32)

    fwd = jax.jit(self_attention_forward)
    out, weights = jax.block_until_ready(fwd(params, hidden_states))

    assert out.shape == (B, S, EMBED_DIM), out.shape
    assert weights is None
    assert bool(jnp.all(jnp.isfinite(out)))
    print("KERNEL_OK")
</pallas_src>

<mosaic_0001>
module attributes {stable_mosaic.version = 11 : i64} {
  func.func @_mm_bias_kernel(%arg0: i32, %arg1: i32, %arg2: memref<128x768xbf16, #tpu.memory_space<vmem>>, %arg3: memref<768x256xbf16, #tpu.memory_space<vmem>>, %arg4: memref<1x256xf32, #tpu.memory_space<vmem>>, %arg5: memref<128x256xf32, #tpu.memory_space<vmem>>) attributes {dimension_semantics = [#tpu.dimension_semantics<parallel>, #tpu.dimension_semantics<parallel>], iteration_bounds = array<i64: 2, 9>, scalar_prefetch = 0 : i64, scratch_operands = 0 : i64, tpu.core_type = #tpu.core_type<tc>, window_params = [{transform_indices = @transform_0, window_bounds = array<i64: 128, 768>}, {transform_indices = @transform_1, window_bounds = array<i64: 768, 256>}, {transform_indices = @transform_2, window_bounds = array<i64: 1, 256>}, {transform_indices = @transform_3, window_bounds = array<i64: 128, 256>}]} {
    %c0 = arith.constant 0 : index
    %c0_0 = arith.constant 0 : index
    %0 = vector.load %arg2[%c0, %c0_0] : memref<128x768xbf16, #tpu.memory_space<vmem>>, vector<128x768xbf16>
    %c0_1 = arith.constant 0 : index
    %c0_2 = arith.constant 0 : index
    %1 = vector.load %arg3[%c0_1, %c0_2] : memref<768x256xbf16, #tpu.memory_space<vmem>>, vector<768x256xbf16>
    %cst = arith.constant dense<0.000000e+00> : vector<128x256xf32>
    %2 = tpu.matmul %0, %1, %cst {dimension_numbers = #tpu.dot_dimension_numbers<[1], [0], [0], [1], [0, 0, 1, 1], [], []>} : vector<128x768xbf16>, vector<768x256xbf16>, vector<128x256xf32> -> vector<128x256xf32>
    %c0_3 = arith.constant 0 : index
    %c0_4 = arith.constant 0 : index
    %3 = vector.load %arg4[%c0_3, %c0_4] : memref<1x256xf32, #tpu.memory_space<vmem>>, vector<1x256xf32>
    %4 = vector.broadcast %3 : vector<1x256xf32> to vector<128x256xf32>
    %5 = arith.addf %2, %4 : vector<128x256xf32>
    %c0_5 = arith.constant 0 : index
    %c0_6 = arith.constant 0 : index
    %6 = vector.load %arg5[%c0_5, %c0_6] : memref<128x256xf32, #tpu.memory_space<vmem>>, vector<128x256xf32>
    tpu.vector_store %arg5[%c0_5, %c0_6], %5 {strides = array<i32>} : memref<128x256xf32, #tpu.memory_space<vmem>>, vector<128x256xf32>,
    return
  }
  func.func @transform_0(%arg0: i32, %arg1: i32) -> (i32, i32) {
    %c0_i32 = arith.constant 0 : i32
    %c0_i32_0 = arith.constant 0 : i32
    return %arg0, %c0_i32 : i32, i32
  }
  func.func @transform_1(%arg0: i32, %arg1: i32) -> (i32, i32) {
    %c0_i32 = arith.constant 0 : i32
    %c0_i32_0 = arith.constant 0 : i32
    return %c0_i32, %arg1 : i32, i32
  }
  func.func @transform_2(%arg0: i32, %arg1: i32) -> (i32, i32) {
    %c0_i32 = arith.constant 0 : i32
    %c0_i32_0 = arith.constant 0 : i32
    return %c0_i32, %arg1 : i32, i32
  }
  func.func @transform_3(%arg0: i32, %arg1: i32) -> (i32, i32) {
    %c0_i32 = arith.constant 0 : i32
    return %arg0, %arg1 : i32, i32
  }
}

module attributes {stable_mosaic.version = 11 : i64} {
  func.func @_attn_kernel(%arg0: i32, %arg1: memref<8x128x128xbf16, #tpu.memory_space<vmem>>, %arg2: memref<8x128x128xbf16, #tpu.memory_space<vmem>>, %arg3: memref<8x128x128xbf16, #tpu.memory_space<vmem>>, %arg4: memref<8x128x128xf32, #tpu.memory_space<vmem>>) attributes {dimension_semantics = [#tpu.dimension_semantics<parallel>], iteration_bounds = array<i64: 3>, scalar_prefetch = 0 : i64, scratch_operands = 0 : i64, tpu.core_type = #tpu.core_type<tc>, window_params = [{transform_indices = @transform_0, window_bounds = array<i64: 8, 128, 128>}, {transform_indices = @transform_1, window_bounds = array<i64: 8, 128, 128>}, {transform_indices = @transform_2, window_bounds = array<i64: 8, 128, 128>}, {transform_indices = @transform_3, window_bounds = array<i64: 8, 128, 128>}]} {
    %c0 = arith.constant 0 : index
    %c0_0 = arith.constant 0 : index
    %c0_1 = arith.constant 0 : index
    %0 = vector.load %arg1[%c0, %c0_0, %c0_1] : memref<8x128x128xbf16, #tpu.memory_space<vmem>>, vector<8x128x128xbf16>
    %c0_2 = arith.constant 0 : index
    %c0_3 = arith.constant 0 : index
    %c0_4 = arith.constant 0 : index
    %1 = vector.load %arg2[%c0_2, %c0_3, %c0_4] : memref<8x128x128xbf16, #tpu.memory_space<vmem>>, vector<8x128x128xbf16>
    %c0_5 = arith.constant 0 : index
    %c0_6 = arith.constant 0 : index
    %c0_7 = arith.constant 0 : index
    %2 = vector.load %arg3[%c0_5, %c0_6, %c0_7] : memref<8x128x128xbf16, #tpu.memory_space<vmem>>, vector<8x128x128xbf16>
    "tpu.trace_start"() <{level = 10 : i32, message = "bqd,bkd->bqk"}> : () -> ()
    %cst = arith.constant dense<0.000000e+00> : vector<8x128x128xf32>
    %3 = tpu.matmul %0, %1, %cst {dimension_numbers = #tpu.dot_dimension_numbers<[2], [2], [1], [1], [0, 0, 0, 1, 1, 1], [0], [0]>} : vector<8x128x128xbf16>, vector<8x128x128xbf16>, vector<8x128x128xf32> -> vector<8x128x128xf32>
    "tpu.trace_stop"() : () -> ()
    %cst_8 = arith.constant 1.250000e-01 : f32
    %4 = vector.broadcast %cst_8 : f32 to vector<8x128x128xf32>
    %5 = arith.mulf %3, %4 : vector<8x128x128xf32>
    %6 = tpu.iota {dimensions = array<i32: 2>} : vector<8x128x128xi32>
    %c128_i32 = arith.constant 128 : i32
    %7 = vector.broadcast %c128_i32 : i32 to vector<8x128x128xi32>
    %8 = arith.cmpi slt, %6, %7 : vector<8x128x128xi32>
    %cst_9 = arith.constant -1.000000e+30 : f32
    %9 = vector.broadcast %cst_9 : f32 to vector<8x128x128xf32>
    %10 = arith.select %8, %5, %9 : vector<8x128x128xi1>, vector<8x128x128xf32>
    %cst_10 = arith.constant dense<0xFF800000> : vector<8x128xf32>
    %11 = vector.multi_reduction <maximumf>, %10, %cst_10 [2] : vector<8x128x128xf32> to vector<8x128xf32>
    %12 = vector.shape_cast %11 : vector<8x128xf32> to vector<8x128x1xf32>
    %13 = vector.broadcast %12 : vector<8x128x1xf32> to vector<8x128x128xf32>
    %14 = arith.subf %10, %13 : vector<8x128x128xf32>
    %15 = math.exp %14 : vector<8x128x128xf32>
    %cst_11 = arith.constant dense<0.000000e+00> : vector<8x128xf32>
    %16 = vector.multi_reduction <add>, %15, %cst_11 [2] : vector<8x128x128xf32> to vector<8x128xf32>
    %17 = vector.shape_cast %16 : vector<8x128xf32> to vector<8x128x1xf32>
    %18 = vector.broadcast %17 : vector<8x128x1xf32> to vector<8x128x128xf32>
    %19 = arith.divf %15, %18 : vector<8x128x128xf32>
    %20 = arith.truncf %19 : vector<8x128x128xf32> to vector<8x128x128xbf16>
    "tpu.trace_start"() <{level = 10 : i32, message = "bqk,bkd->bqd"}> : () -> ()
    %cst_12 = arith.constant dense<0.000000e+00> : vector<8x128x128xf32>
    %21 = tpu.matmul %20, %2, %cst_12 {dimension_numbers = #tpu.dot_dimension_numbers<[2], [1], [1], [2], [0, 0, 0, 1, 1, 2], [0], [0]>} : vector<8x128x128xbf16>, vector<8x128x128xbf16>, vector<8x128x128xf32> -> vector<8x128x128xf32>
    "tpu.trace_stop"() : () -> ()
    %c0_13 = arith.constant 0 : index
    %c0_14 = arith.constant 0 : index
    %c0_15 = arith.constant 0 : index
    %22 = vector.load %arg4[%c0_13, %c0_14, %c0_15] : memref<8x128x128xf32, #tpu.memory_space<vmem>>, vector<8x128x128xf32>
    tpu.vector_store %arg4[%c0_13, %c0_14, %c0_15], %21 {strides = array<i32>} : memref<8x128x128xf32, #tpu.memory_space<vmem>>, vector<8x128x128xf32>,
    return
  }
  func.func @transform_0(%arg0: i32) -> (i32, i32, i32) {
    %c0_i32 = arith.constant 0 : i32
    %c0_i32_0 = arith.constant 0 : i32
    %c0_i32_1 = arith.constant 0 : i32
    return %arg0, %c0_i32, %c0_i32_0 : i32, i32, i32
  }
  func.func @transform_1(%arg0: i32) -> (i32, i32, i32) {
    %c0_i32 = arith.constant 0 : i32
    %c0_i32_0 = arith.constant 0 : i32
    %c0_i32_1 = arith.constant 0 : i32
    return %arg0, %c0_i32, %c0_i32_0 : i32, i32, i32
  }
  func.func @transform_2(%arg0: i32) -> (i32, i32, i32) {
    %c0_i32 = arith.constant 0 : i32
    %c0_i32_0 = arith.constant 0 : i32
    %c0_i32_1 = arith.constant 0 : i32
    return %arg0, %c0_i32, %c0_i32_0 : i32, i32, i32
  }
  func.func @transform_3(%arg0: i32) -> (i32, i32, i32) {
    %c0_i32 = arith.constant 0 : i32
    %c0_i32_0 = arith.constant 0 : i32
    %c0_i32_1 = arith.constant 0 : i32
    return %arg0, %c0_i32, %c0_i32_0 : i32, i32, i32
  }
}

module attributes {stable_mosaic.version = 11 : i64} {
  func.func @_mm_bias_kernel(%arg0: i32, %arg1: i32, %arg2: memref<128x768xbf16, #tpu.memory_space<vmem>>, %arg3: memref<768x256xbf16, #tpu.memory_space<vmem>>, %arg4: memref<1x256xf32, #tpu.memory_space<vmem>>, %arg5: memref<128x256xf32, #tpu.memory_space<vmem>>) attributes {dimension_semantics = [#tpu.dimension_semantics<parallel>, #tpu.dimension_semantics<parallel>], iteration_bounds = array<i64: 2, 3>, scalar_prefetch = 0 : i64, scratch_operands = 0 : i64, tpu.core_type = #tpu.core_type<tc>, window_params = [{transform_indices = @transform_0, window_bounds = array<i64: 128, 768>}, {transform_indices = @transform_1, window_bounds = array<i64: 768, 256>}, {transform_indices = @transform_2, window_bounds = array<i64: 1, 256>}, {transform_indices = @transform_3, window_bounds = array<i64: 128, 256>}]} {
    %c0 = arith.constant 0 : index
    %c0_0 = arith.constant 0 : index
    %0 = vector.load %arg2[%c0, %c0_0] : memref<128x768xbf16, #tpu.memory_space<vmem>>, vector<128x768xbf16>
    %c0_1 = arith.constant 0 : index
    %c0_2 = arith.constant 0 : index
    %1 = vector.load %arg3[%c0_1, %c0_2] : memref<768x256xbf16, #tpu.memory_space<vmem>>, vector<768x256xbf16>
    %cst = arith.constant dense<0.000000e+00> : vector<128x256xf32>
    %2 = tpu.matmul %0, %1, %cst {dimension_numbers = #tpu.dot_dimension_numbers<[1], [0], [0], [1], [0, 0, 1, 1], [], []>} : vector<128x768xbf16>, vector<768x256xbf16>, vector<128x256xf32> -> vector<128x256xf32>
    %c0_3 = arith.constant 0 : index
    %c0_4 = arith.constant 0 : index
    %3 = vector.load %arg4[%c0_3, %c0_4] : memref<1x256xf32, #tpu.memory_space<vmem>>, vector<1x256xf32>
    %4 = vector.broadcast %3 : vector<1x256xf32> to vector<128x256xf32>
    %5 = arith.addf %2, %4 : vector<128x256xf32>
    %c0_5 = arith.constant 0 : index
    %c0_6 = arith.constant 0 : index
    %6 = vector.load %arg5[%c0_5, %c0_6] : memref<128x256xf32, #tpu.memory_space<vmem>>, vector<128x256xf32>
    tpu.vector_store %arg5[%c0_5, %c0_6], %5 {strides = array<i32>} : memref<128x256xf32, #tpu.memory_space<vmem>>, vector<128x256xf32>,
    return
  }
  func.func @transform_0(%arg0: i32, %arg1: i32) -> (i32, i32) {
    %c0_i32 = arith.constant 0 : i32
    %c0_i32_0 = arith.constant 0 : i32
    return %arg0, %c0_i32 : i32, i32
  }
  func.func @transform_1(%arg0: i32, %arg1: i32) -> (i32, i32) {
    %c0_i32 = arith.constant 0 : i32
    %c0_i32_0 = arith.constant 0 : i32
    return %c0_i32, %arg1 : i32, i32
  }
  func.func @transform_2(%arg0: i32, %arg1: i32) -> (i32, i32) {
    %c0_i32 = arith.constant 0 : i32
    %c0_i32_0 = arith.constant 0 : i32
    return %c0_i32, %arg1 : i32, i32
  }
  func.func @transform_3(%arg0: i32, %arg1: i32) -> (i32, i32) {
    %c0_i32 = arith.constant 0 : i32
    return %arg0, %arg1 : i32, i32
  }
}

</mosaic_0001>

<llo_original>
// kernel: self_attention_forward.3
$region0: #{self_attention_forward.3}
  #allocation0 [shape = 'u32[]', space=smem, size = 0x4, offset = 0x4, fixed_abs, tag = 'smem constant byte address 0x4 - core index']
  #allocation1 [shape = 'u32[72,128]{1,0:T(1,128)}', space=vmem, size = 0x9000, scoped, tag = 'internal scratch']
  %s0 = inlined_call_operand.vmem [shape: bf16[256,768], index: 0, kind: input, shape index: {}]
  %s1 = inlined_call_operand.vmem [shape: bf16[768,2304], index: 1, kind: input, shape index: {}]
  %s2 = inlined_call_operand.vmem [shape: f32[1,2304], index: 2, kind: input, shape index: {}]
  %s3 = inlined_call_operand.vmem [shape: f32[256,2304], index: 3, kind: output, shape index: {}]
  %s4 = sld [smem:[#allocation0]]
  $region102: #{self_attention_forward.3} parent=0
    _
  %s6 = ssub.s32 1, %s4
  %s7 = scalar_select 0, %s6, %s4
  $region1: #{self_attention_forward.3} parent=0
    #allocation2 [shape = 'u8[786432]{0}', space=vmem, size = 0xc0000, scoped, tag = 'input window, operand 1']
    #allocation3 [shape = 'u8[262144]{0}', space=vmem, size = 0x40000, scoped, tag = 'output window, operand 0']
    loop: start=0, step=1, limit=20
    $region2: #{self_attention_forward.3} parent=1 // loop_pre_header
      _
    $region3: #{self_attention_forward.3} parent=1 // loop_header
      %s9 = sphi 0, %s13
      %p10 = scmp.ge.s32.totalorder %s9, 20
      %s16 = sphi 0, %s28
      %s17 = sphi 0, %s24
      %s18 = sphi 0, %s16
      %s19 = sphi 0, %s17
      %s20 = sphi 0, %s18
      %s21 = sphi 0, %s19
      %s31 = sphi 0, %s33
      %s34 = sphi 0, %s31
      %s35 = sphi 0, %s34
      %s51 = sphi 0, %s35
      %s57 = sphi 0, %s59
      %s60 = sphi 0, %s57
      %s61 = sphi 0, %s60
      %s77 = sphi 0, %s61
      %s83 = sphi 0, %s85
      %s86 = sphi 0, %s83
      %s87 = sphi 0, %s86
      %s103 = sphi 0, %s87
      %s111 = sphi 0, %s113
      %s114 = sphi 0, %s111
      %s115 = sphi 0, %s114
      %s131 = sphi 0, %s115
    $region4: #{self_attention_forward.3} parent=1 // loop_header_branch
      %12 = sbr.rel (%p10) target = $region8
    $region5: #{self_attention_forward.3} parent=1 // loop_body
      %s14 = ssub.s32 %s9, 1
      %s15 = ssub.s32 %s9, 2
      %s22 = sadd.s32 1, %s17
      %p23 = scmp.ge.s32.totalorder %s22, 9
      %s24 = scalar_select %p23, 0, %s22
      %s25 = sadd.s32 1, %s16
      %s26 = scalar_select %p23, %s25, %s16
      %p27 = scmp.ge.s32.totalorder %s26, 2
      %s28 = scalar_select %p27, 0, %s26
      %s29 = ssub.s32 %s16, %s28
      %p30 = scmp.eq.s32.totalorder %s29, 0
      %s32 = sadd.s32 %s31, 1
      %s33 = scalar_select %p30, %s31, %s32
      %p36 = pneg %p30
      %p37 = scmp.eq.s32.totalorder %s9, 17
      %p38 = por %p36, %p37
      %p39 = scmp.ne.s32.totalorder %s31, %s34
      %p40 = scmp.eq.s32.totalorder %s9, 0
      %p41 = por %p39, %p40
      %p42 = scmp.ne.s32.totalorder %s31, %s34
      %p43 = scmp.eq.s32.totalorder %s14, 17
      %p44 = por %p42, %p43
      %p45 = scmp.ne.s32.totalorder %s34, %s35
      %p46 = scmp.eq.s32.totalorder %s14, 0
      %p47 = por %p45, %p46
      %p48 = scmp.ne.s32.totalorder %s34, %s35
      %p49 = scmp.eq.s32.totalorder %s15, 17
      %p50 = por %p48, %p49
      %p52 = scmp.ne.s32.totalorder %s35, %s51
      %p53 = scmp.eq.s32.totalorder %s15, 0
      %p54 = por %p52, %p53
      %s55 = ssub.s32 %s17, %s24
      %p56 = scmp.eq.s32.totalorder %s55, 0
      %s58 = sadd.s32 %s57, 1
      %s59 = scalar_select %p56, %s57, %s58
      %p62 = pneg %p56
      %p63 = scmp.eq.s32.totalorder %s9, 17
      %p64 = por %p62, %p63
      %p65 = scmp.ne.s32.totalorder %s57, %s60
      %p66 = scmp.eq.s32.totalorder %s9, 0
      %p67 = por %p65, %p66
      %p68 = scmp.ne.s32.totalorder %s57, %s60
      %p69 = scmp.eq.s32.totalorder %s14, 17
      %p70 = por %p68, %p69
      %p71 = scmp.ne.s32.totalorder %s60, %s61
      %p72 = scmp.eq.s32.totalorder %s14, 0
      %p73 = por %p71, %p72
      %p74 = scmp.ne.s32.totalorder %s60, %s61
      %p75 = scmp.eq.s32.totalorder %s15, 17
      %p76 = por %p74, %p75
      %p78 = scmp.ne.s32.totalorder %s61, %s77
      %p79 = scmp.eq.s32.totalorder %s15, 0
      %p80 = por %p78, %p79
      %s81 = ssub.s32 %s17, %s24
      %p82 = scmp.eq.s32.totalorder %s81, 0
      %s84 = sadd.s32 %s83, 1
      %s85 = scalar_select %p82, %s83, %s84
      %p88 = pneg %p82
      %p89 = scmp.eq.s32.totalorder %s9, 17
      %p90 = por %p88, %p89
      %p91 = scmp.ne.s32.totalorder %s83, %s86
      %p92 = scmp.eq.s32.totalorder %s9, 0
      %p93 = por %p91, %p92
      %p94 = scmp.ne.s32.totalorder %s83, %s86
      %p95 = scmp.eq.s32.totalorder %s14, 17
      %p96 = por %p94, %p95
      %p97 = scmp.ne.s32.totalorder %s86, %s87
      %p98 = scmp.eq.s32.totalorder %s14, 0
      %p99 = por %p97, %p98
      %p100 = scmp.ne.s32.totalorder %s86, %s87
      %p101 = scmp.eq.s32.totalorder %s15, 17
      %p102 = por %p100, %p101
      %p104 = scmp.ne.s32.totalorder %s87, %s103
      %p105 = scmp.eq.s32.totalorder %s15, 0
      %p106 = por %p104, %p105
      %s107 = ssub.s32 %s16, %s28
      %s108 = ssub.s32 %s17, %s24
      %s109 = sor.u32 %s107, %s108
      %p110 = scmp.eq.s32.totalorder %s109, 0
      %s112 = sadd.s32 %s111, 1
      %s113 = scalar_select %p110, %s111, %s112
      %p116 = pneg %p110
      %p117 = scmp.eq.s32.totalorder %s9, 17
      %p118 = por %p116, %p117
      %p119 = scmp.ne.s32.totalorder %s111, %s114
      %p120 = scmp.eq.s32.totalorder %s9, 0
      %p121 = por %p119, %p120
      %p122 = scmp.ne.s32.totalorder %s111, %s114
      %p123 = scmp.eq.s32.totalorder %s14, 17
      %p124 = por %p122, %p123
      %p125 = scmp.ne.s32.totalorder %s114, %s115
      %p126 = scmp.eq.s32.totalorder %s14, 0
      %p127 = por %p125, %p126
      %p128 = scmp.ne.s32.totalorder %s114, %s115
      %p129 = scmp.eq.s32.totalorder %s15, 17
      %p130 = por %p128, %p129
      %p132 = scmp.ne.s32.totalorder %s115, %s131
      %p133 = scmp.eq.s32.totalorder %s15, 0
      %p134 = por %p132, %p133
      %p135 = scmp.le.s32.totalorder 1, %s9
      %p136 = scmp.lt.s32.totalorder %s9, 19
      %p137 = pnand %p135, %p136
      %p138 = pneg %p137
      // Predicated region
      $region9: #{self_attention_forward.3} parent=5 // pred_check
        _
      $region10: #{self_attention_forward.3} parent=5 // pred_check_branch
        %140 = sbr.rel (%p137) target = $region12
      $region11: #{self_attention_forward.3} parent=5 // pred_region
        %s141 = ssub.s32 %s9, 1
      $region12: #{self_attention_forward.3} parent=5 // pred_fallthru
        _
      %p142 = scmp.lt.s32.totalorder %s9, 18
      // Predicated region
      $region13: #{self_attention_forward.3} parent=5 // pred_check
        %p143 = pneg %p142
      $region14: #{self_attention_forward.3} parent=5 // pred_check_branch
        %145 = sbr.rel (%p143) target = $region16
      $region15: #{self_attention_forward.3} parent=5 // pred_region
        // Predicated region
        $region17: #{self_attention_forward.3} parent=15 // pred_check
          %p146 = pneg %p41
        $region18: #{self_attention_forward.3} parent=15 // pred_check_branch
          %148 = sbr.rel (%p146) target = $region20
        $region19: #{self_attention_forward.3} parent=15 // pred_region
          %s149 = smul.u32 16, %s16
          %p150 = scmp.lt.s32.totalorder %s149, 31
          %s151 = scalar_select %p150, %s149, 31
          %s152 = smul.addr %s151, 6
          %s153 = smul.addr %s152, 4
          %s154 = scalar_lea.vmem %s0, %s153
          %s155 = smul.u32 16, %s16
        $region20: #{self_attention_forward.3} parent=15 // pred_fallthru
          _
        // Predicated region
        $region21: #{self_attention_forward.3} parent=15 // pred_check
          %p156 = pneg %p67
        $region22: #{self_attention_forward.3} parent=15 // pred_check_branch
          %158 = sbr.rel (%p156) target = $region24
        $region23: #{self_attention_forward.3} parent=15 // pred_region
          %s159 = sand.u32 %s57, 1
          %s160 = sand.u32 %s57, 1
          %s161 = smul.addr %s160, 768
          %s162 = scalar_lea.vmem [#allocation2], %s161
          %s163 = smul.u32 2, %s17
          %s164 = smul.addr %s163, 4
          %s165 = scalar_lea.vmem %s1, %s164
          // Predicated region
          $region25: #{self_attention_forward.3} parent=23 // pred_check
            _
          $region26: #{self_attention_forward.3} parent=23 // pred_check_branch
            %167 = sbr.rel (0) target = $region28
          $region27: #{self_attention_forward.3} parent=23 // pred_region
            // Predicated region
            $region29: #{self_attention_forward.3} parent=27 // pred_check
              _
            $region30: #{self_attention_forward.3} parent=27 // pred_check_branch
              %169 = sbr.rel (0) target = $region32
            $region31: #{self_attention_forward.3} parent=27 // pred_region
              // Predicated region
              $region44: #{self_attention_forward.3} parent=31 // pred_check
                _
              $region45: #{self_attention_forward.3} parent=31 // pred_check_branch
                %375 = sbr.rel (0) target = $region47
              $region46: #{self_attention_forward.3} parent=31 // pred_region
                loop: start=0, step=1, limit=1
                $region48: #{self_attention_forward.3} parent=46 // loop_pre_header
                  _
                $region49: #{self_attention_forward.3} parent=46 // loop_header
                  %s377 = sphi 0, %s381
                  %p378 = scmp.ge.s32.totalorder %s377, 1
                  %s382 = sphi %s165, %s165
                  %s383 = sphi %s162, %s162
                $region50: #{self_attention_forward.3} parent=46 // loop_header_branch
                  %380 = sbr.rel (%p378) target = $region54
                $region51: #{self_attention_forward.3} parent=46 // loop_body
                  %v384 = vld [vmem:[%s382] sm:$0xff]
                  %385 = vst [vmem:[%s383] sm:$0xff] %v384
                  %v386 = vld [vmem:[%s382 + $0x48] sm:$0xff]
                  %387 = vst [vmem:[%s383 + $0x8] sm:$0xff] %v386
                  %v388 = vld [vmem:[%s382 + $0x90] sm:$0xff]
                  %389 = vst [vmem:[%s383 + $0x10] sm:$0xff] %v388
                  %v390 = vld [vmem:[%s382 + $0xd8] sm:$0xff]
                  %391 = vst [vmem:[%s383 + $0x18] sm:$0xff] %v390
                  %v392 = vld [vmem:[%s382 + $0x120] sm:$0xff]
                  %393 = vst [vmem:[%s383 + $0x20] sm:$0xff] %v392
                  %v394 = vld [vmem:[%s382 + $0x168] sm:$0xff]
                  %395 = vst [vmem:[%s383 + $0x28] sm:$0xff] %v394
                  %v396 = vld [vmem:[%s382 + $0x1b0] sm:$0xff]
                  %397 = vst [vmem:[%s383 + $0x30] sm:$0xff] %v396
                  %v398 = vld [vmem:[%s382 + $0x1f8] sm:$0xff]
                  %399 = vst [vmem:[%s383 + $0x38] sm:$0xff] %v398
                  %v400 = vld [vmem:[%s382 + $0x240] sm:$0xff]
                  %401 = vst [vmem:[%s383 + $0x40] sm:$0xff] %v400
                  %v402 = vld [vmem:[%s382 + $0x288] sm:$0xff]
                  %403 = vst [vmem:[%s383 + $0x48] sm:$0xff] %v402
                  %v404 = vld [vmem:[%s382 + $0x2d0] sm:$0xff]
                  %405 = vst [vmem:[%s383 + $0x50] sm:$0xff] %v404
                  %v406 = vld [vmem:[%s382 + $0x318] sm:$0xff]
                  %407 = vst [vmem:[%s383 + $0x58] sm:$0xff] %v406
                  %v408 = vld [vmem:[%s382 + $0x360] sm:$0xff]
                  %409 = vst [vmem:[%s383 + $0x60] sm:$0xff] %v408
                  %v410 = vld [vmem:[%s382 + $0x3a8] sm:$0xff]
                  %411 = vst [vmem:[%s383 + $0x68] sm:$0xff] %v410
                  %v412 = vld [vmem:[%s382 + $0x3f0] sm:$0xff]
                  %413 = vst [vmem:[%s383 + $0x70] sm:$0xff] %v412
                  %v414 = vld [vmem:[%s382 + $0x438] sm:$0xff]
                  %415 = vst [vmem:[%s383 + $0x78] sm:$0xff] %v414
                  %v416 = vld [vmem:[%s382 + $0x480] sm:$0xff]
                  %417 = vst [vmem:[%s383 + $0x80] sm:$0xff] %v416
                  %v418 = vld [vmem:[%s382 + $0x4c8] sm:$0xff]
                  %419 = vst [vmem:[%s383 + $0x88] sm:$0xff] %v418
                  %v420 = vld [vmem:[%s382 + $0x510] sm:$0xff]
                  %421 = vst [vmem:[%s383 + $0x90] sm:$0xff] %v420
                  %v422 = vld [vmem:[%s382 + $0x558] sm:$0xff]
                  %423 = vst [vmem:[%s383 + $0x98] sm:$0xff] %v422
                  %v424 = vld [vmem:[%s382 + $0x5a0] sm:$0xff]
                  %425 = vst [vmem:[%s383 + $0xa0] sm:$0xff] %v424
                  %v426 = vld [vmem:[%s382 + $0x5e8] sm:$0xff]
                  %427 = vst [vmem:[%s383 + $0xa8] sm:$0xff] %v426
                  %v428 = vld [vmem:[%s382 + $0x630] sm:$0xff]
                  %429 = vst [vmem:[%s383 + $0xb0] sm:$0xff] %v428
                  %v430 = vld [vmem:[%s382 + $0x678] sm:$0xff]
                  %431 = vst [vmem:[%s383 + $0xb8] sm:$0xff] %v430
                  %v432 = vld [vmem:[%s382 + $0x6c0] sm:$0xff]
                  %433 = vst [vmem:[%s383 + $0xc0] sm:$0xff] %v432
                  %v434 = vld [vmem:[%s382 + $0x708] sm:$0xff]
                  %435 = vst [vmem:[%s383 + $0xc8] sm:$0xff] %v434
                  %v436 = vld [vmem:[%s382 + $0x750] sm:$0xff]
                  %437 = vst [vmem:[%s383 + $0xd0] sm:$0xff] %v436
                  %v438 = vld [vmem:[%s382 + $0x798] sm:$0xff]
                  %439 = vst [vmem:[%s383 + $0xd8] sm:$0xff] %v438
                  %v440 = vld [vmem:[%s382 + $0x7e0] sm:$0xff]
                  %441 = vst [vmem:[%s383 + $0xe0] sm:$0xff] %v440
                  %v442 = vld [vmem:[%s382 + $0x828] sm:$0xff]
                  %443 = vst [vmem:[%s383 + $0xe8] sm:$0xff] %v442
                  %v444 = vld [vmem:[%s382 + $0x870] sm:$0xff]
                  %445 = vst [vmem:[%s383 + $0xf0] sm:$0xff] %v444
                  %v446 = vld [vmem:[%s382 + $0x8b8] sm:$0xff]
                  %447 = vst [vmem:[%s383 + $0xf8] sm:$0xff] %v446
                  %v448 = vld [vmem:[%s382 + $0x900] sm:$0xff]
                  %449 = vst [vmem:[%s383 + $0x100] sm:$0xff] %v448
                  %v450 = vld [vmem:[%s382 + $0x948] sm:$0xff]
                  %451 = vst [vmem:[%s383 + $0x108] sm:$0xff] %v450
                  %v452 = vld [vmem:[%s382 + $0x990] sm:$0xff]
                  %453 = vst [vmem:[%s383 + $0x110] sm:$0xff] %v452
                  %v454 = vld [vmem:[%s382 + $0x9d8] sm:$0xff]
                  %455 = vst [vmem:[%s383 + $0x118] sm:$0xff] %v454
                  %v456 = vld [vmem:[%s382 + $0xa20] sm:$0xff]
                  %457 = vst [vmem:[%s383 + $0x120] sm:$0xff] %v456
                  %v458 = vld [vmem:[%s382 + $0xa68] sm:$0xff]
                  %459 = vst [vmem:[%s383 + $0x128] sm:$0xff] %v458
                  %v460 = vld [vmem:[%s382 + $0xab0] sm:$0xff]
                  %461 = vst [vmem:[%s383 + $0x130] sm:$0xff] %v460
                  %v462 = vld [vmem:[%s382 + $0xaf8] sm:$0xff]
                  %463 = vst [vmem:[%s383 + $0x138] sm:$0xff] %v462
                  %v464 = vld [vmem:[%s382 + $0xb40] sm:$0xff]
                  %465 = vst [vmem:[%s383 + $0x140] sm:$0xff] %v464
                  %v466 = vld [vmem:[%s382 + $0xb88] sm:$0xff]
                  %467 = vst [vmem:[%s383 + $0x148] sm:$0xff] %v466
                  %v468 = vld [vmem:[%s382 + $0xbd0] sm:$0xff]
                  %469 = vst [vmem:[%s383 + $0x150] sm:$0xff] %v468
                  %v470 = vld [vmem:[%s382 + $0xc18] sm:$0xff]
                  %471 = vst [vmem:[%s383 + $0x158] sm:$0xff] %v470
                  %v472 = vld [vmem:[%s382 + $0xc60] sm:$0xff]
                  %473 = vst [vmem:[%s383 + $0x160] sm:$0xff] %v472
                  %v474 = vld [vmem:[%s382 + $0xca8] sm:$0xff]
                  %475 = vst [vmem:[%s383 + $0x168] sm:$0xff] %v474
                  %v476 = vld [vmem:[%s382 + $0xcf0] sm:$0xff]
                  %477 = vst [vmem:[%s383 + $0x170] sm:$0xff] %v476
                  %v478 = vld [vmem:[%s382 + $0xd38] sm:$0xff]
                  %479 = vst [vmem:[%s383 + $0x178] sm:$0xff] %v478
                  %v480 = vld [vmem:[%s382 + $0xd80] sm:$0xff]
                  %481 = vst [vmem:[%s383 + $0x180] sm:$0xff] %v480
                  %v482 = vld [vmem:[%s382 + $0xdc8] sm:$0xff]
                  %483 = vst [vmem:[%s383 + $0x188] sm:$0xff] %v482
                  %v484 = vld [vmem:[%s382 + $0xe10] sm:$0xff]
                  %485 = vst [vmem:[%s383 + $0x190] sm:$0xff] %v484
                  %v486 = vld [vmem:[%s382 + $0xe58] sm:$0xff]
                  %487 = vst [vmem:[%s383 + $0x198] sm:$0xff] %v486
                  %v488 = vld [vmem:[%s382 + $0xea0] sm:$0xff]
                  %489 = vst [vmem:[%s383 + $0x1a0] sm:$0xff] %v488
                  %v490 = vld [vmem:[%s382 + $0xee8] sm:$0xff]
                  %491 = vst [vmem:[%s383 + $0x1a8] sm:$0xff] %v490
                  %v492 = vld [vmem:[%s382 + $0xf30] sm:$0xff]
                  %493 = vst [vmem:[%s383 + $0x1b0] sm:$0xff] %v492
                  %v494 = vld [vmem:[%s382 + $0xf78] sm:$0xff]
                  %495 = vst [vmem:[%s383 + $0x1b8] sm:$0xff] %v494
                  %v496 = vld [vmem:[%s382 + $0xfc0] sm:$0xff]
                  %497 = vst [vmem:[%s383 + $0x1c0] sm:$0xff] %v496
                  %v498 = vld [vmem:[%s382 + $0x1008] sm:$0xff]
                  %499 = vst [vmem:[%s383 + $0x1c8] sm:$0xff] %v498
                  %v500 = vld [vmem:[%s382 + $0x1050] sm:$0xff]
                  %501 = vst [vmem:[%s383 + $0x1d0] sm:$0xff] %v500
                  %v502 = vld [vmem:[%s382 + $0x1098] sm:$0xff]
                  %503 = vst [vmem:[%s383 + $0x1d8] sm:$0xff] %v502
                  %v504 = vld [vmem:[%s382 + $0x10e0] sm:$0xff]
                  %505 = vst [vmem:[%s383 + $0x1e0] sm:$0xff] %v504
                  %v506 = vld [vmem:[%s382 + $0x1128] sm:$0xff]
                  %507 = vst [vmem:[%s383 + $0x1e8] sm:$0xff] %v506
                  %v508 = vld [vmem:[%s382 + $0x1170] sm:$0xff]
                  %509 = vst [vmem:[%s383 + $0x1f0] sm:$0xff] %v508
                  %v510 = vld [vmem:[%s382 + $0x11b8] sm:$0xff]
                  %511 = vst [vmem:[%s383 + $0x1f8] sm:$0xff] %v510
                  %v512 = vld [vmem:[%s382 + $0x1200] sm:$0xff]
                  %513 = vst [vmem:[%s383 + $0x200] sm:$0xff] %v512
                  %v514 = vld [vmem:[%s382 + $0x1248] sm:$0xff]
                  %515 = vst [vmem:[%s383 + $0x208] sm:$0xff] %v514
                  %v516 = vld [vmem:[%s382 + $0x1290] sm:$0xff]
                  %517 = vst [vmem:[%s383 + $0x210] sm:$0xff] %v516
                  %v518 = vld [vmem:[%s382 + $0x12d8] sm:$0xff]
                  %519 = vst [vmem:[%s383 + $0x218] sm:$0xff] %v518
                  %v520 = vld [vmem:[%s382 + $0x1320] sm:$0xff]
                  %521 = vst [vmem:[%s383 + $0x220] sm:$0xff] %v520
                  %v522 = vld [vmem:[%s382 + $0x1368] sm:$0xff]
                  %523 = vst [vmem:[%s383 + $0x228] sm:$0xff] %v522
                  %v524 = vld [vmem:[%s382 + $0x13b0] sm:$0xff]
                  %525 = vst [vmem:[%s383 + $0x230] sm:$0xff] %v524
                  %v526 = vld [vmem:[%s382 + $0x13f8] sm:$0xff]
                  %527 = vst [vmem:[%s383 + $0x238] sm:$0xff] %v526
                  %v528 = vld [vmem:[%s382 + $0x1440] sm:$0xff]
                  %529 = vst [vmem:[%s383 + $0x240] sm:$0xff] %v528
                  %v530 = vld [vmem:[%s382 + $0x1488] sm:$0xff]
                  %531 = vst [vmem:[%s383 + $0x248] sm:$0xff] %v530
                  %v532 = vld [vmem:[%s382 + $0x14d0] sm:$0xff]
                  %533 = vst [vmem:[%s383 + $0x250] sm:$0xff] %v532
                  %v534 = vld [vmem:[%s382 + $0x1518] sm:$0xff]
                  %535 = vst [vmem:[%s383 + $0x258] sm:$0xff] %v534
                  %v536 = vld [vmem:[%s382 + $0x1560] sm:$0xff]
                  %537 = vst [vmem:[%s383 + $0x260] sm:$0xff] %v536
                  %v538 = vld [vmem:[%s382 + $0x15a8] sm:$0xff]
                  %539 = vst [vmem:[%s383 + $0x268] sm:$0xff] %v538
                  %v540 = vld [vmem:[%s382 + $0x15f0] sm:$0xff]
                  %541 = vst [vmem:[%s383 + $0x270] sm:$0xff] %v540
                  %v542 = vld [vmem:[%s382 + $0x1638] sm:$0xff]
                  %543 = vst [vmem:[%s383 + $0x278] sm:$0xff] %v542
                  %v544 = vld [vmem:[%s382 + $0x1680] sm:$0xff]
                  %545 = vst [vmem:[%s383 + $0x280] sm:$0xff] %v544
                  %v546 = vld [vmem:[%s382 + $0x16c8] sm:$0xff]
                  %547 = vst [vmem:[%s383 + $0x288] sm:$0xff] %v546
                  %v548 = vld [vmem:[%s382 + $0x1710] sm:$0xff]
                  %549 = vst [vmem:[%s383 + $0x290] sm:$0xff] %v548
                  %v550 = vld [vmem:[%s382 + $0x1758] sm:$0xff]
                  %551 = vst [vmem:[%s383 + $0x298] sm:$0xff] %v550
                  %v552 = vld [vmem:[%s382 + $0x17a0] sm:$0xff]
                  %553 = vst [vmem:[%s383 + $0x2a0] sm:$0xff] %v552
                  %v554 = vld [vmem:[%s382 + $0x17e8] sm:$0xff]
                  %555 = vst [vmem:[%s383 + $0x2a8] sm:$0xff] %v554
                  %v556 = vld [vmem:[%s382 + $0x1830] sm:$0xff]
                  %557 = vst [vmem:[%s383 + $0x2b0] sm:$0xff] %v556
                  %v558 = vld [vmem:[%s382 + $0x1878] sm:$0xff]
                  %559 = vst [vmem:[%s383 + $0x2b8] sm:$0xff] %v558
                  %v560 = vld [vmem:[%s382 + $0x18c0] sm:$0xff]
                  %561 = vst [vmem:[%s383 + $0x2c0] sm:$0xff] %v560
                  %v562 = vld [vmem:[%s382 + $0x1908] sm:$0xff]
                  %563 = vst [vmem:[%s383 + $0x2c8] sm:$0xff] %v562
                  %v564 = vld [vmem:[%s382 + $0x1950] sm:$0xff]
                  %565 = vst [vmem:[%s383 + $0x2d0] sm:$0xff] %v564
                  %v566 = vld [vmem:[%s382 + $0x1998] sm:$0xff]
                  %567 = vst [vmem:[%s383 + $0x2d8] sm:$0xff] %v566
                  %v568 = vld [vmem:[%s382 + $0x19e0] sm:$0xff]
                  %569 = vst [vmem:[%s383 + $0x2e0] sm:$0xff] %v568
                  %v570 = vld [vmem:[%s382 + $0x1a28] sm:$0xff]
                  %571 = vst [vmem:[%s383 + $0x2e8] sm:$0xff] %v570
                  %v572 = vld [vmem:[%s382 + $0x1a70] sm:$0xff]
                  %573 = vst [vmem:[%s383 + $0x2f0] sm:$0xff] %v572
                  %v574 = vld [vmem:[%s382 + $0x1ab8] sm:$0xff]
                  %575 = vst [vmem:[%s383 + $0x2f8] sm:$0xff] %v574
                $region52: #{self_attention_forward.3} parent=46 // loop_footer
                  %s381 = sadd.s32 1, %s377
                $region53: #{self_attention_forward.3} parent=46 // loop_footer_branch
                  %376 = sbr.rel target = $region49
                $region54: #{self_attention_forward.3} parent=46 // loop_exit
                  _
              $region47: #{self_attention_forward.3} parent=31 // pred_fallthru
                _
              // Predicated region
              $region55: #{self_attention_forward.3} parent=31 // pred_check
                _
              $region56: #{self_attention_forward.3} parent=31 // pred_check_branch
                %577 = sbr.rel target = $region58
              $region57: #{self_attention_forward.3} parent=31 // pred_region
                _
              $region58: #{self_attention_forward.3} parent=31 // pred_fallthru
                _
            $region32: #{self_attention_forward.3} parent=27 // pred_fallthru
              _
            // Predicated region
            $region33: #{self_attention_forward.3} parent=27 // pred_check
              _
            $region34: #{self_attention_forward.3} parent=27 // pred_check_branch
              %171 = sbr.rel target = $region36
            $region35: #{self_attention_forward.3} parent=27 // pred_region
              %s173 = ssub.s32 256, 1
              loop: start=0, step=1, limit=1
              $region37: #{self_attention_forward.3} parent=35 // loop_pre_header
                _
              $region38: #{self_attention_forward.3} parent=35 // loop_header
                %s175 = sphi 0, %s179
                %p176 = scmp.ge.s32.totalorder %s175, 1
                %s180 = sphi %s165, %s165
                %s181 = sphi %s162, %s162
              $region39: #{self_attention_forward.3} parent=35 // loop_header_branch
                %178 = sbr.rel (%p176) target = $region43
              $region40: #{self_attention_forward.3} parent=35 // loop_body
                %v182 = vld [vmem:[%s180] sm:%s173]
                %183 = vst [vmem:[%s181] sm:%s173] %v182
                %v184 = vld [vmem:[%s180 + $0x48] sm:%s173]
                %185 = vst [vmem:[%s181 + $0x8] sm:%s173] %v184
                %v186 = vld [vmem:[%s180 + $0x90] sm:%s173]
                %187 = vst [vmem:[%s181 + $0x10] sm:%s173] %v186
                %v188 = vld [vmem:[%s180 + $0xd8] sm:%s173]
                %189 = vst [vmem:[%s181 + $0x18] sm:%s173] %v188
                %v190 = vld [vmem:[%s180 + $0x120] sm:%s173]
                %191 = vst [vmem:[%s181 + $0x20] sm:%s173] %v190
                %v192 = vld [vmem:[%s180 + $0x168] sm:%s173]
                %193 = vst [vmem:[%s181 + $0x28] sm:%s173] %v192
                %v194 = vld [vmem:[%s180 + $0x1b0] sm:%s173]
                %195 = vst [vmem:[%s181 + $0x30] sm:%s173] %v194
                %v196 = vld [vmem:[%s180 + $0x1f8] sm:%s173]
                %197 = vst [vmem:[%s181 + $0x38] sm:%s173] %v196
                %v198 = vld [vmem:[%s180 + $0x240] sm:%s173]
                %199 = vst [vmem:[%s181 + $0x40] sm:%s173] %v198
                %v200 = vld [vmem:[%s180 + $0x288] sm:%s173]
                %201 = vst [vmem:[%s181 + $0x48] sm:%s173] %v200
                %v202 = vld [vmem:[%s180 + $0x2d0] sm:%s173]
                %203 = vst [vmem:[%s181 + $0x50] sm:%s173] %v202
                %v204 = vld [vmem:[%s180 + $0x318] sm:%s173]
                %205 = vst [vmem:[%s181 + $0x58] sm:%s173] %v204
                %v206 = vld [vmem:[%s180 + $0x360] sm:%s173]
                %207 = vst [vmem:[%s181 + $0x60] sm:%s173] %v206
                %v208 = vld [vmem:[%s180 + $0x3a8] sm:%s173]
                %209 = vst [vmem:[%s181 + $0x68] sm:%s173] %v208
                %v210 = vld [vmem:[%s180 + $0x3f0] sm:%s173]
                %211 = vst [vmem:[%s181 + $0x70] sm:%s173] %v210
                %v212 = vld [vmem:[%s180 + $0x438] sm:%s173]
                %213 = vst [vmem:[%s181 + $0x78] sm:%s173] %v212
                %v214 = vld [vmem:[%s180 + $0x480] sm:%s173]
                %215 = vst [vmem:[%s181 + $0x80] sm:%s173] %v214
                %v216 = vld [vmem:[%s180 + $0x4c8] sm:%s173]
                %217 = vst [vmem:[%s181 + $0x88] sm:%s173] %v216
                %v218 = vld [vmem:[%s180 + $0x510] sm:%s173]
                %219 = vst [vmem:[%s181 + $0x90] sm:%s173] %v218
                %v220 = vld [vmem:[%s180 + $0x558] sm:%s173]
                %221 = vst [vmem:[%s181 + $0x98] sm:%s173] %v220
                %v222 = vld [vmem:[%s180 + $0x5a0] sm:%s173]
                %223 = vst [vmem:[%s181 + $0xa0] sm:%s173] %v222
                %v224 = vld [vmem:[%s180 + $0x5e8] sm:%s173]
                %225 = vst [vmem:[%s181 + $0xa8] sm:%s173] %v224
                %v226 = vld [vmem:[%s180 + $0x630] sm:%s173]
                %227 = vst [vmem:[%s181 + $0xb0] sm:%s173] %v226
                %v228 = vld [vmem:[%s180 + $0x678] sm:%s173]
                %229 = vst [vmem:[%s181 + $0xb8] sm:%s173] %v228
                %v230 = vld [vmem:[%s180 + $0x6c0] sm:%s173]
                %231 = vst [vmem:[%s181 + $0xc0] sm:%s173] %v230
                %v232 = vld [vmem:[%s180 + $0x708] sm:%s173]
                %233 = vst [vmem:[%s181 + $0xc8] sm:%s173] %v232
                %v234 = vld [vmem:[%s180 + $0x750] sm:%s173]
                %235 = vst [vmem:[%s181 + $0xd0] sm:%s173] %v234
                %v236 = vld [vmem:[%s180 + $0x798] sm:%s173]
                %237 = vst [vmem:[%s181 + $0xd8] sm:%s173] %v236
                %v238 = vld [vmem:[%s180 + $0x7e0] sm:%s173]
                %239 = vst [vmem:[%s181 + $0xe0] sm:%s173] %v238
                %v240 = vld [vmem:[%s180 + $0x828] sm:%s173]
                %241 = vst [vmem:[%s181 + $0xe8] sm:%s173] %v240
                %v242 = vld [vmem:[%s180 + $0x870] sm:%s173]
                %243 = vst [vmem:[%s181 + $0xf0] sm:%s173] %v242
                %v244 = vld [vmem:[%s180 + $0x8b8] sm:%s173]
                %245 = vst [vmem:[%s181 + $0xf8] sm:%s173] %v244
                %v246 = vld [vmem:[%s180 + $0x900] sm:%s173]
                %247 = vst [vmem:[%s181 + $0x100] sm:%s173] %v246
                %v248 = vld [vmem:[%s180 + $0x948] sm:%s173]
                %249 = vst [vmem:[%s181 + $0x108] sm:%s173] %v248
                %v250 = vld [vmem:[%s180 + $0x990] sm:%s173]
                %251 = vst [vmem:[%s181 + $0x110] sm:%s173] %v250
                %v252 = vld [vmem:[%s180 + $0x9d8] sm:%s173]
                %253 = vst [vmem:[%s181 + $0x118] sm:%s173] %v252
                %v254 = vld [vmem:[%s180 + $0xa20] sm:%s173]
                %255 = vst [vmem:[%s181 + $0x120] sm:%s173] %v254
                %v256 = vld [vmem:[%s180 + $0xa68] sm:%s173]
                %257 = vst [vmem:[%s181 + $0x128] sm:%s173] %v256
                %v258 = vld [vmem:[%s180 + $0xab0] sm:%s173]
                %259 = vst [vmem:[%s181 + $0x130] sm:%s173] %v258
                %v260 = vld [vmem:[%s180 + $0xaf8] sm:%s173]
                %261 = vst [vmem:[%s181 + $0x138] sm:%s173] %v260
                %v262 = vld [vmem:[%s180 + $0xb40] sm:%s173]
                %263 = vst [vmem:[%s181 + $0x140] sm:%s173] %v262
                %v264 = vld [vmem:[%s180 + $0xb88] sm:%s173]
                %265 = vst [vmem:[%s181 + $0x148] sm:%s173] %v264
                %v266 = vld [vmem:[%s180 + $0xbd0] sm:%s173]
                %267 = vst [vmem:[%s181 + $0x150] sm:%s173] %v266
                %v268 = vld [vmem:[%s180 + $0xc18] sm:%s173]
                %269 = vst [vmem:[%s181 + $0x158] sm:%s173] %v268
                %v270 = vld [vmem:[%s180 + $0xc60] sm:%s173]
                %271 = vst [vmem:[%s181 + $0x160] sm:%s173] %v270
                %v272 = vld [vmem:[%s180 + $0xca8] sm:%s173]
                %273 = vst [vmem:[%s181 + $0x168] sm:%s173] %v272
                %v274 = vld [vmem:[%s180 + $0xcf0] sm:%s173]
                %275 = vst [vmem:[%s181 + $0x170] sm:%s173] %v274
                %v276 = vld [vmem:[%s180 + $0xd38] sm:%s173]
                %277 = vst [vmem:[%s181 + $0x178] sm:%s173] %v276
                %v278 = vld [vmem:[%s180 + $0xd80] sm:%s173]
                %279 = vst [vmem:[%s181 + $0x180] sm:%s173] %v278
                %v280 = vld [vmem:[%s180 + $0xdc8] sm:%s173]
                %281 = vst [vmem:[%s181 + $0x188] sm:%s173] %v280
                %v282 = vld [vmem:[%s180 + $0xe10] sm:%s173]
                %283 = vst [vmem:[%s181 + $0x190] sm:%s173] %v282
                %v284 = vld [vmem:[%s180 + $0xe58] sm:%s173]
                %285 = vst [vmem:[%s181 + $0x198] sm:%s173] %v284
                %v286 = vld [vmem:[%s180 + $0xea0] sm:%s173]
                %287 = vst [vmem:[%s181 + $0x1a0] sm:%s173] %v286
                %v288 = vld [vmem:[%s180 + $0xee8] sm:%s173]
                %289 = vst [vmem:[%s181 + $0x1a8] sm:%s173] %v288
                %v290 = vld [vmem:[%s180 + $0xf30] sm:%s173]
                %291 = vst [vmem:[%s181 + $0x1b0] sm:%s173] %v290
                %v292 = vld [vmem:[%s180 + $0xf78] sm:%s173]
                %293 = vst [vmem:[%s181 + $0x1b8] sm:%s173] %v292
                %v294 = vld [vmem:[%s180 + $0xfc0] sm:%s173]
                %295 = vst [vmem:[%s181 + $0x1c0] sm:%s173] %v294
                %v296 = vld [vmem:[%s180 + $0x1008] sm:%s173]
                %297 = vst [vmem:[%s181 + $0x1c8] sm:%s173] %v296
                %v298 = vld [vmem:[%s180 + $0x1050] sm:%s173]
                %299 = vst [vmem:[%s181 + $0x1d0] sm:%s173] %v298
                %v300 = vld [vmem:[%s180 + $0x1098] sm:%s173]
                %301 = vst [vmem:[%s181 + $0x1d8] sm:%s173] %v300
                %v302 = vld [vmem:[%s180 + $0x10e0] sm:%s173]
                %303 = vst [vmem:[%s181 + $0x1e0] sm:%s173] %v302
                %v304 = vld [vmem:[%s180 + $0x1128] sm:%s173]
                %305 = vst [vmem:[%s181 + $0x1e8] sm:%s173] %v304
                %v306 = vld [vmem:[%s180 + $0x1170] sm:%s173]
                %307 = vst [vmem:[%s181 + $0x1f0] sm:%s173] %v306
                %v308 = vld [vmem:[%s180 + $0x11b8] sm:%s173]
                %309 = vst [vmem:[%s181 + $0x1f8] sm:%s173] %v308
                %v310 = vld [vmem:[%s180 + $0x1200] sm:%s173]
                %311 = vst [vmem:[%s181 + $0x200] sm:%s173] %v310
                %v312 = vld [vmem:[%s180 + $0x1248] sm:%s173]
                %313 = vst [vmem:[%s181 + $0x208] sm:%s173] %v312
                %v314 = vld [vmem:[%s180 + $0x1290] sm:%s173]
                %315 = vst [vmem:[%s181 + $0x210] sm:%s173] %v314
                %v316 = vld [vmem:[%s180 + $0x12d8] sm:%s173]
                %317 = vst [vmem:[%s181 + $0x218] sm:%s173] %v316
                %v318 = vld [vmem:[%s180 + $0x1320] sm:%s173]
                %319 = vst [vmem:[%s181 + $0x220] sm:%s173] %v318
                %v320 = vld [vmem:[%s180 + $0x1368] sm:%s173]
                %321 = vst [vmem:[%s181 + $0x228] sm:%s173] %v320
                %v322 = vld [vmem:[%s180 + $0x13b0] sm:%s173]
                %323 = vst [vmem:[%s181 + $0x230] sm:%s173] %v322
                %v324 = vld [vmem:[%s180 + $0x13f8] sm:%s173]
                %325 = vst [vmem:[%s181 + $0x238] sm:%s173] %v324
                %v326 = vld [vmem:[%s180 + $0x1440] sm:%s173]
                %327 = vst [vmem:[%s181 + $0x240] sm:%s173] %v326
                %v328 = vld [vmem:[%s180 + $0x1488] sm:%s173]
                %329 = vst [vmem:[%s181 + $0x248] sm:%s173] %v328
                %v330 = vld [vmem:[%s180 + $0x14d0] sm:%s173]
                %331 = vst [vmem:[%s181 + $0x250] sm:%s173] %v330
                %v332 = vld [vmem:[%s180 + $0x1518] sm:%s173]
                %333 = vst [vmem:[%s181 + $0x258] sm:%s173] %v332
                %v334 = vld [vmem:[%s180 + $0x1560] sm:%s173]
                %335 = vst [vmem:[%s181 + $0x260] sm:%s173] %v334
                %v336 = vld [vmem:[%s180 + $0x15a8] sm:%s173]
                %337 = vst [vmem:[%s181 + $0x268] sm:%s173] %v336
                %v338 = vld [vmem:[%s180 + $0x15f0] sm:%s173]
                %339 = vst [vmem:[%s181 + $0x270] sm:%s173] %v338
                %v340 = vld [vmem:[%s180 + $0x1638] sm:%s173]
                %341 = vst [vmem:[%s181 + $0x278] sm:%s173] %v340
                %v342 = vld [vmem:[%s180 + $0x1680] sm:%s173]
                %343 = vst [vmem:[%s181 + $0x280] sm:%s173] %v342
                %v344 = vld [vmem:[%s180 + $0x16c8] sm:%s173]
                %345 = vst [vmem:[%s181 + $0x288] sm:%s173] %v344
                %v346 = vld [vmem:[%s180 + $0x1710] sm:%s173]
                %347 = vst [vmem:[%s181 + $0x290] sm:%s173] %v346
                %v348 = vld [vmem:[%s180 + $0x1758] sm:%s173]
                %349 = vst [vmem:[%s181 + $0x298] sm:%s173] %v348
                %v350 = vld [vmem:[%s180 + $0x17a0] sm:%s173]
                %351 = vst [vmem:[%s181 + $0x2a0] sm:%s173] %v350
                %v352 = vld [vmem:[%s180 + $0x17e8] sm:%s173]
                %353 = vst [vmem:[%s181 + $0x2a8] sm:%s173] %v352
                %v354 = vld [vmem:[%s180 + $0x1830] sm:%s173]
                %355 = vst [vmem:[%s181 + $0x2b0] sm:%s173] %v354
                %v356 = vld [vmem:[%s180 + $0x1878] sm:%s173]
                %357 = vst [vmem:[%s181 + $0x2b8] sm:%s173] %v356
                %v358 = vld [vmem:[%s180 + $0x18c0] sm:%s173]
                %359 = vst [vmem:[%s181 + $0x2c0] sm:%s173] %v358
                %v360 = vld [vmem:[%s180 + $0x1908] sm:%s173]
                %361 = vst [vmem:[%s181 + $0x2c8] sm:%s173] %v360
                %v362 = vld [vmem:[%s180 + $0x1950] sm:%s173]
                %363 = vst [vmem:[%s181 + $0x2d0] sm:%s173] %v362
                %v364 = vld [vmem:[%s180 + $0x1998] sm:%s173]
                %365 = vst [vmem:[%s181 + $0x2d8] sm:%s173] %v364
                %v366 = vld [vmem:[%s180 + $0x19e0] sm:%s173]
                %367 = vst [vmem:[%s181 + $0x2e0] sm:%s173] %v366
                %v368 = vld [vmem:[%s180 + $0x1a28] sm:%s173]
                %369 = vst [vmem:[%s181 + $0x2e8] sm:%s173] %v368
                %v370 = vld [vmem:[%s180 + $0x1a70] sm:%s173]
                %371 = vst [vmem:[%s181 + $0x2f0] sm:%s173] %v370
                %v372 = vld [vmem:[%s180 + $0x1ab8] sm:%s173]
                %373 = vst [vmem:[%s181 + $0x2f8] sm:%s173] %v372
              $region41: #{self_attention_forward.3} parent=35 // loop_footer
                %s179 = sadd.s32 1, %s175
              $region42: #{self_attention_forward.3} parent=35 // loop_footer_branch
                %174 = sbr.rel target = $region38
              $region43: #{self_attention_forward.3} parent=35 // loop_exit
                _
            $region36: #{self_attention_forward.3} parent=27 // pred_fallthru
              _
          $region28: #{self_attention_forward.3} parent=23 // pred_fallthru
            _
          %578 = vnop
        $region24: #{self_attention_forward.3} parent=15 // pred_fallthru
          _
        // Predicated region
        $region59: #{self_attention_forward.3} parent=15 // pred_check
          %p579 = pneg %p93
        $region60: #{self_attention_forward.3} parent=15 // pred_check_branch
          %581 = sbr.rel (%p579) target = $region62
        $region61: #{self_attention_forward.3} parent=15 // pred_region
          %s582 = smul.u32 2, %s17
          %p583 = scmp.lt.s32.totalorder %s582, 17
          %s584 = scalar_select %p583, %s582, 17
          %s585 = scalar_lea.vmem %s2, %s584
          %s586 = smul.u32 2, %s17
        $region62: #{self_attention_forward.3} parent=15 // pred_fallthru
          _
      $region16: #{self_attention_forward.3} parent=5 // pred_fallthru
        _
      %p587 = scmp.le.s32.totalorder 1, %s9
      %p588 = scmp.lt.s32.totalorder %s9, 19
      %p589 = pnand %p587, %p588
      %p590 = pneg %p589
      // Predicated region
      $region63: #{self_attention_forward.3} parent=5 // pred_check
        _
      $region64: #{self_attention_forward.3} parent=5 // pred_check_branch
        %592 = sbr.rel (%p589) target = $region66
      $region65: #{self_attention_forward.3} parent=5 // pred_region
        %s593 = ssub.s32 %s9, 1
        %s594 = sand.u32 %s60, 1
        %s595 = sand.u32 %s60, 1
        %s596 = smul.addr %s595, 768
        %s597 = scalar_lea.vmem [#allocation2], %s596
        // Predicated region
        $region67: #{self_attention_forward.3} parent=65 // pred_check
          %p598 = pneg %p73
        $region68: #{self_attention_forward.3} parent=65 // pred_check_branch
          %600 = sbr.rel (%p598) target = $region70
        $region69: #{self_attention_forward.3} parent=65 // pred_region
          _
        $region70: #{self_attention_forward.3} parent=65 // pred_fallthru
          _
        %s601 = smul.u32 16, %s18
        %p602 = scmp.lt.s32.totalorder %s601, 31
        %s603 = scalar_select %p602, %s601, 31
        %s604 = smul.addr %s603, 6
        %s605 = smul.addr %s604, 4
        %s606 = scalar_lea.vmem %s0, %s605
        %p607 = pneg %p47
        %p608 = pneg %p44
        %s609 = sand.u32 %s60, 1
        %s610 = sand.u32 %s60, 1
        %s611 = smul.addr %s610, 768
        %s612 = scalar_lea.vmem [#allocation2], %s611
        %p613 = pneg %p73
        %p614 = pneg %p70
        %s615 = smul.u32 2, %s19
        %p616 = scmp.lt.s32.totalorder %s615, 17
        %s617 = scalar_select %p616, %s615, 17
        %s618 = scalar_lea.vmem %s2, %s617
        %p619 = pneg %p99
        %p620 = pneg %p96
        %p621 = pneg %p127
        %p622 = pneg %p124
        %s623 = sand.u32 %s114, 1
        %s624 = sand.u32 %s114, 1
        %s625 = smul.addr %s624, 256
        %s626 = scalar_lea.vmem [#allocation3], %s625
        %s627 = smul.u32 16, %s18
        %p628 = scmp.lt.s32.totalorder %s627, 31
        %s629 = scalar_select %p628, %s627, 31
        %s630 = smul.addr %s629, 6
        %s631 = smul.addr %s630, 4
        %s632 = scalar_lea.vmem %s0, %s631
        %s633 = smul.u32 16, %s18
        %s634 = smul.u32 2, %s19
        %s635 = smul.u32 2, %s19
        %p636 = scmp.lt.s32.totalorder %s635, 17
        %s637 = scalar_select %p636, %s635, 17
        %s638 = scalar_lea.vmem %s2, %s637
        %s639 = smul.u32 2, %s19
        %s640 = smul.u32 16, %s18
        %s641 = smul.u32 2, %s19
        %v642 = vld [vmem:[%s632] sm:$0xff]
        %v643 = vld [vmem:[%s632 + $0x8] sm:$0xff]
        %v644 = vld [vmem:[%s632 + $0x10] sm:$0xff]
        %v645 = vld [vmem:[%s632 + $0x18] sm:$0xff]
        %v646 = vld [vmem:[%s632 + $0x20] sm:$0xff]
        %v647 = vld [vmem:[%s632 + $0x28] sm:$0xff]
        %v648 = vld [vmem:[%s632 + $0x30] sm:$0xff]
        %v649 = vld [vmem:[%s632 + $0x38] sm:$0xff]
        %v650 = vld [vmem:[%s632 + $0x40] sm:$0xff]
        %v651 = vld [vmem:[%s632 + $0x48] sm:$0xff]
        %v652 = vld [vmem:[%s632 + $0x50] sm:$0xff]
        %v653 = vld [vmem:[%s632 + $0x58] sm:$0xff]
        %v654 = vld [vmem:[%s632 + $0x60] sm:$0xff]
        %v655 = vld [vmem:[%s632 + $0x68] sm:$0xff]
        %v656 = vld [vmem:[%s632 + $0x70] sm:$0xff]
        %v657 = vld [vmem:[%s632 + $0x78] sm:$0xff]
        %v658 = vld [vmem:[%s632 + $0x80] sm:$0xff]
        %v659 = vld [vmem:[%s632 + $0x88] sm:$0xff]
        %v660 = vld [vmem:[%s632 + $0x90] sm:$0xff]
        %v661 = vld [vmem:[%s632 + $0x98] sm:$0xff]
        %v662 = vld [vmem:[%s632 + $0xa0] sm:$0xff]
        %v663 = vld [vmem:[%s632 + $0xa8] sm:$0xff]
        %v664 = vld [vmem:[%s632 + $0xb0] sm:$0xff]
        %v665 = vld [vmem:[%s632 + $0xb8] sm:$0xff]
        %v666 = vld [vmem:[%s632 + $0xc0] sm:$0xff]
        %v667 = vld [vmem:[%s632 + $0xc8] sm:$0xff]
        %v668 = vld [vmem:[%s632 + $0xd0] sm:$0xff]
        %v669 = vld [vmem:[%s632 + $0xd8] sm:$0xff]
        %v670 = vld [vmem:[%s632 + $0xe0] sm:$0xff]
        %v671 = vld [vmem:[%s632 + $0xe8] sm:$0xff]
        %v672 = vld [vmem:[%s632 + $0xf0] sm:$0xff]
        %v673 = vld [vmem:[%s632 + $0xf8] sm:$0xff]
        %v674 = vld [vmem:[%s632 + $0x100] sm:$0xff]
        %v675 = vld [vmem:[%s632 + $0x108] sm:$0xff]
        %v676 = vld [vmem:[%s632 + $0x110] sm:$0xff]
        %v677 = vld [vmem:[%s632 + $0x118] sm:$0xff]
        %v678 = vld [vmem:[%s632 + $0x120] sm:$0xff]
        %v679 = vld [vmem:[%s632 + $0x128] sm:$0xff]
        %v680 = vld [vmem:[%s632 + $0x130] sm:$0xff]
        %v681 = vld [vmem:[%s632 + $0x138] sm:$0xff]
        %v682 = vld [vmem:[%s632 + $0x140] sm:$0xff]
        %v683 = vld [vmem:[%s632 + $0x148] sm:$0xff]
        %v684 = vld [vmem:[%s632 + $0x150] sm:$0xff]
        %v685 = vld [vmem:[%s632 + $0x158] sm:$0xff]
        %v686 = vld [vmem:[%s632 + $0x160] sm:$0xff]
        %v687 = vld [vmem:[%s632 + $0x168] sm:$0xff]
        %v688 = vld [vmem:[%s632 + $0x170] sm:$0xff]
        %v689 = vld [vmem:[%s632 + $0x178] sm:$0xff]
        %v690 = vld [vmem:[%s597] sm:$0xff]
        %v691 = vld [vmem:[%s597 + $0x8] sm:$0xff]
        %v692 = vld [vmem:[%s597 + $0x10] sm:$0xff]
        %v693 = vld [vmem:[%s597 + $0x18] sm:$0xff]
        %v694 = vld [vmem:[%s597 + $0x20] sm:$0xff]
        %v695 = vld [vmem:[%s597 + $0x28] sm:$0xff]
        %v696 = vld [vmem:[%s597 + $0x30] sm:$0xff]
        %v697 = vld [vmem:[%s597 + $0x38] sm:$0xff]
        %v698 = vld [vmem:[%s597 + $0x40] sm:$0xff]
        %v699 = vld [vmem:[%s597 + $0x48] sm:$0xff]
        %v700 = vld [vmem:[%s597 + $0x50] sm:$0xff]
        %v701 = vld [vmem:[%s597 + $0x58] sm:$0xff]
        %v702 = vld [vmem:[%s597 + $0x60] sm:$0xff]
        %v703 = vld [vmem:[%s597 + $0x68] sm:$0xff]
        %v704 = vld [vmem:[%s597 + $0x70] sm:$0xff]
        %v705 = vld [vmem:[%s597 + $0x78] sm:$0xff]
        %v706 = vld [vmem:[%s597 + $0x80] sm:$0xff]
        %v707 = vld [vmem:[%s597 + $0x88] sm:$0xff]
        %v708 = vld [vmem:[%s597 + $0x90] sm:$0xff]
        %v709 = vld [vmem:[%s597 + $0x98] sm:$0xff]
        %v710 = vld [vmem:[%s597 + $0xa0] sm:$0xff]
        %v711 = vld [vmem:[%s597 + $0xa8] sm:$0xff]
        %v712 = vld [vmem:[%s597 + $0xb0] sm:$0xff]
        %v713 = vld [vmem:[%s597 + $0xb8] sm:$0xff]
        %v714 = vld [vmem:[%s597 + $0xc0] sm:$0xff]
        %v715 = vld [vmem:[%s597 + $0xc8] sm:$0xff]
        %v716 = vld [vmem:[%s597 + $0xd0] sm:$0xff]
        %v717 = vld [vmem:[%s597 + $0xd8] sm:$0xff]
        %v718 = vld [vmem:[%s597 + $0xe0] sm:$0xff]
        %v719 = vld [vmem:[%s597 + $0xe8] sm:$0xff]
        %v720 = vld [vmem:[%s597 + $0xf0] sm:$0xff]
        %v721 = vld [vmem:[%s597 + $0xf8] sm:$0xff]
        %v722 = vld [vmem:[%s597 + $0x100] sm:$0xff]
        %v723 = vld [vmem:[%s597 + $0x108] sm:$0xff]
        %v724 = vld [vmem:[%s597 + $0x110] sm:$0xff]
        %v725 = vld [vmem:[%s597 + $0x118] sm:$0xff]
        %v726 = vld [vmem:[%s597 + $0x120] sm:$0xff]
        %v727 = vld [vmem:[%s597 + $0x128] sm:$0xff]
        %v728 = vld [vmem:[%s597 + $0x130] sm:$0xff]
        %v729 = vld [vmem:[%s597 + $0x138] sm:$0xff]
        %v730 = vld [vmem:[%s597 + $0x140] sm:$0xff]
        %v731 = vld [vmem:[%s597 + $0x148] sm:$0xff]
        %v732 = vld [vmem:[%s597 + $0x150] sm:$0xff]
        %v733 = vld [vmem:[%s597 + $0x158] sm:$0xff]
        %v734 = vld [vmem:[%s597 + $0x160] sm:$0xff]
        %v735 = vld [vmem:[%s597 + $0x168] sm:$0xff]
        %v736 = vld [vmem:[%s597 + $0x170] sm:$0xff]
        %v737 = vld [vmem:[%s597 + $0x178] sm:$0xff]
        %v738 = vld [vmem:[%s597 + $0x180] sm:$0xff]
        %v739 = vld [vmem:[%s597 + $0x188] sm:$0xff]
        %v740 = vld [vmem:[%s597 + $0x190] sm:$0xff]
        %v741 = vld [vmem:[%s597 + $0x198] sm:$0xff]
        %v742 = vld [vmem:[%s597 + $0x1a0] sm:$0xff]
        %v743 = vld [vmem:[%s597 + $0x1a8] sm:$0xff]
        %v744 = vld [vmem:[%s597 + $0x1b0] sm:$0xff]
        %v745 = vld [vmem:[%s597 + $0x1b8] sm:$0xff]
        %v746 = vld [vmem:[%s597 + $0x1c0] sm:$0xff]
        %v747 = vld [vmem:[%s597 + $0x1c8] sm:$0xff]
        %v748 = vld [vmem:[%s597 + $0x1d0] sm:$0xff]
        %v749 = vld [vmem:[%s597 + $0x1d8] sm:$0xff]
        %v750 = vld [vmem:[%s597 + $0x1e0] sm:$0xff]
        %v751 = vld [vmem:[%s597 + $0x1e8] sm:$0xff]
        %v752 = vld [vmem:[%s597 + $0x1f0] sm:$0xff]
        %v753 = vld [vmem:[%s597 + $0x1f8] sm:$0xff]
        %v754 = vld [vmem:[%s597 + $0x200] sm:$0xff]
        %v755 = vld [vmem:[%s597 + $0x208] sm:$0xff]
        %v756 = vld [vmem:[%s597 + $0x210] sm:$0xff]
        %v757 = vld [vmem:[%s597 + $0x218] sm:$0xff]
        %v758 = vld [vmem:[%s597 + $0x220] sm:$0xff]
        %v759 = vld [vmem:[%s597 + $0x228] sm:$0xff]
        %v760 = vld [vmem:[%s597 + $0x230] sm:$0xff]
        %v761 = vld [vmem:[%s597 + $0x238] sm:$0xff]
        %v762 = vld [vmem:[%s597 + $0x240] sm:$0xff]
        %v763 = vld [vmem:[%s597 + $0x248] sm:$0xff]
        %v764 = vld [vmem:[%s597 + $0x250] sm:$0xff]
        %v765 = vld [vmem:[%s597 + $0x258] sm:$0xff]
        %v766 = vld [vmem:[%s597 + $0x260] sm:$0xff]
        %v767 = vld [vmem:[%s597 + $0x268] sm:$0xff]
        %v768 = vld [vmem:[%s597 + $0x270] sm:$0xff]
        %v769 = vld [vmem:[%s597 + $0x278] sm:$0xff]
        %v770 = vld [vmem:[%s597 + $0x280] sm:$0xff]
        %v771 = vld [vmem:[%s597 + $0x288] sm:$0xff]
        %v772 = vld [vmem:[%s597 + $0x290] sm:$0xff]
        %v773 = vld [vmem:[%s597 + $0x298] sm:$0xff]
        %v774 = vld [vmem:[%s597 + $0x2a0] sm:$0xff]
        %v775 = vld [vmem:[%s597 + $0x2a8] sm:$0xff]
        %v776 = vld [vmem:[%s597 + $0x2b0] sm:$0xff]
        %v777 = vld [vmem:[%s597 + $0x2b8] sm:$0xff]
        %v778 = vld [vmem:[%s597 + $0x2c0] sm:$0xff]
        %v779 = vld [vmem:[%s597 + $0x2c8] sm:$0xff]
        %v780 = vld [vmem:[%s597 + $0x2d0] sm:$0xff]
        %v781 = vld [vmem:[%s597 + $0x2d8] sm:$0xff]
        %v782 = vld [vmem:[%s597 + $0x2e0] sm:$0xff]
        %v783 = vld [vmem:[%s597 + $0x2e8] sm:$0xff]
        %v784 = vld [vmem:[%s597 + $0x2f0] sm:$0xff]
        %v785 = vld [vmem:[%s597 + $0x2f8] sm:$0xff]
        %v786 = vld [vmem:[%s638] sm:$0x3]
        %v788 = vperm.slane %v786, 0
        %v789 = vperm.slane %v786, 1
        %v840 = vunpack.c.l.b16 %v642
        %v841 = vunpack.c.h.b16 %v642
        %v842 = vunpack.c.l.b16 %v643
        %v843 = vunpack.c.h.b16 %v643
        %v844 = vunpack.c.l.b16 %v644
        %v845 = vunpack.c.h.b16 %v644
        %v846 = vunpack.c.l.b16 %v645
        %v847 = vunpack.c.h.b16 %v645
        %v848 = vunpack.c.l.b16 %v646
        %v849 = vunpack.c.h.b16 %v646
        %v850 = vunpack.c.l.b16 %v647
        %v851 = vunpack.c.h.b16 %v647
        %v852 = vunpack.c.l.b16 %v648
        %v853 = vunpack.c.h.b16 %v648
        %v854 = vunpack.c.l.b16 %v649
        %v855 = vunpack.c.h.b16 %v649
        %v856 = vunpack.c.l.b16 %v650
        %v857 = vunpack.c.h.b16 %v650
        %v858 = vunpack.c.l.b16 %v651
        %v859 = vunpack.c.h.b16 %v651
        %v860 = vunpack.c.l.b16 %v652
        %v861 = vunpack.c.h.b16 %v652
        %v862 = vunpack.c.l.b16 %v653
        %v863 = vunpack.c.h.b16 %v653
        %v864 = vunpack.c.l.b16 %v654
        %v865 = vunpack.c.h.b16 %v654
        %v866 = vunpack.c.l.b16 %v655
        %v867 = vunpack.c.h.b16 %v655
        %v868 = vunpack.c.l.b16 %v656
        %v869 = vunpack.c.h.b16 %v656
        %v870 = vunpack.c.l.b16 %v657
        %v871 = vunpack.c.h.b16 %v657
        %v872 = vunpack.c.l.b16 %v658
        %v873 = vunpack.c.h.b16 %v658
        %v874 = vunpack.c.l.b16 %v659
        %v875 = vunpack.c.h.b16 %v659
        %v876 = vunpack.c.l.b16 %v660
        %v877 = vunpack.c.h.b16 %v660
        %v878 = vunpack.c.l.b16 %v661
        %v879 = vunpack.c.h.b16 %v661
        %v880 = vunpack.c.l.b16 %v662
        %v881 = vunpack.c.h.b16 %v662
        %v882 = vunpack.c.l.b16 %v663
        %v883 = vunpack.c.h.b16 %v663
        %v884 = vunpack.c.l.b16 %v664
        %v885 = vunpack.c.h.b16 %v664
        %v886 = vunpack.c.l.b16 %v665
        %v887 = vunpack.c.h.b16 %v665
        %v888 = vunpack.c.l.b16 %v666
        %v889 = vunpack.c.h.b16 %v666
        %v890 = vunpack.c.l.b16 %v667
        %v891 = vunpack.c.h.b16 %v667
        %v892 = vunpack.c.l.b16 %v668
        %v893 = vunpack.c.h.b16 %v668
        %v894 = vunpack.c.l.b16 %v669
        %v895 = vunpack.c.h.b16 %v669
        %v896 = vunpack.c.l.b16 %v670
        %v897 = vunpack.c.h.b16 %v670
        %v898 = vunpack.c.l.b16 %v671
        %v899 = vunpack.c.h.b16 %v671
        %v900 = vunpack.c.l.b16 %v672
        %v901 = vunpack.c.h.b16 %v672
        %v902 = vunpack.c.l.b16 %v673
        %v903 = vunpack.c.h.b16 %v673
        %v904 = vunpack.c.l.b16 %v674
        %v905 = vunpack.c.h.b16 %v674
        %v906 = vunpack.c.l.b16 %v675
        %v907 = vunpack.c.h.b16 %v675
        %v908 = vunpack.c.l.b16 %v676
        %v909 = vunpack.c.h.b16 %v676
        %v910 = vunpack.c.l.b16 %v677
        %v911 = vunpack.c.h.b16 %v677
        %v912 = vunpack.c.l.b16 %v678
        %v913 = vunpack.c.h.b16 %v678
        %v914 = vunpack.c.l.b16 %v679
        %v915 = vunpack.c.h.b16 %v679
        %v916 = vunpack.c.l.b16 %v680
        %v917 = vunpack.c.h.b16 %v680
        %v918 = vunpack.c.l.b16 %v681
        %v919 = vunpack.c.h.b16 %v681
        %v920 = vunpack.c.l.b16 %v682
        %v921 = vunpack.c.h.b16 %v682
        %v922 = vunpack.c.l.b16 %v683
        %v923 = vunpack.c.h.b16 %v683
        %v924 = vunpack.c.l.b16 %v684
        %v925 = vunpack.c.h.b16 %v684
        %v926 = vunpack.c.l.b16 %v685
        %v927 = vunpack.c.h.b16 %v685
        %v928 = vunpack.c.l.b16 %v686
        %v929 = vunpack.c.h.b16 %v686
        %v930 = vunpack.c.l.b16 %v687
        %v931 = vunpack.c.h.b16 %v687
        %v932 = vunpack.c.l.b16 %v688
        %v933 = vunpack.c.h.b16 %v688
        %v934 = vunpack.c.l.b16 %v689
        %v935 = vunpack.c.h.b16 %v689
        %v936 = vpack.c.b16 %v846, %v840
        %v937 = vpack.c.b16 %v847, %v841
        %v938 = vpack.c.b16 %v848, %v842
        %v939 = vpack.c.b16 %v849, %v843
        %v940 = vpack.c.b16 %v850, %v844
        %v941 = vpack.c.b16 %v851, %v845
        %v942 = vpack.c.b16 %v858, %v852
        %v943 = vpack.c.b16 %v859, %v853
        %v944 = vpack.c.b16 %v860, %v854
        %v945 = vpack.c.b16 %v861, %v855
        %v946 = vpack.c.b16 %v862, %v856
        %v947 = vpack.c.b16 %v863, %v857
        %v948 = vpack.c.b16 %v870, %v864
        %v949 = vpack.c.b16 %v871, %v865
        %v950 = vpack.c.b16 %v872, %v866
        %v951 = vpack.c.b16 %v873, %v867
        %v952 = vpack.c.b16 %v874, %v868
        %v953 = vpack.c.b16 %v875, %v869
        %v954 = vpack.c.b16 %v882, %v876
        %v955 = vpack.c.b16 %v883, %v877
        %v956 = vpack.c.b16 %v884, %v878
        %v957 = vpack.c.b16 %v885, %v879
        %v958 = vpack.c.b16 %v886, %v880
        %v959 = vpack.c.b16 %v887, %v881
        %v960 = vpack.c.b16 %v894, %v888
        %v961 = vpack.c.b16 %v895, %v889
        %v962 = vpack.c.b16 %v896, %v890
        %v963 = vpack.c.b16 %v897, %v891
        %v964 = vpack.c.b16 %v898, %v892
        %v965 = vpack.c.b16 %v899, %v893
        %v966 = vpack.c.b16 %v906, %v900
        %v967 = vpack.c.b16 %v907, %v901
        %v968 = vpack.c.b16 %v908, %v902
        %v969 = vpack.c.b16 %v909, %v903
        %v970 = vpack.c.b16 %v910, %v904
        %v971 = vpack.c.b16 %v911, %v905
        %v972 = vpack.c.b16 %v918, %v912
        %v973 = vpack.c.b16 %v919, %v913
        %v974 = vpack.c.b16 %v920, %v914
        %v975 = vpack.c.b16 %v921, %v915
        %v976 = vpack.c.b16 %v922, %v916
        %v977 = vpack.c.b16 %v923, %v917
        %v978 = vpack.c.b16 %v930, %v924
        %v979 = vpack.c.b16 %v931, %v925
        %v980 = vpack.c.b16 %v932, %v926
        %v981 = vpack.c.b16 %v933, %v927
        %v982 = vpack.c.b16 %v934, %v928
        %v983 = vpack.c.b16 %v935, %v929
        %v1128 = vunpack.c.l.b16 %v690
        %v1129 = vunpack.c.h.b16 %v690
        %v1130 = vunpack.c.l.b16 %v691
        %v1131 = vunpack.c.h.b16 %v691
        %v1132 = vunpack.c.l.b16 %v692
        %v1133 = vunpack.c.h.b16 %v692
        %v1134 = vunpack.c.l.b16 %v693
        %v1135 = vunpack.c.h.b16 %v693
        %v1136 = vunpack.c.l.b16 %v694
        %v1137 = vunpack.c.h.b16 %v694
        %v1138 = vunpack.c.l.b16 %v695
        %v1139 = vunpack.c.h.b16 %v695
        %v1140 = vunpack.c.l.b16 %v696
        %v1141 = vunpack.c.h.b16 %v696
        %v1142 = vunpack.c.l.b16 %v697
        %v1143 = vunpack.c.h.b16 %v697
        %v1144 = vunpack.c.l.b16 %v698
        %v1145 = vunpack.c.h.b16 %v698
        %v1146 = vunpack.c.l.b16 %v699
        %v1147 = vunpack.c.h.b16 %v699
        %v1148 = vunpack.c.l.b16 %v700
        %v1149 = vunpack.c.h.b16 %v700
        %v1150 = vunpack.c.l.b16 %v701
        %v1151 = vunpack.c.h.b16 %v701
        %v1152 = vunpack.c.l.b16 %v702
        %v1153 = vunpack.c.h.b16 %v702
        %v1154 = vunpack.c.l.b16 %v703
        %v1155 = vunpack.c.h.b16 %v703
        %v1156 = vunpack.c.l.b16 %v704
        %v1157 = vunpack.c.h.b16 %v704
        %v1158 = vunpack.c.l.b16 %v705
        %v1159 = vunpack.c.h.b16 %v705
        %v1160 = vunpack.c.l.b16 %v706
        %v1161 = vunpack.c.h.b16 %v706
        %v1162 = vunpack.c.l.b16 %v707
        %v1163 = vunpack.c.h.b16 %v707
        %v1164 = vunpack.c.l.b16 %v708
        %v1165 = vunpack.c.h.b16 %v708
        %v1166 = vunpack.c.l.b16 %v709
        %v1167 = vunpack.c.h.b16 %v709
        %v1168 = vunpack.c.l.b16 %v710
        %v1169 = vunpack.c.h.b16 %v710
        %v1170 = vunpack.c.l.b16 %v711
        %v1171 = vunpack.c.h.b16 %v711
        %v1172 = vunpack.c.l.b16 %v712
        %v1173 = vunpack.c.h.b16 %v712
        %v1174 = vunpack.c.l.b16 %v713
        %v1175 = vunpack.c.h.b16 %v713
        %v1176 = vunpack.c.l.b16 %v714
        %v1177 = vunpack.c.h.b16 %v714
        %v1178 = vunpack.c.l.b16 %v715
        %v1179 = vunpack.c.h.b16 %v715
        %v1180 = vunpack.c.l.b16 %v716
        %v1181 = vunpack.c.h.b16 %v716
        %v1182 = vunpack.c.l.b16 %v717
        %v1183 = vunpack.c.h.b16 %v717
        %v1184 = vunpack.c.l.b16 %v718
        %v1185 = vunpack.c.h.b16 %v718
        %v1186 = vunpack.c.l.b16 %v719
        %v1187 = vunpack.c.h.b16 %v719
        %v1188 = vunpack.c.l.b16 %v720
        %v1189 = vunpack.c.h.b16 %v720
        %v1190 = vunpack.c.l.b16 %v721
        %v1191 = vunpack.c.h.b16 %v721
        %v1192 = vunpack.c.l.b16 %v722
        %v1193 = vunpack.c.h.b16 %v722
        %v1194 = vunpack.c.l.b16 %v723
        %v1195 = vunpack.c.h.b16 %v723
        %v1196 = vunpack.c.l.b16 %v724
        %v1197 = vunpack.c.h.b16 %v724
        %v1198 = vunpack.c.l.b16 %v725
        %v1199 = vunpack.c.h.b16 %v725
        %v1200 = vunpack.c.l.b16 %v726
        %v1201 = vunpack.c.h.b16 %v726
        %v1202 = vunpack.c.l.b16 %v727
        %v1203 = vunpack.c.h.b16 %v727
        %v1204 = vunpack.c.l.b16 %v728
        %v1205 = vunpack.c.h.b16 %v728
        %v1206 = vunpack.c.l.b16 %v729
        %v1207 = vunpack.c.h.b16 %v729
        %v1208 = vunpack.c.l.b16 %v730
        %v1209 = vunpack.c.h.b16 %v730
        %v1210 = vunpack.c.l.b16 %v731
        %v1211 = vunpack.c.h.b16 %v731
        %v1212 = vunpack.c.l.b16 %v732
        %v1213 = vunpack.c.h.b16 %v732
        %v1214 = vunpack.c.l.b16 %v733
        %v1215 = vunpack.c.h.b16 %v733
        %v1216 = vunpack.c.l.b16 %v734
        %v1217 = vunpack.c.h.b16 %v734
        %v1218 = vunpack.c.l.b16 %v735
        %v1219 = vunpack.c.h.b16 %v735
        %v1220 = vunpack.c.l.b16 %v736
        %v1221 = vunpack.c.h.b16 %v736
        %v1222 = vunpack.c.l.b16 %v737
        %v1223 = vunpack.c.h.b16 %v737
        %v1224 = vunpack.c.l.b16 %v738
        %v1225 = vunpack.c.h.b16 %v738
        %v1226 = vunpack.c.l.b16 %v739
        %v1227 = vunpack.c.h.b16 %v739
        %v1228 = vunpack.c.l.b16 %v740
        %v1229 = vunpack.c.h.b16 %v740
        %v1230 = vunpack.c.l.b16 %v741
        %v1231 = vunpack.c.h.b16 %v741
        %v1232 = vunpack.c.l.b16 %v742
        %v1233 = vunpack.c.h.b16 %v742
        %v1234 = vunpack.c.l.b16 %v743
        %v1235 = vunpack.c.h.b16 %v743
        %v1236 = vunpack.c.l.b16 %v744
        %v1237 = vunpack.c.h.b16 %v744
        %v1238 = vunpack.c.l.b16 %v745
        %v1239 = vunpack.c.h.b16 %v745
        %v1240 = vunpack.c.l.b16 %v746
        %v1241 = vunpack.c.h.b16 %v746
        %v1242 = vunpack.c.l.b16 %v747
        %v1243 = vunpack.c.h.b16 %v747
        %v1244 = vunpack.c.l.b16 %v748
        %v1245 = vunpack.c.h.b16 %v748
        %v1246 = vunpack.c.l.b16 %v749
        %v1247 = vunpack.c.h.b16 %v749
        %v1248 = vunpack.c.l.b16 %v750
        %v1249 = vunpack.c.h.b16 %v750
        %v1250 = vunpack.c.l.b16 %v751
        %v1251 = vunpack.c.h.b16 %v751
        %v1252 = vunpack.c.l.b16 %v752
        %v1253 = vunpack.c.h.b16 %v752
        %v1254 = vunpack.c.l.b16 %v753
        %v1255 = vunpack.c.h.b16 %v753
        %v1256 = vunpack.c.l.b16 %v754
        %v1257 = vunpack.c.h.b16 %v754
        %v1258 = vunpack.c.l.b16 %v755
        %v1259 = vunpack.c.h.b16 %v755
        %v1260 = vunpack.c.l.b16 %v756
        %v1261 = vunpack.c.h.b16 %v756
        %v1262 = vunpack.c.l.b16 %v757
        %v1263 = vunpack.c.h.b16 %v757
        %v1264 = vunpack.c.l.b16 %v758
        %v1265 = vunpack.c.h.b16 %v758
        %v1266 = vunpack.c.l.b16 %v759
        %v1267 = vunpack.c.h.b16 %v759
        %v1268 = vunpack.c.l.b16 %v760
        %v1269 = vunpack.c.h.b16 %v760
        %v1270 = vunpack.c.l.b16 %v761
        %v1271 = vunpack.c.h.b16 %v761
        %v1272 = vunpack.c.l.b16 %v762
        %v1273 = vunpack.c.h.b16 %v762
        %v1274 = vunpack.c.l.b16 %v763
        %v1275 = vunpack.c.h.b16 %v763
        %v1276 = vunpack.c.l.b16 %v764
        %v1277 = vunpack.c.h.b16 %v764
        %v1278 = vunpack.c.l.b16 %v765
        %v1279 = vunpack.c.h.b16 %v765
        %v1280 = vunpack.c.l.b16 %v766
        %v1281 = vunpack.c.h.b16 %v766
        %v1282 = vunpack.c.l.b16 %v767
        %v1283 = vunpack.c.h.b16 %v767
        %v1284 = vunpack.c.l.b16 %v768
        %v1285 = vunpack.c.h.b16 %v768
        %v1286 = vunpack.c.l.b16 %v769
        %v1287 = vunpack.c.h.b16 %v769
        %v1288 = vunpack.c.l.b16 %v770
        %v1289 = vunpack.c.h.b16 %v770
        %v1290 = vunpack.c.l.b16 %v771
        %v1291 = vunpack.c.h.b16 %v771
        %v1292 = vunpack.c.l.b16 %v772
        %v1293 = vunpack.c.h.b16 %v772
        %v1294 = vunpack.c.l.b16 %v773
        %v1295 = vunpack.c.h.b16 %v773
        %v1296 = vunpack.c.l.b16 %v774
        %v1297 = vunpack.c.h.b16 %v774
        %v1298 = vunpack.c.l.b16 %v775
        %v1299 = vunpack.c.h.b16 %v775
        %v1300 = vunpack.c.l.b16 %v776
        %v1301 = vunpack.c.h.b16 %v776
        %v1302 = vunpack.c.l.b16 %v777
        %v1303 = vunpack.c.h.b16 %v777
        %v1304 = vunpack.c.l.b16 %v778
        %v1305 = vunpack.c.h.b16 %v778
        %v1306 = vunpack.c.l.b16 %v779
        %v1307 = vunpack.c.h.b16 %v779
        %v1308 = vunpack.c.l.b16 %v780
        %v1309 = vunpack.c.h.b16 %v780
        %v1310 = vunpack.c.l.b16 %v781
        %v1311 = vunpack.c.h.b16 %v781
        %v1312 = vunpack.c.l.b16 %v782
        %v1313 = vunpack.c.h.b16 %v782
        %v1314 = vunpack.c.l.b16 %v783
        %v1315 = vunpack.c.h.b16 %v783
        %v1316 = vunpack.c.l.b16 %v784
        %v1317 = vunpack.c.h.b16 %v784
        %v1318 = vunpack.c.l.b16 %v785
        %v1319 = vunpack.c.h.b16 %v785
        %v1320 = vpack.c.b16 %v1130, %v1128
        %v1321 = vpack.c.b16 %v1131, %v1129
        %v1322 = vpack.c.b16 %v1134, %v1132
        %v1323 = vpack.c.b16 %v1135, %v1133
        %v1324 = vpack.c.b16 %v1138, %v1136
        %v1325 = vpack.c.b16 %v1139, %v1137
        %v1326 = vpack.c.b16 %v1142, %v1140
        %v1327 = vpack.c.b16 %v1143, %v1141
        %v1328 = vpack.c.b16 %v1146, %v1144
        %v1329 = vpack.c.b16 %v1147, %v1145
        %v1330 = vpack.c.b16 %v1150, %v1148
        %v1331 = vpack.c.b16 %v1151, %v1149
        %v1332 = vpack.c.b16 %v1154, %v1152
        %v1333 = vpack.c.b16 %v1155, %v1153
        %v1334 = vpack.c.b16 %v1158, %v1156
        %v1335 = vpack.c.b16 %v1159, %v1157
        %v1336 = vpack.c.b16 %v1162, %v1160
        %v1337 = vpack.c.b16 %v1163, %v1161
        %v1338 = vpack.c.b16 %v1166, %v1164
        %v1339 = vpack.c.b16 %v1167, %v1165
        %v1340 = vpack.c.b16 %v1170, %v1168
        %v1341 = vpack.c.b16 %v1171, %v1169
        %v1342 = vpack.c.b16 %v1174, %v1172
        %v1343 = vpack.c.b16 %v1175, %v1173
        %v1344 = vpack.c.b16 %v1178, %v1176
        %v1345 = vpack.c.b16 %v1179, %v1177
        %v1346 = vpack.c.b16 %v1182, %v1180
        %v1347 = vpack.c.b16 %v1183, %v1181
        %v1348 = vpack.c.b16 %v1186, %v1184
        %v1349 = vpack.c.b16 %v1187, %v1185
        %v1350 = vpack.c.b16 %v1190, %v1188
        %v1351 = vpack.c.b16 %v1191, %v1189
        %v1352 = vpack.c.b16 %v1194, %v1192
        %v1353 = vpack.c.b16 %v1195, %v1193
        %v1354 = vpack.c.b16 %v1198, %v1196
        %v1355 = vpack.c.b16 %v1199, %v1197
        %v1356 = vpack.c.b16 %v1202, %v1200
        %v1357 = vpack.c.b16 %v1203, %v1201
        %v1358 = vpack.c.b16 %v1206, %v1204
        %v1359 = vpack.c.b16 %v1207, %v1205
        %v1360 = vpack.c.b16 %v1210, %v1208
        %v1361 = vpack.c.b16 %v1211, %v1209
        %v1362 = vpack.c.b16 %v1214, %v1212
        %v1363 = vpack.c.b16 %v1215, %v1213
        %v1364 = vpack.c.b16 %v1218, %v1216
        %v1365 = vpack.c.b16 %v1219, %v1217
        %v1366 = vpack.c.b16 %v1222, %v1220
        %v1367 = vpack.c.b16 %v1223, %v1221
        %v1368 = vpack.c.b16 %v1226, %v1224
        %v1369 = vpack.c.b16 %v1227, %v1225
        %v1370 = vpack.c.b16 %v1230, %v1228
        %v1371 = vpack.c.b16 %v1231, %v1229
        %v1372 = vpack.c.b16 %v1234, %v1232
        %v1373 = vpack.c.b16 %v1235, %v1233
        %v1374 = vpack.c.b16 %v1238, %v1236
        %v1375 = vpack.c.b16 %v1239, %v1237
        %v1376 = vpack.c.b16 %v1242, %v1240
        %v1377 = vpack.c.b16 %v1243, %v1241
        %v1378 = vpack.c.b16 %v1246, %v1244
        %v1379 = vpack.c.b16 %v1247, %v1245
        %v1380 = vpack.c.b16 %v1250, %v1248
        %v1381 = vpack.c.b16 %v1251, %v1249
        %v1382 = vpack.c.b16 %v1254, %v1252
        %v1383 = vpack.c.b16 %v1255, %v1253
        %v1384 = vpack.c.b16 %v1258, %v1256
        %v1385 = vpack.c.b16 %v1259, %v1257
        %v1386 = vpack.c.b16 %v1262, %v1260
        %v1387 = vpack.c.b16 %v1263, %v1261
        %v1388 = vpack.c.b16 %v1266, %v1264
        %v1389 = vpack.c.b16 %v1267, %v1265
        %v1390 = vpack.c.b16 %v1270, %v1268
        %v1391 = vpack.c.b16 %v1271, %v1269
        %v1392 = vpack.c.b16 %v1274, %v1272
        %v1393 = vpack.c.b16 %v1275, %v1273
        %v1394 = vpack.c.b16 %v1278, %v1276
        %v1395 = vpack.c.b16 %v1279, %v1277
        %v1396 = vpack.c.b16 %v1282, %v1280
        %v1397 = vpack.c.b16 %v1283, %v1281
        %v1398 = vpack.c.b16 %v1286, %v1284
        %v1399 = vpack.c.b16 %v1287, %v1285
        %v1400 = vpack.c.b16 %v1290, %v1288
        %v1401 = vpack.c.b16 %v1291, %v1289
        %v1402 = vpack.c.b16 %v1294, %v1292
        %v1403 = vpack.c.b16 %v1295, %v1293
        %v1404 = vpack.c.b16 %v1298, %v1296
        %v1405 = vpack.c.b16 %v1299, %v1297
        %v1406 = vpack.c.b16 %v1302, %v1300
        %v1407 = vpack.c.b16 %v1303, %v1301
        %v1408 = vpack.c.b16 %v1306, %v1304
        %v1409 = vpack.c.b16 %v1307, %v1305
        %v1410 = vpack.c.b16 %v1310, %v1308
        %v1411 = vpack.c.b16 %v1311, %v1309
        %v1412 = vpack.c.b16 %v1314, %v1312
        %v1413 = vpack.c.b16 %v1315, %v1313
        %v1414 = vpack.c.b16 %v1318, %v1316
        %v1415 = vpack.c.b16 %v1319, %v1317
        %1512 = vmatpush.bf16.msra.mxu0 %v1334
        %1513 = vmatpush.bf16.msra.mxu0 %v1332
        %1514 = vmatpush.bf16.msra.mxu0 %v1330
        %1515 = vmatpush.bf16.msra.mxu0 %v1328
        %1516 = vmatpush.bf16.msra.mxu0 %v1326
        %1517 = vmatpush.bf16.msra.mxu0 %v1324
        %1518 = vmatpush.bf16.msra.mxu0 %v1322
        %1519 = vmatpush.bf16.msra.mxu0 %v1320
        %1520 = vmatmul.bf16.gmra.mxu0 %v936
        %v1521 = vpop.f32.mrf.mxu0
        %v1522 = vadd.f32 %v788, %v1521
        %v1523 = vpop.f32.mrf.mxu0
        %v1524 = vadd.f32 %v788, %v1523
        %1525 = vmatmul.bf16.gmra.mxu0 %v942
        %v1526 = vpop.f32.mrf.mxu0
        %v1527 = vadd.f32 %v788, %v1526
        %v1528 = vpop.f32.mrf.mxu0
        %v1529 = vadd.f32 %v788, %v1528
        %1530 = vmatmul.bf16.gmra.mxu0 %v948
        %v1531 = vpop.f32.mrf.mxu0
        %v1532 = vadd.f32 %v788, %v1531
        %v1533 = vpop.f32.mrf.mxu0
        %v1534 = vadd.f32 %v788, %v1533
        %1535 = vmatmul.bf16.gmra.mxu0 %v954
        %v1536 = vpop.f32.mrf.mxu0
        %v1537 = vadd.f32 %v788, %v1536
        %v1538 = vpop.f32.mrf.mxu0
        %v1539 = vadd.f32 %v788, %v1538
        %1540 = vmatmul.bf16.gmra.mxu0 %v960
        %v1541 = vpop.f32.mrf.mxu0
        %v1542 = vadd.f32 %v788, %v1541
        %v1543 = vpop.f32.mrf.mxu0
        %v1544 = vadd.f32 %v788, %v1543
        %1545 = vmatmul.bf16.gmra.mxu0 %v966
        %v1546 = vpop.f32.mrf.mxu0
        %v1547 = vadd.f32 %v788, %v1546
        %v1548 = vpop.f32.mrf.mxu0
        %v1549 = vadd.f32 %v788, %v1548
        %1550 = vmatmul.bf16.gmra.mxu0 %v972
        %v1551 = vpop.f32.mrf.mxu0
        %v1552 = vadd.f32 %v788, %v1551
        %v1553 = vpop.f32.mrf.mxu0
        %v1554 = vadd.f32 %v788, %v1553
        %1555 = vmatmul.bf16.gmra.mxu0 %v978
        %v1556 = vpop.f32.mrf.mxu0
        %v1557 = vadd.f32 %v788, %v1556
        %v1558 = vpop.f32.mrf.mxu0
        %v1559 = vadd.f32 %v788, %v1558
        %1560 = vdwg.mxu0
        %1561 = vmatpush.bf16.msra.mxu0 %v1350
        %1562 = vmatpush.bf16.msra.mxu0 %v1348
        %1563 = vmatpush.bf16.msra.mxu0 %v1346
        %1564 = vmatpush.bf16.msra.mxu0 %v1344
        %1565 = vmatpush.bf16.msra.mxu0 %v1342
        %1566 = vmatpush.bf16.msra.mxu0 %v1340
        %1567 = vmatpush.bf16.msra.mxu0 %v1338
        %1568 = vmatpush.bf16.msra.mxu0 %v1336
        %1569 = vmatmul.bf16.gmra.mxu0 %v937
        %v1570 = vpop.f32.mrf.mxu0
        %v1571 = vadd.f32 %v1522, %v1570
        %v1572 = vpop.f32.mrf.mxu0
        %v1573 = vadd.f32 %v1524, %v1572
        %1574 = vmatmul.bf16.gmra.mxu0 %v943
        %v1575 = vpop.f32.mrf.mxu0
        %v1576 = vadd.f32 %v1527, %v1575
        %v1577 = vpop.f32.mrf.mxu0
        %v1578 = vadd.f32 %v1529, %v1577
        %1579 = vmatmul.bf16.gmra.mxu0 %v949
        %v1580 = vpop.f32.mrf.mxu0
        %v1581 = vadd.f32 %v1532, %v1580
        %v1582 = vpop.f32.mrf.mxu0
        %v1583 = vadd.f32 %v1534, %v1582
        %1584 = vmatmul.bf16.gmra.mxu0 %v955
        %v1585 = vpop.f32.mrf.mxu0
        %v1586 = vadd.f32 %v1537, %v1585
        %v1587 = vpop.f32.mrf.mxu0
        %v1588 = vadd.f32 %v1539, %v1587
        %1589 = vmatmul.bf16.gmra.mxu0 %v961
        %v1590 = vpop.f32.mrf.mxu0
        %v1591 = vadd.f32 %v1542, %v1590
        %v1592 = vpop.f32.mrf.mxu0
        %v1593 = vadd.f32 %v1544, %v1592
        %1594 = vmatmul.bf16.gmra.mxu0 %v967
        %v1595 = vpop.f32.mrf.mxu0
        %v1596 = vadd.f32 %v1547, %v1595
        %v1597 = vpop.f32.mrf.mxu0
        %v1598 = vadd.f32 %v1549, %v1597
        %1599 = vmatmul.bf16.gmra.mxu0 %v973
        %v1600 = vpop.f32.mrf.mxu0
        %v1601 = vadd.f32 %v1552, %v1600
        %v1602 = vpop.f32.mrf.mxu0
        %v1603 = vadd.f32 %v1554, %v1602
        %1604 = vmatmul.bf16.gmra.mxu0 %v979
        %v1605 = vpop.f32.mrf.mxu0
        %v1606 = vadd.f32 %v1557, %v1605
        %v1607 = vpop.f32.mrf.mxu0
        %v1608 = vadd.f32 %v1559, %v1607
        %1609 = vdwg.mxu0
        %1610 = vmatpush.bf16.msra.mxu0 %v1366
        %1611 = vmatpush.bf16.msra.mxu0 %v1364
        %1612 = vmatpush.bf16.msra.mxu0 %v1362
        %1613 = vmatpush.bf16.msra.mxu0 %v1360
        %1614 = vmatpush.bf16.msra.mxu0 %v1358
        %1615 = vmatpush.bf16.msra.mxu0 %v1356
        %1616 = vmatpush.bf16.msra.mxu0 %v1354
        %1617 = vmatpush.bf16.msra.mxu0 %v1352
        %1618 = vmatmul.bf16.gmra.mxu0 %v938
        %v1619 = vpop.f32.mrf.mxu0
        %v1620 = vadd.f32 %v1571, %v1619
        %v1621 = vpop.f32.mrf.mxu0
        %v1622 = vadd.f32 %v1573, %v1621
        %1623 = vmatmul.bf16.gmra.mxu0 %v944
        %v1624 = vpop.f32.mrf.mxu0
        %v1625 = vadd.f32 %v1576, %v1624
        %v1626 = vpop.f32.mrf.mxu0
        %v1627 = vadd.f32 %v1578, %v1626
        %1628 = vmatmul.bf16.gmra.mxu0 %v950
        %v1629 = vpop.f32.mrf.mxu0
        %v1630 = vadd.f32 %v1581, %v1629
        %v1631 = vpop.f32.mrf.mxu0
        %v1632 = vadd.f32 %v1583, %v1631
        %1633 = vmatmul.bf16.gmra.mxu0 %v956
        %v1634 = vpop.f32.mrf.mxu0
        %v1635 = vadd.f32 %v1586, %v1634
        %v1636 = vpop.f32.mrf.mxu0
        %v1637 = vadd.f32 %v1588, %v1636
        %1638 = vmatmul.bf16.gmra.mxu0 %v962
        %v1639 = vpop.f32.mrf.mxu0
        %v1640 = vadd.f32 %v1591, %v1639
        %v1641 = vpop.f32.mrf.mxu0
        %v1642 = vadd.f32 %v1593, %v1641
        %1643 = vmatmul.bf16.gmra.mxu0 %v968
        %v1644 = vpop.f32.mrf.mxu0
        %v1645 = vadd.f32 %v1596, %v1644
        %v1646 = vpop.f32.mrf.mxu0
        %v1647 = vadd.f32 %v1598, %v1646
        %1648 = vmatmul.bf16.gmra.mxu0 %v974
        %v1649 = vpop.f32.mrf.mxu0
        %v1650 = vadd.f32 %v1601, %v1649
        %v1651 = vpop.f32.mrf.mxu0
        %v1652 = vadd.f32 %v1603, %v1651
        %1653 = vmatmul.bf16.gmra.mxu0 %v980
        %v1654 = vpop.f32.mrf.mxu0
        %v1655 = vadd.f32 %v1606, %v1654
        %v1656 = vpop.f32.mrf.mxu0
        %v1657 = vadd.f32 %v1608, %v1656
        %1658 = vdwg.mxu0
        %1659 = vmatpush.bf16.msra.mxu0 %v1382
        %1660 = vmatpush.bf16.msra.mxu0 %v1380
        %1661 = vmatpush.bf16.msra.mxu0 %v1378
        %1662 = vmatpush.bf16.msra.mxu0 %v1376
        %1663 = vmatpush.bf16.msra.mxu0 %v1374
        %1664 = vmatpush.bf16.msra.mxu0 %v1372
        %1665 = vmatpush.bf16.msra.mxu0 %v1370
        %1666 = vmatpush.bf16.msra.mxu0 %v1368
        %1667 = vmatmul.bf16.gmra.mxu0 %v939
        %v1668 = vpop.f32.mrf.mxu0
        %v1669 = vadd.f32 %v1620, %v1668
        %v1670 = vpop.f32.mrf.mxu0
        %v1671 = vadd.f32 %v1622, %v1670
        %1672 = vmatmul.bf16.gmra.mxu0 %v945
        %v1673 = vpop.f32.mrf.mxu0
        %v1674 = vadd.f32 %v1625, %v1673
        %v1675 = vpop.f32.mrf.mxu0
        %v1676 = vadd.f32 %v1627, %v1675
        %1677 = vmatmul.bf16.gmra.mxu0 %v951
        %v1678 = vpop.f32.mrf.mxu0
        %v1679 = vadd.f32 %v1630, %v1678
        %v1680 = vpop.f32.mrf.mxu0
        %v1681 = vadd.f32 %v1632, %v1680
        %1682 = vmatmul.bf16.gmra.mxu0 %v957
        %v1683 = vpop.f32.mrf.mxu0
        %v1684 = vadd.f32 %v1635, %v1683
        %v1685 = vpop.f32.mrf.mxu0
        %v1686 = vadd.f32 %v1637, %v1685
        %1687 = vmatmul.bf16.gmra.mxu0 %v963
        %v1688 = vpop.f32.mrf.mxu0
        %v1689 = vadd.f32 %v1640, %v1688
        %v1690 = vpop.f32.mrf.mxu0
        %v1691 = vadd.f32 %v1642, %v1690
        %1692 = vmatmul.bf16.gmra.mxu0 %v969
        %v1693 = vpop.f32.mrf.mxu0
        %v1694 = vadd.f32 %v1645, %v1693
        %v1695 = vpop.f32.mrf.mxu0
        %v1696 = vadd.f32 %v1647, %v1695
        %1697 = vmatmul.bf16.gmra.mxu0 %v975
        %v1698 = vpop.f32.mrf.mxu0
        %v1699 = vadd.f32 %v1650, %v1698
        %v1700 = vpop.f32.mrf.mxu0
        %v1701 = vadd.f32 %v1652, %v1700
        %1702 = vmatmul.bf16.gmra.mxu0 %v981
        %v1703 = vpop.f32.mrf.mxu0
        %v1704 = vadd.f32 %v1655, %v1703
        %v1705 = vpop.f32.mrf.mxu0
        %v1706 = vadd.f32 %v1657, %v1705
        %1707 = vdwg.mxu0
        %1708 = vmatpush.bf16.msra.mxu0 %v1398
        %1709 = vmatpush.bf16.msra.mxu0 %v1396
        %1710 = vmatpush.bf16.msra.mxu0 %v1394
        %1711 = vmatpush.bf16.msra.mxu0 %v1392
        %1712 = vmatpush.bf16.msra.mxu0 %v1390
        %1713 = vmatpush.bf16.msra.mxu0 %v1388
        %1714 = vmatpush.bf16.msra.mxu0 %v1386
        %1715 = vmatpush.bf16.msra.mxu0 %v1384
        %1716 = vmatmul.bf16.gmra.mxu0 %v940
        %v1717 = vpop.f32.mrf.mxu0
        %v1718 = vadd.f32 %v1669, %v1717
        %v1719 = vpop.f32.mrf.mxu0
        %v1720 = vadd.f32 %v1671, %v1719
        %1721 = vmatmul.bf16.gmra.mxu0 %v946
        %v1722 = vpop.f32.mrf.mxu0
        %v1723 = vadd.f32 %v1674, %v1722
        %v1724 = vpop.f32.mrf.mxu0
        %v1725 = vadd.f32 %v1676, %v1724
        %1726 = vmatmul.bf16.gmra.mxu0 %v952
        %v1727 = vpop.f32.mrf.mxu0
        %v1728 = vadd.f32 %v1679, %v1727
        %v1729 = vpop.f32.mrf.mxu0
        %v1730 = vadd.f32 %v1681, %v1729
        %1731 = vmatmul.bf16.gmra.mxu0 %v958
        %v1732 = vpop.f32.mrf.mxu0
        %v1733 = vadd.f32 %v1684, %v1732
        %v1734 = vpop.f32.mrf.mxu0
        %v1735 = vadd.f32 %v1686, %v1734
        %1736 = vmatmul.bf16.gmra.mxu0 %v964
        %v1737 = vpop.f32.mrf.mxu0
        %v1738 = vadd.f32 %v1689, %v1737
        %v1739 = vpop.f32.mrf.mxu0
        %v1740 = vadd.f32 %v1691, %v1739
        %1741 = vmatmul.bf16.gmra.mxu0 %v970
        %v1742 = vpop.f32.mrf.mxu0
        %v1743 = vadd.f32 %v1694, %v1742
        %v1744 = vpop.f32.mrf.mxu0
        %v1745 = vadd.f32 %v1696, %v1744
        %1746 = vmatmul.bf16.gmra.mxu0 %v976
        %v1747 = vpop.f32.mrf.mxu0
        %v1748 = vadd.f32 %v1699, %v1747
        %v1749 = vpop.f32.mrf.mxu0
        %v1750 = vadd.f32 %v1701, %v1749
        %1751 = vmatmul.bf16.gmra.mxu0 %v982
        %v1752 = vpop.f32.mrf.mxu0
        %v1753 = vadd.f32 %v1704, %v1752
        %v1754 = vpop.f32.mrf.mxu0
        %v1755 = vadd.f32 %v1706, %v1754
        %1756 = vdwg.mxu0
        %1757 = vmatpush.bf16.msra.mxu0 %v1414
        %1758 = vmatpush.bf16.msra.mxu0 %v1412
        %1759 = vmatpush.bf16.msra.mxu0 %v1410
        %1760 = vmatpush.bf16.msra.mxu0 %v1408
        %1761 = vmatpush.bf16.msra.mxu0 %v1406
        %1762 = vmatpush.bf16.msra.mxu0 %v1404
        %1763 = vmatpush.bf16.msra.mxu0 %v1402
        %1764 = vmatpush.bf16.msra.mxu0 %v1400
        %1765 = vmatmul.bf16.gmra.mxu0 %v941
        %v1766 = vpop.f32.mrf.mxu0
        %v1767 = vadd.f32 %v1718, %v1766
        %v1768 = vpop.f32.mrf.mxu0
        %v1769 = vadd.f32 %v1720, %v1768
        %1770 = vmatmul.bf16.gmra.mxu0 %v947
        %v1771 = vpop.f32.mrf.mxu0
        %v1772 = vadd.f32 %v1723, %v1771
        %v1773 = vpop.f32.mrf.mxu0
        %v1774 = vadd.f32 %v1725, %v1773
        %1775 = vmatmul.bf16.gmra.mxu0 %v953
        %v1776 = vpop.f32.mrf.mxu0
        %v1777 = vadd.f32 %v1728, %v1776
        %v1778 = vpop.f32.mrf.mxu0
        %v1779 = vadd.f32 %v1730, %v1778
        %1780 = vmatmul.bf16.gmra.mxu0 %v959
        %v1781 = vpop.f32.mrf.mxu0
        %v1782 = vadd.f32 %v1733, %v1781
        %v1783 = vpop.f32.mrf.mxu0
        %v1784 = vadd.f32 %v1735, %v1783
        %1785 = vmatmul.bf16.gmra.mxu0 %v965
        %v1786 = vpop.f32.mrf.mxu0
        %v1787 = vadd.f32 %v1738, %v1786
        %v1788 = vpop.f32.mrf.mxu0
        %v1789 = vadd.f32 %v1740, %v1788
        %1790 = vmatmul.bf16.gmra.mxu0 %v971
        %v1791 = vpop.f32.mrf.mxu0
        %v1792 = vadd.f32 %v1743, %v1791
        %v1793 = vpop.f32.mrf.mxu0
        %v1794 = vadd.f32 %v1745, %v1793
        %1795 = vmatmul.bf16.gmra.mxu0 %v977
        %v1796 = vpop.f32.mrf.mxu0
        %v1797 = vadd.f32 %v1748, %v1796
        %v1798 = vpop.f32.mrf.mxu0
        %v1799 = vadd.f32 %v1750, %v1798
        %1800 = vmatmul.bf16.gmra.mxu0 %v983
        %v1801 = vpop.f32.mrf.mxu0
        %v1802 = vadd.f32 %v1753, %v1801
        %v1803 = vpop.f32.mrf.mxu0
        %v1804 = vadd.f32 %v1755, %v1803
        %1805 = vdwg.mxu0
        %1806 = vmatpush.bf16.msra.mxu0 %v1335
        %1807 = vmatpush.bf16.msra.mxu0 %v1333
        %1808 = vmatpush.bf16.msra.mxu0 %v1331
        %1809 = vmatpush.bf16.msra.mxu0 %v1329
        %1810 = vmatpush.bf16.msra.mxu0 %v1327
        %1811 = vmatpush.bf16.msra.mxu0 %v1325
        %1812 = vmatpush.bf16.msra.mxu0 %v1323
        %1813 = vmatpush.bf16.msra.mxu0 %v1321
        %1814 = vmatmul.bf16.gmra.mxu0 %v936
        %v1815 = vpop.f32.mrf.mxu0
        %v1816 = vadd.f32 %v789, %v1815
        %v1817 = vpop.f32.mrf.mxu0
        %v1818 = vadd.f32 %v789, %v1817
        %1819 = vmatmul.bf16.gmra.mxu0 %v942
        %v1820 = vpop.f32.mrf.mxu0
        %v1821 = vadd.f32 %v789, %v1820
        %v1822 = vpop.f32.mrf.mxu0
        %v1823 = vadd.f32 %v789, %v1822
        %1824 = vmatmul.bf16.gmra.mxu0 %v948
        %v1825 = vpop.f32.mrf.mxu0
        %v1826 = vadd.f32 %v789, %v1825
        %v1827 = vpop.f32.mrf.mxu0
        %v1828 = vadd.f32 %v789, %v1827
        %1829 = vmatmul.bf16.gmra.mxu0 %v954
        %v1830 = vpop.f32.mrf.mxu0
        %v1831 = vadd.f32 %v789, %v1830
        %v1832 = vpop.f32.mrf.mxu0
        %v1833 = vadd.f32 %v789, %v1832
        %1834 = vmatmul.bf16.gmra.mxu0 %v960
        %v1835 = vpop.f32.mrf.mxu0
        %v1836 = vadd.f32 %v789, %v1835
        %v1837 = vpop.f32.mrf.mxu0
        %v1838 = vadd.f32 %v789, %v1837
        %1839 = vmatmul.bf16.gmra.mxu0 %v966
        %v1840 = vpop.f32.mrf.mxu0
        %v1841 = vadd.f32 %v789, %v1840
        %v1842 = vpop.f32.mrf.mxu0
        %v1843 = vadd.f32 %v789, %v1842
        %1844 = vmatmul.bf16.gmra.mxu0 %v972
        %v1845 = vpop.f32.mrf.mxu0
        %v1846 = vadd.f32 %v789, %v1845
        %v1847 = vpop.f32.mrf.mxu0
        %v1848 = vadd.f32 %v789, %v1847
        %1849 = vmatmul.bf16.gmra.mxu0 %v978
        %v1850 = vpop.f32.mrf.mxu0
        %v1851 = vadd.f32 %v789, %v1850
        %v1852 = vpop.f32.mrf.mxu0
        %v1853 = vadd.f32 %v789, %v1852
        %1854 = vdwg.mxu0
        %1855 = vmatpush.bf16.msra.mxu0 %v1351
        %1856 = vmatpush.bf16.msra.mxu0 %v1349
        %1857 = vmatpush.bf16.msra.mxu0 %v1347
        %1858 = vmatpush.bf16.msra.mxu0 %v1345
        %1859 = vmatpush.bf16.msra.mxu0 %v1343
        %1860 = vmatpush.bf16.msra.mxu0 %v1341
        %1861 = vmatpush.bf16.msra.mxu0 %v1339
        %1862 = vmatpush.bf16.msra.mxu0 %v1337
        %1863 = vmatmul.bf16.gmra.mxu0 %v937
        %v1864 = vpop.f32.mrf.mxu0
        %v1865 = vadd.f32 %v1816, %v1864
        %v1866 = vpop.f32.mrf.mxu0
        %v1867 = vadd.f32 %v1818, %v1866
        %1868 = vmatmul.bf16.gmra.mxu0 %v943
        %v1869 = vpop.f32.mrf.mxu0
        %v1870 = vadd.f32 %v1821, %v1869
        %v1871 = vpop.f32.mrf.mxu0
        %v1872 = vadd.f32 %v1823, %v1871
        %1873 = vmatmul.bf16.gmra.mxu0 %v949
        %v1874 = vpop.f32.mrf.mxu0
        %v1875 = vadd.f32 %v1826, %v1874
        %v1876 = vpop.f32.mrf.mxu0
        %v1877 = vadd.f32 %v1828, %v1876
        %1878 = vmatmul.bf16.gmra.mxu0 %v955
        %v1879 = vpop.f32.mrf.mxu0
        %v1880 = vadd.f32 %v1831, %v1879
        %v1881 = vpop.f32.mrf.mxu0
        %v1882 = vadd.f32 %v1833, %v1881
        %1883 = vmatmul.bf16.gmra.mxu0 %v961
        %v1884 = vpop.f32.mrf.mxu0
        %v1885 = vadd.f32 %v1836, %v1884
        %v1886 = vpop.f32.mrf.mxu0
        %v1887 = vadd.f32 %v1838, %v1886
        %1888 = vmatmul.bf16.gmra.mxu0 %v967
        %v1889 = vpop.f32.mrf.mxu0
        %v1890 = vadd.f32 %v1841, %v1889
        %v1891 = vpop.f32.mrf.mxu0
        %v1892 = vadd.f32 %v1843, %v1891
        %1893 = vmatmul.bf16.gmra.mxu0 %v973
        %v1894 = vpop.f32.mrf.mxu0
        %v1895 = vadd.f32 %v1846, %v1894
        %v1896 = vpop.f32.mrf.mxu0
        %v1897 = vadd.f32 %v1848, %v1896
        %1898 = vmatmul.bf16.gmra.mxu0 %v979
        %v1899 = vpop.f32.mrf.mxu0
        %v1900 = vadd.f32 %v1851, %v1899
        %v1901 = vpop.f32.mrf.mxu0
        %v1902 = vadd.f32 %v1853, %v1901
        %1903 = vdwg.mxu0
        %1904 = vmatpush.bf16.msra.mxu0 %v1367
        %1905 = vmatpush.bf16.msra.mxu0 %v1365
        %1906 = vmatpush.bf16.msra.mxu0 %v1363
        %1907 = vmatpush.bf16.msra.mxu0 %v1361
        %1908 = vmatpush.bf16.msra.mxu0 %v1359
        %1909 = vmatpush.bf16.msra.mxu0 %v1357
        %1910 = vmatpush.bf16.msra.mxu0 %v1355
        %1911 = vmatpush.bf16.msra.mxu0 %v1353
        %1912 = vmatmul.bf16.gmra.mxu0 %v938
        %v1913 = vpop.f32.mrf.mxu0
        %v1914 = vadd.f32 %v1865, %v1913
        %v1915 = vpop.f32.mrf.mxu0
        %v1916 = vadd.f32 %v1867, %v1915
        %1917 = vmatmul.bf16.gmra.mxu0 %v944
        %v1918 = vpop.f32.mrf.mxu0
        %v1919 = vadd.f32 %v1870, %v1918
        %v1920 = vpop.f32.mrf.mxu0
        %v1921 = vadd.f32 %v1872, %v1920
        %1922 = vmatmul.bf16.gmra.mxu0 %v950
        %v1923 = vpop.f32.mrf.mxu0
        %v1924 = vadd.f32 %v1875, %v1923
        %v1925 = vpop.f32.mrf.mxu0
        %v1926 = vadd.f32 %v1877, %v1925
        %1927 = vmatmul.bf16.gmra.mxu0 %v956
        %v1928 = vpop.f32.mrf.mxu0
        %v1929 = vadd.f32 %v1880, %v1928
        %v1930 = vpop.f32.mrf.mxu0
        %v1931 = vadd.f32 %v1882, %v1930
        %1932 = vmatmul.bf16.gmra.mxu0 %v962
        %v1933 = vpop.f32.mrf.mxu0
        %v1934 = vadd.f32 %v1885, %v1933
        %v1935 = vpop.f32.mrf.mxu0
        %v1936 = vadd.f32 %v1887, %v1935
        %1937 = vmatmul.bf16.gmra.mxu0 %v968
        %v1938 = vpop.f32.mrf.mxu0
        %v1939 = vadd.f32 %v1890, %v1938
        %v1940 = vpop.f32.mrf.mxu0
        %v1941 = vadd.f32 %v1892, %v1940
        %1942 = vmatmul.bf16.gmra.mxu0 %v974
        %v1943 = vpop.f32.mrf.mxu0
        %v1944 = vadd.f32 %v1895, %v1943
        %v1945 = vpop.f32.mrf.mxu0
        %v1946 = vadd.f32 %v1897, %v1945
        %1947 = vmatmul.bf16.gmra.mxu0 %v980
        %v1948 = vpop.f32.mrf.mxu0
        %v1949 = vadd.f32 %v1900, %v1948
        %v1950 = vpop.f32.mrf.mxu0
        %v1951 = vadd.f32 %v1902, %v1950
        %1952 = vdwg.mxu0
        %1953 = vmatpush.bf16.msra.mxu0 %v1383
        %1954 = vmatpush.bf16.msra.mxu0 %v1381
        %1955 = vmatpush.bf16.msra.mxu0 %v1379
        %1956 = vmatpush.bf16.msra.mxu0 %v1377
        %1957 = vmatpush.bf16.msra.mxu0 %v1375
        %1958 = vmatpush.bf16.msra.mxu0 %v1373
        %1959 = vmatpush.bf16.msra.mxu0 %v1371
        %1960 = vmatpush.bf16.msra.mxu0 %v1369
        %1961 = vmatmul.bf16.gmra.mxu0 %v939
        %v1962 = vpop.f32.mrf.mxu0
        %v1963 = vadd.f32 %v1914, %v1962
        %v1964 = vpop.f32.mrf.mxu0
        %v1965 = vadd.f32 %v1916, %v1964
        %1966 = vmatmul.bf16.gmra.mxu0 %v945
        %v1967 = vpop.f32.mrf.mxu0
        %v1968 = vadd.f32 %v1919, %v1967
        %v1969 = vpop.f32.mrf.mxu0
        %v1970 = vadd.f32 %v1921, %v1969
        %1971 = vmatmul.bf16.gmra.mxu0 %v951
        %v1972 = vpop.f32.mrf.mxu0
        %v1973 = vadd.f32 %v1924, %v1972
        %v1974 = vpop.f32.mrf.mxu0
        %v1975 = vadd.f32 %v1926, %v1974
        %1976 = vmatmul.bf16.gmra.mxu0 %v957
        %v1977 = vpop.f32.mrf.mxu0
        %v1978 = vadd.f32 %v1929, %v1977
        %v1979 = vpop.f32.mrf.mxu0
        %v1980 = vadd.f32 %v1931, %v1979
        %1981 = vmatmul.bf16.gmra.mxu0 %v963
        %v1982 = vpop.f32.mrf.mxu0
        %v1983 = vadd.f32 %v1934, %v1982
        %v1984 = vpop.f32.mrf.mxu0
        %v1985 = vadd.f32 %v1936, %v1984
        %1986 = vmatmul.bf16.gmra.mxu0 %v969
        %v1987 = vpop.f32.mrf.mxu0
        %v1988 = vadd.f32 %v1939, %v1987
        %v1989 = vpop.f32.mrf.mxu0
        %v1990 = vadd.f32 %v1941, %v1989
        %1991 = vmatmul.bf16.gmra.mxu0 %v975
        %v1992 = vpop.f32.mrf.mxu0
        %v1993 = vadd.f32 %v1944, %v1992
        %v1994 = vpop.f32.mrf.mxu0
        %v1995 = vadd.f32 %v1946, %v1994
        %1996 = vmatmul.bf16.gmra.mxu0 %v981
        %v1997 = vpop.f32.mrf.mxu0
        %v1998 = vadd.f32 %v1949, %v1997
        %v1999 = vpop.f32.mrf.mxu0
        %v2000 = vadd.f32 %v1951, %v1999
        %2001 = vdwg.mxu0
        %2002 = vmatpush.bf16.msra.mxu0 %v1399
        %2003 = vmatpush.bf16.msra.mxu0 %v1397
        %2004 = vmatpush.bf16.msra.mxu0 %v1395
        %2005 = vmatpush.bf16.msra.mxu0 %v1393
        %2006 = vmatpush.bf16.msra.mxu0 %v1391
        %2007 = vmatpush.bf16.msra.mxu0 %v1389
        %2008 = vmatpush.bf16.msra.mxu0 %v1387
        %2009 = vmatpush.bf16.msra.mxu0 %v1385
        %2010 = vmatmul.bf16.gmra.mxu0 %v940
        %v2011 = vpop.f32.mrf.mxu0
        %v2012 = vadd.f32 %v1963, %v2011
        %v2013 = vpop.f32.mrf.mxu0
        %v2014 = vadd.f32 %v1965, %v2013
        %2015 = vmatmul.bf16.gmra.mxu0 %v946
        %v2016 = vpop.f32.mrf.mxu0
        %v2017 = vadd.f32 %v1968, %v2016
        %v2018 = vpop.f32.mrf.mxu0
        %v2019 = vadd.f32 %v1970, %v2018
        %2020 = vmatmul.bf16.gmra.mxu0 %v952
        %v2021 = vpop.f32.mrf.mxu0
        %v2022 = vadd.f32 %v1973, %v2021
        %v2023 = vpop.f32.mrf.mxu0
        %v2024 = vadd.f32 %v1975, %v2023
        %2025 = vmatmul.bf16.gmra.mxu0 %v958
        %v2026 = vpop.f32.mrf.mxu0
        %v2027 = vadd.f32 %v1978, %v2026
        %v2028 = vpop.f32.mrf.mxu0
        %v2029 = vadd.f32 %v1980, %v2028
        %2030 = vmatmul.bf16.gmra.mxu0 %v964
        %v2031 = vpop.f32.mrf.mxu0
        %v2032 = vadd.f32 %v1983, %v2031
        %v2033 = vpop.f32.mrf.mxu0
        %v2034 = vadd.f32 %v1985, %v2033
        %2035 = vmatmul.bf16.gmra.mxu0 %v970
        %v2036 = vpop.f32.mrf.mxu0
        %v2037 = vadd.f32 %v1988, %v2036
        %v2038 = vpop.f32.mrf.mxu0
        %v2039 = vadd.f32 %v1990, %v2038
        %2040 = vmatmul.bf16.gmra.mxu0 %v976
        %v2041 = vpop.f32.mrf.mxu0
        %v2042 = vadd.f32 %v1993, %v2041
        %v2043 = vpop.f32.mrf.mxu0
        %v2044 = vadd.f32 %v1995, %v2043
        %2045 = vmatmul.bf16.gmra.mxu0 %v982
        %v2046 = vpop.f32.mrf.mxu0
        %v2047 = vadd.f32 %v1998, %v2046
        %v2048 = vpop.f32.mrf.mxu0
        %v2049 = vadd.f32 %v2000, %v2048
        %2050 = vdwg.mxu0
        %2051 = vmatpush.bf16.msra.mxu0 %v1415
        %2052 = vmatpush.bf16.msra.mxu0 %v1413
        %2053 = vmatpush.bf16.msra.mxu0 %v1411
        %2054 = vmatpush.bf16.msra.mxu0 %v1409
        %2055 = vmatpush.bf16.msra.mxu0 %v1407
        %2056 = vmatpush.bf16.msra.mxu0 %v1405
        %2057 = vmatpush.bf16.msra.mxu0 %v1403
        %2058 = vmatpush.bf16.msra.mxu0 %v1401
        %2059 = vmatmul.bf16.gmra.mxu0 %v941
        %v2060 = vpop.f32.mrf.mxu0
        %v2061 = vadd.f32 %v2012, %v2060
        %v2062 = vpop.f32.mrf.mxu0
        %v2063 = vadd.f32 %v2014, %v2062
        %2064 = vmatmul.bf16.gmra.mxu0 %v947
        %v2065 = vpop.f32.mrf.mxu0
        %v2066 = vadd.f32 %v2017, %v2065
        %v2067 = vpop.f32.mrf.mxu0
        %v2068 = vadd.f32 %v2019, %v2067
        %2069 = vmatmul.bf16.gmra.mxu0 %v953
        %v2070 = vpop.f32.mrf.mxu0
        %v2071 = vadd.f32 %v2022, %v2070
        %v2072 = vpop.f32.mrf.mxu0
        %v2073 = vadd.f32 %v2024, %v2072
        %2074 = vmatmul.bf16.gmra.mxu0 %v959
        %v2075 = vpop.f32.mrf.mxu0
        %v2076 = vadd.f32 %v2027, %v2075
        %v2077 = vpop.f32.mrf.mxu0
        %v2078 = vadd.f32 %v2029, %v2077
        %2079 = vmatmul.bf16.gmra.mxu0 %v965
        %v2080 = vpop.f32.mrf.mxu0
        %v2081 = vadd.f32 %v2032, %v2080
        %v2082 = vpop.f32.mrf.mxu0
        %v2083 = vadd.f32 %v2034, %v2082
        %2084 = vmatmul.bf16.gmra.mxu0 %v971
        %v2085 = vpop.f32.mrf.mxu0
        %v2086 = vadd.f32 %v2037, %v2085
        %v2087 = vpop.f32.mrf.mxu0
        %v2088 = vadd.f32 %v2039, %v2087
        %2089 = vmatmul.bf16.gmra.mxu0 %v977
        %v2090 = vpop.f32.mrf.mxu0
        %v2091 = vadd.f32 %v2042, %v2090
        %v2092 = vpop.f32.mrf.mxu0
        %v2093 = vadd.f32 %v2044, %v2092
        %2094 = vmatmul.bf16.gmra.mxu0 %v983
        %v2095 = vpop.f32.mrf.mxu0
        %v2096 = vadd.f32 %v2047, %v2095
        %v2097 = vpop.f32.mrf.mxu0
        %v2098 = vadd.f32 %v2049, %v2097
        %2099 = vdwg.mxu0
        %2100 = vst [vmem:[%s626] sm:$0xff] %v1767
        %2101 = vst [vmem:[%s626 + $0x8] sm:$0xff] %v2061
        %2102 = vst [vmem:[%s626 + $0x10] sm:$0xff] %v1769
        %2103 = vst [vmem:[%s626 + $0x18] sm:$0xff] %v2063
        %2104 = vst [vmem:[%s626 + $0x20] sm:$0xff] %v1772
        %2105 = vst [vmem:[%s626 + $0x28] sm:$0xff] %v2066
        %2106 = vst [vmem:[%s626 + $0x30] sm:$0xff] %v1774
        %2107 = vst [vmem:[%s626 + $0x38] sm:$0xff] %v2068
        %2108 = vst [vmem:[%s626 + $0x40] sm:$0xff] %v1777
        %2109 = vst [vmem:[%s626 + $0x48] sm:$0xff] %v2071
        %2110 = vst [vmem:[%s626 + $0x50] sm:$0xff] %v1779
        %2111 = vst [vmem:[%s626 + $0x58] sm:$0xff] %v2073
        %2112 = vst [vmem:[%s626 + $0x60] sm:$0xff] %v1782
        %2113 = vst [vmem:[%s626 + $0x68] sm:$0xff] %v2076
        %2114 = vst [vmem:[%s626 + $0x70] sm:$0xff] %v1784
        %2115 = vst [vmem:[%s626 + $0x78] sm:$0xff] %v2078
        %2116 = vst [vmem:[%s626 + $0x80] sm:$0xff] %v1787
        %2117 = vst [vmem:[%s626 + $0x88] sm:$0xff] %v2081
        %2118 = vst [vmem:[%s626 + $0x90] sm:$0xff] %v1789
        %2119 = vst [vmem:[%s626 + $0x98] sm:$0xff] %v2083
        %2120 = vst [vmem:[%s626 + $0xa0] sm:$0xff] %v1792
        %2121 = vst [vmem:[%s626 + $0xa8] sm:$0xff] %v2086
        %2122 = vst [vmem:[%s626 + $0xb0] sm:$0xff] %v1794
        %2123 = vst [vmem:[%s626 + $0xb8] sm:$0xff] %v2088
        %2124 = vst [vmem:[%s626 + $0xc0] sm:$0xff] %v1797
        %2125 = vst [vmem:[%s626 + $0xc8] sm:$0xff] %v2091
        %2126 = vst [vmem:[%s626 + $0xd0] sm:$0xff] %v1799
        %2127 = vst [vmem:[%s626 + $0xd8] sm:$0xff] %v2093
        %2128 = vst [vmem:[%s626 + $0xe0] sm:$0xff] %v1802
        %2129 = vst [vmem:[%s626 + $0xe8] sm:$0xff] %v2096
        %2130 = vst [vmem:[%s626 + $0xf0] sm:$0xff] %v1804
        %2131 = vst [vmem:[%s626 + $0xf8] sm:$0xff] %v2098
        %s2132 = sand.u32 %s114, 1
        %s2133 = sand.u32 %s114, 1
        %s2134 = smul.addr %s2133, 256
        %s2135 = scalar_lea.vmem [#allocation3], %s2134
        // Predicated region
        $region71: #{self_attention_forward.3} parent=65 // pred_check
          %p2136 = pneg %p124
        $region72: #{self_attention_forward.3} parent=65 // pred_check_branch
          %2138 = sbr.rel (%p2136) target = $region74
        $region73: #{self_attention_forward.3} parent=65 // pred_region
          %s2139 = smul.u32 16, %s18
          %s2140 = smul.u32 2, %s19
          %s2141 = smul.addr %s2139, 18
          %s2142 = sadd.s32 %s2140, %s2141
          %s2143 = smul.addr %s2142, 8
          %s2144 = scalar_lea.vmem %s3, %s2143
          // Predicated region
          $region75: #{self_attention_forward.3} parent=73 // pred_check
            _
          $region76: #{self_attention_forward.3} parent=73 // pred_check_branch
            %2146 = sbr.rel (0) target = $region78
          $region77: #{self_attention_forward.3} parent=73 // pred_region
            // Predicated region
            $region79: #{self_attention_forward.3} parent=77 // pred_check
              _
            $region80: #{self_attention_forward.3} parent=77 // pred_check_branch
              %2148 = sbr.rel (0) target = $region82
            $region81: #{self_attention_forward.3} parent=77 // pred_region
              loop: start=0, step=1, limit=1
              $region83: #{self_attention_forward.3} parent=81 // loop_pre_header
                _
              $region84: #{self_attention_forward.3} parent=81 // loop_header
                %s2150 = sphi 0, %s2154
                %p2151 = scmp.ge.s32.totalorder %s2150, 1
                %s2155 = sphi %s2135, %s2135
                %s2156 = sphi %s2144, %s2144
              $region85: #{self_attention_forward.3} parent=81 // loop_header_branch
                %2153 = sbr.rel (%p2151) target = $region89
              $region86: #{self_attention_forward.3} parent=81 // loop_body
                %v2157 = vld [vmem:[%s2155] sm:$0xff]
                %2158 = vst [vmem:[%s2156] sm:$0xff] %v2157
                %v2159 = vld [vmem:[%s2155 + $0x8] sm:$0xff]
                %2160 = vst [vmem:[%s2156 + $0x8] sm:$0xff] %v2159
                %v2161 = vld [vmem:[%s2155 + $0x10] sm:$0xff]
                %2162 = vst [vmem:[%s2156 + $0x90] sm:$0xff] %v2161
                %v2163 = vld [vmem:[%s2155 + $0x18] sm:$0xff]
                %2164 = vst [vmem:[%s2156 + $0x98] sm:$0xff] %v2163
                %v2165 = vld [vmem:[%s2155 + $0x20] sm:$0xff]
                %2166 = vst [vmem:[%s2156 + $0x120] sm:$0xff] %v2165
                %v2167 = vld [vmem:[%s2155 + $0x28] sm:$0xff]
                %2168 = vst [vmem:[%s2156 + $0x128] sm:$0xff] %v2167
                %v2169 = vld [vmem:[%s2155 + $0x30] sm:$0xff]
                %2170 = vst [vmem:[%s2156 + $0x1b0] sm:$0xff] %v2169
                %v2171 = vld [vmem:[%s2155 + $0x38] sm:$0xff]
                %2172 = vst [vmem:[%s2156 + $0x1b8] sm:$0xff] %v2171
                %v2173 = vld [vmem:[%s2155 + $0x40] sm:$0xff]
                %2174 = vst [vmem:[%s2156 + $0x240] sm:$0xff] %v2173
                %v2175 = vld [vmem:[%s2155 + $0x48] sm:$0xff]
                %2176 = vst [vmem:[%s2156 + $0x248] sm:$0xff] %v2175
                %v2177 = vld [vmem:[%s2155 + $0x50] sm:$0xff]
                %2178 = vst [vmem:[%s2156 + $0x2d0] sm:$0xff] %v2177
                %v2179 = vld [vmem:[%s2155 + $0x58] sm:$0xff]
                %2180 = vst [vmem:[%s2156 + $0x2d8] sm:$0xff] %v2179
                %v2181 = vld [vmem:[%s2155 + $0x60] sm:$0xff]
                %2182 = vst [vmem:[%s2156 + $0x360] sm:$0xff] %v2181
                %v2183 = vld [vmem:[%s2155 + $0x68] sm:$0xff]
                %2184 = vst [vmem:[%s2156 + $0x368] sm:$0xff] %v2183
                %v2185 = vld [vmem:[%s2155 + $0x70] sm:$0xff]
                %2186 = vst [vmem:[%s2156 + $0x3f0] sm:$0xff] %v2185
                %v2187 = vld [vmem:[%s2155 + $0x78] sm:$0xff]
                %2188 = vst [vmem:[%s2156 + $0x3f8] sm:$0xff] %v2187
                %v2189 = vld [vmem:[%s2155 + $0x80] sm:$0xff]
                %2190 = vst [vmem:[%s2156 + $0x480] sm:$0xff] %v2189
                %v2191 = vld [vmem:[%s2155 + $0x88] sm:$0xff]
                %2192 = vst [vmem:[%s2156 + $0x488] sm:$0xff] %v2191
                %v2193 = vld [vmem:[%s2155 + $0x90] sm:$0xff]
                %2194 = vst [vmem:[%s2156 + $0x510] sm:$0xff] %v2193
                %v2195 = vld [vmem:[%s2155 + $0x98] sm:$0xff]
                %2196 = vst [vmem:[%s2156 + $0x518] sm:$0xff] %v2195
                %v2197 = vld [vmem:[%s2155 + $0xa0] sm:$0xff]
                %2198 = vst [vmem:[%s2156 + $0x5a0] sm:$0xff] %v2197
                %v2199 = vld [vmem:[%s2155 + $0xa8] sm:$0xff]
                %2200 = vst [vmem:[%s2156 + $0x5a8] sm:$0xff] %v2199
                %v2201 = vld [vmem:[%s2155 + $0xb0] sm:$0xff]
                %2202 = vst [vmem:[%s2156 + $0x630] sm:$0xff] %v2201
                %v2203 = vld [vmem:[%s2155 + $0xb8] sm:$0xff]
                %2204 = vst [vmem:[%s2156 + $0x638] sm:$0xff] %v2203
                %v2205 = vld [vmem:[%s2155 + $0xc0] sm:$0xff]
                %2206 = vst [vmem:[%s2156 + $0x6c0] sm:$0xff] %v2205
                %v2207 = vld [vmem:[%s2155 + $0xc8] sm:$0xff]
                %2208 = vst [vmem:[%s2156 + $0x6c8] sm:$0xff] %v2207
                %v2209 = vld [vmem:[%s2155 + $0xd0] sm:$0xff]
                %2210 = vst [vmem:[%s2156 + $0x750] sm:$0xff] %v2209
                %v2211 = vld [vmem:[%s2155 + $0xd8] sm:$0xff]
                %2212 = vst [vmem:[%s2156 + $0x758] sm:$0xff] %v2211
                %v2213 = vld [vmem:[%s2155 + $0xe0] sm:$0xff]
                %2214 = vst [vmem:[%s2156 + $0x7e0] sm:$0xff] %v2213
                %v2215 = vld [vmem:[%s2155 + $0xe8] sm:$0xff]
                %2216 = vst [vmem:[%s2156 + $0x7e8] sm:$0xff] %v2215
                %v2217 = vld [vmem:[%s2155 + $0xf0] sm:$0xff]
                %2218 = vst [vmem:[%s2156 + $0x870] sm:$0xff] %v2217
                %v2219 = vld [vmem:[%s2155 + $0xf8] sm:$0xff]
                %2220 = vst [vmem:[%s2156 + $0x878] sm:$0xff] %v2219
              $region87: #{self_attention_forward.3} parent=81 // loop_footer
                %s2154 = sadd.s32 1, %s2150
              $region88: #{self_attention_forward.3} parent=81 // loop_footer_branch
                %2149 = sbr.rel target = $region84
              $region89: #{self_attention_forward.3} parent=81 // loop_exit
                _
            $region82: #{self_attention_forward.3} parent=77 // pred_fallthru
              _
            // Predicated region
            $region90: #{self_attention_forward.3} parent=77 // pred_check
              _
            $region91: #{self_attention_forward.3} parent=77 // pred_check_branch
              %2222 = sbr.rel target = $region93
            $region92: #{self_attention_forward.3} parent=77 // pred_region
              _
            $region93: #{self_attention_forward.3} parent=77 // pred_fallthru
              _
          $region78: #{self_attention_forward.3} parent=73 // pred_fallthru
            _
          %2223 = vnop
        $region74: #{self_attention_forward.3} parent=65 // pred_fallthru
          _
      $region66: #{self_attention_forward.3} parent=5 // pred_fallthru
        _
      %p2224 = scmp.le.s32.totalorder 2, %s9
      // Predicated region
      $region94: #{self_attention_forward.3} parent=5 // pred_check
        %p2225 = pneg %p2224
      $region95: #{self_attention_forward.3} parent=5 // pred_check_branch
        %2227 = sbr.rel (%p2225) target = $region97
      $region96: #{self_attention_forward.3} parent=5 // pred_region
        %s2228 = ssub.s32 %s9, 2
        // Predicated region
        $region98: #{self_attention_forward.3} parent=96 // pred_check
          %p2229 = pneg %p130
        $region99: #{self_attention_forward.3} parent=96 // pred_check_branch
          %2231 = sbr.rel (%p2229) target = $region101
        $region100: #{self_attention_forward.3} parent=96 // pred_region
          %s2232 = sand.u32 %s115, 1
          %s2233 = sand.u32 %s115, 1
          %s2234 = smul.addr %s2233, 256
          %s2235 = scalar_lea.vmem [#allocation3], %s2234
        $region101: #{self_attention_forward.3} parent=96 // pred_fallthru
          _
      $region97: #{self_attention_forward.3} parent=5 // pred_fallthru
        _
    $region6: #{self_attention_forward.3} parent=1 // loop_footer
      %s13 = sadd.s32 1, %s9
    $region7: #{self_attention_forward.3} parent=1 // loop_footer_branch
      %8 = sbr.rel target = $region3
    $region8: #{self_attention_forward.3} parent=1 // loop_exit
      _

// kernel: self_attention_forward.4
$region0: #{self_attention_forward.4}
  #allocation0 [shape = 'u32[]', space=smem, size = 0x4, offset = 0x4, fixed_abs, tag = 'smem constant byte address 0x4 - core index']
  #allocation1 [shape = 'u32[72,128]{1,0:T(1,128)}', space=vmem, size = 0x9000, scoped, tag = 'internal scratch']
  %s0 = inlined_call_operand.vmem [shape: bf16[24,128,128], index: 0, kind: input, shape index: {}]
  %s1 = inlined_call_operand.vmem [shape: bf16[24,128,128], index: 1, kind: input, shape index: {}]
  %s2 = inlined_call_operand.vmem [shape: bf16[24,128,128], index: 2, kind: input, shape index: {}]
  %s3 = inlined_call_operand.vmem [shape: f32[24,128,128], index: 3, kind: output, shape index: {}]
  %s4 = sld [smem:[#allocation0]]
  $region45: #{self_attention_forward.4} parent=0
    _
  %s6 = ssub.s32 1, %s4
  %s7 = scalar_select 0, %s6, %s4
  loop: start=0, step=1, limit=5
  $region2: #{self_attention_forward.4} parent=0 // loop_pre_header
    _
  $region3: #{self_attention_forward.4} parent=0 // loop_header
    %s9 = sphi 0, %s13
    %p10 = scmp.ge.s32.totalorder %s9, 5
    %s19 = sphi 0, %s21
    %s22 = sphi 0, %s19
    %s23 = sphi 0, %s22
    %s39 = sphi 0, %s23
    %s45 = sphi 0, %s47
    %s48 = sphi 0, %s45
    %s49 = sphi 0, %s48
    %s65 = sphi 0, %s49
    %s71 = sphi 0, %s73
    %s74 = sphi 0, %s71
    %s75 = sphi 0, %s74
    %s91 = sphi 0, %s75
    %s97 = sphi 0, %s99
    %s100 = sphi 0, %s97
    %s101 = sphi 0, %s100
    %s117 = sphi 0, %s101
  $region4: #{self_attention_forward.4} parent=0 // loop_header_branch
    %12 = sbr.rel (%p10) target = $region8
  $region5: #{self_attention_forward.4} parent=0 // loop_body
    %s14 = ssub.s32 %s9, 1
    %s15 = ssub.s32 %s9, 2
    %s16 = sadd.s32 %s9, 1
    %s17 = ssub.s32 %s9, %s16
    %p18 = scmp.eq.s32.totalorder %s17, 0
    %s20 = sadd.s32 %s19, 1
    %s21 = scalar_select %p18, %s19, %s20
    %p24 = pneg %p18
    %p25 = scmp.eq.s32.totalorder %s9, 2
    %p26 = por %p24, %p25
    %p27 = scmp.ne.s32.totalorder %s19, %s22
    %p28 = scmp.eq.s32.totalorder %s9, 0
    %p29 = por %p27, %p28
    %p30 = scmp.ne.s32.totalorder %s19, %s22
    %p31 = scmp.eq.s32.totalorder %s14, 2
    %p32 = por %p30, %p31
    %p33 = scmp.ne.s32.totalorder %s22, %s23
    %p34 = scmp.eq.s32.totalorder %s14, 0
    %p35 = por %p33, %p34
    %p36 = scmp.ne.s32.totalorder %s22, %s23
    %p37 = scmp.eq.s32.totalorder %s15, 2
    %p38 = por %p36, %p37
    %p40 = scmp.ne.s32.totalorder %s23, %s39
    %p41 = scmp.eq.s32.totalorder %s15, 0
    %p42 = por %p40, %p41
    %s43 = ssub.s32 %s9, %s16
    %p44 = scmp.eq.s32.totalorder %s43, 0
    %s46 = sadd.s32 %s45, 1
    %s47 = scalar_select %p44, %s45, %s46
    %p50 = pneg %p44
    %p51 = scmp.eq.s32.totalorder %s9, 2
    %p52 = por %p50, %p51
    %p53 = scmp.ne.s32.totalorder %s45, %s48
    %p54 = scmp.eq.s32.totalorder %s9, 0
    %p55 = por %p53, %p54
    %p56 = scmp.ne.s32.totalorder %s45, %s48
    %p57 = scmp.eq.s32.totalorder %s14, 2
    %p58 = por %p56, %p57
    %p59 = scmp.ne.s32.totalorder %s48, %s49
    %p60 = scmp.eq.s32.totalorder %s14, 0
    %p61 = por %p59, %p60
    %p62 = scmp.ne.s32.totalorder %s48, %s49
    %p63 = scmp.eq.s32.totalorder %s15, 2
    %p64 = por %p62, %p63
    %p66 = scmp.ne.s32.totalorder %s49, %s65
    %p67 = scmp.eq.s32.totalorder %s15, 0
    %p68 = por %p66, %p67
    %s69 = ssub.s32 %s9, %s16
    %p70 = scmp.eq.s32.totalorder %s69, 0
    %s72 = sadd.s32 %s71, 1
    %s73 = scalar_select %p70, %s71, %s72
    %p76 = pneg %p70
    %p77 = scmp.eq.s32.totalorder %s9, 2
    %p78 = por %p76, %p77
    %p79 = scmp.ne.s32.totalorder %s71, %s74
    %p80 = scmp.eq.s32.totalorder %s9, 0
    %p81 = por %p79, %p80
    %p82 = scmp.ne.s32.totalorder %s71, %s74
    %p83 = scmp.eq.s32.totalorder %s14, 2
    %p84 = por %p82, %p83
    %p85 = scmp.ne.s32.totalorder %s74, %s75
    %p86 = scmp.eq.s32.totalorder %s14, 0
    %p87 = por %p85, %p86
    %p88 = scmp.ne.s32.totalorder %s74, %s75
    %p89 = scmp.eq.s32.totalorder %s15, 2
    %p90 = por %p88, %p89
    %p92 = scmp.ne.s32.totalorder %s75, %s91
    %p93 = scmp.eq.s32.totalorder %s15, 0
    %p94 = por %p92, %p93
    %s95 = ssub.s32 %s9, %s16
    %p96 = scmp.eq.s32.totalorder %s95, 0
    %s98 = sadd.s32 %s97, 1
    %s99 = scalar_select %p96, %s97, %s98
    %p102 = pneg %p96
    %p103 = scmp.eq.s32.totalorder %s9, 2
    %p104 = por %p102, %p103
    %p105 = scmp.ne.s32.totalorder %s97, %s100
    %p106 = scmp.eq.s32.totalorder %s9, 0
    %p107 = por %p105, %p106
    %p108 = scmp.ne.s32.totalorder %s97, %s100
    %p109 = scmp.eq.s32.totalorder %s14, 2
    %p110 = por %p108, %p109
    %p111 = scmp.ne.s32.totalorder %s100, %s101
    %p112 = scmp.eq.s32.totalorder %s14, 0
    %p113 = por %p111, %p112
    %p114 = scmp.ne.s32.totalorder %s100, %s101
    %p115 = scmp.eq.s32.totalorder %s15, 2
    %p116 = por %p114, %p115
    %p118 = scmp.ne.s32.totalorder %s101, %s117
    %p119 = scmp.eq.s32.totalorder %s15, 0
    %p120 = por %p118, %p119
    %p121 = scmp.le.s32.totalorder 1, %s9
    %p122 = scmp.lt.s32.totalorder %s9, 4
    %p123 = pnand %p121, %p122
    %p124 = pneg %p123
    // Predicated region
    $region9: #{self_attention_forward.4} parent=5 // pred_check
      _
    $region10: #{self_attention_forward.4} parent=5 // pred_check_branch
      %126 = sbr.rel (%p123) target = $region12
    $region11: #{self_attention_forward.4} parent=5 // pred_region
      %s127 = ssub.s32 %s9, 1
    $region12: #{self_attention_forward.4} parent=5 // pred_fallthru
      _
    %p128 = scmp.lt.s32.totalorder %s9, 3
    // Predicated region
    $region13: #{self_attention_forward.4} parent=5 // pred_check
      %p129 = pneg %p128
    $region14: #{self_attention_forward.4} parent=5 // pred_check_branch
      %131 = sbr.rel (%p129) target = $region16
    $region15: #{self_attention_forward.4} parent=5 // pred_region
      // Predicated region
      $region17: #{self_attention_forward.4} parent=15 // pred_check
        %p132 = pneg %p29
      $region18: #{self_attention_forward.4} parent=15 // pred_check_branch
        %134 = sbr.rel (%p132) target = $region20
      $region19: #{self_attention_forward.4} parent=15 // pred_region
        %s135 = smul.u32 8, %s9
        %p136 = scmp.lt.s32.totalorder %s135, 23
        %s137 = scalar_select %p136, %s135, 23
        %s138 = smul.addr %s137, 16
        %s139 = smul.addr %s138, 4
        %s140 = scalar_lea.vmem %s0, %s139
        %s141 = smul.u32 8, %s9
      $region20: #{self_attention_forward.4} parent=15 // pred_fallthru
        _
      // Predicated region
      $region21: #{self_attention_forward.4} parent=15 // pred_check
        %p142 = pneg %p55
      $region22: #{self_attention_forward.4} parent=15 // pred_check_branch
        %144 = sbr.rel (%p142) target = $region24
      $region23: #{self_attention_forward.4} parent=15 // pred_region
        %s145 = smul.u32 8, %s9
        %p146 = scmp.lt.s32.totalorder %s145, 23
        %s147 = scalar_select %p146, %s145, 23
        %s148 = smul.addr %s147, 16
        %s149 = smul.addr %s148, 4
        %s150 = scalar_lea.vmem %s1, %s149
        %s151 = smul.u32 8, %s9
      $region24: #{self_attention_forward.4} parent=15 // pred_fallthru
        _
      // Predicated region
      $region25: #{self_attention_forward.4} parent=15 // pred_check
        %p152 = pneg %p81
      $region26: #{self_attention_forward.4} parent=15 // pred_check_branch
        %154 = sbr.rel (%p152) target = $region28
      $region27: #{self_attention_forward.4} parent=15 // pred_region
        %s155 = smul.u32 8, %s9
        %p156 = scmp.lt.s32.totalorder %s155, 23
        %s157 = scalar_select %p156, %s155, 23
        %s158 = smul.addr %s157, 16
        %s159 = smul.addr %s158, 4
        %s160 = scalar_lea.vmem %s2, %s159
        %s161 = smul.u32 8, %s9
      $region28: #{self_attention_forward.4} parent=15 // pred_fallthru
        _
    $region16: #{self_attention_forward.4} parent=5 // pred_fallthru
      _
    %p162 = scmp.le.s32.totalorder 1, %s9
    %p163 = scmp.lt.s32.totalorder %s9, 4
    %p164 = pnand %p162, %p163
    %p165 = pneg %p164
    // Predicated region
    $region29: #{self_attention_forward.4} parent=5 // pred_check
      _
    $region30: #{self_attention_forward.4} parent=5 // pred_check_branch
      %167 = sbr.rel (%p164) target = $region32
    $region31: #{self_attention_forward.4} parent=5 // pred_region
      %s168 = ssub.s32 %s9, 1
      %s169 = smul.u32 8, %s14
      %p170 = scmp.lt.s32.totalorder %s169, 23
      %s171 = scalar_select %p170, %s169, 23
      %s172 = smul.addr %s171, 16
      %s173 = smul.addr %s172, 4
      %s174 = scalar_lea.vmem %s0, %s173
      %p175 = pneg %p35
      %p176 = pneg %p32
      %s177 = smul.u32 8, %s14
      %p178 = scmp.lt.s32.totalorder %s177, 23
      %s179 = scalar_select %p178, %s177, 23
      %s180 = smul.addr %s179, 16
      %s181 = smul.addr %s180, 4
      %s182 = scalar_lea.vmem %s1, %s181
      %p183 = pneg %p61
      %p184 = pneg %p58
      %s185 = smul.u32 8, %s14
      %p186 = scmp.lt.s32.totalorder %s185, 23
      %s187 = scalar_select %p186, %s185, 23
      %s188 = smul.addr %s187, 16
      %s189 = smul.addr %s188, 4
      %s190 = scalar_lea.vmem %s2, %s189
      %p191 = pneg %p87
      %p192 = pneg %p84
      %p193 = pneg %p113
      %p194 = pneg %p110
      %s195 = smul.u32 8, %s14
      %p196 = scmp.lt.s32.totalorder %s195, 23
      %s197 = scalar_select %p196, %s195, 23
      %s198 = smul.addr %s197, 16
      %s199 = smul.addr %s198, 8
      %s200 = scalar_lea.vmem %s3, %s199
      %s201 = smul.u32 8, %s14
      %p202 = scmp.lt.s32.totalorder %s201, 23
      %s203 = scalar_select %p202, %s201, 23
      %s204 = smul.addr %s203, 16
      %s205 = smul.addr %s204, 4
      %s206 = scalar_lea.vmem %s0, %s205
      %s207 = smul.u32 8, %s14
      %s208 = smul.u32 8, %s14
      %p209 = scmp.lt.s32.totalorder %s208, 23
      %s210 = scalar_select %p209, %s208, 23
      %s211 = smul.addr %s210, 16
      %s212 = smul.addr %s211, 4
      %s213 = scalar_lea.vmem %s1, %s212
      %s214 = smul.u32 8, %s14
      %s215 = smul.u32 8, %s14
      %p216 = scmp.lt.s32.totalorder %s215, 23
      %s217 = scalar_select %p216, %s215, 23
      %s218 = smul.addr %s217, 16
      %s219 = smul.addr %s218, 4
      %s220 = scalar_lea.vmem %s2, %s219
      %s221 = smul.u32 8, %s14
      %s222 = smul.u32 8, %s14
      %p223 = scmp.lt.s32.totalorder %s222, 23
      %s224 = scalar_select %p223, %s222, 23
      %s225 = smul.addr %s224, 16
      %s226 = smul.addr %s225, 8
      %s227 = scalar_lea.vmem %s3, %s226
      %s228 = smul.u32 8, %s14
      %v229 = vld [vmem:[%s206] sm:$0xf]
      %v230 = vld [vmem:[%s206 + $0x4] sm:$0xf]
      %v231 = vld [vmem:[%s206 + $0x8] sm:$0xf]
      %v232 = vld [vmem:[%s206 + $0xc] sm:$0xf]
      %v233 = vld [vmem:[%s206 + $0x10] sm:$0xf]
      %v234 = vld [vmem:[%s206 + $0x14] sm:$0xf]
      %v235 = vld [vmem:[%s206 + $0x18] sm:$0xf]
      %v236 = vld [vmem:[%s206 + $0x1c] sm:$0xf]
      %v237 = vld [vmem:[%s206 + $0x20] sm:$0xf]
      %v238 = vld [vmem:[%s206 + $0x24] sm:$0xf]
      %v239 = vld [vmem:[%s206 + $0x28] sm:$0xf]
      %v240 = vld [vmem:[%s206 + $0x2c] sm:$0xf]
      %v241 = vld [vmem:[%s206 + $0x30] sm:$0xf]
      %v242 = vld [vmem:[%s206 + $0x34] sm:$0xf]
      %v243 = vld [vmem:[%s206 + $0x38] sm:$0xf]
      %v244 = vld [vmem:[%s206 + $0x3c] sm:$0xf]
      %v245 = vld [vmem:[%s206 + $0x40] sm:$0xf]
      %v246 = vld [vmem:[%s206 + $0x44] sm:$0xf]
      %v247 = vld [vmem:[%s206 + $0x48] sm:$0xf]
      %v248 = vld [vmem:[%s206 + $0x4c] sm:$0xf]
      %v249 = vld [vmem:[%s206 + $0x50] sm:$0xf]
      %v250 = vld [vmem:[%s206 + $0x54] sm:$0xf]
      %v251 = vld [vmem:[%s206 + $0x58] sm:$0xf]
      %v252 = vld [vmem:[%s206 + $0x5c] sm:$0xf]
      %v253 = vld [vmem:[%s206 + $0x60] sm:$0xf]
      %v254 = vld [vmem:[%s206 + $0x64] sm:$0xf]
      %v255 = vld [vmem:[%s206 + $0x68] sm:$0xf]
      %v256 = vld [vmem:[%s206 + $0x6c] sm:$0xf]
      %v257 = vld [vmem:[%s206 + $0x70] sm:$0xf]
      %v258 = vld [vmem:[%s206 + $0x74] sm:$0xf]
      %v259 = vld [vmem:[%s206 + $0x78] sm:$0xf]
      %v260 = vld [vmem:[%s206 + $0x7c] sm:$0xf]
      %v261 = vld [vmem:[%s206 + $0x80] sm:$0xf]
      %v262 = vld [vmem:[%s206 + $0x84] sm:$0xf]
      %v263 = vld [vmem:[%s206 + $0x88] sm:$0xf]
      %v264 = vld [vmem:[%s206 + $0x8c] sm:$0xf]
      %v265 = vld [vmem:[%s206 + $0x90] sm:$0xf]
      %v266 = vld [vmem:[%s206 + $0x94] sm:$0xf]
      %v267 = vld [vmem:[%s206 + $0x98] sm:$0xf]
      %v268 = vld [vmem:[%s206 + $0x9c] sm:$0xf]
      %v269 = vld [vmem:[%s206 + $0xa0] sm:$0xf]
      %v270 = vld [vmem:[%s206 + $0xa4] sm:$0xf]
      %v271 = vld [vmem:[%s206 + $0xa8] sm:$0xf]
      %v272 = vld [vmem:[%s206 + $0xac] sm:$0xf]
      %v273 = vld [vmem:[%s206 + $0xb0] sm:$0xf]
      %v274 = vld [vmem:[%s206 + $0xb4] sm:$0xf]
      %v275 = vld [vmem:[%s206 + $0xb8] sm:$0xf]
      %v276 = vld [vmem:[%s206 + $0xbc] sm:$0xf]
      %v277 = vld [vmem:[%s206 + $0xc0] sm:$0xf]
      %v278 = vld [vmem:[%s206 + $0xc4] sm:$0xf]
      %v279 = vld [vmem:[%s206 + $0xc8] sm:$0xf]
      %v280 = vld [vmem:[%s206 + $0xcc] sm:$0xf]
      %v281 = vld [vmem:[%s206 + $0xd0] sm:$0xf]
      %v282 = vld [vmem:[%s206 + $0xd4] sm:$0xf]
      %v283 = vld [vmem:[%s206 + $0xd8] sm:$0xf]
      %v284 = vld [vmem:[%s206 + $0xdc] sm:$0xf]
      %v285 = vld [vmem:[%s206 + $0xe0] sm:$0xf]
      %v286 = vld [vmem:[%s206 + $0xe4] sm:$0xf]
      %v287 = vld [vmem:[%s206 + $0xe8] sm:$0xf]
      %v288 = vld [vmem:[%s206 + $0xec] sm:$0xf]
      %v289 = vld [vmem:[%s206 + $0xf0] sm:$0xf]
      %v290 = vld [vmem:[%s206 + $0xf4] sm:$0xf]
      %v291 = vld [vmem:[%s206 + $0xf8] sm:$0xf]
      %v292 = vld [vmem:[%s206 + $0xfc] sm:$0xf]
      %v293 = vld [vmem:[%s206 + $0x100] sm:$0xf]
      %v294 = vld [vmem:[%s206 + $0x104] sm:$0xf]
      %v295 = vld [vmem:[%s206 + $0x108] sm:$0xf]
      %v296 = vld [vmem:[%s206 + $0x10c] sm:$0xf]
      %v297 = vld [vmem:[%s206 + $0x110] sm:$0xf]
      %v298 = vld [vmem:[%s206 + $0x114] sm:$0xf]
      %v299 = vld [vmem:[%s206 + $0x118] sm:$0xf]
      %v300 = vld [vmem:[%s206 + $0x11c] sm:$0xf]
      %v301 = vld [vmem:[%s206 + $0x120] sm:$0xf]
      %v302 = vld [vmem:[%s206 + $0x124] sm:$0xf]
      %v303 = vld [vmem:[%s206 + $0x128] sm:$0xf]
      %v304 = vld [vmem:[%s206 + $0x12c] sm:$0xf]
      %v305 = vld [vmem:[%s206 + $0x130] sm:$0xf]
      %v306 = vld [vmem:[%s206 + $0x134] sm:$0xf]
      %v307 = vld [vmem:[%s206 + $0x138] sm:$0xf]
      %v308 = vld [vmem:[%s206 + $0x13c] sm:$0xf]
      %v309 = vld [vmem:[%s206 + $0x140] sm:$0xf]
      %v310 = vld [vmem:[%s206 + $0x144] sm:$0xf]
      %v311 = vld [vmem:[%s206 + $0x148] sm:$0xf]
      %v312 = vld [vmem:[%s206 + $0x14c] sm:$0xf]
      %v313 = vld [vmem:[%s206 + $0x150] sm:$0xf]
      %v314 = vld [vmem:[%s206 + $0x154] sm:$0xf]
      %v315 = vld [vmem:[%s206 + $0x158] sm:$0xf]
      %v316 = vld [vmem:[%s206 + $0x15c] sm:$0xf]
      %v317 = vld [vmem:[%s206 + $0x160] sm:$0xf]
      %v318 = vld [vmem:[%s206 + $0x164] sm:$0xf]
      %v319 = vld [vmem:[%s206 + $0x168] sm:$0xf]
      %v320 = vld [vmem:[%s206 + $0x16c] sm:$0xf]
      %v321 = vld [vmem:[%s206 + $0x170] sm:$0xf]
      %v322 = vld [vmem:[%s206 + $0x174] sm:$0xf]
      %v323 = vld [vmem:[%s206 + $0x178] sm:$0xf]
      %v324 = vld [vmem:[%s206 + $0x17c] sm:$0xf]
      %v325 = vld [vmem:[%s206 + $0x180] sm:$0xf]
      %v326 = vld [vmem:[%s206 + $0x184] sm:$0xf]
      %v327 = vld [vmem:[%s206 + $0x188] sm:$0xf]
      %v328 = vld [vmem:[%s206 + $0x18c] sm:$0xf]
      %v329 = vld [vmem:[%s206 + $0x190] sm:$0xf]
      %v330 = vld [vmem:[%s206 + $0x194] sm:$0xf]
      %v331 = vld [vmem:[%s206 + $0x198] sm:$0xf]
      %v332 = vld [vmem:[%s206 + $0x19c] sm:$0xf]
      %v333 = vld [vmem:[%s206 + $0x1a0] sm:$0xf]
      %v334 = vld [vmem:[%s206 + $0x1a4] sm:$0xf]
      %v335 = vld [vmem:[%s206 + $0x1a8] sm:$0xf]
      %v336 = vld [vmem:[%s206 + $0x1ac] sm:$0xf]
      %v337 = vld [vmem:[%s206 + $0x1b0] sm:$0xf]
      %v338 = vld [vmem:[%s206 + $0x1b4] sm:$0xf]
      %v339 = vld [vmem:[%s206 + $0x1b8] sm:$0xf]
      %v340 = vld [vmem:[%s206 + $0x1bc] sm:$0xf]
      %v341 = vld [vmem:[%s206 + $0x1c0] sm:$0xf]
      %v342 = vld [vmem:[%s206 + $0x1c4] sm:$0xf]
      %v343 = vld [vmem:[%s206 + $0x1c8] sm:$0xf]
      %v344 = vld [vmem:[%s206 + $0x1cc] sm:$0xf]
      %v345 = vld [vmem:[%s206 + $0x1d0] sm:$0xf]
      %v346 = vld [vmem:[%s206 + $0x1d4] sm:$0xf]
      %v347 = vld [vmem:[%s206 + $0x1d8] sm:$0xf]
      %v348 = vld [vmem:[%s206 + $0x1dc] sm:$0xf]
      %v349 = vld [vmem:[%s206 + $0x1e0] sm:$0xf]
      %v350 = vld [vmem:[%s206 + $0x1e4] sm:$0xf]
      %v351 = vld [vmem:[%s206 + $0x1e8] sm:$0xf]
      %v352 = vld [vmem:[%s206 + $0x1ec] sm:$0xf]
      %v353 = vld [vmem:[%s206 + $0x1f0] sm:$0xf]
      %v354 = vld [vmem:[%s206 + $0x1f4] sm:$0xf]
      %v355 = vld [vmem:[%s206 + $0x1f8] sm:$0xf]
      %v356 = vld [vmem:[%s206 + $0x1fc] sm:$0xf]
      %v357 = vld [vmem:[%s213] sm:$0xf]
      %v358 = vld [vmem:[%s213 + $0x4] sm:$0xf]
      %v359 = vld [vmem:[%s213 + $0x8] sm:$0xf]
      %v360 = vld [vmem:[%s213 + $0xc] sm:$0xf]
      %v361 = vld [vmem:[%s213 + $0x10] sm:$0xf]
      %v362 = vld [vmem:[%s213 + $0x14] sm:$0xf]
      %v363 = vld [vmem:[%s213 + $0x18] sm:$0xf]
      %v364 = vld [vmem:[%s213 + $0x1c] sm:$0xf]
      %v365 = vld [vmem:[%s213 + $0x20] sm:$0xf]
      %v366 = vld [vmem:[%s213 + $0x24] sm:$0xf]
      %v367 = vld [vmem:[%s213 + $0x28] sm:$0xf]
      %v368 = vld [vmem:[%s213 + $0x2c] sm:$0xf]
      %v369 = vld [vmem:[%s213 + $0x30] sm:$0xf]
      %v370 = vld [vmem:[%s213 + $0x34] sm:$0xf]
      %v371 = vld [vmem:[%s213 + $0x38] sm:$0xf]
      %v372 = vld [vmem:[%s213 + $0x3c] sm:$0xf]
      %v373 = vld [vmem:[%s213 + $0x40] sm:$0xf]
      %v374 = vld [vmem:[%s213 + $0x44] sm:$0xf]
      %v375 = vld [vmem:[%s213 + $0x48] sm:$0xf]
      %v376 = vld [vmem:[%s213 + $0x4c] sm:$0xf]
      %v377 = vld [vmem:[%s213 + $0x50] sm:$0xf]
      %v378 = vld [vmem:[%s213 + $0x54] sm:$0xf]
      %v379 = vld [vmem:[%s213 + $0x58] sm:$0xf]
      %v380 = vld [vmem:[%s213 + $0x5c] sm:$0xf]
      %v381 = vld [vmem:[%s213 + $0x60] sm:$0xf]
      %v382 = vld [vmem:[%s213 + $0x64] sm:$0xf]
      %v383 = vld [vmem:[%s213 + $0x68] sm:$0xf]
      %v384 = vld [vmem:[%s213 + $0x6c] sm:$0xf]
      %v385 = vld [vmem:[%s213 + $0x70] sm:$0xf]
      %v386 = vld [vmem:[%s213 + $0x74] sm:$0xf]
      %v387 = vld [vmem:[%s213 + $0x78] sm:$0xf]
      %v388 = vld [vmem:[%s213 + $0x7c] sm:$0xf]
      %v389 = vld [vmem:[%s213 + $0x80] sm:$0xf]
      %v390 = vld [vmem:[%s213 + $0x84] sm:$0xf]
      %v391 = vld [vmem:[%s213 + $0x88] sm:$0xf]
      %v392 = vld [vmem:[%s213 + $0x8c] sm:$0xf]
      %v393 = vld [vmem:[%s213 + $0x90] sm:$0xf]
      %v394 = vld [vmem:[%s213 + $0x94] sm:$0xf]
      %v395 = vld [vmem:[%s213 + $0x98] sm:$0xf]
      %v396 = vld [vmem:[%s213 + $0x9c] sm:$0xf]
      %v397 = vld [vmem:[%s213 + $0xa0] sm:$0xf]
      %v398 = vld [vmem:[%s213 + $0xa4] sm:$0xf]
      %v399 = vld [vmem:[%s213 + $0xa8] sm:$0xf]
      %v400 = vld [vmem:[%s213 + $0xac] sm:$0xf]
      %v401 = vld [vmem:[%s213 + $0xb0] sm:$0xf]
      %v402 = vld [vmem:[%s213 + $0xb4] sm:$0xf]
      %v403 = vld [vmem:[%s213 + $0xb8] sm:$0xf]
      %v404 = vld [vmem:[%s213 + $0xbc] sm:$0xf]
      %v405 = vld [vmem:[%s213 + $0xc0] sm:$0xf]
      %v406 = vld [vmem:[%s213 + $0xc4] sm:$0xf]
      %v407 = vld [vmem:[%s213 + $0xc8] sm:$0xf]
      %v408 = vld [vmem:[%s213 + $0xcc] sm:$0xf]
      %v409 = vld [vmem:[%s213 + $0xd0] sm:$0xf]
      %v410 = vld [vmem:[%s213 + $0xd4] sm:$0xf]
      %v411 = vld [vmem:[%s213 + $0xd8] sm:$0xf]
      %v412 = vld [vmem:[%s213 + $0xdc] sm:$0xf]
      %v413 = vld [vmem:[%s213 + $0xe0] sm:$0xf]
      %v414 = vld [vmem:[%s213 + $0xe4] sm:$0xf]
      %v415 = vld [vmem:[%s213 + $0xe8] sm:$0xf]
      %v416 = vld [vmem:[%s213 + $0xec] sm:$0xf]
      %v417 = vld [vmem:[%s213 + $0xf0] sm:$0xf]
      %v418 = vld [vmem:[%s213 + $0xf4] sm:$0xf]
      %v419 = vld [vmem:[%s213 + $0xf8] sm:$0xf]
      %v420 = vld [vmem:[%s213 + $0xfc] sm:$0xf]
      %v421 = vld [vmem:[%s213 + $0x100] sm:$0xf]
      %v422 = vld [vmem:[%s213 + $0x104] sm:$0xf]
      %v423 = vld [vmem:[%s213 + $0x108] sm:$0xf]
      %v424 = vld [vmem:[%s213 + $0x10c] sm:$0xf]
      %v425 = vld [vmem:[%s213 + $0x110] sm:$0xf]
      %v426 = vld [vmem:[%s213 + $0x114] sm:$0xf]
      %v427 = vld [vmem:[%s213 + $0x118] sm:$0xf]
      %v428 = vld [vmem:[%s213 + $0x11c] sm:$0xf]
      %v429 = vld [vmem:[%s213 + $0x120] sm:$0xf]
      %v430 = vld [vmem:[%s213 + $0x124] sm:$0xf]
      %v431 = vld [vmem:[%s213 + $0x128] sm:$0xf]
      %v432 = vld [vmem:[%s213 + $0x12c] sm:$0xf]
      %v433 = vld [vmem:[%s213 + $0x130] sm:$0xf]
      %v434 = vld [vmem:[%s213 + $0x134] sm:$0xf]
      %v435 = vld [vmem:[%s213 + $0x138] sm:$0xf]
      %v436 = vld [vmem:[%s213 + $0x13c] sm:$0xf]
      %v437 = vld [vmem:[%s213 + $0x140] sm:$0xf]
      %v438 = vld [vmem:[%s213 + $0x144] sm:$0xf]
      %v439 = vld [vmem:[%s213 + $0x148] sm:$0xf]
      %v440 = vld [vmem:[%s213 + $0x14c] sm:$0xf]
      %v441 = vld [vmem:[%s213 + $0x150] sm:$0xf]
      %v442 = vld [vmem:[%s213 + $0x154] sm:$0xf]
      %v443 = vld [vmem:[%s213 + $0x158] sm:$0xf]
      %v444 = vld [vmem:[%s213 + $0x15c] sm:$0xf]
      %v445 = vld [vmem:[%s213 + $0x160] sm:$0xf]
      %v446 = vld [vmem:[%s213 + $0x164] sm:$0xf]
      %v447 = vld [vmem:[%s213 + $0x168] sm:$0xf]
      %v448 = vld [vmem:[%s213 + $0x16c] sm:$0xf]
      %v449 = vld [vmem:[%s213 + $0x170] sm:$0xf]
      %v450 = vld [vmem:[%s213 + $0x174] sm:$0xf]
      %v451 = vld [vmem:[%s213 + $0x178] sm:$0xf]
      %v452 = vld [vmem:[%s213 + $0x17c] sm:$0xf]
      %v453 = vld [vmem:[%s213 + $0x180] sm:$0xf]
      %v454 = vld [vmem:[%s213 + $0x184] sm:$0xf]
      %v455 = vld [vmem:[%s213 + $0x188] sm:$0xf]
      %v456 = vld [vmem:[%s213 + $0x18c] sm:$0xf]
      %v457 = vld [vmem:[%s213 + $0x190] sm:$0xf]
      %v458 = vld [vmem:[%s213 + $0x194] sm:$0xf]
      %v459 = vld [vmem:[%s213 + $0x198] sm:$0xf]
      %v460 = vld [vmem:[%s213 + $0x19c] sm:$0xf]
      %v461 = vld [vmem:[%s213 + $0x1a0] sm:$0xf]
      %v462 = vld [vmem:[%s213 + $0x1a4] sm:$0xf]
      %v463 = vld [vmem:[%s213 + $0x1a8] sm:$0xf]
      %v464 = vld [vmem:[%s213 + $0x1ac] sm:$0xf]
      %v465 = vld [vmem:[%s213 + $0x1b0] sm:$0xf]
      %v466 = vld [vmem:[%s213 + $0x1b4] sm:$0xf]
      %v467 = vld [vmem:[%s213 + $0x1b8] sm:$0xf]
      %v468 = vld [vmem:[%s213 + $0x1bc] sm:$0xf]
      %v469 = vld [vmem:[%s213 + $0x1c0] sm:$0xf]
      %v470 = vld [vmem:[%s213 + $0x1c4] sm:$0xf]
      %v471 = vld [vmem:[%s213 + $0x1c8] sm:$0xf]
      %v472 = vld [vmem:[%s213 + $0x1cc] sm:$0xf]
      %v473 = vld [vmem:[%s213 + $0x1d0] sm:$0xf]
      %v474 = vld [vmem:[%s213 + $0x1d4] sm:$0xf]
      %v475 = vld [vmem:[%s213 + $0x1d8] sm:$0xf]
      %v476 = vld [vmem:[%s213 + $0x1dc] sm:$0xf]
      %v477 = vld [vmem:[%s213 + $0x1e0] sm:$0xf]
      %v478 = vld [vmem:[%s213 + $0x1e4] sm:$0xf]
      %v479 = vld [vmem:[%s213 + $0x1e8] sm:$0xf]
      %v480 = vld [vmem:[%s213 + $0x1ec] sm:$0xf]
      %v481 = vld [vmem:[%s213 + $0x1f0] sm:$0xf]
      %v482 = vld [vmem:[%s213 + $0x1f4] sm:$0xf]
      %v483 = vld [vmem:[%s213 + $0x1f8] sm:$0xf]
      %v484 = vld [vmem:[%s213 + $0x1fc] sm:$0xf]
      %v485 = vld [vmem:[%s220] sm:$0xf]
      %v486 = vld [vmem:[%s220 + $0x4] sm:$0xf]
      %v487 = vld [vmem:[%s220 + $0x8] sm:$0xf]
      %v488 = vld [vmem:[%s220 + $0xc] sm:$0xf]
      %v489 = vld [vmem:[%s220 + $0x10] sm:$0xf]
      %v490 = vld [vmem:[%s220 + $0x14] sm:$0xf]
      %v491 = vld [vmem:[%s220 + $0x18] sm:$0xf]
      %v492 = vld [vmem:[%s220 + $0x1c] sm:$0xf]
      %v493 = vld [vmem:[%s220 + $0x20] sm:$0xf]
      %v494 = vld [vmem:[%s220 + $0x24] sm:$0xf]
      %v495 = vld [vmem:[%s220 + $0x28] sm:$0xf]
      %v496 = vld [vmem:[%s220 + $0x2c] sm:$0xf]
      %v497 = vld [vmem:[%s220 + $0x30] sm:$0xf]
      %v498 = vld [vmem:[%s220 + $0x34] sm:$0xf]
      %v499 = vld [vmem:[%s220 + $0x38] sm:$0xf]
      %v500 = vld [vmem:[%s220 + $0x3c] sm:$0xf]
      %v501 = vld [vmem:[%s220 + $0x40] sm:$0xf]
      %v502 = vld [vmem:[%s220 + $0x44] sm:$0xf]
      %v503 = vld [vmem:[%s220 + $0x48] sm:$0xf]
      %v504 = vld [vmem:[%s220 + $0x4c] sm:$0xf]
      %v505 = vld [vmem:[%s220 + $0x50] sm:$0xf]
      %v506 = vld [vmem:[%s220 + $0x54] sm:$0xf]
      %v507 = vld [vmem:[%s220 + $0x58] sm:$0xf]
      %v508 = vld [vmem:[%s220 + $0x5c] sm:$0xf]
      %v509 = vld [vmem:[%s220 + $0x60] sm:$0xf]
      %v510 = vld [vmem:[%s220 + $0x64] sm:$0xf]
      %v511 = vld [vmem:[%s220 + $0x68] sm:$0xf]
      %v512 = vld [vmem:[%s220 + $0x6c] sm:$0xf]
      %v513 = vld [vmem:[%s220 + $0x70] sm:$0xf]
      %v514 = vld [vmem:[%s220 + $0x74] sm:$0xf]
      %v515 = vld [vmem:[%s220 + $0x78] sm:$0xf]
      %v516 = vld [vmem:[%s220 + $0x7c] sm:$0xf]
      %v517 = vld [vmem:[%s220 + $0x80] sm:$0xf]
      %v518 = vld [vmem:[%s220 + $0x84] sm:$0xf]
      %v519 = vld [vmem:[%s220 + $0x88] sm:$0xf]
      %v520 = vld [vmem:[%s220 + $0x8c] sm:$0xf]
      %v521 = vld [vmem:[%s220 + $0x90] sm:$0xf]
      %v522 = vld [vmem:[%s220 + $0x94] sm:$0xf]
      %v523 = vld [vmem:[%s220 + $0x98] sm:$0xf]
      %v524 = vld [vmem:[%s220 + $0x9c] sm:$0xf]
      %v525 = vld [vmem:[%s220 + $0xa0] sm:$0xf]
      %v526 = vld [vmem:[%s220 + $0xa4] sm:$0xf]
      %v527 = vld [vmem:[%s220 + $0xa8] sm:$0xf]
      %v528 = vld [vmem:[%s220 + $0xac] sm:$0xf]
      %v529 = vld [vmem:[%s220 + $0xb0] sm:$0xf]
      %v530 = vld [vmem:[%s220 + $0xb4] sm:$0xf]
      %v531 = vld [vmem:[%s220 + $0xb8] sm:$0xf]
      %v532 = vld [vmem:[%s220 + $0xbc] sm:$0xf]
      %v533 = vld [vmem:[%s220 + $0xc0] sm:$0xf]
      %v534 = vld [vmem:[%s220 + $0xc4] sm:$0xf]
      %v535 = vld [vmem:[%s220 + $0xc8] sm:$0xf]
      %v536 = vld [vmem:[%s220 + $0xcc] sm:$0xf]
      %v537 = vld [vmem:[%s220 + $0xd0] sm:$0xf]
      %v538 = vld [vmem:[%s220 + $0xd4] sm:$0xf]
      %v539 = vld [vmem:[%s220 + $0xd8] sm:$0xf]
      %v540 = vld [vmem:[%s220 + $0xdc] sm:$0xf]
      %v541 = vld [vmem:[%s220 + $0xe0] sm:$0xf]
      %v542 = vld [vmem:[%s220 + $0xe4] sm:$0xf]
      %v543 = vld [vmem:[%s220 + $0xe8] sm:$0xf]
      %v544 = vld [vmem:[%s220 + $0xec] sm:$0xf]
      %v545 = vld [vmem:[%s220 + $0xf0] sm:$0xf]
      %v546 = vld [vmem:[%s220 + $0xf4] sm:$0xf]
      %v547 = vld [vmem:[%s220 + $0xf8] sm:$0xf]
      %v548 = vld [vmem:[%s220 + $0xfc] sm:$0xf]
      %v549 = vld [vmem:[%s220 + $0x100] sm:$0xf]
      %v550 = vld [vmem:[%s220 + $0x104] sm:$0xf]
      %v551 = vld [vmem:[%s220 + $0x108] sm:$0xf]
      %v552 = vld [vmem:[%s220 + $0x10c] sm:$0xf]
      %v553 = vld [vmem:[%s220 + $0x110] sm:$0xf]
      %v554 = vld [vmem:[%s220 + $0x114] sm:$0xf]
      %v555 = vld [vmem:[%s220 + $0x118] sm:$0xf]
      %v556 = vld [vmem:[%s220 + $0x11c] sm:$0xf]
      %v557 = vld [vmem:[%s220 + $0x120] sm:$0xf]
      %v558 = vld [vmem:[%s220 + $0x124] sm:$0xf]
      %v559 = vld [vmem:[%s220 + $0x128] sm:$0xf]
      %v560 = vld [vmem:[%s220 + $0x12c] sm:$0xf]
      %v561 = vld [vmem:[%s220 + $0x130] sm:$0xf]
      %v562 = vld [vmem:[%s220 + $0x134] sm:$0xf]
      %v563 = vld [vmem:[%s220 + $0x138] sm:$0xf]
      %v564 = vld [vmem:[%s220 + $0x13c] sm:$0xf]
      %v565 = vld [vmem:[%s220 + $0x140] sm:$0xf]
      %v566 = vld [vmem:[%s220 + $0x144] sm:$0xf]
      %v567 = vld [vmem:[%s220 + $0x148] sm:$0xf]
      %v568 = vld [vmem:[%s220 + $0x14c] sm:$0xf]
      %v569 = vld [vmem:[%s220 + $0x150] sm:$0xf]
      %v570 = vld [vmem:[%s220 + $0x154] sm:$0xf]
      %v571 = vld [vmem:[%s220 + $0x158] sm:$0xf]
      %v572 = vld [vmem:[%s220 + $0x15c] sm:$0xf]
      %v573 = vld [vmem:[%s220 + $0x160] sm:$0xf]
      %v574 = vld [vmem:[%s220 + $0x164] sm:$0xf]
      %v575 = vld [vmem:[%s220 + $0x168] sm:$0xf]
      %v576 = vld [vmem:[%s220 + $0x16c] sm:$0xf]
      %v577 = vld [vmem:[%s220 + $0x170] sm:$0xf]
      %v578 = vld [vmem:[%s220 + $0x174] sm:$0xf]
      %v579 = vld [vmem:[%s220 + $0x178] sm:$0xf]
      %v580 = vld [vmem:[%s220 + $0x17c] sm:$0xf]
      %v581 = vld [vmem:[%s220 + $0x180] sm:$0xf]
      %v582 = vld [vmem:[%s220 + $0x184] sm:$0xf]
      %v583 = vld [vmem:[%s220 + $0x188] sm:$0xf]
      %v584 = vld [vmem:[%s220 + $0x18c] sm:$0xf]
      %v585 = vld [vmem:[%s220 + $0x190] sm:$0xf]
      %v586 = vld [vmem:[%s220 + $0x194] sm:$0xf]
      %v587 = vld [vmem:[%s220 + $0x198] sm:$0xf]
      %v588 = vld [vmem:[%s220 + $0x19c] sm:$0xf]
      %v589 = vld [vmem:[%s220 + $0x1a0] sm:$0xf]
      %v590 = vld [vmem:[%s220 + $0x1a4] sm:$0xf]
      %v591 = vld [vmem:[%s220 + $0x1a8] sm:$0xf]
      %v592 = vld [vmem:[%s220 + $0x1ac] sm:$0xf]
      %v593 = vld [vmem:[%s220 + $0x1b0] sm:$0xf]
      %v594 = vld [vmem:[%s220 + $0x1b4] sm:$0xf]
      %v595 = vld [vmem:[%s220 + $0x1b8] sm:$0xf]
      %v596 = vld [vmem:[%s220 + $0x1bc] sm:$0xf]
      %v597 = vld [vmem:[%s220 + $0x1c0] sm:$0xf]
      %v598 = vld [vmem:[%s220 + $0x1c4] sm:$0xf]
      %v599 = vld [vmem:[%s220 + $0x1c8] sm:$0xf]
      %v600 = vld [vmem:[%s220 + $0x1cc] sm:$0xf]
      %v601 = vld [vmem:[%s220 + $0x1d0] sm:$0xf]
      %v602 = vld [vmem:[%s220 + $0x1d4] sm:$0xf]
      %v603 = vld [vmem:[%s220 + $0x1d8] sm:$0xf]
      %v604 = vld [vmem:[%s220 + $0x1dc] sm:$0xf]
      %v605 = vld [vmem:[%s220 + $0x1e0] sm:$0xf]
      %v606 = vld [vmem:[%s220 + $0x1e4] sm:$0xf]
      %v607 = vld [vmem:[%s220 + $0x1e8] sm:$0xf]
      %v608 = vld [vmem:[%s220 + $0x1ec] sm:$0xf]
      %v609 = vld [vmem:[%s220 + $0x1f0] sm:$0xf]
      %v610 = vld [vmem:[%s220 + $0x1f4] sm:$0xf]
      %v611 = vld [vmem:[%s220 + $0x1f8] sm:$0xf]
      %v612 = vld [vmem:[%s220 + $0x1fc] sm:$0xf]
      %v629 = vunpack.c.l.b16 %v229
      %v630 = vunpack.c.l.b16 %v230
      %v631 = vunpack.c.l.b16 %v231
      %v632 = vunpack.c.l.b16 %v232
      %v633 = vunpack.c.l.b16 %v233
      %v634 = vunpack.c.l.b16 %v234
      %v635 = vunpack.c.l.b16 %v235
      %v636 = vunpack.c.l.b16 %v236
      %v637 = vunpack.c.l.b16 %v237
      %v638 = vunpack.c.l.b16 %v238
      %v639 = vunpack.c.l.b16 %v239
      %v640 = vunpack.c.l.b16 %v240
      %v641 = vunpack.c.l.b16 %v241
      %v642 = vunpack.c.l.b16 %v242
      %v643 = vunpack.c.l.b16 %v243
      %v644 = vunpack.c.l.b16 %v244
      %v645 = vpack.c.b16 %v630, %v629
      %v646 = vpack.c.b16 %v632, %v631
      %v647 = vpack.c.b16 %v634, %v633
      %v648 = vpack.c.b16 %v636, %v635
      %v649 = vpack.c.b16 %v638, %v637
      %v650 = vpack.c.b16 %v640, %v639
      %v651 = vpack.c.b16 %v642, %v641
      %v652 = vpack.c.b16 %v644, %v643
      %v677 = vunpack.c.l.b16 %v357
      %v678 = vunpack.c.l.b16 %v358
      %v679 = vunpack.c.l.b16 %v359
      %v680 = vunpack.c.l.b16 %v360
      %v681 = vunpack.c.l.b16 %v361
      %v682 = vunpack.c.l.b16 %v362
      %v683 = vunpack.c.l.b16 %v363
      %v684 = vunpack.c.l.b16 %v364
      %v685 = vunpack.c.l.b16 %v365
      %v686 = vunpack.c.l.b16 %v366
      %v687 = vunpack.c.l.b16 %v367
      %v688 = vunpack.c.l.b16 %v368
      %v689 = vunpack.c.l.b16 %v369
      %v690 = vunpack.c.l.b16 %v370
      %v691 = vunpack.c.l.b16 %v371
      %v692 = vunpack.c.l.b16 %v372
      %v693 = vpack.c.b16 %v678, %v677
      %v694 = vpack.c.b16 %v680, %v679
      %v695 = vpack.c.b16 %v682, %v681
      %v696 = vpack.c.b16 %v684, %v683
      %v697 = vpack.c.b16 %v686, %v685
      %v698 = vpack.c.b16 %v688, %v687
      %v699 = vpack.c.b16 %v690, %v689
      %v700 = vpack.c.b16 %v692, %v691
      %709 = vmatpush.bf16.xpose.msra.mxu0 %v700
      %710 = vmatpush.bf16.xpose.msra.mxu0 %v699
      %711 = vmatpush.bf16.xpose.msra.mxu0 %v698
      %712 = vmatpush.bf16.xpose.msra.mxu0 %v697
      %713 = vmatpush.bf16.xpose.msra.mxu0 %v696
      %714 = vmatpush.bf16.xpose.msra.mxu0 %v695
      %715 = vmatpush.bf16.xpose.msra.mxu0 %v694
      %716 = vmatpush.bf16.xpose.msra.mxu0 %v693
      %717 = vmatmul.bf16.gmra.mxu0 %v645
      %v718 = vpop.f32.mrf.mxu0
      %v719 = vadd.f32 0.0, %v718
      %v720 = vpop.f32.mrf.mxu0
      %v721 = vadd.f32 0.0, %v720
      %722 = vmatmul.bf16.gmra.mxu0 %v646
      %v723 = vpop.f32.mrf.mxu0
      %v724 = vadd.f32 0.0, %v723
      %v725 = vpop.f32.mrf.mxu0
      %v726 = vadd.f32 0.0, %v725
      %727 = vmatmul.bf16.gmra.mxu0 %v647
      %v728 = vpop.f32.mrf.mxu0
      %v729 = vadd.f32 0.0, %v728
      %v730 = vpop.f32.mrf.mxu0
      %v731 = vadd.f32 0.0, %v730
      %732 = vmatmul.bf16.gmra.mxu0 %v648
      %v733 = vpop.f32.mrf.mxu0
      %v734 = vadd.f32 0.0, %v733
      %v735 = vpop.f32.mrf.mxu0
      %v736 = vadd.f32 0.0, %v735
      %737 = vmatmul.bf16.gmra.mxu0 %v649
      %v738 = vpop.f32.mrf.mxu0
      %v739 = vadd.f32 0.0, %v738
      %v740 = vpop.f32.mrf.mxu0
      %v741 = vadd.f32 0.0, %v740
      %742 = vmatmul.bf16.gmra.mxu0 %v650
      %v743 = vpop.f32.mrf.mxu0
      %v744 = vadd.f32 0.0, %v743
      %v745 = vpop.f32.mrf.mxu0
      %v746 = vadd.f32 0.0, %v745
      %747 = vmatmul.bf16.gmra.mxu0 %v651
      %v748 = vpop.f32.mrf.mxu0
      %v749 = vadd.f32 0.0, %v748
      %v750 = vpop.f32.mrf.mxu0
      %v751 = vadd.f32 0.0, %v750
      %752 = vmatmul.bf16.gmra.mxu0 %v652
      %v753 = vpop.f32.mrf.mxu0
      %v754 = vadd.f32 0.0, %v753
      %v755 = vpop.f32.mrf.mxu0
      %v756 = vadd.f32 0.0, %v755
      %757 = vdwg.mxu0
      %v774 = vunpack.c.l.b16 %v245
      %v775 = vunpack.c.l.b16 %v246
      %v776 = vunpack.c.l.b16 %v247
      %v777 = vunpack.c.l.b16 %v248
      %v778 = vunpack.c.l.b16 %v249
      %v779 = vunpack.c.l.b16 %v250
      %v780 = vunpack.c.l.b16 %v251
      %v781 = vunpack.c.l.b16 %v252
      %v782 = vunpack.c.l.b16 %v253
      %v783 = vunpack.c.l.b16 %v254
      %v784 = vunpack.c.l.b16 %v255
      %v785 = vunpack.c.l.b16 %v256
      %v786 = vunpack.c.l.b16 %v257
      %v787 = vunpack.c.l.b16 %v258
      %v788 = vunpack.c.l.b16 %v259
      %v789 = vunpack.c.l.b16 %v260
      %v790 = vpack.c.b16 %v775, %v774
      %v791 = vpack.c.b16 %v777, %v776
      %v792 = vpack.c.b16 %v779, %v778
      %v793 = vpack.c.b16 %v781, %v780
      %v794 = vpack.c.b16 %v783, %v782
      %v795 = vpack.c.b16 %v785, %v784
      %v796 = vpack.c.b16 %v787, %v786
      %v797 = vpack.c.b16 %v789, %v788
      %v822 = vunpack.c.l.b16 %v373
      %v823 = vunpack.c.l.b16 %v374
      %v824 = vunpack.c.l.b16 %v375
      %v825 = vunpack.c.l.b16 %v376
      %v826 = vunpack.c.l.b16 %v377
      %v827 = vunpack.c.l.b16 %v378
      %v828 = vunpack.c.l.b16 %v379
      %v829 = vunpack.c.l.b16 %v380
      %v830 = vunpack.c.l.b16 %v381
      %v831 = vunpack.c.l.b16 %v382
      %v832 = vunpack.c.l.b16 %v383
      %v833 = vunpack.c.l.b16 %v384
      %v834 = vunpack.c.l.b16 %v385
      %v835 = vunpack.c.l.b16 %v386
      %v836 = vunpack.c.l.b16 %v387
      %v837 = vunpack.c.l.b16 %v388
      %v838 = vpack.c.b16 %v823, %v822
      %v839 = vpack.c.b16 %v825, %v824
      %v840 = vpack.c.b16 %v827, %v826
      %v841 = vpack.c.b16 %v829, %v828
      %v842 = vpack.c.b16 %v831, %v830
      %v843 = vpack.c.b16 %v833, %v832
      %v844 = vpack.c.b16 %v835, %v834
      %v845 = vpack.c.b16 %v837, %v836
      %854 = vmatpush.bf16.xpose.msra.mxu0 %v845
      %855 = vmatpush.bf16.xpose.msra.mxu0 %v844
      %856 = vmatpush.bf16.xpose.msra.mxu0 %v843
      %857 = vmatpush.bf16.xpose.msra.mxu0 %v842
      %858 = vmatpush.bf16.xpose.msra.mxu0 %v841
      %859 = vmatpush.bf16.xpose.msra.mxu0 %v840
      %860 = vmatpush.bf16.xpose.msra.mxu0 %v839
      %861 = vmatpush.bf16.xpose.msra.mxu0 %v838
      %862 = vmatmul.bf16.gmra.mxu0 %v790
      %v863 = vpop.f32.mrf.mxu0
      %v864 = vadd.f32 0.0, %v863
      %v865 = vpop.f32.mrf.mxu0
      %v866 = vadd.f32 0.0, %v865
      %867 = vmatmul.bf16.gmra.mxu0 %v791
      %v868 = vpop.f32.mrf.mxu0
      %v869 = vadd.f32 0.0, %v868
      %v870 = vpop.f32.mrf.mxu0
      %v871 = vadd.f32 0.0, %v870
      %872 = vmatmul.bf16.gmra.mxu0 %v792
      %v873 = vpop.f32.mrf.mxu0
      %v874 = vadd.f32 0.0, %v873
      %v875 = vpop.f32.mrf.mxu0
      %v876 = vadd.f32 0.0, %v875
      %877 = vmatmul.bf16.gmra.mxu0 %v793
      %v878 = vpop.f32.mrf.mxu0
      %v879 = vadd.f32 0.0, %v878
      %v880 = vpop.f32.mrf.mxu0
      %v881 = vadd.f32 0.0, %v880
      %882 = vmatmul.bf16.gmra.mxu0 %v794
      %v883 = vpop.f32.mrf.mxu0
      %v884 = vadd.f32 0.0, %v883
      %v885 = vpop.f32.mrf.mxu0
      %v886 = vadd.f32 0.0, %v885
      %887 = vmatmul.bf16.gmra.mxu0 %v795
      %v888 = vpop.f32.mrf.mxu0
      %v889 = vadd.f32 0.0, %v888
      %v890 = vpop.f32.mrf.mxu0
      %v891 = vadd.f32 0.0, %v890
      %892 = vmatmul.bf16.gmra.mxu0 %v796
      %v893 = vpop.f32.mrf.mxu0
      %v894 = vadd.f32 0.0, %v893
      %v895 = vpop.f32.mrf.mxu0
      %v896 = vadd.f32 0.0, %v895
      %897 = vmatmul.bf16.gmra.mxu0 %v797
      %v898 = vpop.f32.mrf.mxu0
      %v899 = vadd.f32 0.0, %v898
      %v900 = vpop.f32.mrf.mxu0
      %v901 = vadd.f32 0.0, %v900
      %902 = vdwg.mxu0
      %v919 = vunpack.c.l.b16 %v261
      %v920 = vunpack.c.l.b16 %v262
      %v921 = vunpack.c.l.b16 %v263
      %v922 = vunpack.c.l.b16 %v264
      %v923 = vunpack.c.l.b16 %v265
      %v924 = vunpack.c.l.b16 %v266
      %v925 = vunpack.c.l.b16 %v267
      %v926 = vunpack.c.l.b16 %v268
      %v927 = vunpack.c.l.b16 %v269
      %v928 = vunpack.c.l.b16 %v270
      %v929 = vunpack.c.l.b16 %v271
      %v930 = vunpack.c.l.b16 %v272
      %v931 = vunpack.c.l.b16 %v273
      %v932 = vunpack.c.l.b16 %v274
      %v933 = vunpack.c.l.b16 %v275
      %v934 = vunpack.c.l.b16 %v276
      %v935 = vpack.c.b16 %v920, %v919
      %v936 = vpack.c.b16 %v922, %v921
      %v937 = vpack.c.b16 %v924, %v923
      %v938 = vpack.c.b16 %v926, %v925
      %v939 = vpack.c.b16 %v928, %v927
      %v940 = vpack.c.b16 %v930, %v929
      %v941 = vpack.c.b16 %v932, %v931
      %v942 = vpack.c.b16 %v934, %v933
      %v967 = vunpack.c.l.b16 %v389
      %v968 = vunpack.c.l.b16 %v390
      %v969 = vunpack.c.l.b16 %v391
      %v970 = vunpack.c.l.b16 %v392
      %v971 = vunpack.c.l.b16 %v393
      %v972 = vunpack.c.l.b16 %v394
      %v973 = vunpack.c.l.b16 %v395
      %v974 = vunpack.c.l.b16 %v396
      %v975 = vunpack.c.l.b16 %v397
      %v976 = vunpack.c.l.b16 %v398
      %v977 = vunpack.c.l.b16 %v399
      %v978 = vunpack.c.l.b16 %v400
      %v979 = vunpack.c.l.b16 %v401
      %v980 = vunpack.c.l.b16 %v402
      %v981 = vunpack.c.l.b16 %v403
      %v982 = vunpack.c.l.b16 %v404
      %v983 = vpack.c.b16 %v968, %v967
      %v984 = vpack.c.b16 %v970, %v969
      %v985 = vpack.c.b16 %v972, %v971
      %v986 = vpack.c.b16 %v974, %v973
      %v987 = vpack.c.b16 %v976, %v975
      %v988 = vpack.c.b16 %v978, %v977
      %v989 = vpack.c.b16 %v980, %v979
      %v990 = vpack.c.b16 %v982, %v981
      %999 = vmatpush.bf16.xpose.msra.mxu0 %v990
      %1000 = vmatpush.bf16.xpose.msra.mxu0 %v989
      %1001 = vmatpush.bf16.xpose.msra.mxu0 %v988
      %1002 = vmatpush.bf16.xpose.msra.mxu0 %v987
      %1003 = vmatpush.bf16.xpose.msra.mxu0 %v986
      %1004 = vmatpush.bf16.xpose.msra.mxu0 %v985
      %1005 = vmatpush.bf16.xpose.msra.mxu0 %v984
      %1006 = vmatpush.bf16.xpose.msra.mxu0 %v983
      %1007 = vmatmul.bf16.gmra.mxu0 %v935
      %v1008 = vpop.f32.mrf.mxu0
      %v1009 = vadd.f32 0.0, %v1008
      %v1010 = vpop.f32.mrf.mxu0
      %v1011 = vadd.f32 0.0, %v1010
      %1012 = vmatmul.bf16.gmra.mxu0 %v936
      %v1013 = vpop.f32.mrf.mxu0
      %v1014 = vadd.f32 0.0, %v1013
      %v1015 = vpop.f32.mrf.mxu0
      %v1016 = vadd.f32 0.0, %v1015
      %1017 = vmatmul.bf16.gmra.mxu0 %v937
      %v1018 = vpop.f32.mrf.mxu0
      %v1019 = vadd.f32 0.0, %v1018
      %v1020 = vpop.f32.mrf.mxu0
      %v1021 = vadd.f32 0.0, %v1020
      %1022 = vmatmul.bf16.gmra.mxu0 %v938
      %v1023 = vpop.f32.mrf.mxu0
      %v1024 = vadd.f32 0.0, %v1023
      %v1025 = vpop.f32.mrf.mxu0
      %v1026 = vadd.f32 0.0, %v1025
      %1027 = vmatmul.bf16.gmra.mxu0 %v939
      %v1028 = vpop.f32.mrf.mxu0
      %v1029 = vadd.f32 0.0, %v1028
      %v1030 = vpop.f32.mrf.mxu0
      %v1031 = vadd.f32 0.0, %v1030
      %1032 = vmatmul.bf16.gmra.mxu0 %v940
      %v1033 = vpop.f32.mrf.mxu0
      %v1034 = vadd.f32 0.0, %v1033
      %v1035 = vpop.f32.mrf.mxu0
      %v1036 = vadd.f32 0.0, %v1035
      %1037 = vmatmul.bf16.gmra.mxu0 %v941
      %v1038 = vpop.f32.mrf.mxu0
      %v1039 = vadd.f32 0.0, %v1038
      %v1040 = vpop.f32.mrf.mxu0
      %v1041 = vadd.f32 0.0, %v1040
      %1042 = vmatmul.bf16.gmra.mxu0 %v942
      %v1043 = vpop.f32.mrf.mxu0
      %v1044 = vadd.f32 0.0, %v1043
      %v1045 = vpop.f32.mrf.mxu0
      %v1046 = vadd.f32 0.0, %v1045
      %1047 = vdwg.mxu0
      %v1064 = vunpack.c.l.b16 %v277
      %v1065 = vunpack.c.l.b16 %v278
      %v1066 = vunpack.c.l.b16 %v279
      %v1067 = vunpack.c.l.b16 %v280
      %v1068 = vunpack.c.l.b16 %v281
      %v1069 = vunpack.c.l.b16 %v282
      %v1070 = vunpack.c.l.b16 %v283
      %v1071 = vunpack.c.l.b16 %v284
      %v1072 = vunpack.c.l.b16 %v285
      %v1073 = vunpack.c.l.b16 %v286
      %v1074 = vunpack.c.l.b16 %v287
      %v1075 = vunpack.c.l.b16 %v288
      %v1076 = vunpack.c.l.b16 %v289
      %v1077 = vunpack.c.l.b16 %v290
      %v1078 = vunpack.c.l.b16 %v291
      %v1079 = vunpack.c.l.b16 %v292
      %v1080 = vpack.c.b16 %v1065, %v1064
      %v1081 = vpack.c.b16 %v1067, %v1066
      %v1082 = vpack.c.b16 %v1069, %v1068
      %v1083 = vpack.c.b16 %v1071, %v1070
      %v1084 = vpack.c.b16 %v1073, %v1072
      %v1085 = vpack.c.b16 %v1075, %v1074
      %v1086 = vpack.c.b16 %v1077, %v1076
      %v1087 = vpack.c.b16 %v1079, %v1078
      %v1112 = vunpack.c.l.b16 %v405
      %v1113 = vunpack.c.l.b16 %v406
      %v1114 = vunpack.c.l.b16 %v407
      %v1115 = vunpack.c.l.b16 %v408
      %v1116 = vunpack.c.l.b16 %v409
      %v1117 = vunpack.c.l.b16 %v410
      %v1118 = vunpack.c.l.b16 %v411
      %v1119 = vunpack.c.l.b16 %v412
      %v1120 = vunpack.c.l.b16 %v413
      %v1121 = vunpack.c.l.b16 %v414
      %v1122 = vunpack.c.l.b16 %v415
      %v1123 = vunpack.c.l.b16 %v416
      %v1124 = vunpack.c.l.b16 %v417
      %v1125 = vunpack.c.l.b16 %v418
      %v1126 = vunpack.c.l.b16 %v419
      %v1127 = vunpack.c.l.b16 %v420
      %v1128 = vpack.c.b16 %v1113, %v1112
      %v1129 = vpack.c.b16 %v1115, %v1114
      %v1130 = vpack.c.b16 %v1117, %v1116
      %v1131 = vpack.c.b16 %v1119, %v1118
      %v1132 = vpack.c.b16 %v1121, %v1120
      %v1133 = vpack.c.b16 %v1123, %v1122
      %v1134 = vpack.c.b16 %v1125, %v1124
      %v1135 = vpack.c.b16 %v1127, %v1126
      %1144 = vmatpush.bf16.xpose.msra.mxu0 %v1135
      %1145 = vmatpush.bf16.xpose.msra.mxu0 %v1134
      %1146 = vmatpush.bf16.xpose.msra.mxu0 %v1133
      %1147 = vmatpush.bf16.xpose.msra.mxu0 %v1132
      %1148 = vmatpush.bf16.xpose.msra.mxu0 %v1131
      %1149 = vmatpush.bf16.xpose.msra.mxu0 %v1130
      %1150 = vmatpush.bf16.xpose.msra.mxu0 %v1129
      %1151 = vmatpush.bf16.xpose.msra.mxu0 %v1128
      %1152 = vmatmul.bf16.gmra.mxu0 %v1080
      %v1153 = vpop.f32.mrf.mxu0
      %v1154 = vadd.f32 0.0, %v1153
      %v1155 = vpop.f32.mrf.mxu0
      %v1156 = vadd.f32 0.0, %v1155
      %1157 = vmatmul.bf16.gmra.mxu0 %v1081
      %v1158 = vpop.f32.mrf.mxu0
      %v1159 = vadd.f32 0.0, %v1158
      %v1160 = vpop.f32.mrf.mxu0
      %v1161 = vadd.f32 0.0, %v1160
      %1162 = vmatmul.bf16.gmra.mxu0 %v1082
      %v1163 = vpop.f32.mrf.mxu0
      %v1164 = vadd.f32 0.0, %v1163
      %v1165 = vpop.f32.mrf.mxu0
      %v1166 = vadd.f32 0.0, %v1165
      %1167 = vmatmul.bf16.gmra.mxu0 %v1083
      %v1168 = vpop.f32.mrf.mxu0
      %v1169 = vadd.f32 0.0, %v1168
      %v1170 = vpop.f32.mrf.mxu0
      %v1171 = vadd.f32 0.0, %v1170
      %1172 = vmatmul.bf16.gmra.mxu0 %v1084
      %v1173 = vpop.f32.mrf.mxu0
      %v1174 = vadd.f32 0.0, %v1173
      %v1175 = vpop.f32.mrf.mxu0
      %v1176 = vadd.f32 0.0, %v1175
      %1177 = vmatmul.bf16.gmra.mxu0 %v1085
      %v1178 = vpop.f32.mrf.mxu0
      %v1179 = vadd.f32 0.0, %v1178
      %v1180 = vpop.f32.mrf.mxu0
      %v1181 = vadd.f32 0.0, %v1180
      %1182 = vmatmul.bf16.gmra.mxu0 %v1086
      %v1183 = vpop.f32.mrf.mxu0
      %v1184 = vadd.f32 0.0, %v1183
      %v1185 = vpop.f32.mrf.mxu0
      %v1186 = vadd.f32 0.0, %v1185
      %1187 = vmatmul.bf16.gmra.mxu0 %v1087
      %v1188 = vpop.f32.mrf.mxu0
      %v1189 = vadd.f32 0.0, %v1188
      %v1190 = vpop.f32.mrf.mxu0
      %v1191 = vadd.f32 0.0, %v1190
      %1192 = vdwg.mxu0
      %v1209 = vunpack.c.l.b16 %v293
      %v1210 = vunpack.c.l.b16 %v294
      %v1211 = vunpack.c.l.b16 %v295
      %v1212 = vunpack.c.l.b16 %v296
      %v1213 = vunpack.c.l.b16 %v297
      %v1214 = vunpack.c.l.b16 %v298
      %v1215 = vunpack.c.l.b16 %v299
      %v1216 = vunpack.c.l.b16 %v300
      %v1217 = vunpack.c.l.b16 %v301
      %v1218 = vunpack.c.l.b16 %v302
      %v1219 = vunpack.c.l.b16 %v303
      %v1220 = vunpack.c.l.b16 %v304
      %v1221 = vunpack.c.l.b16 %v305
      %v1222 = vunpack.c.l.b16 %v306
      %v1223 = vunpack.c.l.b16 %v307
      %v1224 = vunpack.c.l.b16 %v308
      %v1225 = vpack.c.b16 %v1210, %v1209
      %v1226 = vpack.c.b16 %v1212, %v1211
      %v1227 = vpack.c.b16 %v1214, %v1213
      %v1228 = vpack.c.b16 %v1216, %v1215
      %v1229 = vpack.c.b16 %v1218, %v1217
      %v1230 = vpack.c.b16 %v1220, %v1219
      %v1231 = vpack.c.b16 %v1222, %v1221
      %v1232 = vpack.c.b16 %v1224, %v1223
      %v1257 = vunpack.c.l.b16 %v421
      %v1258 = vunpack.c.l.b16 %v422
      %v1259 = vunpack.c.l.b16 %v423
      %v1260 = vunpack.c.l.b16 %v424
      %v1261 = vunpack.c.l.b16 %v425
      %v1262 = vunpack.c.l.b16 %v426
      %v1263 = vunpack.c.l.b16 %v427
      %v1264 = vunpack.c.l.b16 %v428
      %v1265 = vunpack.c.l.b16 %v429
      %v1266 = vunpack.c.l.b16 %v430
      %v1267 = vunpack.c.l.b16 %v431
      %v1268 = vunpack.c.l.b16 %v432
      %v1269 = vunpack.c.l.b16 %v433
      %v1270 = vunpack.c.l.b16 %v434
      %v1271 = vunpack.c.l.b16 %v435
      %v1272 = vunpack.c.l.b16 %v436
      %v1273 = vpack.c.b16 %v1258, %v1257
      %v1274 = vpack.c.b16 %v1260, %v1259
      %v1275 = vpack.c.b16 %v1262, %v1261
      %v1276 = vpack.c.b16 %v1264, %v1263
      %v1277 = vpack.c.b16 %v1266, %v1265
      %v1278 = vpack.c.b16 %v1268, %v1267
      %v1279 = vpack.c.b16 %v1270, %v1269
      %v1280 = vpack.c.b16 %v1272, %v1271
      %1289 = vmatpush.bf16.xpose.msra.mxu0 %v1280
      %1290 = vmatpush.bf16.xpose.msra.mxu0 %v1279
      %1291 = vmatpush.bf16.xpose.msra.mxu0 %v1278
      %1292 = vmatpush.bf16.xpose.msra.mxu0 %v1277
      %1293 = vmatpush.bf16.xpose.msra.mxu0 %v1276
      %1294 = vmatpush.bf16.xpose.msra.mxu0 %v1275
      %1295 = vmatpush.bf16.xpose.msra.mxu0 %v1274
      %1296 = vmatpush.bf16.xpose.msra.mxu0 %v1273
      %1297 = vmatmul.bf16.gmra.mxu0 %v1225
      %v1298 = vpop.f32.mrf.mxu0
      %v1299 = vadd.f32 0.0, %v1298
      %v1300 = vpop.f32.mrf.mxu0
      %v1301 = vadd.f32 0.0, %v1300
      %1302 = vmatmul.bf16.gmra.mxu0 %v1226
      %v1303 = vpop.f32.mrf.mxu0
      %v1304 = vadd.f32 0.0, %v1303
      %v1305 = vpop.f32.mrf.mxu0
      %v1306 = vadd.f32 0.0, %v1305
      %1307 = vmatmul.bf16.gmra.mxu0 %v1227
      %v1308 = vpop.f32.mrf.mxu0
      %v1309 = vadd.f32 0.0, %v1308
      %v1310 = vpop.f32.mrf.mxu0
      %v1311 = vadd.f32 0.0, %v1310
      %1312 = vmatmul.bf16.gmra.mxu0 %v1228
      %v1313 = vpop.f32.mrf.mxu0
      %v1314 = vadd.f32 0.0, %v1313
      %v1315 = vpop.f32.mrf.mxu0
      %v1316 = vadd.f32 0.0, %v1315
      %1317 = vmatmul.bf16.gmra.mxu0 %v1229
      %v1318 = vpop.f32.mrf.mxu0
      %v1319 = vadd.f32 0.0, %v1318
      %v1320 = vpop.f32.mrf.mxu0
      %v1321 = vadd.f32 0.0, %v1320
      %1322 = vmatmul.bf16.gmra.mxu0 %v1230
      %v1323 = vpop.f32.mrf.mxu0
      %v1324 = vadd.f32 0.0, %v1323
      %v1325 = vpop.f32.mrf.mxu0
      %v1326 = vadd.f32 0.0, %v1325
      %1327 = vmatmul.bf16.gmra.mxu0 %v1231
      %v1328 = vpop.f32.mrf.mxu0
      %v1329 = vadd.f32 0.0, %v1328
      %v1330 = vpop.f32.mrf.mxu0
      %v1331 = vadd.f32 0.0, %v1330
      %1332 = vmatmul.bf16.gmra.mxu0 %v1232
      %v1333 = vpop.f32.mrf.mxu0
      %v1334 = vadd.f32 0.0, %v1333
      %v1335 = vpop.f32.mrf.mxu0
      %v1336 = vadd.f32 0.0, %v1335
      %1337 = vdwg.mxu0
      %v1354 = vunpack.c.l.b16 %v309
      %v1355 = vunpack.c.l.b16 %v310
      %v1356 = vunpack.c.l.b16 %v311
      %v1357 = vunpack.c.l.b16 %v312
      %v1358 = vunpack.c.l.b16 %v313
      %v1359 = vunpack.c.l.b16 %v314
      %v1360 = vunpack.c.l.b16 %v315
      %v1361 = vunpack.c.l.b16 %v316
      %v1362 = vunpack.c.l.b16 %v317
      %v1363 = vunpack.c.l.b16 %v318
      %v1364 = vunpack.c.l.b16 %v319
      %v1365 = vunpack.c.l.b16 %v320
      %v1366 = vunpack.c.l.b16 %v321
      %v1367 = vunpack.c.l.b16 %v322
      %v1368 = vunpack.c.l.b16 %v323
      %v1369 = vunpack.c.l.b16 %v324
      %v1370 = vpack.c.b16 %v1355, %v1354
      %v1371 = vpack.c.b16 %v1357, %v1356
      %v1372 = vpack.c.b16 %v1359, %v1358
      %v1373 = vpack.c.b16 %v1361, %v1360
      %v1374 = vpack.c.b16 %v1363, %v1362
      %v1375 = vpack.c.b16 %v1365, %v1364
      %v1376 = vpack.c.b16 %v1367, %v1366
      %v1377 = vpack.c.b16 %v1369, %v1368
      %v1402 = vunpack.c.l.b16 %v437
      %v1403 = vunpack.c.l.b16 %v438
      %v1404 = vunpack.c.l.b16 %v439
      %v1405 = vunpack.c.l.b16 %v440
      %v1406 = vunpack.c.l.b16 %v441
      %v1407 = vunpack.c.l.b16 %v442
      %v1408 = vunpack.c.l.b16 %v443
      %v1409 = vunpack.c.l.b16 %v444
      %v1410 = vunpack.c.l.b16 %v445
      %v1411 = vunpack.c.l.b16 %v446
      %v1412 = vunpack.c.l.b16 %v447
      %v1413 = vunpack.c.l.b16 %v448
      %v1414 = vunpack.c.l.b16 %v449
      %v1415 = vunpack.c.l.b16 %v450
      %v1416 = vunpack.c.l.b16 %v451
      %v1417 = vunpack.c.l.b16 %v452
      %v1418 = vpack.c.b16 %v1403, %v1402
      %v1419 = vpack.c.b16 %v1405, %v1404
      %v1420 = vpack.c.b16 %v1407, %v1406
      %v1421 = vpack.c.b16 %v1409, %v1408
      %v1422 = vpack.c.b16 %v1411, %v1410
      %v1423 = vpack.c.b16 %v1413, %v1412
      %v1424 = vpack.c.b16 %v1415, %v1414
      %v1425 = vpack.c.b16 %v1417, %v1416
      %1434 = vmatpush.bf16.xpose.msra.mxu0 %v1425
      %1435 = vmatpush.bf16.xpose.msra.mxu0 %v1424
      %1436 = vmatpush.bf16.xpose.msra.mxu0 %v1423
      %1437 = vmatpush.bf16.xpose.msra.mxu0 %v1422
      %1438 = vmatpush.bf16.xpose.msra.mxu0 %v1421
      %1439 = vmatpush.bf16.xpose.msra.mxu0 %v1420
      %1440 = vmatpush.bf16.xpose.msra.mxu0 %v1419
      %1441 = vmatpush.bf16.xpose.msra.mxu0 %v1418
      %1442 = vmatmul.bf16.gmra.mxu0 %v1370
      %v1443 = vpop.f32.mrf.mxu0
      %v1444 = vadd.f32 0.0, %v1443
      %v1445 = vpop.f32.mrf.mxu0
      %v1446 = vadd.f32 0.0, %v1445
      %1447 = vmatmul.bf16.gmra.mxu0 %v1371
      %v1448 = vpop.f32.mrf.mxu0
      %v1449 = vadd.f32 0.0, %v1448
      %v1450 = vpop.f32.mrf.mxu0
      %v1451 = vadd.f32 0.0, %v1450
      %1452 = vmatmul.bf16.gmra.mxu0 %v1372
      %v1453 = vpop.f32.mrf.mxu0
      %v1454 = vadd.f32 0.0, %v1453
      %v1455 = vpop.f32.mrf.mxu0
      %v1456 = vadd.f32 0.0, %v1455
      %1457 = vmatmul.bf16.gmra.mxu0 %v1373
      %v1458 = vpop.f32.mrf.mxu0
      %v1459 = vadd.f32 0.0, %v1458
      %v1460 = vpop.f32.mrf.mxu0
      %v1461 = vadd.f32 0.0, %v1460
      %1462 = vmatmul.bf16.gmra.mxu0 %v1374
      %v1463 = vpop.f32.mrf.mxu0
      %v1464 = vadd.f32 0.0, %v1463
      %v1465 = vpop.f32.mrf.mxu0
      %v1466 = vadd.f32 0.0, %v1465
      %1467 = vmatmul.bf16.gmra.mxu0 %v1375
      %v1468 = vpop.f32.mrf.mxu0
      %v1469 = vadd.f32 0.0, %v1468
      %v1470 = vpop.f32.mrf.mxu0
      %v1471 = vadd.f32 0.0, %v1470
      %1472 = vmatmul.bf16.gmra.mxu0 %v1376
      %v1473 = vpop.f32.mrf.mxu0
      %v1474 = vadd.f32 0.0, %v1473
      %v1475 = vpop.f32.mrf.mxu0
      %v1476 = vadd.f32 0.0, %v1475
      %1477 = vmatmul.bf16.gmra.mxu0 %v1377
      %v1478 = vpop.f32.mrf.mxu0
      %v1479 = vadd.f32 0.0, %v1478
      %v1480 = vpop.f32.mrf.mxu0
      %v1481 = vadd.f32 0.0, %v1480
      %1482 = vdwg.mxu0
      %v1499 = vunpack.c.l.b16 %v325
      %v1500 = vunpack.c.l.b16 %v326
      %v1501 = vunpack.c.l.b16 %v327
      %v1502 = vunpack.c.l.b16 %v328
      %v1503 = vunpack.c.l.b16 %v329
      %v1504 = vunpack.c.l.b16 %v330
      %v1505 = vunpack.c.l.b16 %v331
      %v1506 = vunpack.c.l.b16 %v332
      %v1507 = vunpack.c.l.b16 %v333
      %v1508 = vunpack.c.l.b16 %v334
      %v1509 = vunpack.c.l.b16 %v335
      %v1510 = vunpack.c.l.b16 %v336
      %v1511 = vunpack.c.l.b16 %v337
      %v1512 = vunpack.c.l.b16 %v338
      %v1513 = vunpack.c.l.b16 %v339
      %v1514 = vunpack.c.l.b16 %v340
      %v1515 = vpack.c.b16 %v1500, %v1499
      %v1516 = vpack.c.b16 %v1502, %v1501
      %v1517 = vpack.c.b16 %v1504, %v1503
      %v1518 = vpack.c.b16 %v1506, %v1505
      %v1519 = vpack.c.b16 %v1508, %v1507
      %v1520 = vpack.c.b16 %v1510, %v1509
      %v1521 = vpack.c.b16 %v1512, %v1511
      %v1522 = vpack.c.b16 %v1514, %v1513
      %v1547 = vunpack.c.l.b16 %v453
      %v1548 = vunpack.c.l.b16 %v454
      %v1549 = vunpack.c.l.b16 %v455
      %v1550 = vunpack.c.l.b16 %v456
      %v1551 = vunpack.c.l.b16 %v457
      %v1552 = vunpack.c.l.b16 %v458
      %v1553 = vunpack.c.l.b16 %v459
      %v1554 = vunpack.c.l.b16 %v460
      %v1555 = vunpack.c.l.b16 %v461
      %v1556 = vunpack.c.l.b16 %v462
      %v1557 = vunpack.c.l.b16 %v463
      %v1558 = vunpack.c.l.b16 %v464
      %v1559 = vunpack.c.l.b16 %v465
      %v1560 = vunpack.c.l.b16 %v466
      %v1561 = vunpack.c.l.b16 %v467
      %v1562 = vunpack.c.l.b16 %v468
      %v1563 = vpack.c.b16 %v1548, %v1547
      %v1564 = vpack.c.b16 %v1550, %v1549
      %v1565 = vpack.c.b16 %v1552, %v1551
      %v1566 = vpack.c.b16 %v1554, %v1553
      %v1567 = vpack.c.b16 %v1556, %v1555
      %v1568 = vpack.c.b16 %v1558, %v1557
      %v1569 = vpack.c.b16 %v1560, %v1559
      %v1570 = vpack.c.b16 %v1562, %v1561
      %1579 = vmatpush.bf16.xpose.msra.mxu0 %v1570
      %1580 = vmatpush.bf16.xpose.msra.mxu0 %v1569
      %1581 = vmatpush.bf16.xpose.msra.mxu0 %v1568
      %1582 = vmatpush.bf16.xpose.msra.mxu0 %v1567
      %1583 = vmatpush.bf16.xpose.msra.mxu0 %v1566
      %1584 = vmatpush.bf16.xpose.msra.mxu0 %v1565
      %1585 = vmatpush.bf16.xpose.msra.mxu0 %v1564
      %1586 = vmatpush.bf16.xpose.msra.mxu0 %v1563
      %1587 = vmatmul.bf16.gmra.mxu0 %v1515
      %v1588 = vpop.f32.mrf.mxu0
      %v1589 = vadd.f32 0.0, %v1588
      %v1590 = vpop.f32.mrf.mxu0
      %v1591 = vadd.f32 0.0, %v1590
      %1592 = vmatmul.bf16.gmra.mxu0 %v1516
      %v1593 = vpop.f32.mrf.mxu0
      %v1594 = vadd.f32 0.0, %v1593
      %v1595 = vpop.f32.mrf.mxu0
      %v1596 = vadd.f32 0.0, %v1595
      %1597 = vmatmul.bf16.gmra.mxu0 %v1517
      %v1598 = vpop.f32.mrf.mxu0
      %v1599 = vadd.f32 0.0, %v1598
      %v1600 = vpop.f32.mrf.mxu0
      %v1601 = vadd.f32 0.0, %v1600
      %1602 = vmatmul.bf16.gmra.mxu0 %v1518
      %v1603 = vpop.f32.mrf.mxu0
      %v1604 = vadd.f32 0.0, %v1603
      %v1605 = vpop.f32.mrf.mxu0
      %v1606 = vadd.f32 0.0, %v1605
      %1607 = vmatmul.bf16.gmra.mxu0 %v1519
      %v1608 = vpop.f32.mrf.mxu0
      %v1609 = vadd.f32 0.0, %v1608
      %v1610 = vpop.f32.mrf.mxu0
      %v1611 = vadd.f32 0.0, %v1610
      %1612 = vmatmul.bf16.gmra.mxu0 %v1520
      %v1613 = vpop.f32.mrf.mxu0
      %v1614 = vadd.f32 0.0, %v1613
      %v1615 = vpop.f32.mrf.mxu0
      %v1616 = vadd.f32 0.0, %v1615
      %1617 = vmatmul.bf16.gmra.mxu0 %v1521
      %v1618 = vpop.f32.mrf.mxu0
      %v1619 = vadd.f32 0.0, %v1618
      %v1620 = vpop.f32.mrf.mxu0
      %v1621 = vadd.f32 0.0, %v1620
      %1622 = vmatmul.bf16.gmra.mxu0 %v1522
      %v1623 = vpop.f32.mrf.mxu0
      %v1624 = vadd.f32 0.0, %v1623
      %v1625 = vpop.f32.mrf.mxu0
      %v1626 = vadd.f32 0.0, %v1625
      %1627 = vdwg.mxu0
      %v1644 = vunpack.c.l.b16 %v341
      %v1645 = vunpack.c.l.b16 %v342
      %v1646 = vunpack.c.l.b16 %v343
      %v1647 = vunpack.c.l.b16 %v344
      %v1648 = vunpack.c.l.b16 %v345
      %v1649 = vunpack.c.l.b16 %v346
      %v1650 = vunpack.c.l.b16 %v347
      %v1651 = vunpack.c.l.b16 %v348
      %v1652 = vunpack.c.l.b16 %v349
      %v1653 = vunpack.c.l.b16 %v350
      %v1654 = vunpack.c.l.b16 %v351
      %v1655 = vunpack.c.l.b16 %v352
      %v1656 = vunpack.c.l.b16 %v353
      %v1657 = vunpack.c.l.b16 %v354
      %v1658 = vunpack.c.l.b16 %v355
      %v1659 = vunpack.c.l.b16 %v356
      %v1660 = vpack.c.b16 %v1645, %v1644
      %v1661 = vpack.c.b16 %v1647, %v1646
      %v1662 = vpack.c.b16 %v1649, %v1648
      %v1663 = vpack.c.b16 %v1651, %v1650
      %v1664 = vpack.c.b16 %v1653, %v1652
      %v1665 = vpack.c.b16 %v1655, %v1654
      %v1666 = vpack.c.b16 %v1657, %v1656
      %v1667 = vpack.c.b16 %v1659, %v1658
      %v1692 = vunpack.c.l.b16 %v469
      %v1693 = vunpack.c.l.b16 %v470
      %v1694 = vunpack.c.l.b16 %v471
      %v1695 = vunpack.c.l.b16 %v472
      %v1696 = vunpack.c.l.b16 %v473
      %v1697 = vunpack.c.l.b16 %v474
      %v1698 = vunpack.c.l.b16 %v475
      %v1699 = vunpack.c.l.b16 %v476
      %v1700 = vunpack.c.l.b16 %v477
      %v1701 = vunpack.c.l.b16 %v478
      %v1702 = vunpack.c.l.b16 %v479
      %v1703 = vunpack.c.l.b16 %v480
      %v1704 = vunpack.c.l.b16 %v481
      %v1705 = vunpack.c.l.b16 %v482
      %v1706 = vunpack.c.l.b16 %v483
      %v1707 = vunpack.c.l.b16 %v484
      %v1708 = vpack.c.b16 %v1693, %v1692
      %v1709 = vpack.c.b16 %v1695, %v1694
      %v1710 = vpack.c.b16 %v1697, %v1696
      %v1711 = vpack.c.b16 %v1699, %v1698
      %v1712 = vpack.c.b16 %v1701, %v1700
      %v1713 = vpack.c.b16 %v1703, %v1702
      %v1714 = vpack.c.b16 %v1705, %v1704
      %v1715 = vpack.c.b16 %v1707, %v1706
      %1724 = vmatpush.bf16.xpose.msra.mxu0 %v1715
      %1725 = vmatpush.bf16.xpose.msra.mxu0 %v1714
      %1726 = vmatpush.bf16.xpose.msra.mxu0 %v1713
      %1727 = vmatpush.bf16.xpose.msra.mxu0 %v1712
      %1728 = vmatpush.bf16.xpose.msra.mxu0 %v1711
      %1729 = vmatpush.bf16.xpose.msra.mxu0 %v1710
      %1730 = vmatpush.bf16.xpose.msra.mxu0 %v1709
      %1731 = vmatpush.bf16.xpose.msra.mxu0 %v1708
      %1732 = vmatmul.bf16.gmra.mxu0 %v1660
      %v1733 = vpop.f32.mrf.mxu0
      %v1734 = vadd.f32 0.0, %v1733
      %v1735 = vpop.f32.mrf.mxu0
      %v1736 = vadd.f32 0.0, %v1735
      %1737 = vmatmul.bf16.gmra.mxu0 %v1661
      %v1738 = vpop.f32.mrf.mxu0
      %v1739 = vadd.f32 0.0, %v1738
      %v1740 = vpop.f32.mrf.mxu0
      %v1741 = vadd.f32 0.0, %v1740
      %1742 = vmatmul.bf16.gmra.mxu0 %v1662
      %v1743 = vpop.f32.mrf.mxu0
      %v1744 = vadd.f32 0.0, %v1743
      %v1745 = vpop.f32.mrf.mxu0
      %v1746 = vadd.f32 0.0, %v1745
      %1747 = vmatmul.bf16.gmra.mxu0 %v1663
      %v1748 = vpop.f32.mrf.mxu0
      %v1749 = vadd.f32 0.0, %v1748
      %v1750 = vpop.f32.mrf.mxu0
      %v1751 = vadd.f32 0.0, %v1750
      %1752 = vmatmul.bf16.gmra.mxu0 %v1664
      %v1753 = vpop.f32.mrf.mxu0
      %v1754 = vadd.f32 0.0, %v1753
      %v1755 = vpop.f32.mrf.mxu0
      %v1756 = vadd.f32 0.0, %v1755
      %1757 = vmatmul.bf16.gmra.mxu0 %v1665
      %v1758 = vpop.f32.mrf.mxu0
      %v1759 = vadd.f32 0.0, %v1758
      %v1760 = vpop.f32.mrf.mxu0
      %v1761 = vadd.f32 0.0, %v1760
      %1762 = vmatmul.bf16.gmra.mxu0 %v1666
      %v1763 = vpop.f32.mrf.mxu0
      %v1764 = vadd.f32 0.0, %v1763
      %v1765 = vpop.f32.mrf.mxu0
      %v1766 = vadd.f32 0.0, %v1765
      %1767 = vmatmul.bf16.gmra.mxu0 %v1667
      %v1768 = vpop.f32.mrf.mxu0
      %v1769 = vadd.f32 0.0, %v1768
      %v1770 = vpop.f32.mrf.mxu0
      %v1771 = vadd.f32 0.0, %v1770
      %1772 = vdwg.mxu0
      %v1773 = vmul.f32 %v719, 0.125
      %v1774 = vmul.f32 %v721, 0.125
      %v1775 = vmul.f32 %v724, 0.125
      %v1776 = vmul.f32 %v726, 0.125
      %v1777 = vmul.f32 %v729, 0.125
      %v1778 = vmul.f32 %v731, 0.125
      %v1779 = vmul.f32 %v734, 0.125
      %v1780 = vmul.f32 %v736, 0.125
      %v1781 = vmul.f32 %v739, 0.125
      %v1782 = vmul.f32 %v741, 0.125
      %v1783 = vmul.f32 %v744, 0.125
      %v1784 = vmul.f32 %v746, 0.125
      %v1785 = vmul.f32 %v749, 0.125
      %v1786 = vmul.f32 %v751, 0.125
      %v1787 = vmul.f32 %v754, 0.125
      %v1788 = vmul.f32 %v756, 0.125
      %v1789 = vmul.f32 %v864, 0.125
      %v1790 = vmul.f32 %v866, 0.125
      %v1791 = vmul.f32 %v869, 0.125
      %v1792 = vmul.f32 %v871, 0.125
      %v1793 = vmul.f32 %v874, 0.125
      %v1794 = vmul.f32 %v876, 0.125
      %v1795 = vmul.f32 %v879, 0.125
      %v1796 = vmul.f32 %v881, 0.125
      %v1797 = vmul.f32 %v884, 0.125
      %v1798 = vmul.f32 %v886, 0.125
      %v1799 = vmul.f32 %v889, 0.125
      %v1800 = vmul.f32 %v891, 0.125
      %v1801 = vmul.f32 %v894, 0.125
      %v1802 = vmul.f32 %v896, 0.125
      %v1803 = vmul.f32 %v899, 0.125
      %v1804 = vmul.f32 %v901, 0.125
      %v1805 = vmul.f32 %v1009, 0.125
      %v1806 = vmul.f32 %v1011, 0.125
      %v1807 = vmul.f32 %v1014, 0.125
      %v1808 = vmul.f32 %v1016, 0.125
      %v1809 = vmul.f32 %v1019, 0.125
      %v1810 = vmul.f32 %v1021, 0.125
      %v1811 = vmul.f32 %v1024, 0.125
      %v1812 = vmul.f32 %v1026, 0.125
      %v1813 = vmul.f32 %v1029, 0.125
      %v1814 = vmul.f32 %v1031, 0.125
      %v1815 = vmul.f32 %v1034, 0.125
      %v1816 = vmul.f32 %v1036, 0.125
      %v1817 = vmul.f32 %v1039, 0.125
      %v1818 = vmul.f32 %v1041, 0.125
      %v1819 = vmul.f32 %v1044, 0.125
      %v1820 = vmul.f32 %v1046, 0.125
      %v1821 = vmul.f32 %v1154, 0.125
      %v1822 = vmul.f32 %v1156, 0.125
      %v1823 = vmul.f32 %v1159, 0.125
      %v1824 = vmul.f32 %v1161, 0.125
      %v1825 = vmul.f32 %v1164, 0.125
      %v1826 = vmul.f32 %v1166, 0.125
      %v1827 = vmul.f32 %v1169, 0.125
      %v1828 = vmul.f32 %v1171, 0.125
      %v1829 = vmul.f32 %v1174, 0.125
      %v1830 = vmul.f32 %v1176, 0.125
      %v1831 = vmul.f32 %v1179, 0.125
      %v1832 = vmul.f32 %v1181, 0.125
      %v1833 = vmul.f32 %v1184, 0.125
      %v1834 = vmul.f32 %v1186, 0.125
      %v1835 = vmul.f32 %v1189, 0.125
      %v1836 = vmul.f32 %v1191, 0.125
      %v1837 = vmul.f32 %v1299, 0.125
      %v1838 = vmul.f32 %v1301, 0.125
      %v1839 = vmul.f32 %v1304, 0.125
      %v1840 = vmul.f32 %v1306, 0.125
      %v1841 = vmul.f32 %v1309, 0.125
      %v1842 = vmul.f32 %v1311, 0.125
      %v1843 = vmul.f32 %v1314, 0.125
      %v1844 = vmul.f32 %v1316, 0.125
      %v1845 = vmul.f32 %v1319, 0.125
      %v1846 = vmul.f32 %v1321, 0.125
      %v1847 = vmul.f32 %v1324, 0.125
      %v1848 = vmul.f32 %v1326, 0.125
      %v1849 = vmul.f32 %v1329, 0.125
      %v1850 = vmul.f32 %v1331, 0.125
      %v1851 = vmul.f32 %v1334, 0.125
      %v1852 = vmul.f32 %v1336, 0.125
      %v1853 = vmul.f32 %v1444, 0.125
      %v1854 = vmul.f32 %v1446, 0.125
      %v1855 = vmul.f32 %v1449, 0.125
      %v1856 = vmul.f32 %v1451, 0.125
      %v1857 = vmul.f32 %v1454, 0.125
      %v1858 = vmul.f32 %v1456, 0.125
      %v1859 = vmul.f32 %v1459, 0.125
      %v1860 = vmul.f32 %v1461, 0.125
      %v1861 = vmul.f32 %v1464, 0.125
      %v1862 = vmul.f32 %v1466, 0.125
      %v1863 = vmul.f32 %v1469, 0.125
      %v1864 = vmul.f32 %v1471, 0.125
      %v1865 = vmul.f32 %v1474, 0.125
      %v1866 = vmul.f32 %v1476, 0.125
      %v1867 = vmul.f32 %v1479, 0.125
      %v1868 = vmul.f32 %v1481, 0.125
      %v1869 = vmul.f32 %v1589, 0.125
      %v1870 = vmul.f32 %v1591, 0.125
      %v1871 = vmul.f32 %v1594, 0.125
      %v1872 = vmul.f32 %v1596, 0.125
      %v1873 = vmul.f32 %v1599, 0.125
      %v1874 = vmul.f32 %v1601, 0.125
      %v1875 = vmul.f32 %v1604, 0.125
      %v1876 = vmul.f32 %v1606, 0.125
      %v1877 = vmul.f32 %v1609, 0.125
      %v1878 = vmul.f32 %v1611, 0.125
      %v1879 = vmul.f32 %v1614, 0.125
      %v1880 = vmul.f32 %v1616, 0.125
      %v1881 = vmul.f32 %v1619, 0.125
      %v1882 = vmul.f32 %v1621, 0.125
      %v1883 = vmul.f32 %v1624, 0.125
      %v1884 = vmul.f32 %v1626, 0.125
      %v1885 = vmul.f32 %v1734, 0.125
      %v1886 = vmul.f32 %v1736, 0.125
      %v1887 = vmul.f32 %v1739, 0.125
      %v1888 = vmul.f32 %v1741, 0.125
      %v1889 = vmul.f32 %v1744, 0.125
      %v1890 = vmul.f32 %v1746, 0.125
      %v1891 = vmul.f32 %v1749, 0.125
      %v1892 = vmul.f32 %v1751, 0.125
      %v1893 = vmul.f32 %v1754, 0.125
      %v1894 = vmul.f32 %v1756, 0.125
      %v1895 = vmul.f32 %v1759, 0.125
      %v1896 = vmul.f32 %v1761, 0.125
      %v1897 = vmul.f32 %v1764, 0.125
      %v1898 = vmul.f32 %v1766, 0.125
      %v1899 = vmul.f32 %v1769, 0.125
      %v1900 = vmul.f32 %v1771, 0.125
      %v1901 = vlaneseq
      %v1902 = vand.u32 %v1901, 127
      %vm1903 = vcmp.lt.s32.totalorder %v1902, 128
      %v1904 = vsel %vm1903, %v1773, -1e+30
      %v1905 = vsel %vm1903, %v1774, -1e+30
      %v1906 = vsel %vm1903, %v1775, -1e+30
      %v1907 = vsel %vm1903, %v1776, -1e+30
      %v1908 = vsel %vm1903, %v1777, -1e+30
      %v1909 = vsel %vm1903, %v1778, -1e+30
      %v1910 = vsel %vm1903, %v1779, -1e+30
      %v1911 = vsel %vm1903, %v1780, -1e+30
      %v1912 = vsel %vm1903, %v1781, -1e+30
      %v1913 = vsel %vm1903, %v1782, -1e+30
      %v1914 = vsel %vm1903, %v1783, -1e+30
      %v1915 = vsel %vm1903, %v1784, -1e+30
      %v1916 = vsel %vm1903, %v1785, -1e+30
      %v1917 = vsel %vm1903, %v1786, -1e+30
      %v1918 = vsel %vm1903, %v1787, -1e+30
      %v1919 = vsel %vm1903, %v1788, -1e+30
      %v1920 = vsel %vm1903, %v1789, -1e+30
      %v1921 = vsel %vm1903, %v1790, -1e+30
      %v1922 = vsel %vm1903, %v1791, -1e+30
      %v1923 = vsel %vm1903, %v1792, -1e+30
      %v1924 = vsel %vm1903, %v1793, -1e+30
      %v1925 = vsel %vm1903, %v1794, -1e+30
      %v1926 = vsel %vm1903, %v1795, -1e+30
      %v1927 = vsel %vm1903, %v1796, -1e+30
      %v1928 = vsel %vm1903, %v1797, -1e+30
      %v1929 = vsel %vm1903, %v1798, -1e+30
      %v1930 = vsel %vm1903, %v1799, -1e+30
      %v1931 = vsel %vm1903, %v1800, -1e+30
      %v1932 = vsel %vm1903, %v1801, -1e+30
      %v1933 = vsel %vm1903, %v1802, -1e+30
      %v1934 = vsel %vm1903, %v1803, -1e+30
      %v1935 = vsel %vm1903, %v1804, -1e+30
      %v1936 = vsel %vm1903, %v1805, -1e+30
      %v1937 = vsel %vm1903, %v1806, -1e+30
      %v1938 = vsel %vm1903, %v1807, -1e+30
      %v1939 = vsel %vm1903, %v1808, -1e+30
      %v1940 = vsel %vm1903, %v1809, -1e+30
      %v1941 = vsel %vm1903, %v1810, -1e+30
      %v1942 = vsel %vm1903, %v1811, -1e+30
      %v1943 = vsel %vm1903, %v1812, -1e+30
      %v1944 = vsel %vm1903, %v1813, -1e+30
      %v1945 = vsel %vm1903, %v1814, -1e+30
      %v1946 = vsel %vm1903, %v1815, -1e+30
      %v1947 = vsel %vm1903, %v1816, -1e+30
      %v1948 = vsel %vm1903, %v1817, -1e+30
      %v1949 = vsel %vm1903, %v1818, -1e+30
      %v1950 = vsel %vm1903, %v1819, -1e+30
      %v1951 = vsel %vm1903, %v1820, -1e+30
      %v1952 = vsel %vm1903, %v1821, -1e+30
      %v1953 = vsel %vm1903, %v1822, -1e+30
      %v1954 = vsel %vm1903, %v1823, -1e+30
      %v1955 = vsel %vm1903, %v1824, -1e+30
      %v1956 = vsel %vm1903, %v1825, -1e+30
      %v1957 = vsel %vm1903, %v1826, -1e+30
      %v1958 = vsel %vm1903, %v1827, -1e+30
      %v1959 = vsel %vm1903, %v1828, -1e+30
      %v1960 = vsel %vm1903, %v1829, -1e+30
      %v1961 = vsel %vm1903, %v1830, -1e+30
      %v1962 = vsel %vm1903, %v1831, -1e+30
      %v1963 = vsel %vm1903, %v1832, -1e+30
      %v1964 = vsel %vm1903, %v1833, -1e+30
      %v1965 = vsel %vm1903, %v1834, -1e+30
      %v1966 = vsel %vm1903, %v1835, -1e+30
      %v1967 = vsel %vm1903, %v1836, -1e+30
      %v1968 = vsel %vm1903, %v1837, -1e+30
      %v1969 = vsel %vm1903, %v1838, -1e+30
      %v1970 = vsel %vm1903, %v1839, -1e+30
      %v1971 = vsel %vm1903, %v1840, -1e+30
      %v1972 = vsel %vm1903, %v1841, -1e+30
      %v1973 = vsel %vm1903, %v1842, -1e+30
      %v1974 = vsel %vm1903, %v1843, -1e+30
      %v1975 = vsel %vm1903, %v1844, -1e+30
      %v1976 = vsel %vm1903, %v1845, -1e+30
      %v1977 = vsel %vm1903, %v1846, -1e+30
      %v1978 = vsel %vm1903, %v1847, -1e+30
      %v1979 = vsel %vm1903, %v1848, -1e+30
      %v1980 = vsel %vm1903, %v1849, -1e+30
      %v1981 = vsel %vm1903, %v1850, -1e+30
      %v1982 = vsel %vm1903, %v1851, -1e+30
      %v1983 = vsel %vm1903, %v1852, -1e+30
      %v1984 = vsel %vm1903, %v1853, -1e+30
      %v1985 = vsel %vm1903, %v1854, -1e+30
      %v1986 = vsel %vm1903, %v1855, -1e+30
      %v1987 = vsel %vm1903, %v1856, -1e+30
      %v1988 = vsel %vm1903, %v1857, -1e+30
      %v1989 = vsel %vm1903, %v1858, -1e+30
      %v1990 = vsel %vm1903, %v1859, -1e+30
      %v1991 = vsel %vm1903, %v1860, -1e+30
      %v1992 = vsel %vm1903, %v1861, -1e+30
      %v1993 = vsel %vm1903, %v1862, -1e+30
      %v1994 = vsel %vm1903, %v1863, -1e+30
      %v1995 = vsel %vm1903, %v1864, -1e+30
      %v1996 = vsel %vm1903, %v1865, -1e+30
      %v1997 = vsel %vm1903, %v1866, -1e+30
      %v1998 = vsel %vm1903, %v1867, -1e+30
      %v1999 = vsel %vm1903, %v1868, -1e+30
      %v2000 = vsel %vm1903, %v1869, -1e+30
      %v2001 = vsel %vm1903, %v1870, -1e+30
      %v2002 = vsel %vm1903, %v1871, -1e+30
      %v2003 = vsel %vm1903, %v1872, -1e+30
      %v2004 = vsel %vm1903, %v1873, -1e+30
      %v2005 = vsel %vm1903, %v1874, -1e+30
      %v2006 = vsel %vm1903, %v1875, -1e+30
      %v2007 = vsel %vm1903, %v1876, -1e+30
      %v2008 = vsel %vm1903, %v1877, -1e+30
      %v2009 = vsel %vm1903, %v1878, -1e+30
      %v2010 = vsel %vm1903, %v1879, -1e+30
      %v2011 = vsel %vm1903, %v1880, -1e+30
      %v2012 = vsel %vm1903, %v1881, -1e+30
      %v2013 = vsel %vm1903, %v1882, -1e+30
      %v2014 = vsel %vm1903, %v1883, -1e+30
      %v2015 = vsel %vm1903, %v1884, -1e+30
      %v2016 = vsel %vm1903, %v1885, -1e+30
      %v2017 = vsel %vm1903, %v1886, -1e+30
      %v2018 = vsel %vm1903, %v1887, -1e+30
      %v2019 = vsel %vm1903, %v1888, -1e+30
      %v2020 = vsel %vm1903, %v1889, -1e+30
      %v2021 = vsel %vm1903, %v1890, -1e+30
      %v2022 = vsel %vm1903, %v1891, -1e+30
      %v2023 = vsel %vm1903, %v1892, -1e+30
      %v2024 = vsel %vm1903, %v1893, -1e+30
      %v2025 = vsel %vm1903, %v1894, -1e+30
      %v2026 = vsel %vm1903, %v1895, -1e+30
      %v2027 = vsel %vm1903, %v1896, -1e+30
      %v2028 = vsel %vm1903, %v1897, -1e+30
      %v2029 = vsel %vm1903, %v1898, -1e+30
      %v2030 = vsel %vm1903, %v1899, -1e+30
      %v2031 = vsel %vm1903, %v1900, -1e+30
      %2032 = vmax.xlane.f32.xlu0 %v1904
      %v2033 = vpop.xlane.xlu0 %2032
      %2034 = vmax.xlane.f32.xlu0 %v1905
      %v2035 = vpop.xlane.xlu0 %2034
      %2036 = vmax.xlane.f32.xlu0 %v1906
      %v2037 = vpop.xlane.xlu0 %2036
      %2038 = vmax.xlane.f32.xlu0 %v1907
      %v2039 = vpop.xlane.xlu0 %2038
      %2040 = vmax.xlane.f32.xlu0 %v1908
      %v2041 = vpop.xlane.xlu0 %2040
      %2042 = vmax.xlane.f32.xlu0 %v1909
      %v2043 = vpop.xlane.xlu0 %2042
      %2044 = vmax.xlane.f32.xlu0 %v1910
      %v2045 = vpop.xlane.xlu0 %2044
      %2046 = vmax.xlane.f32.xlu0 %v1911
      %v2047 = vpop.xlane.xlu0 %2046
      %2048 = vmax.xlane.f32.xlu0 %v1912
      %v2049 = vpop.xlane.xlu0 %2048
      %2050 = vmax.xlane.f32.xlu0 %v1913
      %v2051 = vpop.xlane.xlu0 %2050
      %2052 = vmax.xlane.f32.xlu0 %v1914
      %v2053 = vpop.xlane.xlu0 %2052
      %2054 = vmax.xlane.f32.xlu0 %v1915
      %v2055 = vpop.xlane.xlu0 %2054
      %2056 = vmax.xlane.f32.xlu0 %v1916
      %v2057 = vpop.xlane.xlu0 %2056
      %2058 = vmax.xlane.f32.xlu0 %v1917
      %v2059 = vpop.xlane.xlu0 %2058
      %2060 = vmax.xlane.f32.xlu0 %v1918
      %v2061 = vpop.xlane.xlu0 %2060
      %2062 = vmax.xlane.f32.xlu0 %v1919
      %v2063 = vpop.xlane.xlu0 %2062
      %2064 = vmax.xlane.f32.xlu0 %v1920
      %v2065 = vpop.xlane.xlu0 %2064
      %2066 = vmax.xlane.f32.xlu0 %v1921
      %v2067 = vpop.xlane.xlu0 %2066
      %2068 = vmax.xlane.f32.xlu0 %v1922
      %v2069 = vpop.xlane.xlu0 %2068
      %2070 = vmax.xlane.f32.xlu0 %v1923
      %v2071 = vpop.xlane.xlu0 %2070
      %2072 = vmax.xlane.f32.xlu0 %v1924
      %v2073 = vpop.xlane.xlu0 %2072
      %2074 = vmax.xlane.f32.xlu0 %v1925
      %v2075 = vpop.xlane.xlu0 %2074
      %2076 = vmax.xlane.f32.xlu0 %v1926
      %v2077 = vpop.xlane.xlu0 %2076
      %2078 = vmax.xlane.f32.xlu0 %v1927
      %v2079 = vpop.xlane.xlu0 %2078
      %2080 = vmax.xlane.f32.xlu0 %v1928
      %v2081 = vpop.xlane.xlu0 %2080
      %2082 = vmax.xlane.f32.xlu0 %v1929
      %v2083 = vpop.xlane.xlu0 %2082
      %2084 = vmax.xlane.f32.xlu0 %v1930
      %v2085 = vpop.xlane.xlu0 %2084
      %2086 = vmax.xlane.f32.xlu0 %v1931
      %v2087 = vpop.xlane.xlu0 %2086
      %2088 = vmax.xlane.f32.xlu0 %v1932
      %v2089 = vpop.xlane.xlu0 %2088
      %2090 = vmax.xlane.f32.xlu0 %v1933
      %v2091 = vpop.xlane.xlu0 %2090
      %2092 = vmax.xlane.f32.xlu0 %v1934
      %v2093 = vpop.xlane.xlu0 %2092
      %2094 = vmax.xlane.f32.xlu0 %v1935
      %v2095 = vpop.xlane.xlu0 %2094
      %2096 = vmax.xlane.f32.xlu0 %v1936
      %v2097 = vpop.xlane.xlu0 %2096
      %2098 = vmax.xlane.f32.xlu0 %v1937
      %v2099 = vpop.xlane.xlu0 %2098
      %2100 = vmax.xlane.f32.xlu0 %v1938
      %v2101 = vpop.xlane.xlu0 %2100
      %2102 = vmax.xlane.f32.xlu0 %v1939
      %v2103 = vpop.xlane.xlu0 %2102
      %2104 = vmax.xlane.f32.xlu0 %v1940
      %v2105 = vpop.xlane.xlu0 %2104
      %2106 = vmax.xlane.f32.xlu0 %v1941
      %v2107 = vpop.xlane.xlu0 %2106
      %2108 = vmax.xlane.f32.xlu0 %v1942
      %v2109 = vpop.xlane.xlu0 %2108
      %2110 = vmax.xlane.f32.xlu0 %v1943
      %v2111 = vpop.xlane.xlu0 %2110
      %2112 = vmax.xlane.f32.xlu0 %v1944
      %v2113 = vpop.xlane.xlu0 %2112
      %2114 = vmax.xlane.f32.xlu0 %v1945
      %v2115 = vpop.xlane.xlu0 %2114
      %2116 = vmax.xlane.f32.xlu0 %v1946
      %v2117 = vpop.xlane.xlu0 %2116
      %2118 = vmax.xlane.f32.xlu0 %v1947
      %v2119 = vpop.xlane.xlu0 %2118
      %2120 = vmax.xlane.f32.xlu0 %v1948
      %v2121 = vpop.xlane.xlu0 %2120
      %2122 = vmax.xlane.f32.xlu0 %v1949
      %v2123 = vpop.xlane.xlu0 %2122
      %2124 = vmax.xlane.f32.xlu0 %v1950
      %v2125 = vpop.xlane.xlu0 %2124
      %2126 = vmax.xlane.f32.xlu0 %v1951
      %v2127 = vpop.xlane.xlu0 %2126
      %2128 = vmax.xlane.f32.xlu0 %v1952
      %v2129 = vpop.xlane.xlu0 %2128
      %2130 = vmax.xlane.f32.xlu0 %v1953
      %v2131 = vpop.xlane.xlu0 %2130
      %2132 = vmax.xlane.f32.xlu0 %v1954
      %v2133 = vpop.xlane.xlu0 %2132
      %2134 = vmax.xlane.f32.xlu0 %v1955
      %v2135 = vpop.xlane.xlu0 %2134
      %2136 = vmax.xlane.f32.xlu0 %v1956
      %v2137 = vpop.xlane.xlu0 %2136
      %2138 = vmax.xlane.f32.xlu0 %v1957
      %v2139 = vpop.xlane.xlu0 %2138
      %2140 = vmax.xlane.f32.xlu0 %v1958
      %v2141 = vpop.xlane.xlu0 %2140
      %2142 = vmax.xlane.f32.xlu0 %v1959
      %v2143 = vpop.xlane.xlu0 %2142
      %2144 = vmax.xlane.f32.xlu0 %v1960
      %v2145 = vpop.xlane.xlu0 %2144
      %2146 = vmax.xlane.f32.xlu0 %v1961
      %v2147 = vpop.xlane.xlu0 %2146
      %2148 = vmax.xlane.f32.xlu0 %v1962
      %v2149 = vpop.xlane.xlu0 %2148
      %2150 = vmax.xlane.f32.xlu0 %v1963
      %v2151 = vpop.xlane.xlu0 %2150
      %2152 = vmax.xlane.f32.xlu0 %v1964
      %v2153 = vpop.xlane.xlu0 %2152
      %2154 = vmax.xlane.f32.xlu0 %v1965
      %v2155 = vpop.xlane.xlu0 %2154
      %2156 = vmax.xlane.f32.xlu0 %v1966
      %v2157 = vpop.xlane.xlu0 %2156
      %2158 = vmax.xlane.f32.xlu0 %v1967
      %v2159 = vpop.xlane.xlu0 %2158
      %2160 = vmax.xlane.f32.xlu0 %v1968
      %v2161 = vpop.xlane.xlu0 %2160
      %2162 = vmax.xlane.f32.xlu0 %v1969
      %v2163 = vpop.xlane.xlu0 %2162
      %2164 = vmax.xlane.f32.xlu0 %v1970
      %v2165 = vpop.xlane.xlu0 %2164
      %2166 = vmax.xlane.f32.xlu0 %v1971
      %v2167 = vpop.xlane.xlu0 %2166
      %2168 = vmax.xlane.f32.xlu0 %v1972
      %v2169 = vpop.xlane.xlu0 %2168
      %2170 = vmax.xlane.f32.xlu0 %v1973
      %v2171 = vpop.xlane.xlu0 %2170
      %2172 = vmax.xlane.f32.xlu0 %v1974
      %v2173 = vpop.xlane.xlu0 %2172
      %2174 = vmax.xlane.f32.xlu0 %v1975
      %v2175 = vpop.xlane.xlu0 %2174
      %2176 = vmax.xlane.f32.xlu0 %v1976
      %v2177 = vpop.xlane.xlu0 %2176
      %2178 = vmax.xlane.f32.xlu0 %v1977
      %v2179 = vpop.xlane.xlu0 %2178
      %2180 = vmax.xlane.f32.xlu0 %v1978
      %v2181 = vpop.xlane.xlu0 %2180
      %2182 = vmax.xlane.f32.xlu0 %v1979
      %v2183 = vpop.xlane.xlu0 %2182
      %2184 = vmax.xlane.f32.xlu0 %v1980
      %v2185 = vpop.xlane.xlu0 %2184
      %2186 = vmax.xlane.f32.xlu0 %v1981
      %v2187 = vpop.xlane.xlu0 %2186
      %2188 = vmax.xlane.f32.xlu0 %v1982
      %v2189 = vpop.xlane.xlu0 %2188
      %2190 = vmax.xlane.f32.xlu0 %v1983
      %v2191 = vpop.xlane.xlu0 %2190
      %2192 = vmax.xlane.f32.xlu0 %v1984
      %v2193 = vpop.xlane.xlu0 %2192
      %2194 = vmax.xlane.f32.xlu0 %v1985
      %v2195 = vpop.xlane.xlu0 %2194
      %2196 = vmax.xlane.f32.xlu0 %v1986
      %v2197 = vpop.xlane.xlu0 %2196
      %2198 = vmax.xlane.f32.xlu0 %v1987
      %v2199 = vpop.xlane.xlu0 %2198
      %2200 = vmax.xlane.f32.xlu0 %v1988
      %v2201 = vpop.xlane.xlu0 %2200
      %2202 = vmax.xlane.f32.xlu0 %v1989
      %v2203 = vpop.xlane.xlu0 %2202
      %2204 = vmax.xlane.f32.xlu0 %v1990
      %v2205 = vpop.xlane.xlu0 %2204
      %2206 = vmax.xlane.f32.xlu0 %v1991
      %v2207 = vpop.xlane.xlu0 %2206
      %2208 = vmax.xlane.f32.xlu0 %v1992
      %v2209 = vpop.xlane.xlu0 %2208
      %2210 = vmax.xlane.f32.xlu0 %v1993
      %v2211 = vpop.xlane.xlu0 %2210
      %2212 = vmax.xlane.f32.xlu0 %v1994
      %v2213 = vpop.xlane.xlu0 %2212
      %2214 = vmax.xlane.f32.xlu0 %v1995
      %v2215 = vpop.xlane.xlu0 %2214
      %2216 = vmax.xlane.f32.xlu0 %v1996
      %v2217 = vpop.xlane.xlu0 %2216
      %2218 = vmax.xlane.f32.xlu0 %v1997
      %v2219 = vpop.xlane.xlu0 %2218
      %2220 = vmax.xlane.f32.xlu0 %v1998
      %v2221 = vpop.xlane.xlu0 %2220
      %2222 = vmax.xlane.f32.xlu0 %v1999
      %v2223 = vpop.xlane.xlu0 %2222
      %2224 = vmax.xlane.f32.xlu0 %v2000
      %v2225 = vpop.xlane.xlu0 %2224
      %2226 = vmax.xlane.f32.xlu0 %v2001
      %v2227 = vpop.xlane.xlu0 %2226
      %2228 = vmax.xlane.f32.xlu0 %v2002
      %v2229 = vpop.xlane.xlu0 %2228
      %2230 = vmax.xlane.f32.xlu0 %v2003
      %v2231 = vpop.xlane.xlu0 %2230
      %2232 = vmax.xlane.f32.xlu0 %v2004
      %v2233 = vpop.xlane.xlu0 %2232
      %2234 = vmax.xlane.f32.xlu0 %v2005
      %v2235 = vpop.xlane.xlu0 %2234
      %2236 = vmax.xlane.f32.xlu0 %v2006
      %v2237 = vpop.xlane.xlu0 %2236
      %2238 = vmax.xlane.f32.xlu0 %v2007
      %v2239 = vpop.xlane.xlu0 %2238
      %2240 = vmax.xlane.f32.xlu0 %v2008
      %v2241 = vpop.xlane.xlu0 %2240
      %2242 = vmax.xlane.f32.xlu0 %v2009
      %v2243 = vpop.xlane.xlu0 %2242
      %2244 = vmax.xlane.f32.xlu0 %v2010
      %v2245 = vpop.xlane.xlu0 %2244
      %2246 = vmax.xlane.f32.xlu0 %v2011
      %v2247 = vpop.xlane.xlu0 %2246
      %2248 = vmax.xlane.f32.xlu0 %v2012
      %v2249 = vpop.xlane.xlu0 %2248
      %2250 = vmax.xlane.f32.xlu0 %v2013
      %v2251 = vpop.xlane.xlu0 %2250
      %2252 = vmax.xlane.f32.xlu0 %v2014
      %v2253 = vpop.xlane.xlu0 %2252
      %2254 = vmax.xlane.f32.xlu0 %v2015
      %v2255 = vpop.xlane.xlu0 %2254
      %2256 = vmax.xlane.f32.xlu0 %v2016
      %v2257 = vpop.xlane.xlu0 %2256
      %2258 = vmax.xlane.f32.xlu0 %v2017
      %v2259 = vpop.xlane.xlu0 %2258
      %2260 = vmax.xlane.f32.xlu0 %v2018
      %v2261 = vpop.xlane.xlu0 %2260
      %2262 = vmax.xlane.f32.xlu0 %v2019
      %v2263 = vpop.xlane.xlu0 %2262
      %2264 = vmax.xlane.f32.xlu0 %v2020
      %v2265 = vpop.xlane.xlu0 %2264
      %2266 = vmax.xlane.f32.xlu0 %v2021
      %v2267 = vpop.xlane.xlu0 %2266
      %2268 = vmax.xlane.f32.xlu0 %v2022
      %v2269 = vpop.xlane.xlu0 %2268
      %2270 = vmax.xlane.f32.xlu0 %v2023
      %v2271 = vpop.xlane.xlu0 %2270
      %2272 = vmax.xlane.f32.xlu0 %v2024
      %v2273 = vpop.xlane.xlu0 %2272
      %2274 = vmax.xlane.f32.xlu0 %v2025
      %v2275 = vpop.xlane.xlu0 %2274
      %2276 = vmax.xlane.f32.xlu0 %v2026
      %v2277 = vpop.xlane.xlu0 %2276
      %2278 = vmax.xlane.f32.xlu0 %v2027
      %v2279 = vpop.xlane.xlu0 %2278
      %2280 = vmax.xlane.f32.xlu0 %v2028
      %v2281 = vpop.xlane.xlu0 %2280
      %2282 = vmax.xlane.f32.xlu0 %v2029
      %v2283 = vpop.xlane.xlu0 %2282
      %2284 = vmax.xlane.f32.xlu0 %v2030
      %v2285 = vpop.xlane.xlu0 %2284
      %2286 = vmax.xlane.f32.xlu0 %v2031
      %v2287 = vpop.xlane.xlu0 %2286
      %v2288 = vsub.f32 %v1904, %v2033
      %v2289 = vsub.f32 %v1905, %v2035
      %v2290 = vsub.f32 %v1906, %v2037
      %v2291 = vsub.f32 %v1907, %v2039
      %v2292 = vsub.f32 %v1908, %v2041
      %v2293 = vsub.f32 %v1909, %v2043
      %v2294 = vsub.f32 %v1910, %v2045
      %v2295 = vsub.f32 %v1911, %v2047
      %v2296 = vsub.f32 %v1912, %v2049
      %v2297 = vsub.f32 %v1913, %v2051
      %v2298 = vsub.f32 %v1914, %v2053
      %v2299 = vsub.f32 %v1915, %v2055
      %v2300 = vsub.f32 %v1916, %v2057
      %v2301 = vsub.f32 %v1917, %v2059
      %v2302 = vsub.f32 %v1918, %v2061
      %v2303 = vsub.f32 %v1919, %v2063
      %v2304 = vsub.f32 %v1920, %v2065
      %v2305 = vsub.f32 %v1921, %v2067
      %v2306 = vsub.f32 %v1922, %v2069
      %v2307 = vsub.f32 %v1923, %v2071
      %v2308 = vsub.f32 %v1924, %v2073
      %v2309 = vsub.f32 %v1925, %v2075
      %v2310 = vsub.f32 %v1926, %v2077
      %v2311 = vsub.f32 %v1927, %v2079
      %v2312 = vsub.f32 %v1928, %v2081
      %v2313 = vsub.f32 %v1929, %v2083
      %v2314 = vsub.f32 %v1930, %v2085
      %v2315 = vsub.f32 %v1931, %v2087
      %v2316 = vsub.f32 %v1932, %v2089
      %v2317 = vsub.f32 %v1933, %v2091
      %v2318 = vsub.f32 %v1934, %v2093
      %v2319 = vsub.f32 %v1935, %v2095
      %v2320 = vsub.f32 %v1936, %v2097
      %v2321 = vsub.f32 %v1937, %v2099
      %v2322 = vsub.f32 %v1938, %v2101
      %v2323 = vsub.f32 %v1939, %v2103
      %v2324 = vsub.f32 %v1940, %v2105
      %v2325 = vsub.f32 %v1941, %v2107
      %v2326 = vsub.f32 %v1942, %v2109
      %v2327 = vsub.f32 %v1943, %v2111
      %v2328 = vsub.f32 %v1944, %v2113
      %v2329 = vsub.f32 %v1945, %v2115
      %v2330 = vsub.f32 %v1946, %v2117
      %v2331 = vsub.f32 %v1947, %v2119
      %v2332 = vsub.f32 %v1948, %v2121
      %v2333 = vsub.f32 %v1949, %v2123
      %v2334 = vsub.f32 %v1950, %v2125
      %v2335 = vsub.f32 %v1951, %v2127
      %v2336 = vsub.f32 %v1952, %v2129
      %v2337 = vsub.f32 %v1953, %v2131
      %v2338 = vsub.f32 %v1954, %v2133
      %v2339 = vsub.f32 %v1955, %v2135
      %v2340 = vsub.f32 %v1956, %v2137
      %v2341 = vsub.f32 %v1957, %v2139
      %v2342 = vsub.f32 %v1958, %v2141
      %v2343 = vsub.f32 %v1959, %v2143
      %v2344 = vsub.f32 %v1960, %v2145
      %v2345 = vsub.f32 %v1961, %v2147
      %v2346 = vsub.f32 %v1962, %v2149
      %v2347 = vsub.f32 %v1963, %v2151
      %v2348 = vsub.f32 %v1964, %v2153
      %v2349 = vsub.f32 %v1965, %v2155
      %v2350 = vsub.f32 %v1966, %v2157
      %v2351 = vsub.f32 %v1967, %v2159
      %v2352 = vsub.f32 %v1968, %v2161
      %v2353 = vsub.f32 %v1969, %v2163
      %v2354 = vsub.f32 %v1970, %v2165
      %v2355 = vsub.f32 %v1971, %v2167
      %v2356 = vsub.f32 %v1972, %v2169
      %v2357 = vsub.f32 %v1973, %v2171
      %v2358 = vsub.f32 %v1974, %v2173
      %v2359 = vsub.f32 %v1975, %v2175
      %v2360 = vsub.f32 %v1976, %v2177
      %v2361 = vsub.f32 %v1977, %v2179
      %v2362 = vsub.f32 %v1978, %v2181
      %v2363 = vsub.f32 %v1979, %v2183
      %v2364 = vsub.f32 %v1980, %v2185
      %v2365 = vsub.f32 %v1981, %v2187
      %v2366 = vsub.f32 %v1982, %v2189
      %v2367 = vsub.f32 %v1983, %v2191
      %v2368 = vsub.f32 %v1984, %v2193
      %v2369 = vsub.f32 %v1985, %v2195
      %v2370 = vsub.f32 %v1986, %v2197
      %v2371 = vsub.f32 %v1987, %v2199
      %v2372 = vsub.f32 %v1988, %v2201
      %v2373 = vsub.f32 %v1989, %v2203
      %v2374 = vsub.f32 %v1990, %v2205
      %v2375 = vsub.f32 %v1991, %v2207
      %v2376 = vsub.f32 %v1992, %v2209
      %v2377 = vsub.f32 %v1993, %v2211
      %v2378 = vsub.f32 %v1994, %v2213
      %v2379 = vsub.f32 %v1995, %v2215
      %v2380 = vsub.f32 %v1996, %v2217
      %v2381 = vsub.f32 %v1997, %v2219
      %v2382 = vsub.f32 %v1998, %v2221
      %v2383 = vsub.f32 %v1999, %v2223
      %v2384 = vsub.f32 %v2000, %v2225
      %v2385 = vsub.f32 %v2001, %v2227
      %v2386 = vsub.f32 %v2002, %v2229
      %v2387 = vsub.f32 %v2003, %v2231
      %v2388 = vsub.f32 %v2004, %v2233
      %v2389 = vsub.f32 %v2005, %v2235
      %v2390 = vsub.f32 %v2006, %v2237
      %v2391 = vsub.f32 %v2007, %v2239
      %v2392 = vsub.f32 %v2008, %v2241
      %v2393 = vsub.f32 %v2009, %v2243
      %v2394 = vsub.f32 %v2010, %v2245
      %v2395 = vsub.f32 %v2011, %v2247
      %v2396 = vsub.f32 %v2012, %v2249
      %v2397 = vsub.f32 %v2013, %v2251
      %v2398 = vsub.f32 %v2014, %v2253
      %v2399 = vsub.f32 %v2015, %v2255
      %v2400 = vsub.f32 %v2016, %v2257
      %v2401 = vsub.f32 %v2017, %v2259
      %v2402 = vsub.f32 %v2018, %v2261
      %v2403 = vsub.f32 %v2019, %v2263
      %v2404 = vsub.f32 %v2020, %v2265
      %v2405 = vsub.f32 %v2021, %v2267
      %v2406 = vsub.f32 %v2022, %v2269
      %v2407 = vsub.f32 %v2023, %v2271
      %v2408 = vsub.f32 %v2024, %v2273
      %v2409 = vsub.f32 %v2025, %v2275
      %v2410 = vsub.f32 %v2026, %v2277
      %v2411 = vsub.f32 %v2027, %v2279
      %v2412 = vsub.f32 %v2028, %v2281
      %v2413 = vsub.f32 %v2029, %v2283
      %v2414 = vsub.f32 %v2030, %v2285
      %v2415 = vsub.f32 %v2031, %v2287
      %v2416 = vmul.f32 %v2288, 1.442695
      %v2417 = vpow.pop %v2416
      %v2418 = vmul.f32 %v2289, 1.442695
      %v2419 = vpow.pop %v2418
      %v2420 = vmul.f32 %v2290, 1.442695
      %v2421 = vpow.pop %v2420
      %v2422 = vmul.f32 %v2291, 1.442695
      %v2423 = vpow.pop %v2422
      %v2424 = vmul.f32 %v2292, 1.442695
      %v2425 = vpow.pop %v2424
      %v2426 = vmul.f32 %v2293, 1.442695
      %v2427 = vpow.pop %v2426
      %v2428 = vmul.f32 %v2294, 1.442695
      %v2429 = vpow.pop %v2428
      %v2430 = vmul.f32 %v2295, 1.442695
      %v2431 = vpow.pop %v2430
      %v2432 = vmul.f32 %v2296, 1.442695
      %v2433 = vpow.pop %v2432
      %v2434 = vmul.f32 %v2297, 1.442695
      %v2435 = vpow.pop %v2434
      %v2436 = vmul.f32 %v2298, 1.442695
      %v2437 = vpow.pop %v2436
      %v2438 = vmul.f32 %v2299, 1.442695
      %v2439 = vpow.pop %v2438
      %v2440 = vmul.f32 %v2300, 1.442695
      %v2441 = vpow.pop %v2440
      %v2442 = vmul.f32 %v2301, 1.442695
      %v2443 = vpow.pop %v2442
      %v2444 = vmul.f32 %v2302, 1.442695
      %v2445 = vpow.pop %v2444
      %v2446 = vmul.f32 %v2303, 1.442695
      %v2447 = vpow.pop %v2446
      %v2448 = vmul.f32 %v2304, 1.442695
      %v2449 = vpow.pop %v2448
      %v2450 = vmul.f32 %v2305, 1.442695
      %v2451 = vpow.pop %v2450
      %v2452 = vmul.f32 %v2306, 1.442695
      %v2453 = vpow.pop %v2452
      %v2454 = vmul.f32 %v2307, 1.442695
      %v2455 = vpow.pop %v2454
      %v2456 = vmul.f32 %v2308, 1.442695
      %v2457 = vpow.pop %v2456
      %v2458 = vmul.f32 %v2309, 1.442695
      %v2459 = vpow.pop %v2458
      %v2460 = vmul.f32 %v2310, 1.442695
      %v2461 = vpow.pop %v2460
      %v2462 = vmul.f32 %v2311, 1.442695
      %v2463 = vpow.pop %v2462
      %v2464 = vmul.f32 %v2312, 1.442695
      %v2465 = vpow.pop %v2464
      %v2466 = vmul.f32 %v2313, 1.442695
      %v2467 = vpow.pop %v2466
      %v2468 = vmul.f32 %v2314, 1.442695
      %v2469 = vpow.pop %v2468
      %v2470 = vmul.f32 %v2315, 1.442695
      %v2471 = vpow.pop %v2470
      %v2472 = vmul.f32 %v2316, 1.442695
      %v2473 = vpow.pop %v2472
      %v2474 = vmul.f32 %v2317, 1.442695
      %v2475 = vpow.pop %v2474
      %v2476 = vmul.f32 %v2318, 1.442695
      %v2477 = vpow.pop %v2476
      %v2478 = vmul.f32 %v2319, 1.442695
      %v2479 = vpow.pop %v2478
      %v2480 = vmul.f32 %v2320, 1.442695
      %v2481 = vpow.pop %v2480
      %v2482 = vmul.f32 %v2321, 1.442695
      %v2483 = vpow.pop %v2482
      %v2484 = vmul.f32 %v2322, 1.442695
      %v2485 = vpow.pop %v2484
      %v2486 = vmul.f32 %v2323, 1.442695
      %v2487 = vpow.pop %v2486
      %v2488 = vmul.f32 %v2324, 1.442695
      %v2489 = vpow.pop %v2488
      %v2490 = vmul.f32 %v2325, 1.442695
      %v2491 = vpow.pop %v2490
      %v2492 = vmul.f32 %v2326, 1.442695
      %v2493 = vpow.pop %v2492
      %v2494 = vmul.f32 %v2327, 1.442695
      %v2495 = vpow.pop %v2494
      %v2496 = vmul.f32 %v2328, 1.442695
      %v2497 = vpow.pop %v2496
      %v2498 = vmul.f32 %v2329, 1.442695
      %v2499 = vpow.pop %v2498
      %v2500 = vmul.f32 %v2330, 1.442695
      %v2501 = vpow.pop %v2500
      %v2502 = vmul.f32 %v2331, 1.442695
      %v2503 = vpow.pop %v2502
      %v2504 = vmul.f32 %v2332, 1.442695
      %v2505 = vpow.pop %v2504
      %v2506 = vmul.f32 %v2333, 1.442695
      %v2507 = vpow.pop %v2506
      %v2508 = vmul.f32 %v2334, 1.442695
      %v2509 = vpow.pop %v2508
      %v2510 = vmul.f32 %v2335, 1.442695
      %v2511 = vpow.pop %v2510
      %v2512 = vmul.f32 %v2336, 1.442695
      %v2513 = vpow.pop %v2512
      %v2514 = vmul.f32 %v2337, 1.442695
      %v2515 = vpow.pop %v2514
      %v2516 = vmul.f32 %v2338, 1.442695
      %v2517 = vpow.pop %v2516
      %v2518 = vmul.f32 %v2339, 1.442695
      %v2519 = vpow.pop %v2518
      %v2520 = vmul.f32 %v2340, 1.442695
      %v2521 = vpow.pop %v2520
      %v2522 = vmul.f32 %v2341, 1.442695
      %v2523 = vpow.pop %v2522
      %v2524 = vmul.f32 %v2342, 1.442695
      %v2525 = vpow.pop %v2524
      %v2526 = vmul.f32 %v2343, 1.442695
      %v2527 = vpow.pop %v2526
      %v2528 = vmul.f32 %v2344, 1.442695
      %v2529 = vpow.pop %v2528
      %v2530 = vmul.f32 %v2345, 1.442695
      %v2531 = vpow.pop %v2530
      %v2532 = vmul.f32 %v2346, 1.442695
      %v2533 = vpow.pop %v2532
      %v2534 = vmul.f32 %v2347, 1.442695
      %v2535 = vpow.pop %v2534
      %v2536 = vmul.f32 %v2348, 1.442695
      %v2537 = vpow.pop %v2536
      %v2538 = vmul.f32 %v2349, 1.442695
      %v2539 = vpow.pop %v2538
      %v2540 = vmul.f32 %v2350, 1.442695
      %v2541 = vpow.pop %v2540
      %v2542 = vmul.f32 %v2351, 1.442695
      %v2543 = vpow.pop %v2542
      %v2544 = vmul.f32 %v2352, 1.442695
      %v2545 = vpow.pop %v2544
      %v2546 = vmul.f32 %v2353, 1.442695
      %v2547 = vpow.pop %v2546
      %v2548 = vmul.f32 %v2354, 1.442695
      %v2549 = vpow.pop %v2548
      %v2550 = vmul.f32 %v2355, 1.442695
      %v2551 = vpow.pop %v2550
      %v2552 = vmul.f32 %v2356, 1.442695
      %v2553 = vpow.pop %v2552
      %v2554 = vmul.f32 %v2357, 1.442695
      %v2555 = vpow.pop %v2554
      %v2556 = vmul.f32 %v2358, 1.442695
      %v2557 = vpow.pop %v2556
      %v2558 = vmul.f32 %v2359, 1.442695
      %v2559 = vpow.pop %v2558
      %v2560 = vmul.f32 %v2360, 1.442695
      %v2561 = vpow.pop %v2560
      %v2562 = vmul.f32 %v2361, 1.442695
      %v2563 = vpow.pop %v2562
      %v2564 = vmul.f32 %v2362, 1.442695
      %v2565 = vpow.pop %v2564
      %v2566 = vmul.f32 %v2363, 1.442695
      %v2567 = vpow.pop %v2566
      %v2568 = vmul.f32 %v2364, 1.442695
      %v2569 = vpow.pop %v2568
      %v2570 = vmul.f32 %v2365, 1.442695
      %v2571 = vpow.pop %v2570
      %v2572 = vmul.f32 %v2366, 1.442695
      %v2573 = vpow.pop %v2572
      %v2574 = vmul.f32 %v2367, 1.442695
      %v2575 = vpow.pop %v2574
      %v2576 = vmul.f32 %v2368, 1.442695
      %v2577 = vpow.pop %v2576
      %v2578 = vmul.f32 %v2369, 1.442695
      %v2579 = vpow.pop %v2578
      %v2580 = vmul.f32 %v2370, 1.442695
      %v2581 = vpow.pop %v2580
      %v2582 = vmul.f32 %v2371, 1.442695
      %v2583 = vpow.pop %v2582
      %v2584 = vmul.f32 %v2372, 1.442695
      %v2585 = vpow.pop %v2584
      %v2586 = vmul.f32 %v2373, 1.442695
      %v2587 = vpow.pop %v2586
      %v2588 = vmul.f32 %v2374, 1.442695
      %v2589 = vpow.pop %v2588
      %v2590 = vmul.f32 %v2375, 1.442695
      %v2591 = vpow.pop %v2590
      %v2592 = vmul.f32 %v2376, 1.442695
      %v2593 = vpow.pop %v2592
      %v2594 = vmul.f32 %v2377, 1.442695
      %v2595 = vpow.pop %v2594
      %v2596 = vmul.f32 %v2378, 1.442695
      %v2597 = vpow.pop %v2596
      %v2598 = vmul.f32 %v2379, 1.442695
      %v2599 = vpow.pop %v2598
      %v2600 = vmul.f32 %v2380, 1.442695
      %v2601 = vpow.pop %v2600
      %v2602 = vmul.f32 %v2381, 1.442695
      %v2603 = vpow.pop %v2602
      %v2604 = vmul.f32 %v2382, 1.442695
      %v2605 = vpow.pop %v2604
      %v2606 = vmul.f32 %v2383, 1.442695
      %v2607 = vpow.pop %v2606
      %v2608 = vmul.f32 %v2384, 1.442695
      %v2609 = vpow.pop %v2608
      %v2610 = vmul.f32 %v2385, 1.442695
      %v2611 = vpow.pop %v2610
      %v2612 = vmul.f32 %v2386, 1.442695
      %v2613 = vpow.pop %v2612
      %v2614 = vmul.f32 %v2387, 1.442695
      %v2615 = vpow.pop %v2614
      %v2616 = vmul.f32 %v2388, 1.442695
      %v2617 = vpow.pop %v2616
      %v2618 = vmul.f32 %v2389, 1.442695
      %v2619 = vpow.pop %v2618
      %v2620 = vmul.f32 %v2390, 1.442695
      %v2621 = vpow.pop %v2620
      %v2622 = vmul.f32 %v2391, 1.442695
      %v2623 = vpow.pop %v2622
      %v2624 = vmul.f32 %v2392, 1.442695
      %v2625 = vpow.pop %v2624
      %v2626 = vmul.f32 %v2393, 1.442695
      %v2627 = vpow.pop %v2626
      %v2628 = vmul.f32 %v2394, 1.442695
      %v2629 = vpow.pop %v2628
      %v2630 = vmul.f32 %v2395, 1.442695
      %v2631 = vpow.pop %v2630
      %v2632 = vmul.f32 %v2396, 1.442695
      %v2633 = vpow.pop %v2632
      %v2634 = vmul.f32 %v2397, 1.442695
      %v2635 = vpow.pop %v2634
      %v2636 = vmul.f32 %v2398, 1.442695
      %v2637 = vpow.pop %v2636
      %v2638 = vmul.f32 %v2399, 1.442695
      %v2639 = vpow.pop %v2638
      %v2640 = vmul.f32 %v2400, 1.442695
      %v2641 = vpow.pop %v2640
      %v2642 = vmul.f32 %v2401, 1.442695
      %v2643 = vpow.pop %v2642
      %v2644 = vmul.f32 %v2402, 1.442695
      %v2645 = vpow.pop %v2644
      %v2646 = vmul.f32 %v2403, 1.442695
      %v2647 = vpow.pop %v2646
      %v2648 = vmul.f32 %v2404, 1.442695
      %v2649 = vpow.pop %v2648
      %v2650 = vmul.f32 %v2405, 1.442695
      %v2651 = vpow.pop %v2650
      %v2652 = vmul.f32 %v2406, 1.442695
      %v2653 = vpow.pop %v2652
      %v2654 = vmul.f32 %v2407, 1.442695
      %v2655 = vpow.pop %v2654
      %v2656 = vmul.f32 %v2408, 1.442695
      %v2657 = vpow.pop %v2656
      %v2658 = vmul.f32 %v2409, 1.442695
      %v2659 = vpow.pop %v2658
      %v2660 = vmul.f32 %v2410, 1.442695
      %v2661 = vpow.pop %v2660
      %v2662 = vmul.f32 %v2411, 1.442695
      %v2663 = vpow.pop %v2662
      %v2664 = vmul.f32 %v2412, 1.442695
      %v2665 = vpow.pop %v2664
      %v2666 = vmul.f32 %v2413, 1.442695
      %v2667 = vpow.pop %v2666
      %v2668 = vmul.f32 %v2414, 1.442695
      %v2669 = vpow.pop %v2668
      %v2670 = vmul.f32 %v2415, 1.442695
      %v2671 = vpow.pop %v2670
      %2672 = vadd.xlane.f32.xlu0 %v2417
      %v2673 = vpop.xlane.xlu0 %2672
      %2674 = vadd.xlane.f32.xlu0 %v2419
      %v2675 = vpop.xlane.xlu0 %2674
      %2676 = vadd.xlane.f32.xlu0 %v2421
      %v2677 = vpop.xlane.xlu0 %2676
      %2678 = vadd.xlane.f32.xlu0 %v2423
      %v2679 = vpop.xlane.xlu0 %2678
      %2680 = vadd.xlane.f32.xlu0 %v2425
      %v2681 = vpop.xlane.xlu0 %2680
      %2682 = vadd.xlane.f32.xlu0 %v2427
      %v2683 = vpop.xlane.xlu0 %2682
      %2684 = vadd.xlane.f32.xlu0 %v2429
      %v2685 = vpop.xlane.xlu0 %2684
      %2686 = vadd.xlane.f32.xlu0 %v2431
      %v2687 = vpop.xlane.xlu0 %2686
      %2688 = vadd.xlane.f32.xlu0 %v2433
      %v2689 = vpop.xlane.xlu0 %2688
      %2690 = vadd.xlane.f32.xlu0 %v2435
      %v2691 = vpop.xlane.xlu0 %2690
      %2692 = vadd.xlane.f32.xlu0 %v2437
      %v2693 = vpop.xlane.xlu0 %2692
      %2694 = vadd.xlane.f32.xlu0 %v2439
      %v2695 = vpop.xlane.xlu0 %2694
      %2696 = vadd.xlane.f32.xlu0 %v2441
      %v2697 = vpop.xlane.xlu0 %2696
      %2698 = vadd.xlane.f32.xlu0 %v2443
      %v2699 = vpop.xlane.xlu0 %2698
      %2700 = vadd.xlane.f32.xlu0 %v2445
      %v2701 = vpop.xlane.xlu0 %2700
      %2702 = vadd.xlane.f32.xlu0 %v2447
      %v2703 = vpop.xlane.xlu0 %2702
      %2704 = vadd.xlane.f32.xlu0 %v2449
      %v2705 = vpop.xlane.xlu0 %2704
      %2706 = vadd.xlane.f32.xlu0 %v2451
      %v2707 = vpop.xlane.xlu0 %2706
      %2708 = vadd.xlane.f32.xlu0 %v2453
      %v2709 = vpop.xlane.xlu0 %2708
      %2710 = vadd.xlane.f32.xlu0 %v2455
      %v2711 = vpop.xlane.xlu0 %2710
      %2712 = vadd.xlane.f32.xlu0 %v2457
      %v2713 = vpop.xlane.xlu0 %2712
      %2714 = vadd.xlane.f32.xlu0 %v2459
      %v2715 = vpop.xlane.xlu0 %2714
      %2716 = vadd.xlane.f32.xlu0 %v2461
      %v2717 = vpop.xlane.xlu0 %2716
      %2718 = vadd.xlane.f32.xlu0 %v2463
      %v2719 = vpop.xlane.xlu0 %2718
      %2720 = vadd.xlane.f32.xlu0 %v2465
      %v2721 = vpop.xlane.xlu0 %2720
      %2722 = vadd.xlane.f32.xlu0 %v2467
      %v2723 = vpop.xlane.xlu0 %2722
      %2724 = vadd.xlane.f32.xlu0 %v2469
      %v2725 = vpop.xlane.xlu0 %2724
      %2726 = vadd.xlane.f32.xlu0 %v2471
      %v2727 = vpop.xlane.xlu0 %2726
      %2728 = vadd.xlane.f32.xlu0 %v2473
      %v2729 = vpop.xlane.xlu0 %2728
      %2730 = vadd.xlane.f32.xlu0 %v2475
      %v2731 = vpop.xlane.xlu0 %2730
      %2732 = vadd.xlane.f32.xlu0 %v2477
      %v2733 = vpop.xlane.xlu0 %2732
      %2734 = vadd.xlane.f32.xlu0 %v2479
      %v2735 = vpop.xlane.xlu0 %2734
      %2736 = vadd.xlane.f32.xlu0 %v2481
      %v2737 = vpop.xlane.xlu0 %2736
      %2738 = vadd.xlane.f32.xlu0 %v2483
      %v2739 = vpop.xlane.xlu0 %2738
      %2740 = vadd.xlane.f32.xlu0 %v2485
      %v2741 = vpop.xlane.xlu0 %2740
      %2742 = vadd.xlane.f32.xlu0 %v2487
      %v2743 = vpop.xlane.xlu0 %2742
      %2744 = vadd.xlane.f32.xlu0 %v2489
      %v2745 = vpop.xlane.xlu0 %2744
      %2746 = vadd.xlane.f32.xlu0 %v2491
      %v2747 = vpop.xlane.xlu0 %2746
      %2748 = vadd.xlane.f32.xlu0 %v2493
      %v2749 = vpop.xlane.xlu0 %2748
      %2750 = vadd.xlane.f32.xlu0 %v2495
      %v2751 = vpop.xlane.xlu0 %2750
      %2752 = vadd.xlane.f32.xlu0 %v2497
      %v2753 = vpop.xlane.xlu0 %2752
      %2754 = vadd.xlane.f32.xlu0 %v2499
      %v2755 = vpop.xlane.xlu0 %2754
      %2756 = vadd.xlane.f32.xlu0 %v2501
      %v2757 = vpop.xlane.xlu0 %2756
      %2758 = vadd.xlane.f32.xlu0 %v2503
      %v2759 = vpop.xlane.xlu0 %2758
      %2760 = vadd.xlane.f32.xlu0 %v2505
      %v2761 = vpop.xlane.xlu0 %2760
      %2762 = vadd.xlane.f32.xlu0 %v2507
      %v2763 = vpop.xlane.xlu0 %2762
      %2764 = vadd.xlane.f32.xlu0 %v2509
      %v2765 = vpop.xlane.xlu0 %2764
      %2766 = vadd.xlane.f32.xlu0 %v2511
      %v2767 = vpop.xlane.xlu0 %2766
      %2768 = vadd.xlane.f32.xlu0 %v2513
      %v2769 = vpop.xlane.xlu0 %2768
      %2770 = vadd.xlane.f32.xlu0 %v2515
      %v2771 = vpop.xlane.xlu0 %2770
      %2772 = vadd.xlane.f32.xlu0 %v2517
      %v2773 = vpop.xlane.xlu0 %2772
      %2774 = vadd.xlane.f32.xlu0 %v2519
      %v2775 = vpop.xlane.xlu0 %2774
      %2776 = vadd.xlane.f32.xlu0 %v2521
      %v2777 = vpop.xlane.xlu0 %2776
      %2778 = vadd.xlane.f32.xlu0 %v2523
      %v2779 = vpop.xlane.xlu0 %2778
      %2780 = vadd.xlane.f32.xlu0 %v2525
      %v2781 = vpop.xlane.xlu0 %2780
      %2782 = vadd.xlane.f32.xlu0 %v2527
      %v2783 = vpop.xlane.xlu0 %2782
      %2784 = vadd.xlane.f32.xlu0 %v2529
      %v2785 = vpop.xlane.xlu0 %2784
      %2786 = vadd.xlane.f32.xlu0 %v2531
      %v2787 = vpop.xlane.xlu0 %2786
      %2788 = vadd.xlane.f32.xlu0 %v2533
      %v2789 = vpop.xlane.xlu0 %2788
      %2790 = vadd.xlane.f32.xlu0 %v2535
      %v2791 = vpop.xlane.xlu0 %2790
      %2792 = vadd.xlane.f32.xlu0 %v2537
      %v2793 = vpop.xlane.xlu0 %2792
      %2794 = vadd.xlane.f32.xlu0 %v2539
      %v2795 = vpop.xlane.xlu0 %2794
      %2796 = vadd.xlane.f32.xlu0 %v2541
      %v2797 = vpop.xlane.xlu0 %2796
      %2798 = vadd.xlane.f32.xlu0 %v2543
      %v2799 = vpop.xlane.xlu0 %2798
      %2800 = vadd.xlane.f32.xlu0 %v2545
      %v2801 = vpop.xlane.xlu0 %2800
      %2802 = vadd.xlane.f32.xlu0 %v2547
      %v2803 = vpop.xlane.xlu0 %2802
      %2804 = vadd.xlane.f32.xlu0 %v2549
      %v2805 = vpop.xlane.xlu0 %2804
      %2806 = vadd.xlane.f32.xlu0 %v2551
      %v2807 = vpop.xlane.xlu0 %2806
      %2808 = vadd.xlane.f32.xlu0 %v2553
      %v2809 = vpop.xlane.xlu0 %2808
      %2810 = vadd.xlane.f32.xlu0 %v2555
      %v2811 = vpop.xlane.xlu0 %2810
      %2812 = vadd.xlane.f32.xlu0 %v2557
      %v2813 = vpop.xlane.xlu0 %2812
      %2814 = vadd.xlane.f32.xlu0 %v2559
      %v2815 = vpop.xlane.xlu0 %2814
      %2816 = vadd.xlane.f32.xlu0 %v2561
      %v2817 = vpop.xlane.xlu0 %2816
      %2818 = vadd.xlane.f32.xlu0 %v2563
      %v2819 = vpop.xlane.xlu0 %2818
      %2820 = vadd.xlane.f32.xlu0 %v2565
      %v2821 = vpop.xlane.xlu0 %2820
      %2822 = vadd.xlane.f32.xlu0 %v2567
      %v2823 = vpop.xlane.xlu0 %2822
      %2824 = vadd.xlane.f32.xlu0 %v2569
      %v2825 = vpop.xlane.xlu0 %2824
      %2826 = vadd.xlane.f32.xlu0 %v2571
      %v2827 = vpop.xlane.xlu0 %2826
      %2828 = vadd.xlane.f32.xlu0 %v2573
      %v2829 = vpop.xlane.xlu0 %2828
      %2830 = vadd.xlane.f32.xlu0 %v2575
      %v2831 = vpop.xlane.xlu0 %2830
      %2832 = vadd.xlane.f32.xlu0 %v2577
      %v2833 = vpop.xlane.xlu0 %2832
      %2834 = vadd.xlane.f32.xlu0 %v2579
      %v2835 = vpop.xlane.xlu0 %2834
      %2836 = vadd.xlane.f32.xlu0 %v2581
      %v2837 = vpop.xlane.xlu0 %2836
      %2838 = vadd.xlane.f32.xlu0 %v2583
      %v2839 = vpop.xlane.xlu0 %2838
      %2840 = vadd.xlane.f32.xlu0 %v2585
      %v2841 = vpop.xlane.xlu0 %2840
      %2842 = vadd.xlane.f32.xlu0 %v2587
      %v2843 = vpop.xlane.xlu0 %2842
      %2844 = vadd.xlane.f32.xlu0 %v2589
      %v2845 = vpop.xlane.xlu0 %2844
      %2846 = vadd.xlane.f32.xlu0 %v2591
      %v2847 = vpop.xlane.xlu0 %2846
      %2848 = vadd.xlane.f32.xlu0 %v2593
      %v2849 = vpop.xlane.xlu0 %2848
      %2850 = vadd.xlane.f32.xlu0 %v2595
      %v2851 = vpop.xlane.xlu0 %2850
      %2852 = vadd.xlane.f32.xlu0 %v2597
      %v2853 = vpop.xlane.xlu0 %2852
      %2854 = vadd.xlane.f32.xlu0 %v2599
      %v2855 = vpop.xlane.xlu0 %2854
      %2856 = vadd.xlane.f32.xlu0 %v2601
      %v2857 = vpop.xlane.xlu0 %2856
      %2858 = vadd.xlane.f32.xlu0 %v2603
      %v2859 = vpop.xlane.xlu0 %2858
      %2860 = vadd.xlane.f32.xlu0 %v2605
      %v2861 = vpop.xlane.xlu0 %2860
      %2862 = vadd.xlane.f32.xlu0 %v2607
      %v2863 = vpop.xlane.xlu0 %2862
      %2864 = vadd.xlane.f32.xlu0 %v2609
      %v2865 = vpop.xlane.xlu0 %2864
      %2866 = vadd.xlane.f32.xlu0 %v2611
      %v2867 = vpop.xlane.xlu0 %2866
      %2868 = vadd.xlane.f32.xlu0 %v2613
      %v2869 = vpop.xlane.xlu0 %2868
      %2870 = vadd.xlane.f32.xlu0 %v2615
      %v2871 = vpop.xlane.xlu0 %2870
      %2872 = vadd.xlane.f32.xlu0 %v2617
      %v2873 = vpop.xlane.xlu0 %2872
      %2874 = vadd.xlane.f32.xlu0 %v2619
      %v2875 = vpop.xlane.xlu0 %2874
      %2876 = vadd.xlane.f32.xlu0 %v2621
      %v2877 = vpop.xlane.xlu0 %2876
      %2878 = vadd.xlane.f32.xlu0 %v2623
      %v2879 = vpop.xlane.xlu0 %2878
      %2880 = vadd.xlane.f32.xlu0 %v2625
      %v2881 = vpop.xlane.xlu0 %2880
      %2882 = vadd.xlane.f32.xlu0 %v2627
      %v2883 = vpop.xlane.xlu0 %2882
      %2884 = vadd.xlane.f32.xlu0 %v2629
      %v2885 = vpop.xlane.xlu0 %2884
      %2886 = vadd.xlane.f32.xlu0 %v2631
      %v2887 = vpop.xlane.xlu0 %2886
      %2888 = vadd.xlane.f32.xlu0 %v2633
      %v2889 = vpop.xlane.xlu0 %2888
      %2890 = vadd.xlane.f32.xlu0 %v2635
      %v2891 = vpop.xlane.xlu0 %2890
      %2892 = vadd.xlane.f32.xlu0 %v2637
      %v2893 = vpop.xlane.xlu0 %2892
      %2894 = vadd.xlane.f32.xlu0 %v2639
      %v2895 = vpop.xlane.xlu0 %2894
      %2896 = vadd.xlane.f32.xlu0 %v2641
      %v2897 = vpop.xlane.xlu0 %2896
      %2898 = vadd.xlane.f32.xlu0 %v2643
      %v2899 = vpop.xlane.xlu0 %2898
      %2900 = vadd.xlane.f32.xlu0 %v2645
      %v2901 = vpop.xlane.xlu0 %2900
      %2902 = vadd.xlane.f32.xlu0 %v2647
      %v2903 = vpop.xlane.xlu0 %2902
      %2904 = vadd.xlane.f32.xlu0 %v2649
      %v2905 = vpop.xlane.xlu0 %2904
      %2906 = vadd.xlane.f32.xlu0 %v2651
      %v2907 = vpop.xlane.xlu0 %2906
      %2908 = vadd.xlane.f32.xlu0 %v2653
      %v2909 = vpop.xlane.xlu0 %2908
      %2910 = vadd.xlane.f32.xlu0 %v2655
      %v2911 = vpop.xlane.xlu0 %2910
      %2912 = vadd.xlane.f32.xlu0 %v2657
      %v2913 = vpop.xlane.xlu0 %2912
      %2914 = vadd.xlane.f32.xlu0 %v2659
      %v2915 = vpop.xlane.xlu0 %2914
      %2916 = vadd.xlane.f32.xlu0 %v2661
      %v2917 = vpop.xlane.xlu0 %2916
      %2918 = vadd.xlane.f32.xlu0 %v2663
      %v2919 = vpop.xlane.xlu0 %2918
      %2920 = vadd.xlane.f32.xlu0 %v2665
      %v2921 = vpop.xlane.xlu0 %2920
      %2922 = vadd.xlane.f32.xlu0 %v2667
      %v2923 = vpop.xlane.xlu0 %2922
      %2924 = vadd.xlane.f32.xlu0 %v2669
      %v2925 = vpop.xlane.xlu0 %2924
      %2926 = vadd.xlane.f32.xlu0 %v2671
      %v2927 = vpop.xlane.xlu0 %2926
      %v2928 = vrcp.pop %v2673
      %v2929 = vmul.f32 %v2673, %v2928
      %v2930 = vsub.f32 1.0, %v2929
      %v2931 = vmul.f32 %v2928, %v2930
      %v2932 = vadd.f32 %v2928, %v2931
      %vm2933 = vweird.f32 %v2673
      %vm2934 = vweird.f32 %v2928
      %vm2935 = vmor %vm2933, %vm2934
      %v2936 = vsel %vm2935, %v2928, %v2932
      %v2937 = vand.u32 2147483647, %v2673
      %vm2938 = vcmp.eq.f32.partialorder %v2937, 8.507059e+37
      %v2939 = vand.u32 %v2673, 2147483648
      %v2940 = vor.u32 1.1754944e-38, %v2939
      %v2941 = vsel %vm2938, %v2940, %v2936
      %v2942 = vmul.f32 %v2417, %v2941
      %v2943 = vrcp.pop %v2675
      %v2944 = vmul.f32 %v2675, %v2943
      %v2945 = vsub.f32 1.0, %v2944
      %v2946 = vmul.f32 %v2943, %v2945
      %v2947 = vadd.f32 %v2943, %v2946
      %vm2948 = vweird.f32 %v2675
      %vm2949 = vweird.f32 %v2943
      %vm2950 = vmor %vm2948, %vm2949
      %v2951 = vsel %vm2950, %v2943, %v2947
      %v2952 = vand.u32 2147483647, %v2675
      %vm2953 = vcmp.eq.f32.partialorder %v2952, 8.507059e+37
      %v2954 = vand.u32 %v2675, 2147483648
      %v2955 = vor.u32 1.1754944e-38, %v2954
      %v2956 = vsel %vm2953, %v2955, %v2951
      %v2957 = vmul.f32 %v2419, %v2956
      %v2958 = vrcp.pop %v2677
      %v2959 = vmul.f32 %v2677, %v2958
      %v2960 = vsub.f32 1.0, %v2959
      %v2961 = vmul.f32 %v2958, %v2960
      %v2962 = vadd.f32 %v2958, %v2961
      %vm2963 = vweird.f32 %v2677
      %vm2964 = vweird.f32 %v2958
      %vm2965 = vmor %vm2963, %vm2964
      %v2966 = vsel %vm2965, %v2958, %v2962
      %v2967 = vand.u32 2147483647, %v2677
      %vm2968 = vcmp.eq.f32.partialorder %v2967, 8.507059e+37
      %v2969 = vand.u32 %v2677, 2147483648
      %v2970 = vor.u32 1.1754944e-38, %v2969
      %v2971 = vsel %vm2968, %v2970, %v2966
      %v2972 = vmul.f32 %v2421, %v2971
      %v2973 = vrcp.pop %v2679
      %v2974 = vmul.f32 %v2679, %v2973
      %v2975 = vsub.f32 1.0, %v2974
      %v2976 = vmul.f32 %v2973, %v2975
      %v2977 = vadd.f32 %v2973, %v2976
      %vm2978 = vweird.f32 %v2679
      %vm2979 = vweird.f32 %v2973
      %vm2980 = vmor %vm2978, %vm2979
      %v2981 = vsel %vm2980, %v2973, %v2977
      %v2982 = vand.u32 2147483647, %v2679
      %vm2983 = vcmp.eq.f32.partialorder %v2982, 8.507059e+37
      %v2984 = vand.u32 %v2679, 2147483648
      %v2985 = vor.u32 1.1754944e-38, %v2984
      %v2986 = vsel %vm2983, %v2985, %v2981
      %v2987 = vmul.f32 %v2423, %v2986
      %v2988 = vrcp.pop %v2681
      %v2989 = vmul.f32 %v2681, %v2988
      %v2990 = vsub.f32 1.0, %v2989
      %v2991 = vmul.f32 %v2988, %v2990
      %v2992 = vadd.f32 %v2988, %v2991
      %vm2993 = vweird.f32 %v2681
      %vm2994 = vweird.f32 %v2988
      %vm2995 = vmor %vm2993, %vm2994
      %v2996 = vsel %vm2995, %v2988, %v2992
      %v2997 = vand.u32 2147483647, %v2681
      %vm2998 = vcmp.eq.f32.partialorder %v2997, 8.507059e+37
      %v2999 = vand.u32 %v2681, 2147483648
      %v3000 = vor.u32 1.1754944e-38, %v2999
      %v3001 = vsel %vm2998, %v3000, %v2996
      %v3002 = vmul.f32 %v2425, %v3001
      %v3003 = vrcp.pop %v2683
      %v3004 = vmul.f32 %v2683, %v3003
      %v3005 = vsub.f32 1.0, %v3004
      %v3006 = vmul.f32 %v3003, %v3005
      %v3007 = vadd.f32 %v3003, %v3006
      %vm3008 = vweird.f32 %v2683
      %vm3009 = vweird.f32 %v3003
      %vm3010 = vmor %vm3008, %vm3009
      %v3011 = vsel %vm3010, %v3003, %v3007
      %v3012 = vand.u32 2147483647, %v2683
      %vm3013 = vcmp.eq.f32.partialorder %v3012, 8.507059e+37
      %v3014 = vand.u32 %v2683, 2147483648
      %v3015 = vor.u32 1.1754944e-38, %v3014
      %v3016 = vsel %vm3013, %v3015, %v3011
      %v3017 = vmul.f32 %v2427, %v3016
      %v3018 = vrcp.pop %v2685
      %v3019 = vmul.f32 %v2685, %v3018
      %v3020 = vsub.f32 1.0, %v3019
      %v3021 = vmul.f32 %v3018, %v3020
      %v3022 = vadd.f32 %v3018, %v3021
      %vm3023 = vweird.f32 %v2685
      %vm3024 = vweird.f32 %v3018
      %vm3025 = vmor %vm3023, %vm3024
      %v3026 = vsel %vm3025, %v3018, %v3022
      %v3027 = vand.u32 2147483647, %v2685
      %vm3028 = vcmp.eq.f32.partialorder %v3027, 8.507059e+37
      %v3029 = vand.u32 %v2685, 2147483648
      %v3030 = vor.u32 1.1754944e-38, %v3029
      %v3031 = vsel %vm3028, %v3030, %v3026
      %v3032 = vmul.f32 %v2429, %v3031
      %v3033 = vrcp.pop %v2687
      %v3034 = vmul.f32 %v2687, %v3033
      %v3035 = vsub.f32 1.0, %v3034
      %v3036 = vmul.f32 %v3033, %v3035
      %v3037 = vadd.f32 %v3033, %v3036
      %vm3038 = vweird.f32 %v2687
      %vm3039 = vweird.f32 %v3033
      %vm3040 = vmor %vm3038, %vm3039
      %v3041 = vsel %vm3040, %v3033, %v3037
      %v3042 = vand.u32 2147483647, %v2687
      %vm3043 = vcmp.eq.f32.partialorder %v3042, 8.507059e+37
      %v3044 = vand.u32 %v2687, 2147483648
      %v3045 = vor.u32 1.1754944e-38, %v3044
      %v3046 = vsel %vm3043, %v3045, %v3041
      %v3047 = vmul.f32 %v2431, %v3046
      %v3048 = vrcp.pop %v2689
      %v3049 = vmul.f32 %v2689, %v3048
      %v3050 = vsub.f32 1.0, %v3049
      %v3051 = vmul.f32 %v3048, %v3050
      %v3052 = vadd.f32 %v3048, %v3051
      %vm3053 = vweird.f32 %v2689
      %vm3054 = vweird.f32 %v3048
      %vm3055 = vmor %vm3053, %vm3054
      %v3056 = vsel %vm3055, %v3048, %v3052
      %v3057 = vand.u32 2147483647, %v2689
      %vm3058 = vcmp.eq.f32.partialorder %v3057, 8.507059e+37
      %v3059 = vand.u32 %v2689, 2147483648
      %v3060 = vor.u32 1.1754944e-38, %v3059
      %v3061 = vsel %vm3058, %v3060, %v3056
      %v3062 = vmul.f32 %v2433, %v3061
      %v3063 = vrcp.pop %v2691
      %v3064 = vmul.f32 %v2691, %v3063
      %v3065 = vsub.f32 1.0, %v3064
      %v3066 = vmul.f32 %v3063, %v3065
      %v3067 = vadd.f32 %v3063, %v3066
      %vm3068 = vweird.f32 %v2691
      %vm3069 = vweird.f32 %v3063
      %vm3070 = vmor %vm3068, %vm3069
      %v3071 = vsel %vm3070, %v3063, %v3067
      %v3072 = vand.u32 2147483647, %v2691
      %vm3073 = vcmp.eq.f32.partialorder %v3072, 8.507059e+37
      %v3074 = vand.u32 %v2691, 2147483648
      %v3075 = vor.u32 1.1754944e-38, %v3074
      %v3076 = vsel %vm3073, %v3075, %v3071
      %v3077 = vmul.f32 %v2435, %v3076
      %v3078 = vrcp.pop %v2693
      %v3079 = vmul.f32 %v2693, %v3078
      %v3080 = vsub.f32 1.0, %v3079
      %v3081 = vmul.f32 %v3078, %v3080
      %v3082 = vadd.f32 %v3078, %v3081
      %vm3083 = vweird.f32 %v2693
      %vm3084 = vweird.f32 %v3078
      %vm3085 = vmor %vm3083, %vm3084
      %v3086 = vsel %vm3085, %v3078, %v3082
      %v3087 = vand.u32 2147483647, %v2693
      %vm3088 = vcmp.eq.f32.partialorder %v3087, 8.507059e+37
      %v3089 = vand.u32 %v2693, 2147483648
      %v3090 = vor.u32 1.1754944e-38, %v3089
      %v3091 = vsel %vm3088, %v3090, %v3086
      %v3092 = vmul.f32 %v2437, %v3091
      %v3093 = vrcp.pop %v2695
      %v3094 = vmul.f32 %v2695, %v3093
      %v3095 = vsub.f32 1.0, %v3094
      %v3096 = vmul.f32 %v3093, %v3095
      %v3097 = vadd.f32 %v3093, %v3096
      %vm3098 = vweird.f32 %v2695
      %vm3099 = vweird.f32 %v3093
      %vm3100 = vmor %vm3098, %vm3099
      %v3101 = vsel %vm3100, %v3093, %v3097
      %v3102 = vand.u32 2147483647, %v2695
      %vm3103 = vcmp.eq.f32.partialorder %v3102, 8.507059e+37
      %v3104 = vand.u32 %v2695, 2147483648
      %v3105 = vor.u32 1.1754944e-38, %v3104
      %v3106 = vsel %vm3103, %v3105, %v3101
      %v3107 = vmul.f32 %v2439, %v3106
      %v3108 = vrcp.pop %v2697
      %v3109 = vmul.f32 %v2697, %v3108
      %v3110 = vsub.f32 1.0, %v3109
      %v3111 = vmul.f32 %v3108, %v3110
      %v3112 = vadd.f32 %v3108, %v3111
      %vm3113 = vweird.f32 %v2697
      %vm3114 = vweird.f32 %v3108
      %vm3115 = vmor %vm3113, %vm3114
      %v3116 = vsel %vm3115, %v3108, %v3112
      %v3117 = vand.u32 2147483647, %v2697
      %vm3118 = vcmp.eq.f32.partialorder %v3117, 8.507059e+37
      %v3119 = vand.u32 %v2697, 2147483648
      %v3120 = vor.u32 1.1754944e-38, %v3119
      %v3121 = vsel %vm3118, %v3120, %v3116
      %v3122 = vmul.f32 %v2441, %v3121
      %v3123 = vrcp.pop %v2699
      %v3124 = vmul.f32 %v2699, %v3123
      %v3125 = vsub.f32 1.0, %v3124
      %v3126 = vmul.f32 %v3123, %v3125
      %v3127 = vadd.f32 %v3123, %v3126
      %vm3128 = vweird.f32 %v2699
      %vm3129 = vweird.f32 %v3123
      %vm3130 = vmor %vm3128, %vm3129
      %v3131 = vsel %vm3130, %v3123, %v3127
      %v3132 = vand.u32 2147483647, %v2699
      %vm3133 = vcmp.eq.f32.partialorder %v3132, 8.507059e+37
      %v3134 = vand.u32 %v2699, 2147483648
      %v3135 = vor.u32 1.1754944e-38, %v3134
      %v3136 = vsel %vm3133, %v3135, %v3131
      %v3137 = vmul.f32 %v2443, %v3136
      %v3138 = vrcp.pop %v2701
      %v3139 = vmul.f32 %v2701, %v3138
      %v3140 = vsub.f32 1.0, %v3139
      %v3141 = vmul.f32 %v3138, %v3140
      %v3142 = vadd.f32 %v3138, %v3141
      %vm3143 = vweird.f32 %v2701
      %vm3144 = vweird.f32 %v3138
      %vm3145 = vmor %vm3143, %vm3144
      %v3146 = vsel %vm3145, %v3138, %v3142
      %v3147 = vand.u32 2147483647, %v2701
      %vm3148 = vcmp.eq.f32.partialorder %v3147, 8.507059e+37
      %v3149 = vand.u32 %v2701, 2147483648
      %v3150 = vor.u32 1.1754944e-38, %v3149
      %v3151 = vsel %vm3148, %v3150, %v3146
      %v3152 = vmul.f32 %v2445, %v3151
      %v3153 = vrcp.pop %v2703
      %v3154 = vmul.f32 %v2703, %v3153
      %v3155 = vsub.f32 1.0, %v3154
      %v3156 = vmul.f32 %v3153, %v3155
      %v3157 = vadd.f32 %v3153, %v3156
      %vm3158 = vweird.f32 %v2703
      %vm3159 = vweird.f32 %v3153
      %vm3160 = vmor %vm3158, %vm3159
      %v3161 = vsel %vm3160, %v3153, %v3157
      %v3162 = vand.u32 2147483647, %v2703
      %vm3163 = vcmp.eq.f32.partialorder %v3162, 8.507059e+37
      %v3164 = vand.u32 %v2703, 2147483648
      %v3165 = vor.u32 1.1754944e-38, %v3164
      %v3166 = vsel %vm3163, %v3165, %v3161
      %v3167 = vmul.f32 %v2447, %v3166
      %v3168 = vrcp.pop %v2705
      %v3169 = vmul.f32 %v2705, %v3168
      %v3170 = vsub.f32 1.0, %v3169
      %v3171 = vmul.f32 %v3168, %v3170
      %v3172 = vadd.f32 %v3168, %v3171
      %vm3173 = vweird.f32 %v2705
      %vm3174 = vweird.f32 %v3168
      %vm3175 = vmor %vm3173, %vm3174
      %v3176 = vsel %vm3175, %v3168, %v3172
      %v3177 = vand.u32 2147483647, %v2705
      %vm3178 = vcmp.eq.f32.partialorder %v3177, 8.507059e+37
      %v3179 = vand.u32 %v2705, 2147483648
      %v3180 = vor.u32 1.1754944e-38, %v3179
      %v3181 = vsel %vm3178, %v3180, %v3176
      %v3182 = vmul.f32 %v2449, %v3181
      %v3183 = vrcp.pop %v2707
      %v3184 = vmul.f32 %v2707, %v3183
      %v3185 = vsub.f32 1.0, %v3184
      %v3186 = vmul.f32 %v3183, %v3185
      %v3187 = vadd.f32 %v3183, %v3186
      %vm3188 = vweird.f32 %v2707
      %vm3189 = vweird.f32 %v3183
      %vm3190 = vmor %vm3188, %vm3189
      %v3191 = vsel %vm3190, %v3183, %v3187
      %v3192 = vand.u32 2147483647, %v2707
      %vm3193 = vcmp.eq.f32.partialorder %v3192, 8.507059e+37
      %v3194 = vand.u32 %v2707, 2147483648
      %v3195 = vor.u32 1.1754944e-38, %v3194
      %v3196 = vsel %vm3193, %v3195, %v3191
      %v3197 = vmul.f32 %v2451, %v3196
      %v3198 = vrcp.pop %v2709
      %v3199 = vmul.f32 %v2709, %v3198
      %v3200 = vsub.f32 1.0, %v3199
      %v3201 = vmul.f32 %v3198, %v3200
      %v3202 = vadd.f32 %v3198, %v3201
      %vm3203 = vweird.f32 %v2709
      %vm3204 = vweird.f32 %v3198
      %vm3205 = vmor %vm3203, %vm3204
      %v3206 = vsel %vm3205, %v3198, %v3202
      %v3207 = vand.u32 2147483647, %v2709
      %vm3208 = vcmp.eq.f32.partialorder %v3207, 8.507059e+37
      %v3209 = vand.u32 %v2709, 2147483648
      %v3210 = vor.u32 1.1754944e-38, %v3209
      %v3211 = vsel %vm3208, %v3210, %v3206
      %v3212 = vmul.f32 %v2453, %v3211
      %v3213 = vrcp.pop %v2711
      %v3214 = vmul.f32 %v2711, %v3213
      %v3215 = vsub.f32 1.0, %v3214
      %v3216 = vmul.f32 %v3213, %v3215
      %v3217 = vadd.f32 %v3213, %v3216
      %vm3218 = vweird.f32 %v2711
      %vm3219 = vweird.f32 %v3213
      %vm3220 = vmor %vm3218, %vm3219
      %v3221 = vsel %vm3220, %v3213, %v3217
      %v3222 = vand.u32 2147483647, %v2711
      %vm3223 = vcmp.eq.f32.partialorder %v3222, 8.507059e+37
      %v3224 = vand.u32 %v2711, 2147483648
      %v3225 = vor.u32 1.1754944e-38, %v3224
      %v3226 = vsel %vm3223, %v3225, %v3221
      %v3227 = vmul.f32 %v2455, %v3226
      %v3228 = vrcp.pop %v2713
      %v3229 = vmul.f32 %v2713, %v3228
      %v3230 = vsub.f32 1.0, %v3229
      %v3231 = vmul.f32 %v3228, %v3230
      %v3232 = vadd.f32 %v3228, %v3231
      %vm3233 = vweird.f32 %v2713
      %vm3234 = vweird.f32 %v3228
      %vm3235 = vmor %vm3233, %vm3234
      %v3236 = vsel %vm3235, %v3228, %v3232
      %v3237 = vand.u32 2147483647, %v2713
      %vm3238 = vcmp.eq.f32.partialorder %v3237, 8.507059e+37
      %v3239 = vand.u32 %v2713, 2147483648
      %v3240 = vor.u32 1.1754944e-38, %v3239
      %v3241 = vsel %vm3238, %v3240, %v3236
      %v3242 = vmul.f32 %v2457, %v3241
      %v3243 = vrcp.pop %v2715
      %v3244 = vmul.f32 %v2715, %v3243
      %v3245 = vsub.f32 1.0, %v3244
      %v3246 = vmul.f32 %v3243, %v3245
      %v3247 = vadd.f32 %v3243, %v3246
      %vm3248 = vweird.f32 %v2715
      %vm3249 = vweird.f32 %v3243
      %vm3250 = vmor %vm3248, %vm3249
      %v3251 = vsel %vm3250, %v3243, %v3247
      %v3252 = vand.u32 2147483647, %v2715
      %vm3253 = vcmp.eq.f32.partialorder %v3252, 8.507059e+37
      %v3254 = vand.u32 %v2715, 2147483648
      %v3255 = vor.u32 1.1754944e-38, %v3254
      %v3256 = vsel %vm3253, %v3255, %v3251
      %v3257 = vmul.f32 %v2459, %v3256
      %v3258 = vrcp.pop %v2717
      %v3259 = vmul.f32 %v2717, %v3258
      %v3260 = vsub.f32 1.0, %v3259
      %v3261 = vmul.f32 %v3258, %v3260
      %v3262 = vadd.f32 %v3258, %v3261
      %vm3263 = vweird.f32 %v2717
      %vm3264 = vweird.f32 %v3258
      %vm3265 = vmor %vm3263, %vm3264
      %v3266 = vsel %vm3265, %v3258, %v3262
      %v3267 = vand.u32 2147483647, %v2717
      %vm3268 = vcmp.eq.f32.partialorder %v3267, 8.507059e+37
      %v3269 = vand.u32 %v2717, 2147483648
      %v3270 = vor.u32 1.1754944e-38, %v3269
      %v3271 = vsel %vm3268, %v3270, %v3266
      %v3272 = vmul.f32 %v2461, %v3271
      %v3273 = vrcp.pop %v2719
      %v3274 = vmul.f32 %v2719, %v3273
      %v3275 = vsub.f32 1.0, %v3274
      %v3276 = vmul.f32 %v3273, %v3275
      %v3277 = vadd.f32 %v3273, %v3276
      %vm3278 = vweird.f32 %v2719
      %vm3279 = vweird.f32 %v3273
      %vm3280 = vmor %vm3278, %vm3279
      %v3281 = vsel %vm3280, %v3273, %v3277
      %v3282 = vand.u32 2147483647, %v2719
      %vm3283 = vcmp.eq.f32.partialorder %v3282, 8.507059e+37
      %v3284 = vand.u32 %v2719, 2147483648
      %v3285 = vor.u32 1.1754944e-38, %v3284
      %v3286 = vsel %vm3283, %v3285, %v3281
      %v3287 = vmul.f32 %v2463, %v3286
      %v3288 = vrcp.pop %v2721
      %v3289 = vmul.f32 %v2721, %v3288
      %v3290 = vsub.f32 1.0, %v3289
      %v3291 = vmul.f32 %v3288, %v3290
      %v3292 = vadd.f32 %v3288, %v3291
      %vm3293 = vweird.f32 %v2721
      %vm3294 = vweird.f32 %v3288
      %vm3295 = vmor %vm3293, %vm3294
      %v3296 = vsel %vm3295, %v3288, %v3292
      %v3297 = vand.u32 2147483647, %v2721
      %vm3298 = vcmp.eq.f32.partialorder %v3297, 8.507059e+37
      %v3299 = vand.u32 %v2721, 2147483648
      %v3300 = vor.u32 1.1754944e-38, %v3299
      %v3301 = vsel %vm3298, %v3300, %v3296
      %v3302 = vmul.f32 %v2465, %v3301
      %v3303 = vrcp.pop %v2723
      %v3304 = vmul.f32 %v2723, %v3303
      %v3305 = vsub.f32 1.0, %v3304
      %v3306 = vmul.f32 %v3303, %v3305
      %v3307 = vadd.f32 %v3303, %v3306
      %vm3308 = vweird.f32 %v2723
      %vm3309 = vweird.f32 %v3303
      %vm3310 = vmor %vm3308, %vm3309
      %v3311 = vsel %vm3310, %v3303, %v3307
      %v3312 = vand.u32 2147483647, %v2723
      %vm3313 = vcmp.eq.f32.partialorder %v3312, 8.507059e+37
      %v3314 = vand.u32 %v2723, 2147483648
      %v3315 = vor.u32 1.1754944e-38, %v3314
      %v3316 = vsel %vm3313, %v3315, %v3311
      %v3317 = vmul.f32 %v2467, %v3316
      %v3318 = vrcp.pop %v2725
      %v3319 = vmul.f32 %v2725, %v3318
      %v3320 = vsub.f32 1.0, %v3319
      %v3321 = vmul.f32 %v3318, %v3320
      %v3322 = vadd.f32 %v3318, %v3321
      %vm3323 = vweird.f32 %v2725
      %vm3324 = vweird.f32 %v3318
      %vm3325 = vmor %vm3323, %vm3324
      %v3326 = vsel %vm3325, %v3318, %v3322
      %v3327 = vand.u32 2147483647, %v2725
      %vm3328 = vcmp.eq.f32.partialorder %v3327, 8.507059e+37
      %v3329 = vand.u32 %v2725, 2147483648
      %v3330 = vor.u32 1.1754944e-38, %v3329
      %v3331 = vsel %vm3328, %v3330, %v3326
      %v3332 = vmul.f32 %v2469, %v3331
      %v3333 = vrcp.pop %v2727
      %v3334 = vmul.f32 %v2727, %v3333
      %v3335 = vsub.f32 1.0, %v3334
      %v3336 = vmul.f32 %v3333, %v3335
      %v3337 = vadd.f32 %v3333, %v3336
      %vm3338 = vweird.f32 %v2727
      %vm3339 = vweird.f32 %v3333
      %vm3340 = vmor %vm3338, %vm3339
      %v3341 = vsel %vm3340, %v3333, %v3337
      %v3342 = vand.u32 2147483647, %v2727
      %vm3343 = vcmp.eq.f32.partialorder %v3342, 8.507059e+37
      %v3344 = vand.u32 %v2727, 2147483648
      %v3345 = vor.u32 1.1754944e-38, %v3344
      %v3346 = vsel %vm3343, %v3345, %v3341
      %v3347 = vmul.f32 %v2471, %v3346
      %v3348 = vrcp.pop %v2729
      %v3349 = vmul.f32 %v2729, %v3348
      %v3350 = vsub.f32 1.0, %v3349
      %v3351 = vmul.f32 %v3348, %v3350
      %v3352 = vadd.f32 %v3348, %v3351
      %vm3353 = vweird.f32 %v2729
      %vm3354 = vweird.f32 %v3348
      %vm3355 = vmor %vm3353, %vm3354
      %v3356 = vsel %vm3355, %v3348, %v3352
      %v3357 = vand.u32 2147483647, %v2729
      %vm3358 = vcmp.eq.f32.partialorder %v3357, 8.507059e+37
      %v3359 = vand.u32 %v2729, 2147483648
      %v3360 = vor.u32 1.1754944e-38, %v3359
      %v3361 = vsel %vm3358, %v3360, %v3356
      %v3362 = vmul.f32 %v2473, %v3361
      %v3363 = vrcp.pop %v2731
      %v3364 = vmul.f32 %v2731, %v3363
      %v3365 = vsub.f32 1.0, %v3364
      %v3366 = vmul.f32 %v3363, %v3365
      %v3367 = vadd.f32 %v3363, %v3366
      %vm3368 = vweird.f32 %v2731
      %vm3369 = vweird.f32 %v3363
      %vm3370 = vmor %vm3368, %vm3369
      %v3371 = vsel %vm3370, %v3363, %v3367
      %v3372 = vand.u32 2147483647, %v2731
      %vm3373 = vcmp.eq.f32.partialorder %v3372, 8.507059e+37
      %v3374 = vand.u32 %v2731, 2147483648
      %v3375 = vor.u32 1.1754944e-38, %v3374
      %v3376 = vsel %vm3373, %v3375, %v3371
      %v3377 = vmul.f32 %v2475, %v3376
      %v3378 = vrcp.pop %v2733
      %v3379 = vmul.f32 %v2733, %v3378
      %v3380 = vsub.f32 1.0, %v3379
      %v3381 = vmul.f32 %v3378, %v3380
      %v3382 = vadd.f32 %v3378, %v3381
      %vm3383 = vweird.f32 %v2733
      %vm3384 = vweird.f32 %v3378
      %vm3385 = vmor %vm3383, %vm3384
      %v3386 = vsel %vm3385, %v3378, %v3382
      %v3387 = vand.u32 2147483647, %v2733
      %vm3388 = vcmp.eq.f32.partialorder %v3387, 8.507059e+37
      %v3389 = vand.u32 %v2733, 2147483648
      %v3390 = vor.u32 1.1754944e-38, %v3389
      %v3391 = vsel %vm3388, %v3390, %v3386
      %v3392 = vmul.f32 %v2477, %v3391
      %v3393 = vrcp.pop %v2735
      %v3394 = vmul.f32 %v2735, %v3393
      %v3395 = vsub.f32 1.0, %v3394
      %v3396 = vmul.f32 %v3393, %v3395
      %v3397 = vadd.f32 %v3393, %v3396
      %vm3398 = vweird.f32 %v2735
      %vm3399 = vweird.f32 %v3393
      %vm3400 = vmor %vm3398, %vm3399
      %v3401 = vsel %vm3400, %v3393, %v3397
      %v3402 = vand.u32 2147483647, %v2735
      %vm3403 = vcmp.eq.f32.partialorder %v3402, 8.507059e+37
      %v3404 = vand.u32 %v2735, 2147483648
      %v3405 = vor.u32 1.1754944e-38, %v3404
      %v3406 = vsel %vm3403, %v3405, %v3401
      %v3407 = vmul.f32 %v2479, %v3406
      %v3408 = vrcp.pop %v2737
      %v3409 = vmul.f32 %v2737, %v3408
      %v3410 = vsub.f32 1.0, %v3409
      %v3411 = vmul.f32 %v3408, %v3410
      %v3412 = vadd.f32 %v3408, %v3411
      %vm3413 = vweird.f32 %v2737
      %vm3414 = vweird.f32 %v3408
      %vm3415 = vmor %vm3413, %vm3414
      %v3416 = vsel %vm3415, %v3408, %v3412
      %v3417 = vand.u32 2147483647, %v2737
      %vm3418 = vcmp.eq.f32.partialorder %v3417, 8.507059e+37
      %v3419 = vand.u32 %v2737, 2147483648
      %v3420 = vor.u32 1.1754944e-38, %v3419
      %v3421 = vsel %vm3418, %v3420, %v3416
      %v3422 = vmul.f32 %v2481, %v3421
      %v3423 = vrcp.pop %v2739
      %v3424 = vmul.f32 %v2739, %v3423
      %v3425 = vsub.f32 1.0, %v3424
      %v3426 = vmul.f32 %v3423, %v3425
      %v3427 = vadd.f32 %v3423, %v3426
      %vm3428 = vweird.f32 %v2739
      %vm3429 = vweird.f32 %v3423
      %vm3430 = vmor %vm3428, %vm3429
      %v3431 = vsel %vm3430, %v3423, %v3427
      %v3432 = vand.u32 2147483647, %v2739
      %vm3433 = vcmp.eq.f32.partialorder %v3432, 8.507059e+37
      %v3434 = vand.u32 %v2739, 2147483648
      %v3435 = vor.u32 1.1754944e-38, %v3434
      %v3436 = vsel %vm3433, %v3435, %v3431
      %v3437 = vmul.f32 %v2483, %v3436
      %v3438 = vrcp.pop %v2741
      %v3439 = vmul.f32 %v2741, %v3438
      %v3440 = vsub.f32 1.0, %v3439
      %v3441 = vmul.f32 %v3438, %v3440
      %v3442 = vadd.f32 %v3438, %v3441
      %vm3443 = vweird.f32 %v2741
      %vm3444 = vweird.f32 %v3438
      %vm3445 = vmor %vm3443, %vm3444
      %v3446 = vsel %vm3445, %v3438, %v3442
      %v3447 = vand.u32 2147483647, %v2741
      %vm3448 = vcmp.eq.f32.partialorder %v3447, 8.507059e+37
      %v3449 = vand.u32 %v2741, 2147483648
      %v3450 = vor.u32 1.1754944e-38, %v3449
      %v3451 = vsel %vm3448, %v3450, %v3446
      %v3452 = vmul.f32 %v2485, %v3451
      %v3453 = vrcp.pop %v2743
      %v3454 = vmul.f32 %v2743, %v3453
      %v3455 = vsub.f32 1.0, %v3454
      %v3456 = vmul.f32 %v3453, %v3455
      %v3457 = vadd.f32 %v3453, %v3456
      %vm3458 = vweird.f32 %v2743
      %vm3459 = vweird.f32 %v3453
      %vm3460 = vmor %vm3458, %vm3459
      %v3461 = vsel %vm3460, %v3453, %v3457
      %v3462 = vand.u32 2147483647, %v2743
      %vm3463 = vcmp.eq.f32.partialorder %v3462, 8.507059e+37
      %v3464 = vand.u32 %v2743, 2147483648
      %v3465 = vor.u32 1.1754944e-38, %v3464
      %v3466 = vsel %vm3463, %v3465, %v3461
      %v3467 = vmul.f32 %v2487, %v3466
      %v3468 = vrcp.pop %v2745
      %v3469 = vmul.f32 %v2745, %v3468
      %v3470 = vsub.f32 1.0, %v3469
      %v3471 = vmul.f32 %v3468, %v3470
      %v3472 = vadd.f32 %v3468, %v3471
      %vm3473 = vweird.f32 %v2745
      %vm3474 = vweird.f32 %v3468
      %vm3475 = vmor %vm3473, %vm3474
      %v3476 = vsel %vm3475, %v3468, %v3472
      %v3477 = vand.u32 2147483647, %v2745
      %vm3478 = vcmp.eq.f32.partialorder %v3477, 8.507059e+37
      %v3479 = vand.u32 %v2745, 2147483648
      %v3480 = vor.u32 1.1754944e-38, %v3479
      %v3481 = vsel %vm3478, %v3480, %v3476
      %v3482 = vmul.f32 %v2489, %v3481
      %v3483 = vrcp.pop %v2747
      %v3484 = vmul.f32 %v2747, %v3483
      %v3485 = vsub.f32 1.0, %v3484
      %v3486 = vmul.f32 %v3483, %v3485
      %v3487 = vadd.f32 %v3483, %v3486
      %vm3488 = vweird.f32 %v2747
      %vm3489 = vweird.f32 %v3483
      %vm3490 = vmor %vm3488, %vm3489
      %v3491 = vsel %vm3490, %v3483, %v3487
      %v3492 = vand.u32 2147483647, %v2747
      %vm3493 = vcmp.eq.f32.partialorder %v3492, 8.507059e+37
      %v3494 = vand.u32 %v2747, 2147483648
      %v3495 = vor.u32 1.1754944e-38, %v3494
      %v3496 = vsel %vm3493, %v3495, %v3491
      %v3497 = vmul.f32 %v2491, %v3496
      %v3498 = vrcp.pop %v2749
      %v3499 = vmul.f32 %v2749, %v3498
      %v3500 = vsub.f32 1.0, %v3499
      %v3501 = vmul.f32 %v3498, %v3500
      %v3502 = vadd.f32 %v3498, %v3501
      %vm3503 = vweird.f32 %v2749
      %vm3504 = vweird.f32 %v3498
      %vm3505 = vmor %vm3503, %vm3504
      %v3506 = vsel %vm3505, %v3498, %v3502
      %v3507 = vand.u32 2147483647, %v2749
      %vm3508 = vcmp.eq.f32.partialorder %v3507, 8.507059e+37
      %v3509 = vand.u32 %v2749, 2147483648
      %v3510 = vor.u32 1.1754944e-38, %v3509
      %v3511 = vsel %vm3508, %v3510, %v3506
      %v3512 = vmul.f32 %v2493, %v3511
      %v3513 = vrcp.pop %v2751
      %v3514 = vmul.f32 %v2751, %v3513
      %v3515 = vsub.f32 1.0, %v3514
      %v3516 = vmul.f32 %v3513, %v3515
      %v3517 = vadd.f32 %v3513, %v3516
      %vm3518 = vweird.f32 %v2751
      %vm3519 = vweird.f32 %v3513
      %vm3520 = vmor %vm3518, %vm3519
      %v3521 = vsel %vm3520, %v3513, %v3517
      %v3522 = vand.u32 2147483647, %v2751
      %vm3523 = vcmp.eq.f32.partialorder %v3522, 8.507059e+37
      %v3524 = vand.u32 %v2751, 2147483648
      %v3525 = vor.u32 1.1754944e-38, %v3524
      %v3526 = vsel %vm3523, %v3525, %v3521
      %v3527 = vmul.f32 %v2495, %v3526
      %v3528 = vrcp.pop %v2753
      %v3529 = vmul.f32 %v2753, %v3528
      %v3530 = vsub.f32 1.0, %v3529
      %v3531 = vmul.f32 %v3528, %v3530
      %v3532 = vadd.f32 %v3528, %v3531
      %vm3533 = vweird.f32 %v2753
      %vm3534 = vweird.f32 %v3528
      %vm3535 = vmor %vm3533, %vm3534
      %v3536 = vsel %vm3535, %v3528, %v3532
      %v3537 = vand.u32 2147483647, %v2753
      %vm3538 = vcmp.eq.f32.partialorder %v3537, 8.507059e+37
      %v3539 = vand.u32 %v2753, 2147483648
      %v3540 = vor.u32 1.1754944e-38, %v3539
      %v3541 = vsel %vm3538, %v3540, %v3536
      %v3542 = vmul.f32 %v2497, %v3541
      %v3543 = vrcp.pop %v2755
      %v3544 = vmul.f32 %v2755, %v3543
      %v3545 = vsub.f32 1.0, %v3544
      %v3546 = vmul.f32 %v3543, %v3545
      %v3547 = vadd.f32 %v3543, %v3546
      %vm3548 = vweird.f32 %v2755
      %vm3549 = vweird.f32 %v3543
      %vm3550 = vmor %vm3548, %vm3549
      %v3551 = vsel %vm3550, %v3543, %v3547
      %v3552 = vand.u32 2147483647, %v2755
      %vm3553 = vcmp.eq.f32.partialorder %v3552, 8.507059e+37
      %v3554 = vand.u32 %v2755, 2147483648
      %v3555 = vor.u32 1.1754944e-38, %v3554
      %v3556 = vsel %vm3553, %v3555, %v3551
      %v3557 = vmul.f32 %v2499, %v3556
      %v3558 = vrcp.pop %v2757
      %v3559 = vmul.f32 %v2757, %v3558
      %v3560 = vsub.f32 1.0, %v3559
      %v3561 = vmul.f32 %v3558, %v3560
      %v3562 = vadd.f32 %v3558, %v3561
      %vm3563 = vweird.f32 %v2757
      %vm3564 = vweird.f32 %v3558
      %vm3565 = vmor %vm3563, %vm3564
      %v3566 = vsel %vm3565, %v3558, %v3562
      %v3567 = vand.u32 2147483647, %v2757
      %vm3568 = vcmp.eq.f32.partialorder %v3567, 8.507059e+37
      %v3569 = vand.u32 %v2757, 2147483648
      %v3570 = vor.u32 1.1754944e-38, %v3569
      %v3571 = vsel %vm3568, %v3570, %v3566
      %v3572 = vmul.f32 %v2501, %v3571
      %v3573 = vrcp.pop %v2759
      %v3574 = vmul.f32 %v2759, %v3573
      %v3575 = vsub.f32 1.0, %v3574
      %v3576 = vmul.f32 %v3573, %v3575
      %v3577 = vadd.f32 %v3573, %v3576
      %vm3578 = vweird.f32 %v2759
      %vm3579 = vweird.f32 %v3573
      %vm3580 = vmor %vm3578, %vm3579
      %v3581 = vsel %vm3580, %v3573, %v3577
      %v3582 = vand.u32 2147483647, %v2759
      %vm3583 = vcmp.eq.f32.partialorder %v3582, 8.507059e+37
      %v3584 = vand.u32 %v2759, 2147483648
      %v3585 = vor.u32 1.1754944e-38, %v3584
      %v3586 = vsel %vm3583, %v3585, %v3581
      %v3587 = vmul.f32 %v2503, %v3586
      %v3588 = vrcp.pop %v2761
      %v3589 = vmul.f32 %v2761, %v3588
      %v3590 = vsub.f32 1.0, %v3589
      %v3591 = vmul.f32 %v3588, %v3590
      %v3592 = vadd.f32 %v3588, %v3591
      %vm3593 = vweird.f32 %v2761
      %vm3594 = vweird.f32 %v3588
      %vm3595 = vmor %vm3593, %vm3594
      %v3596 = vsel %vm3595, %v3588, %v3592
      %v3597 = vand.u32 2147483647, %v2761
      %vm3598 = vcmp.eq.f32.partialorder %v3597, 8.507059e+37
      %v3599 = vand.u32 %v2761, 2147483648
      %v3600 = vor.u32 1.1754944e-38, %v3599
      %v3601 = vsel %vm3598, %v3600, %v3596
      %v3602 = vmul.f32 %v2505, %v3601
      %v3603 = vrcp.pop %v2763
      %v3604 = vmul.f32 %v2763, %v3603
      %v3605 = vsub.f32 1.0, %v3604
      %v3606 = vmul.f32 %v3603, %v3605
      %v3607 = vadd.f32 %v3603, %v3606
      %vm3608 = vweird.f32 %v2763
      %vm3609 = vweird.f32 %v3603
      %vm3610 = vmor %vm3608, %vm3609
      %v3611 = vsel %vm3610, %v3603, %v3607
      %v3612 = vand.u32 2147483647, %v2763
      %vm3613 = vcmp.eq.f32.partialorder %v3612, 8.507059e+37
      %v3614 = vand.u32 %v2763, 2147483648
      %v3615 = vor.u32 1.1754944e-38, %v3614
      %v3616 = vsel %vm3613, %v3615, %v3611
      %v3617 = vmul.f32 %v2507, %v3616
      %v3618 = vrcp.pop %v2765
      %v3619 = vmul.f32 %v2765, %v3618
      %v3620 = vsub.f32 1.0, %v3619
      %v3621 = vmul.f32 %v3618, %v3620
      %v3622 = vadd.f32 %v3618, %v3621
      %vm3623 = vweird.f32 %v2765
      %vm3624 = vweird.f32 %v3618
      %vm3625 = vmor %vm3623, %vm3624
      %v3626 = vsel %vm3625, %v3618, %v3622
      %v3627 = vand.u32 2147483647, %v2765
      %vm3628 = vcmp.eq.f32.partialorder %v3627, 8.507059e+37
      %v3629 = vand.u32 %v2765, 2147483648
      %v3630 = vor.u32 1.1754944e-38, %v3629
      %v3631 = vsel %vm3628, %v3630, %v3626
      %v3632 = vmul.f32 %v2509, %v3631
      %v3633 = vrcp.pop %v2767
      %v3634 = vmul.f32 %v2767, %v3633
      %v3635 = vsub.f32 1.0, %v3634
      %v3636 = vmul.f32 %v3633, %v3635
      %v3637 = vadd.f32 %v3633, %v3636
      %vm3638 = vweird.f32 %v2767
      %vm3639 = vweird.f32 %v3633
      %vm3640 = vmor %vm3638, %vm3639
      %v3641 = vsel %vm3640, %v3633, %v3637
      %v3642 = vand.u32 2147483647, %v2767
      %vm3643 = vcmp.eq.f32.partialorder %v3642, 8.507059e+37
      %v3644 = vand.u32 %v2767, 2147483648
      %v3645 = vor.u32 1.1754944e-38, %v3644
      %v3646 = vsel %vm3643, %v3645, %v3641
      %v3647 = vmul.f32 %v2511, %v3646
      %v3648 = vrcp.pop %v2769
      %v3649 = vmul.f32 %v2769, %v3648
      %v3650 = vsub.f32 1.0, %v3649
      %v3651 = vmul.f32 %v3648, %v3650
      %v3652 = vadd.f32 %v3648, %v3651
      %vm3653 = vweird.f32 %v2769
      %vm3654 = vweird.f32 %v3648
      %vm3655 = vmor %vm3653, %vm3654
      %v3656 = vsel %vm3655, %v3648, %v3652
      %v3657 = vand.u32 2147483647, %v2769
      %vm3658 = vcmp.eq.f32.partialorder %v3657, 8.507059e+37
      %v3659 = vand.u32 %v2769, 2147483648
      %v3660 = vor.u32 1.1754944e-38, %v3659
      %v3661 = vsel %vm3658, %v3660, %v3656
      %v3662 = vmul.f32 %v2513, %v3661
      %v3663 = vrcp.pop %v2771
      %v3664 = vmul.f32 %v2771, %v3663
      %v3665 = vsub.f32 1.0, %v3664
      %v3666 = vmul.f32 %v3663, %v3665
      %v3667 = vadd.f32 %v3663, %v3666
      %vm3668 = vweird.f32 %v2771
      %vm3669 = vweird.f32 %v3663
      %vm3670 = vmor %vm3668, %vm3669
      %v3671 = vsel %vm3670, %v3663, %v3667
      %v3672 = vand.u32 2147483647, %v2771
      %vm3673 = vcmp.eq.f32.partialorder %v3672, 8.507059e+37
      %v3674 = vand.u32 %v2771, 2147483648
      %v3675 = vor.u32 1.1754944e-38, %v3674
      %v3676 = vsel %vm3673, %v3675, %v3671
      %v3677 = vmul.f32 %v2515, %v3676
      %v3678 = vrcp.pop %v2773
      %v3679 = vmul.f32 %v2773, %v3678
      %v3680 = vsub.f32 1.0, %v3679
      %v3681 = vmul.f32 %v3678, %v3680
      %v3682 = vadd.f32 %v3678, %v3681
      %vm3683 = vweird.f32 %v2773
      %vm3684 = vweird.f32 %v3678
      %vm3685 = vmor %vm3683, %vm3684
      %v3686 = vsel %vm3685, %v3678, %v3682
      %v3687 = vand.u32 2147483647, %v2773
      %vm3688 = vcmp.eq.f32.partialorder %v3687, 8.507059e+37
      %v3689 = vand.u32 %v2773, 2147483648
      %v3690 = vor.u32 1.1754944e-38, %v3689
      %v3691 = vsel %vm3688, %v3690, %v3686
      %v3692 = vmul.f32 %v2517, %v3691
      %v3693 = vrcp.pop %v2775
      %v3694 = vmul.f32 %v2775, %v3693
      %v3695 = vsub.f32 1.0, %v3694
      %v3696 = vmul.f32 %v3693, %v3695
      %v3697 = vadd.f32 %v3693, %v3696
      %vm3698 = vweird.f32 %v2775
      %vm3699 = vweird.f32 %v3693
      %vm3700 = vmor %vm3698, %vm3699
      %v3701 = vsel %vm3700, %v3693, %v3697
      %v3702 = vand.u32 2147483647, %v2775
      %vm3703 = vcmp.eq.f32.partialorder %v3702, 8.507059e+37
      %v3704 = vand.u32 %v2775, 2147483648
      %v3705 = vor.u32 1.1754944e-38, %v3704
      %v3706 = vsel %vm3703, %v3705, %v3701
      %v3707 = vmul.f32 %v2519, %v3706
      %v3708 = vrcp.pop %v2777
      %v3709 = vmul.f32 %v2777, %v3708
      %v3710 = vsub.f32 1.0, %v3709
      %v3711 = vmul.f32 %v3708, %v3710
      %v3712 = vadd.f32 %v3708, %v3711
      %vm3713 = vweird.f32 %v2777
      %vm3714 = vweird.f32 %v3708
      %vm3715 = vmor %vm3713, %vm3714
      %v3716 = vsel %vm3715, %v3708, %v3712
      %v3717 = vand.u32 2147483647, %v2777
      %vm3718 = vcmp.eq.f32.partialorder %v3717, 8.507059e+37
      %v3719 = vand.u32 %v2777, 2147483648
      %v3720 = vor.u32 1.1754944e-38, %v3719
      %v3721 = vsel %vm3718, %v3720, %v3716
      %v3722 = vmul.f32 %v2521, %v3721
      %v3723 = vrcp.pop %v2779
      %v3724 = vmul.f32 %v2779, %v3723
      %v3725 = vsub.f32 1.0, %v3724
      %v3726 = vmul.f32 %v3723, %v3725
      %v3727 = vadd.f32 %v3723, %v3726
      %vm3728 = vweird.f32 %v2779
      %vm3729 = vweird.f32 %v3723
      %vm3730 = vmor %vm3728, %vm3729
      %v3731 = vsel %vm3730, %v3723, %v3727
      %v3732 = vand.u32 2147483647, %v2779
      %vm3733 = vcmp.eq.f32.partialorder %v3732, 8.507059e+37
      %v3734 = vand.u32 %v2779, 2147483648
      %v3735 = vor.u32 1.1754944e-38, %v3734
      %v3736 = vsel %vm3733, %v3735, %v3731
      %v3737 = vmul.f32 %v2523, %v3736
      %v3738 = vrcp.pop %v2781
      %v3739 = vmul.f32 %v2781, %v3738
      %v3740 = vsub.f32 1.0, %v3739
      %v3741 = vmul.f32 %v3738, %v3740
      %v3742 = vadd.f32 %v3738, %v3741
      %vm3743 = vweird.f32 %v2781
      %vm3744 = vweird.f32 %v3738
      %vm3745 = vmor %vm3743, %vm3744
      %v3746 = vsel %vm3745, %v3738, %v3742
      %v3747 = vand.u32 2147483647, %v2781
      %vm3748 = vcmp.eq.f32.partialorder %v3747, 8.507059e+37
      %v3749 = vand.u32 %v2781, 2147483648
      %v3750 = vor.u32 1.1754944e-38, %v3749
      %v3751 = vsel %vm3748, %v3750, %v3746
      %v3752 = vmul.f32 %v2525, %v3751
      %v3753 = vrcp.pop %v2783
      %v3754 = vmul.f32 %v2783, %v3753
      %v3755 = vsub.f32 1.0, %v3754
      %v3756 = vmul.f32 %v3753, %v3755
      %v3757 = vadd.f32 %v3753, %v3756
      %vm3758 = vweird.f32 %v2783
      %vm3759 = vweird.f32 %v3753
      %vm3760 = vmor %vm3758, %vm3759
      %v3761 = vsel %vm3760, %v3753, %v3757
      %v3762 = vand.u32 2147483647, %v2783
      %vm3763 = vcmp.eq.f32.partialorder %v3762, 8.507059e+37
      %v3764 = vand.u32 %v2783, 2147483648
      %v3765 = vor.u32 1.1754944e-38, %v3764
      %v3766 = vsel %vm3763, %v3765, %v3761
      %v3767 = vmul.f32 %v2527, %v3766
      %v3768 = vrcp.pop %v2785
      %v3769 = vmul.f32 %v2785, %v3768
      %v3770 = vsub.f32 1.0, %v3769
      %v3771 = vmul.f32 %v3768, %v3770
      %v3772 = vadd.f32 %v3768, %v3771
      %vm3773 = vweird.f32 %v2785
      %vm3774 = vweird.f32 %v3768
      %vm3775 = vmor %vm3773, %vm3774
      %v3776 = vsel %vm3775, %v3768, %v3772
      %v3777 = vand.u32 2147483647, %v2785
      %vm3778 = vcmp.eq.f32.partialorder %v3777, 8.507059e+37
      %v3779 = vand.u32 %v2785, 2147483648
      %v3780 = vor.u32 1.1754944e-38, %v3779
      %v3781 = vsel %vm3778, %v3780, %v3776
      %v3782 = vmul.f32 %v2529, %v3781
      %v3783 = vrcp.pop %v2787
      %v3784 = vmul.f32 %v2787, %v3783
      %v3785 = vsub.f32 1.0, %v3784
      %v3786 = vmul.f32 %v3783, %v3785
      %v3787 = vadd.f32 %v3783, %v3786
      %vm3788 = vweird.f32 %v2787
      %vm3789 = vweird.f32 %v3783
      %vm3790 = vmor %vm3788, %vm3789
      %v3791 = vsel %vm3790, %v3783, %v3787
      %v3792 = vand.u32 2147483647, %v2787
      %vm3793 = vcmp.eq.f32.partialorder %v3792, 8.507059e+37
      %v3794 = vand.u32 %v2787, 2147483648
      %v3795 = vor.u32 1.1754944e-38, %v3794
      %v3796 = vsel %vm3793, %v3795, %v3791
      %v3797 = vmul.f32 %v2531, %v3796
      %v3798 = vrcp.pop %v2789
      %v3799 = vmul.f32 %v2789, %v3798
      %v3800 = vsub.f32 1.0, %v3799
      %v3801 = vmul.f32 %v3798, %v3800
      %v3802 = vadd.f32 %v3798, %v3801
      %vm3803 = vweird.f32 %v2789
      %vm3804 = vweird.f32 %v3798
      %vm3805 = vmor %vm3803, %vm3804
      %v3806 = vsel %vm3805, %v3798, %v3802
      %v3807 = vand.u32 2147483647, %v2789
      %vm3808 = vcmp.eq.f32.partialorder %v3807, 8.507059e+37
      %v3809 = vand.u32 %v2789, 2147483648
      %v3810 = vor.u32 1.1754944e-38, %v3809
      %v3811 = vsel %vm3808, %v3810, %v3806
      %v3812 = vmul.f32 %v2533, %v3811
      %v3813 = vrcp.pop %v2791
      %v3814 = vmul.f32 %v2791, %v3813
      %v3815 = vsub.f32 1.0, %v3814
      %v3816 = vmul.f32 %v3813, %v3815
      %v3817 = vadd.f32 %v3813, %v3816
      %vm3818 = vweird.f32 %v2791
      %vm3819 = vweird.f32 %v3813
      %vm3820 = vmor %vm3818, %vm3819
      %v3821 = vsel %vm3820, %v3813, %v3817
      %v3822 = vand.u32 2147483647, %v2791
      %vm3823 = vcmp.eq.f32.partialorder %v3822, 8.507059e+37
      %v3824 = vand.u32 %v2791, 2147483648
      %v3825 = vor.u32 1.1754944e-38, %v3824
      %v3826 = vsel %vm3823, %v3825, %v3821
      %v3827 = vmul.f32 %v2535, %v3826
      %v3828 = vrcp.pop %v2793
      %v3829 = vmul.f32 %v2793, %v3828
      %v3830 = vsub.f32 1.0, %v3829
      %v3831 = vmul.f32 %v3828, %v3830
      %v3832 = vadd.f32 %v3828, %v3831
      %vm3833 = vweird.f32 %v2793
      %vm3834 = vweird.f32 %v3828
      %vm3835 = vmor %vm3833, %vm3834
      %v3836 = vsel %vm3835, %v3828, %v3832
      %v3837 = vand.u32 2147483647, %v2793
      %vm3838 = vcmp.eq.f32.partialorder %v3837, 8.507059e+37
      %v3839 = vand.u32 %v2793, 2147483648
      %v3840 = vor.u32 1.1754944e-38, %v3839
      %v3841 = vsel %vm3838, %v3840, %v3836
      %v3842 = vmul.f32 %v2537, %v3841
      %v3843 = vrcp.pop %v2795
      %v3844 = vmul.f32 %v2795, %v3843
      %v3845 = vsub.f32 1.0, %v3844
      %v3846 = vmul.f32 %v3843, %v3845
      %v3847 = vadd.f32 %v3843, %v3846
      %vm3848 = vweird.f32 %v2795
      %vm3849 = vweird.f32 %v3843
      %vm3850 = vmor %vm3848, %vm3849
      %v3851 = vsel %vm3850, %v3843, %v3847
      %v3852 = vand.u32 2147483647, %v2795
      %vm3853 = vcmp.eq.f32.partialorder %v3852, 8.507059e+37
      %v3854 = vand.u32 %v2795, 2147483648
      %v3855 = vor.u32 1.1754944e-38, %v3854
      %v3856 = vsel %vm3853, %v3855, %v3851
      %v3857 = vmul.f32 %v2539, %v3856
      %v3858 = vrcp.pop %v2797
      %v3859 = vmul.f32 %v2797, %v3858
      %v3860 = vsub.f32 1.0, %v3859
      %v3861 = vmul.f32 %v3858, %v3860
      %v3862 = vadd.f32 %v3858, %v3861
      %vm3863 = vweird.f32 %v2797
      %vm3864 = vweird.f32 %v3858
      %vm3865 = vmor %vm3863, %vm3864
      %v3866 = vsel %vm3865, %v3858, %v3862
      %v3867 = vand.u32 2147483647, %v2797
      %vm3868 = vcmp.eq.f32.partialorder %v3867, 8.507059e+37
      %v3869 = vand.u32 %v2797, 2147483648
      %v3870 = vor.u32 1.1754944e-38, %v3869
      %v3871 = vsel %vm3868, %v3870, %v3866
      %v3872 = vmul.f32 %v2541, %v3871
      %v3873 = vrcp.pop %v2799
      %v3874 = vmul.f32 %v2799, %v3873
      %v3875 = vsub.f32 1.0, %v3874
      %v3876 = vmul.f32 %v3873, %v3875
      %v3877 = vadd.f32 %v3873, %v3876
      %vm3878 = vweird.f32 %v2799
      %vm3879 = vweird.f32 %v3873
      %vm3880 = vmor %vm3878, %vm3879
      %v3881 = vsel %vm3880, %v3873, %v3877
      %v3882 = vand.u32 2147483647, %v2799
      %vm3883 = vcmp.eq.f32.partialorder %v3882, 8.507059e+37
      %v3884 = vand.u32 %v2799, 2147483648
      %v3885 = vor.u32 1.1754944e-38, %v3884
      %v3886 = vsel %vm3883, %v3885, %v3881
      %v3887 = vmul.f32 %v2543, %v3886
      %v3888 = vrcp.pop %v2801
      %v3889 = vmul.f32 %v2801, %v3888
      %v3890 = vsub.f32 1.0, %v3889
      %v3891 = vmul.f32 %v3888, %v3890
      %v3892 = vadd.f32 %v3888, %v3891
      %vm3893 = vweird.f32 %v2801
      %vm3894 = vweird.f32 %v3888
      %vm3895 = vmor %vm3893, %vm3894
      %v3896 = vsel %vm3895, %v3888, %v3892
      %v3897 = vand.u32 2147483647, %v2801
      %vm3898 = vcmp.eq.f32.partialorder %v3897, 8.507059e+37
      %v3899 = vand.u32 %v2801, 2147483648
      %v3900 = vor.u32 1.1754944e-38, %v3899
      %v3901 = vsel %vm3898, %v3900, %v3896
      %v3902 = vmul.f32 %v2545, %v3901
      %v3903 = vrcp.pop %v2803
      %v3904 = vmul.f32 %v2803, %v3903
      %v3905 = vsub.f32 1.0, %v3904
      %v3906 = vmul.f32 %v3903, %v3905
      %v3907 = vadd.f32 %v3903, %v3906
      %vm3908 = vweird.f32 %v2803
      %vm3909 = vweird.f32 %v3903
      %vm3910 = vmor %vm3908, %vm3909
      %v3911 = vsel %vm3910, %v3903, %v3907
      %v3912 = vand.u32 2147483647, %v2803
      %vm3913 = vcmp.eq.f32.partialorder %v3912, 8.507059e+37
      %v3914 = vand.u32 %v2803, 2147483648
      %v3915 = vor.u32 1.1754944e-38, %v3914
      %v3916 = vsel %vm3913, %v3915, %v3911
      %v3917 = vmul.f32 %v2547, %v3916
      %v3918 = vrcp.pop %v2805
      %v3919 = vmul.f32 %v2805, %v3918
      %v3920 = vsub.f32 1.0, %v3919
      %v3921 = vmul.f32 %v3918, %v3920
      %v3922 = vadd.f32 %v3918, %v3921
      %vm3923 = vweird.f32 %v2805
      %vm3924 = vweird.f32 %v3918
      %vm3925 = vmor %vm3923, %vm3924
      %v3926 = vsel %vm3925, %v3918, %v3922
      %v3927 = vand.u32 2147483647, %v2805
      %vm3928 = vcmp.eq.f32.partialorder %v3927, 8.507059e+37
      %v3929 = vand.u32 %v2805, 2147483648
      %v3930 = vor.u32 1.1754944e-38, %v3929
      %v3931 = vsel %vm3928, %v3930, %v3926
      %v3932 = vmul.f32 %v2549, %v3931
      %v3933 = vrcp.pop %v2807
      %v3934 = vmul.f32 %v2807, %v3933
      %v3935 = vsub.f32 1.0, %v3934
      %v3936 = vmul.f32 %v3933, %v3935
      %v3937 = vadd.f32 %v3933, %v3936
      %vm3938 = vweird.f32 %v2807
      %vm3939 = vweird.f32 %v3933
      %vm3940 = vmor %vm3938, %vm3939
      %v3941 = vsel %vm3940, %v3933, %v3937
      %v3942 = vand.u32 2147483647, %v2807
      %vm3943 = vcmp.eq.f32.partialorder %v3942, 8.507059e+37
      %v3944 = vand.u32 %v2807, 2147483648
      %v3945 = vor.u32 1.1754944e-38, %v3944
      %v3946 = vsel %vm3943, %v3945, %v3941
      %v3947 = vmul.f32 %v2551, %v3946
      %v3948 = vrcp.pop %v2809
      %v3949 = vmul.f32 %v2809, %v3948
      %v3950 = vsub.f32 1.0, %v3949
      %v3951 = vmul.f32 %v3948, %v3950
      %v3952 = vadd.f32 %v3948, %v3951
      %vm3953 = vweird.f32 %v2809
      %vm3954 = vweird.f32 %v3948
      %vm3955 = vmor %vm3953, %vm3954
      %v3956 = vsel %vm3955, %v3948, %v3952
      %v3957 = vand.u32 2147483647, %v2809
      %vm3958 = vcmp.eq.f32.partialorder %v3957, 8.507059e+37
      %v3959 = vand.u32 %v2809, 2147483648
      %v3960 = vor.u32 1.1754944e-38, %v3959
      %v3961 = vsel %vm3958, %v3960, %v3956
      %v3962 = vmul.f32 %v2553, %v3961
      %v3963 = vrcp.pop %v2811
      %v3964 = vmul.f32 %v2811, %v3963
      %v3965 = vsub.f32 1.0, %v3964
      %v3966 = vmul.f32 %v3963, %v3965
      %v3967 = vadd.f32 %v3963, %v3966
      %vm3968 = vweird.f32 %v2811
      %vm3969 = vweird.f32 %v3963
      %vm3970 = vmor %vm3968, %vm3969
      %v3971 = vsel %vm3970, %v3963, %v3967
      %v3972 = vand.u32 2147483647, %v2811
      %vm3973 = vcmp.eq.f32.partialorder %v3972, 8.507059e+37
      %v3974 = vand.u32 %v2811, 2147483648
      %v3975 = vor.u32 1.1754944e-38, %v3974
      %v3976 = vsel %vm3973, %v3975, %v3971
      %v3977 = vmul.f32 %v2555, %v3976
      %v3978 = vrcp.pop %v2813
      %v3979 = vmul.f32 %v2813, %v3978
      %v3980 = vsub.f32 1.0, %v3979
      %v3981 = vmul.f32 %v3978, %v3980
      %v3982 = vadd.f32 %v3978, %v3981
      %vm3983 = vweird.f32 %v2813
      %vm3984 = vweird.f32 %v3978
      %vm3985 = vmor %vm3983, %vm3984
      %v3986 = vsel %vm3985, %v3978, %v3982
      %v3987 = vand.u32 2147483647, %v2813
      %vm3988 = vcmp.eq.f32.partialorder %v3987, 8.507059e+37
      %v3989 = vand.u32 %v2813, 2147483648
      %v3990 = vor.u32 1.1754944e-38, %v3989
      %v3991 = vsel %vm3988, %v3990, %v3986
      %v3992 = vmul.f32 %v2557, %v3991
      %v3993 = vrcp.pop %v2815
      %v3994 = vmul.f32 %v2815, %v3993
      %v3995 = vsub.f32 1.0, %v3994
      %v3996 = vmul.f32 %v3993, %v3995
      %v3997 = vadd.f32 %v3993, %v3996
      %vm3998 = vweird.f32 %v2815
      %vm3999 = vweird.f32 %v3993
      %vm4000 = vmor %vm3998, %vm3999
      %v4001 = vsel %vm4000, %v3993, %v3997
      %v4002 = vand.u32 2147483647, %v2815
      %vm4003 = vcmp.eq.f32.partialorder %v4002, 8.507059e+37
      %v4004 = vand.u32 %v2815, 2147483648
      %v4005 = vor.u32 1.1754944e-38, %v4004
      %v4006 = vsel %vm4003, %v4005, %v4001
      %v4007 = vmul.f32 %v2559, %v4006
      %v4008 = vrcp.pop %v2817
      %v4009 = vmul.f32 %v2817, %v4008
      %v4010 = vsub.f32 1.0, %v4009
      %v4011 = vmul.f32 %v4008, %v4010
      %v4012 = vadd.f32 %v4008, %v4011
      %vm4013 = vweird.f32 %v2817
      %vm4014 = vweird.f32 %v4008
      %vm4015 = vmor %vm4013, %vm4014
      %v4016 = vsel %vm4015, %v4008, %v4012
      %v4017 = vand.u32 2147483647, %v2817
      %vm4018 = vcmp.eq.f32.partialorder %v4017, 8.507059e+37
      %v4019 = vand.u32 %v2817, 2147483648
      %v4020 = vor.u32 1.1754944e-38, %v4019
      %v4021 = vsel %vm4018, %v4020, %v4016
      %v4022 = vmul.f32 %v2561, %v4021
      %v4023 = vrcp.pop %v2819
      %v4024 = vmul.f32 %v2819, %v4023
      %v4025 = vsub.f32 1.0, %v4024
      %v4026 = vmul.f32 %v4023, %v4025
      %v4027 = vadd.f32 %v4023, %v4026
      %vm4028 = vweird.f32 %v2819
      %vm4029 = vweird.f32 %v4023
      %vm4030 = vmor %vm4028, %vm4029
      %v4031 = vsel %vm4030, %v4023, %v4027
      %v4032 = vand.u32 2147483647, %v2819
      %vm4033 = vcmp.eq.f32.partialorder %v4032, 8.507059e+37
      %v4034 = vand.u32 %v2819, 2147483648
      %v4035 = vor.u32 1.1754944e-38, %v4034
      %v4036 = vsel %vm4033, %v4035, %v4031
      %v4037 = vmul.f32 %v2563, %v4036
      %v4038 = vrcp.pop %v2821
      %v4039 = vmul.f32 %v2821, %v4038
      %v4040 = vsub.f32 1.0, %v4039
      %v4041 = vmul.f32 %v4038, %v4040
      %v4042 = vadd.f32 %v4038, %v4041
      %vm4043 = vweird.f32 %v2821
      %vm4044 = vweird.f32 %v4038
      %vm4045 = vmor %vm4043, %vm4044
      %v4046 = vsel %vm4045, %v4038, %v4042
      %v4047 = vand.u32 2147483647, %v2821
      %vm4048 = vcmp.eq.f32.partialorder %v4047, 8.507059e+37
      %v4049 = vand.u32 %v2821, 2147483648
      %v4050 = vor.u32 1.1754944e-38, %v4049
      %v4051 = vsel %vm4048, %v4050, %v4046
      %v4052 = vmul.f32 %v2565, %v4051
      %v4053 = vrcp.pop %v2823
      %v4054 = vmul.f32 %v2823, %v4053
      %v4055 = vsub.f32 1.0, %v4054
      %v4056 = vmul.f32 %v4053, %v4055
      %v4057 = vadd.f32 %v4053, %v4056
      %vm4058 = vweird.f32 %v2823
      %vm4059 = vweird.f32 %v4053
      %vm4060 = vmor %vm4058, %vm4059
      %v4061 = vsel %vm4060, %v4053, %v4057
      %v4062 = vand.u32 2147483647, %v2823
      %vm4063 = vcmp.eq.f32.partialorder %v4062, 8.507059e+37
      %v4064 = vand.u32 %v2823, 2147483648
      %v4065 = vor.u32 1.1754944e-38, %v4064
      %v4066 = vsel %vm4063, %v4065, %v4061
      %v4067 = vmul.f32 %v2567, %v4066
      %v4068 = vrcp.pop %v2825
      %v4069 = vmul.f32 %v2825, %v4068
      %v4070 = vsub.f32 1.0, %v4069
      %v4071 = vmul.f32 %v4068, %v4070
      %v4072 = vadd.f32 %v4068, %v4071
      %vm4073 = vweird.f32 %v2825
      %vm4074 = vweird.f32 %v4068
      %vm4075 = vmor %vm4073, %vm4074
      %v4076 = vsel %vm4075, %v4068, %v4072
      %v4077 = vand.u32 2147483647, %v2825
      %vm4078 = vcmp.eq.f32.partialorder %v4077, 8.507059e+37
      %v4079 = vand.u32 %v2825, 2147483648
      %v4080 = vor.u32 1.1754944e-38, %v4079
      %v4081 = vsel %vm4078, %v4080, %v4076
      %v4082 = vmul.f32 %v2569, %v4081
      %v4083 = vrcp.pop %v2827
      %v4084 = vmul.f32 %v2827, %v4083
      %v4085 = vsub.f32 1.0, %v4084
      %v4086 = vmul.f32 %v4083, %v4085
      %v4087 = vadd.f32 %v4083, %v4086
      %vm4088 = vweird.f32 %v2827
      %vm4089 = vweird.f32 %v4083
      %vm4090 = vmor %vm4088, %vm4089
      %v4091 = vsel %vm4090, %v4083, %v4087
      %v4092 = vand.u32 2147483647, %v2827
      %vm4093 = vcmp.eq.f32.partialorder %v4092, 8.507059e+37
      %v4094 = vand.u32 %v2827, 2147483648
      %v4095 = vor.u32 1.1754944e-38, %v4094
      %v4096 = vsel %vm4093, %v4095, %v4091
      %v4097 = vmul.f32 %v2571, %v4096
      %v4098 = vrcp.pop %v2829
      %v4099 = vmul.f32 %v2829, %v4098
      %v4100 = vsub.f32 1.0, %v4099
      %v4101 = vmul.f32 %v4098, %v4100
      %v4102 = vadd.f32 %v4098, %v4101
      %vm4103 = vweird.f32 %v2829
      %vm4104 = vweird.f32 %v4098
      %vm4105 = vmor %vm4103, %vm4104
      %v4106 = vsel %vm4105, %v4098, %v4102
      %v4107 = vand.u32 2147483647, %v2829
      %vm4108 = vcmp.eq.f32.partialorder %v4107, 8.507059e+37
      %v4109 = vand.u32 %v2829, 2147483648
      %v4110 = vor.u32 1.1754944e-38, %v4109
      %v4111 = vsel %vm4108, %v4110, %v4106
      %v4112 = vmul.f32 %v2573, %v4111
      %v4113 = vrcp.pop %v2831
      %v4114 = vmul.f32 %v2831, %v4113
      %v4115 = vsub.f32 1.0, %v4114
      %v4116 = vmul.f32 %v4113, %v4115
      %v4117 = vadd.f32 %v4113, %v4116
      %vm4118 = vweird.f32 %v2831
      %vm4119 = vweird.f32 %v4113
      %vm4120 = vmor %vm4118, %vm4119
      %v4121 = vsel %vm4120, %v4113, %v4117
      %v4122 = vand.u32 2147483647, %v2831
      %vm4123 = vcmp.eq.f32.partialorder %v4122, 8.507059e+37
      %v4124 = vand.u32 %v2831, 2147483648
      %v4125 = vor.u32 1.1754944e-38, %v4124
      %v4126 = vsel %vm4123, %v4125, %v4121
      %v4127 = vmul.f32 %v2575, %v4126
      %v4128 = vrcp.pop %v2833
      %v4129 = vmul.f32 %v2833, %v4128
      %v4130 = vsub.f32 1.0, %v4129
      %v4131 = vmul.f32 %v4128, %v4130
      %v4132 = vadd.f32 %v4128, %v4131
      %vm4133 = vweird.f32 %v2833
      %vm4134 = vweird.f32 %v4128
      %vm4135 = vmor %vm4133, %vm4134
      %v4136 = vsel %vm4135, %v4128, %v4132
      %v4137 = vand.u32 2147483647, %v2833
      %vm4138 = vcmp.eq.f32.partialorder %v4137, 8.507059e+37
      %v4139 = vand.u32 %v2833, 2147483648
      %v4140 = vor.u32 1.1754944e-38, %v4139
      %v4141 = vsel %vm4138, %v4140, %v4136
      %v4142 = vmul.f32 %v2577, %v4141
      %v4143 = vrcp.pop %v2835
      %v4144 = vmul.f32 %v2835, %v4143
      %v4145 = vsub.f32 1.0, %v4144
      %v4146 = vmul.f32 %v4143, %v4145
      %v4147 = vadd.f32 %v4143, %v4146
      %vm4148 = vweird.f32 %v2835
      %vm4149 = vweird.f32 %v4143
      %vm4150 = vmor %vm4148, %vm4149
      %v4151 = vsel %vm4150, %v4143, %v4147
      %v4152 = vand.u32 2147483647, %v2835
      %vm4153 = vcmp.eq.f32.partialorder %v4152, 8.507059e+37
      %v4154 = vand.u32 %v2835, 2147483648
      %v4155 = vor.u32 1.1754944e-38, %v4154
      %v4156 = vsel %vm4153, %v4155, %v4151
      %v4157 = vmul.f32 %v2579, %v4156
      %v4158 = vrcp.pop %v2837
      %v4159 = vmul.f32 %v2837, %v4158
      %v4160 = vsub.f32 1.0, %v4159
      %v4161 = vmul.f32 %v4158, %v4160
      %v4162 = vadd.f32 %v4158, %v4161
      %vm4163 = vweird.f32 %v2837
      %vm4164 = vweird.f32 %v4158
      %vm4165 = vmor %vm4163, %vm4164
      %v4166 = vsel %vm4165, %v4158, %v4162
      %v4167 = vand.u32 2147483647, %v2837
      %vm4168 = vcmp.eq.f32.partialorder %v4167, 8.507059e+37
      %v4169 = vand.u32 %v2837, 2147483648
      %v4170 = vor.u32 1.1754944e-38, %v4169
      %v4171 = vsel %vm4168, %v4170, %v4166
      %v4172 = vmul.f32 %v2581, %v4171
      %v4173 = vrcp.pop %v2839
      %v4174 = vmul.f32 %v2839, %v4173
      %v4175 = vsub.f32 1.0, %v4174
      %v4176 = vmul.f32 %v4173, %v4175
      %v4177 = vadd.f32 %v4173, %v4176
      %vm4178 = vweird.f32 %v2839
      %vm4179 = vweird.f32 %v4173
      %vm4180 = vmor %vm4178, %vm4179
      %v4181 = vsel %vm4180, %v4173, %v4177
      %v4182 = vand.u32 2147483647, %v2839
      %vm4183 = vcmp.eq.f32.partialorder %v4182, 8.507059e+37
      %v4184 = vand.u32 %v2839, 2147483648
      %v4185 = vor.u32 1.1754944e-38, %v4184
      %v4186 = vsel %vm4183, %v4185, %v4181
      %v4187 = vmul.f32 %v2583, %v4186
      %v4188 = vrcp.pop %v2841
      %v4189 = vmul.f32 %v2841, %v4188
      %v4190 = vsub.f32 1.0, %v4189
      %v4191 = vmul.f32 %v4188, %v4190
      %v4192 = vadd.f32 %v4188, %v4191
      %vm4193 = vweird.f32 %v2841
      %vm4194 = vweird.f32 %v4188
      %vm4195 = vmor %vm4193, %vm4194
      %v4196 = vsel %vm4195, %v4188, %v4192
      %v4197 = vand.u32 2147483647, %v2841
      %vm4198 = vcmp.eq.f32.partialorder %v4197, 8.507059e+37
      %v4199 = vand.u32 %v2841, 2147483648
      %v4200 = vor.u32 1.1754944e-38, %v4199
      %v4201 = vsel %vm4198, %v4200, %v4196
      %v4202 = vmul.f32 %v2585, %v4201
      %v4203 = vrcp.pop %v2843
      %v4204 = vmul.f32 %v2843, %v4203
      %v4205 = vsub.f32 1.0, %v4204
      %v4206 = vmul.f32 %v4203, %v4205
      %v4207 = vadd.f32 %v4203, %v4206
      %vm4208 = vweird.f32 %v2843
      %vm4209 = vweird.f32 %v4203
      %vm4210 = vmor %vm4208, %vm4209
      %v4211 = vsel %vm4210, %v4203, %v4207
      %v4212 = vand.u32 2147483647, %v2843
      %vm4213 = vcmp.eq.f32.partialorder %v4212, 8.507059e+37
      %v4214 = vand.u32 %v2843, 2147483648
      %v4215 = vor.u32 1.1754944e-38, %v4214
      %v4216 = vsel %vm4213, %v4215, %v4211
      %v4217 = vmul.f32 %v2587, %v4216
      %v4218 = vrcp.pop %v2845
      %v4219 = vmul.f32 %v2845, %v4218
      %v4220 = vsub.f32 1.0, %v4219
      %v4221 = vmul.f32 %v4218, %v4220
      %v4222 = vadd.f32 %v4218, %v4221
      %vm4223 = vweird.f32 %v2845
      %vm4224 = vweird.f32 %v4218
      %vm4225 = vmor %vm4223, %vm4224
      %v4226 = vsel %vm4225, %v4218, %v4222
      %v4227 = vand.u32 2147483647, %v2845
      %vm4228 = vcmp.eq.f32.partialorder %v4227, 8.507059e+37
      %v4229 = vand.u32 %v2845, 2147483648
      %v4230 = vor.u32 1.1754944e-38, %v4229
      %v4231 = vsel %vm4228, %v4230, %v4226
      %v4232 = vmul.f32 %v2589, %v4231
      %v4233 = vrcp.pop %v2847
      %v4234 = vmul.f32 %v2847, %v4233
      %v4235 = vsub.f32 1.0, %v4234
      %v4236 = vmul.f32 %v4233, %v4235
      %v4237 = vadd.f32 %v4233, %v4236
      %vm4238 = vweird.f32 %v2847
      %vm4239 = vweird.f32 %v4233
      %vm4240 = vmor %vm4238, %vm4239
      %v4241 = vsel %vm4240, %v4233, %v4237
      %v4242 = vand.u32 2147483647, %v2847
      %vm4243 = vcmp.eq.f32.partialorder %v4242, 8.507059e+37
      %v4244 = vand.u32 %v2847, 2147483648
      %v4245 = vor.u32 1.1754944e-38, %v4244
      %v4246 = vsel %vm4243, %v4245, %v4241
      %v4247 = vmul.f32 %v2591, %v4246
      %v4248 = vrcp.pop %v2849
      %v4249 = vmul.f32 %v2849, %v4248
      %v4250 = vsub.f32 1.0, %v4249
      %v4251 = vmul.f32 %v4248, %v4250
      %v4252 = vadd.f32 %v4248, %v4251
      %vm4253 = vweird.f32 %v2849
      %vm4254 = vweird.f32 %v4248
      %vm4255 = vmor %vm4253, %vm4254
      %v4256 = vsel %vm4255, %v4248, %v4252
      %v4257 = vand.u32 2147483647, %v2849
      %vm4258 = vcmp.eq.f32.partialorder %v4257, 8.507059e+37
      %v4259 = vand.u32 %v2849, 2147483648
      %v4260 = vor.u32 1.1754944e-38, %v4259
      %v4261 = vsel %vm4258, %v4260, %v4256
      %v4262 = vmul.f32 %v2593, %v4261
      %v4263 = vrcp.pop %v2851
      %v4264 = vmul.f32 %v2851, %v4263
      %v4265 = vsub.f32 1.0, %v4264
      %v4266 = vmul.f32 %v4263, %v4265
      %v4267 = vadd.f32 %v4263, %v4266
      %vm4268 = vweird.f32 %v2851
      %vm4269 = vweird.f32 %v4263
      %vm4270 = vmor %vm4268, %vm4269
      %v4271 = vsel %vm4270, %v4263, %v4267
      %v4272 = vand.u32 2147483647, %v2851
      %vm4273 = vcmp.eq.f32.partialorder %v4272, 8.507059e+37
      %v4274 = vand.u32 %v2851, 2147483648
      %v4275 = vor.u32 1.1754944e-38, %v4274
      %v4276 = vsel %vm4273, %v4275, %v4271
      %v4277 = vmul.f32 %v2595, %v4276
      %v4278 = vrcp.pop %v2853
      %v4279 = vmul.f32 %v2853, %v4278
      %v4280 = vsub.f32 1.0, %v4279
      %v4281 = vmul.f32 %v4278, %v4280
      %v4282 = vadd.f32 %v4278, %v4281
      %vm4283 = vweird.f32 %v2853
      %vm4284 = vweird.f32 %v4278
      %vm4285 = vmor %vm4283, %vm4284
      %v4286 = vsel %vm4285, %v4278, %v4282
      %v4287 = vand.u32 2147483647, %v2853
      %vm4288 = vcmp.eq.f32.partialorder %v4287, 8.507059e+37
      %v4289 = vand.u32 %v2853, 2147483648
      %v4290 = vor.u32 1.1754944e-38, %v4289
      %v4291 = vsel %vm4288, %v4290, %v4286
      %v4292 = vmul.f32 %v2597, %v4291
      %v4293 = vrcp.pop %v2855
      %v4294 = vmul.f32 %v2855, %v4293
      %v4295 = vsub.f32 1.0, %v4294
      %v4296 = vmul.f32 %v4293, %v4295
      %v4297 = vadd.f32 %v4293, %v4296
      %vm4298 = vweird.f32 %v2855
      %vm4299 = vweird.f32 %v4293
      %vm4300 = vmor %vm4298, %vm4299
      %v4301 = vsel %vm4300, %v4293, %v4297
      %v4302 = vand.u32 2147483647, %v2855
      %vm4303 = vcmp.eq.f32.partialorder %v4302, 8.507059e+37
      %v4304 = vand.u32 %v2855, 2147483648
      %v4305 = vor.u32 1.1754944e-38, %v4304
      %v4306 = vsel %vm4303, %v4305, %v4301
      %v4307 = vmul.f32 %v2599, %v4306
      %v4308 = vrcp.pop %v2857
      %v4309 = vmul.f32 %v2857, %v4308
      %v4310 = vsub.f32 1.0, %v4309
      %v4311 = vmul.f32 %v4308, %v4310
      %v4312 = vadd.f32 %v4308, %v4311
      %vm4313 = vweird.f32 %v2857
      %vm4314 = vweird.f32 %v4308
      %vm4315 = vmor %vm4313, %vm4314
      %v4316 = vsel %vm4315, %v4308, %v4312
      %v4317 = vand.u32 2147483647, %v2857
      %vm4318 = vcmp.eq.f32.partialorder %v4317, 8.507059e+37
      %v4319 = vand.u32 %v2857, 2147483648
      %v4320 = vor.u32 1.1754944e-38, %v4319
      %v4321 = vsel %vm4318, %v4320, %v4316
      %v4322 = vmul.f32 %v2601, %v4321
      %v4323 = vrcp.pop %v2859
      %v4324 = vmul.f32 %v2859, %v4323
      %v4325 = vsub.f32 1.0, %v4324
      %v4326 = vmul.f32 %v4323, %v4325
      %v4327 = vadd.f32 %v4323, %v4326
      %vm4328 = vweird.f32 %v2859
      %vm4329 = vweird.f32 %v4323
      %vm4330 = vmor %vm4328, %vm4329
      %v4331 = vsel %vm4330, %v4323, %v4327
      %v4332 = vand.u32 2147483647, %v2859
      %vm4333 = vcmp.eq.f32.partialorder %v4332, 8.507059e+37
      %v4334 = vand.u32 %v2859, 2147483648
      %v4335 = vor.u32 1.1754944e-38, %v4334
      %v4336 = vsel %vm4333, %v4335, %v4331
      %v4337 = vmul.f32 %v2603, %v4336
      %v4338 = vrcp.pop %v2861
      %v4339 = vmul.f32 %v2861, %v4338
      %v4340 = vsub.f32 1.0, %v4339
      %v4341 = vmul.f32 %v4338, %v4340
      %v4342 = vadd.f32 %v4338, %v4341
      %vm4343 = vweird.f32 %v2861
      %vm4344 = vweird.f32 %v4338
      %vm4345 = vmor %vm4343, %vm4344
      %v4346 = vsel %vm4345, %v4338, %v4342
      %v4347 = vand.u32 2147483647, %v2861
      %vm4348 = vcmp.eq.f32.partialorder %v4347, 8.507059e+37
      %v4349 = vand.u32 %v2861, 2147483648
      %v4350 = vor.u32 1.1754944e-38, %v4349
      %v4351 = vsel %vm4348, %v4350, %v4346
      %v4352 = vmul.f32 %v2605, %v4351
      %v4353 = vrcp.pop %v2863
      %v4354 = vmul.f32 %v2863, %v4353
      %v4355 = vsub.f32 1.0, %v4354
      %v4356 = vmul.f32 %v4353, %v4355
      %v4357 = vadd.f32 %v4353, %v4356
      %vm4358 = vweird.f32 %v2863
      %vm4359 = vweird.f32 %v4353
      %vm4360 = vmor %vm4358, %vm4359
      %v4361 = vsel %vm4360, %v4353, %v4357
      %v4362 = vand.u32 2147483647, %v2863
      %vm4363 = vcmp.eq.f32.partialorder %v4362, 8.507059e+37
      %v4364 = vand.u32 %v2863, 2147483648
      %v4365 = vor.u32 1.1754944e-38, %v4364
      %v4366 = vsel %vm4363, %v4365, %v4361
      %v4367 = vmul.f32 %v2607, %v4366
      %v4368 = vrcp.pop %v2865
      %v4369 = vmul.f32 %v2865, %v4368
      %v4370 = vsub.f32 1.0, %v4369
      %v4371 = vmul.f32 %v4368, %v4370
      %v4372 = vadd.f32 %v4368, %v4371
      %vm4373 = vweird.f32 %v2865
      %vm4374 = vweird.f32 %v4368
      %vm4375 = vmor %vm4373, %vm4374
      %v4376 = vsel %vm4375, %v4368, %v4372
      %v4377 = vand.u32 2147483647, %v2865
      %vm4378 = vcmp.eq.f32.partialorder %v4377, 8.507059e+37
      %v4379 = vand.u32 %v2865, 2147483648
      %v4380 = vor.u32 1.1754944e-38, %v4379
      %v4381 = vsel %vm4378, %v4380, %v4376
      %v4382 = vmul.f32 %v2609, %v4381
      %v4383 = vrcp.pop %v2867
      %v4384 = vmul.f32 %v2867, %v4383
      %v4385 = vsub.f32 1.0, %v4384
      %v4386 = vmul.f32 %v4383, %v4385
      %v4387 = vadd.f32 %v4383, %v4386
      %vm4388 = vweird.f32 %v2867
      %vm4389 = vweird.f32 %v4383
      %vm4390 = vmor %vm4388, %vm4389
      %v4391 = vsel %vm4390, %v4383, %v4387
      %v4392 = vand.u32 2147483647, %v2867
      %vm4393 = vcmp.eq.f32.partialorder %v4392, 8.507059e+37
      %v4394 = vand.u32 %v2867, 2147483648
      %v4395 = vor.u32 1.1754944e-38, %v4394
      %v4396 = vsel %vm4393, %v4395, %v4391
      %v4397 = vmul.f32 %v2611, %v4396
      %v4398 = vrcp.pop %v2869
      %v4399 = vmul.f32 %v2869, %v4398
      %v4400 = vsub.f32 1.0, %v4399
      %v4401 = vmul.f32 %v4398, %v4400
      %v4402 = vadd.f32 %v4398, %v4401
      %vm4403 = vweird.f32 %v2869
      %vm4404 = vweird.f32 %v4398
      %vm4405 = vmor %vm4403, %vm4404
      %v4406 = vsel %vm4405, %v4398, %v4402
      %v4407 = vand.u32 2147483647, %v2869
      %vm4408 = vcmp.eq.f32.partialorder %v4407, 8.507059e+37
      %v4409 = vand.u32 %v2869, 2147483648
      %v4410 = vor.u32 1.1754944e-38, %v4409
      %v4411 = vsel %vm4408, %v4410, %v4406
      %v4412 = vmul.f32 %v2613, %v4411
      %v4413 = vrcp.pop %v2871
      %v4414 = vmul.f32 %v2871, %v4413
      %v4415 = vsub.f32 1.0, %v4414
      %v4416 = vmul.f32 %v4413, %v4415
      %v4417 = vadd.f32 %v4413, %v4416
      %vm4418 = vweird.f32 %v2871
      %vm4419 = vweird.f32 %v4413
      %vm4420 = vmor %vm4418, %vm4419
      %v4421 = vsel %vm4420, %v4413, %v4417
      %v4422 = vand.u32 2147483647, %v2871
      %vm4423 = vcmp.eq.f32.partialorder %v4422, 8.507059e+37
      %v4424 = vand.u32 %v2871, 2147483648
      %v4425 = vor.u32 1.1754944e-38, %v4424
      %v4426 = vsel %vm4423, %v4425, %v4421
      %v4427 = vmul.f32 %v2615, %v4426
      %v4428 = vrcp.pop %v2873
      %v4429 = vmul.f32 %v2873, %v4428
      %v4430 = vsub.f32 1.0, %v4429
      %v4431 = vmul.f32 %v4428, %v4430
      %v4432 = vadd.f32 %v4428, %v4431
      %vm4433 = vweird.f32 %v2873
      %vm4434 = vweird.f32 %v4428
      %vm4435 = vmor %vm4433, %vm4434
      %v4436 = vsel %vm4435, %v4428, %v4432
      %v4437 = vand.u32 2147483647, %v2873
      %vm4438 = vcmp.eq.f32.partialorder %v4437, 8.507059e+37
      %v4439 = vand.u32 %v2873, 2147483648
      %v4440 = vor.u32 1.1754944e-38, %v4439
      %v4441 = vsel %vm4438, %v4440, %v4436
      %v4442 = vmul.f32 %v2617, %v4441
      %v4443 = vrcp.pop %v2875
      %v4444 = vmul.f32 %v2875, %v4443
      %v4445 = vsub.f32 1.0, %v4444
      %v4446 = vmul.f32 %v4443, %v4445
      %v4447 = vadd.f32 %v4443, %v4446
      %vm4448 = vweird.f32 %v2875
      %vm4449 = vweird.f32 %v4443
      %vm4450 = vmor %vm4448, %vm4449
      %v4451 = vsel %vm4450, %v4443, %v4447
      %v4452 = vand.u32 2147483647, %v2875
      %vm4453 = vcmp.eq.f32.partialorder %v4452, 8.507059e+37
      %v4454 = vand.u32 %v2875, 2147483648
      %v4455 = vor.u32 1.1754944e-38, %v4454
      %v4456 = vsel %vm4453, %v4455, %v4451
      %v4457 = vmul.f32 %v2619, %v4456
      %v4458 = vrcp.pop %v2877
      %v4459 = vmul.f32 %v2877, %v4458
      %v4460 = vsub.f32 1.0, %v4459
      %v4461 = vmul.f32 %v4458, %v4460
      %v4462 = vadd.f32 %v4458, %v4461
      %vm4463 = vweird.f32 %v2877
      %vm4464 = vweird.f32 %v4458
      %vm4465 = vmor %vm4463, %vm4464
      %v4466 = vsel %vm4465, %v4458, %v4462
      %v4467 = vand.u32 2147483647, %v2877
      %vm4468 = vcmp.eq.f32.partialorder %v4467, 8.507059e+37
      %v4469 = vand.u32 %v2877, 2147483648
      %v4470 = vor.u32 1.1754944e-38, %v4469
      %v4471 = vsel %vm4468, %v4470, %v4466
      %v4472 = vmul.f32 %v2621, %v4471
      %v4473 = vrcp.pop %v2879
      %v4474 = vmul.f32 %v2879, %v4473
      %v4475 = vsub.f32 1.0, %v4474
      %v4476 = vmul.f32 %v4473, %v4475
      %v4477 = vadd.f32 %v4473, %v4476
      %vm4478 = vweird.f32 %v2879
      %vm4479 = vweird.f32 %v4473
      %vm4480 = vmor %vm4478, %vm4479
      %v4481 = vsel %vm4480, %v4473, %v4477
      %v4482 = vand.u32 2147483647, %v2879
      %vm4483 = vcmp.eq.f32.partialorder %v4482, 8.507059e+37
      %v4484 = vand.u32 %v2879, 2147483648
      %v4485 = vor.u32 1.1754944e-38, %v4484
      %v4486 = vsel %vm4483, %v4485, %v4481
      %v4487 = vmul.f32 %v2623, %v4486
      %v4488 = vrcp.pop %v2881
      %v4489 = vmul.f32 %v2881, %v4488
      %v4490 = vsub.f32 1.0, %v4489
      %v4491 = vmul.f32 %v4488, %v4490
      %v4492 = vadd.f32 %v4488, %v4491
      %vm4493 = vweird.f32 %v2881
      %vm4494 = vweird.f32 %v4488
      %vm4495 = vmor %vm4493, %vm4494
      %v4496 = vsel %vm4495, %v4488, %v4492
      %v4497 = vand.u32 2147483647, %v2881
      %vm4498 = vcmp.eq.f32.partialorder %v4497, 8.507059e+37
      %v4499 = vand.u32 %v2881, 2147483648
      %v4500 = vor.u32 1.1754944e-38, %v4499
      %v4501 = vsel %vm4498, %v4500, %v4496
      %v4502 = vmul.f32 %v2625, %v4501
      %v4503 = vrcp.pop %v2883
      %v4504 = vmul.f32 %v2883, %v4503
      %v4505 = vsub.f32 1.0, %v4504
      %v4506 = vmul.f32 %v4503, %v4505
      %v4507 = vadd.f32 %v4503, %v4506
      %vm4508 = vweird.f32 %v2883
      %vm4509 = vweird.f32 %v4503
      %vm4510 = vmor %vm4508, %vm4509
      %v4511 = vsel %vm4510, %v4503, %v4507
      %v4512 = vand.u32 2147483647, %v2883
      %vm4513 = vcmp.eq.f32.partialorder %v4512, 8.507059e+37
      %v4514 = vand.u32 %v2883, 2147483648
      %v4515 = vor.u32 1.1754944e-38, %v4514
      %v4516 = vsel %vm4513, %v4515, %v4511
      %v4517 = vmul.f32 %v2627, %v4516
      %v4518 = vrcp.pop %v2885
      %v4519 = vmul.f32 %v2885, %v4518
      %v4520 = vsub.f32 1.0, %v4519
      %v4521 = vmul.f32 %v4518, %v4520
      %v4522 = vadd.f32 %v4518, %v4521
      %vm4523 = vweird.f32 %v2885
      %vm4524 = vweird.f32 %v4518
      %vm4525 = vmor %vm4523, %vm4524
      %v4526 = vsel %vm4525, %v4518, %v4522
      %v4527 = vand.u32 2147483647, %v2885
      %vm4528 = vcmp.eq.f32.partialorder %v4527, 8.507059e+37
      %v4529 = vand.u32 %v2885, 2147483648
      %v4530 = vor.u32 1.1754944e-38, %v4529
      %v4531 = vsel %vm4528, %v4530, %v4526
      %v4532 = vmul.f32 %v2629, %v4531
      %v4533 = vrcp.pop %v2887
      %v4534 = vmul.f32 %v2887, %v4533
      %v4535 = vsub.f32 1.0, %v4534
      %v4536 = vmul.f32 %v4533, %v4535
      %v4537 = vadd.f32 %v4533, %v4536
      %vm4538 = vweird.f32 %v2887
      %vm4539 = vweird.f32 %v4533
      %vm4540 = vmor %vm4538, %vm4539
      %v4541 = vsel %vm4540, %v4533, %v4537
      %v4542 = vand.u32 2147483647, %v2887
      %vm4543 = vcmp.eq.f32.partialorder %v4542, 8.507059e+37
      %v4544 = vand.u32 %v2887, 2147483648
      %v4545 = vor.u32 1.1754944e-38, %v4544
      %v4546 = vsel %vm4543, %v4545, %v4541
      %v4547 = vmul.f32 %v2631, %v4546
      %v4548 = vrcp.pop %v2889
      %v4549 = vmul.f32 %v2889, %v4548
      %v4550 = vsub.f32 1.0, %v4549
      %v4551 = vmul.f32 %v4548, %v4550
      %v4552 = vadd.f32 %v4548, %v4551
      %vm4553 = vweird.f32 %v2889
      %vm4554 = vweird.f32 %v4548
      %vm4555 = vmor %vm4553, %vm4554
      %v4556 = vsel %vm4555, %v4548, %v4552
      %v4557 = vand.u32 2147483647, %v2889
      %vm4558 = vcmp.eq.f32.partialorder %v4557, 8.507059e+37
      %v4559 = vand.u32 %v2889, 2147483648
      %v4560 = vor.u32 1.1754944e-38, %v4559
      %v4561 = vsel %vm4558, %v4560, %v4556
      %v4562 = vmul.f32 %v2633, %v4561
      %v4563 = vrcp.pop %v2891
      %v4564 = vmul.f32 %v2891, %v4563
      %v4565 = vsub.f32 1.0, %v4564
      %v4566 = vmul.f32 %v4563, %v4565
      %v4567 = vadd.f32 %v4563, %v4566
      %vm4568 = vweird.f32 %v2891
      %vm4569 = vweird.f32 %v4563
      %vm4570 = vmor %vm4568, %vm4569
      %v4571 = vsel %vm4570, %v4563, %v4567
      %v4572 = vand.u32 2147483647, %v2891
      %vm4573 = vcmp.eq.f32.partialorder %v4572, 8.507059e+37
      %v4574 = vand.u32 %v2891, 2147483648
      %v4575 = vor.u32 1.1754944e-38, %v4574
      %v4576 = vsel %vm4573, %v4575, %v4571
      %v4577 = vmul.f32 %v2635, %v4576
      %v4578 = vrcp.pop %v2893
      %v4579 = vmul.f32 %v2893, %v4578
      %v4580 = vsub.f32 1.0, %v4579
      %v4581 = vmul.f32 %v4578, %v4580
      %v4582 = vadd.f32 %v4578, %v4581
      %vm4583 = vweird.f32 %v2893
      %vm4584 = vweird.f32 %v4578
      %vm4585 = vmor %vm4583, %vm4584
      %v4586 = vsel %vm4585, %v4578, %v4582
      %v4587 = vand.u32 2147483647, %v2893
      %vm4588 = vcmp.eq.f32.partialorder %v4587, 8.507059e+37
      %v4589 = vand.u32 %v2893, 2147483648
      %v4590 = vor.u32 1.1754944e-38, %v4589
      %v4591 = vsel %vm4588, %v4590, %v4586
      %v4592 = vmul.f32 %v2637, %v4591
      %v4593 = vrcp.pop %v2895
      %v4594 = vmul.f32 %v2895, %v4593
      %v4595 = vsub.f32 1.0, %v4594
      %v4596 = vmul.f32 %v4593, %v4595
      %v4597 = vadd.f32 %v4593, %v4596
      %vm4598 = vweird.f32 %v2895
      %vm4599 = vweird.f32 %v4593
      %vm4600 = vmor %vm4598, %vm4599
      %v4601 = vsel %vm4600, %v4593, %v4597
      %v4602 = vand.u32 2147483647, %v2895
      %vm4603 = vcmp.eq.f32.partialorder %v4602, 8.507059e+37
      %v4604 = vand.u32 %v2895, 2147483648
      %v4605 = vor.u32 1.1754944e-38, %v4604
      %v4606 = vsel %vm4603, %v4605, %v4601
      %v4607 = vmul.f32 %v2639, %v4606
      %v4608 = vrcp.pop %v2897
      %v4609 = vmul.f32 %v2897, %v4608
      %v4610 = vsub.f32 1.0, %v4609
      %v4611 = vmul.f32 %v4608, %v4610
      %v4612 = vadd.f32 %v4608, %v4611
      %vm4613 = vweird.f32 %v2897
      %vm4614 = vweird.f32 %v4608
      %vm4615 = vmor %vm4613, %vm4614
      %v4616 = vsel %vm4615, %v4608, %v4612
      %v4617 = vand.u32 2147483647, %v2897
      %vm4618 = vcmp.eq.f32.partialorder %v4617, 8.507059e+37
      %v4619 = vand.u32 %v2897, 2147483648
      %v4620 = vor.u32 1.1754944e-38, %v4619
      %v4621 = vsel %vm4618, %v4620, %v4616
      %v4622 = vmul.f32 %v2641, %v4621
      %v4623 = vrcp.pop %v2899
      %v4624 = vmul.f32 %v2899, %v4623
      %v4625 = vsub.f32 1.0, %v4624
      %v4626 = vmul.f32 %v4623, %v4625
      %v4627 = vadd.f32 %v4623, %v4626
      %vm4628 = vweird.f32 %v2899
      %vm4629 = vweird.f32 %v4623
      %vm4630 = vmor %vm4628, %vm4629
      %v4631 = vsel %vm4630, %v4623, %v4627
      %v4632 = vand.u32 2147483647, %v2899
      %vm4633 = vcmp.eq.f32.partialorder %v4632, 8.507059e+37
      %v4634 = vand.u32 %v2899, 2147483648
      %v4635 = vor.u32 1.1754944e-38, %v4634
      %v4636 = vsel %vm4633, %v4635, %v4631
      %v4637 = vmul.f32 %v2643, %v4636
      %v4638 = vrcp.pop %v2901
      %v4639 = vmul.f32 %v2901, %v4638
      %v4640 = vsub.f32 1.0, %v4639
      %v4641 = vmul.f32 %v4638, %v4640
      %v4642 = vadd.f32 %v4638, %v4641
      %vm4643 = vweird.f32 %v2901
      %vm4644 = vweird.f32 %v4638
      %vm4645 = vmor %vm4643, %vm4644
      %v4646 = vsel %vm4645, %v4638, %v4642
      %v4647 = vand.u32 2147483647, %v2901
      %vm4648 = vcmp.eq.f32.partialorder %v4647, 8.507059e+37
      %v4649 = vand.u32 %v2901, 2147483648
      %v4650 = vor.u32 1.1754944e-38, %v4649
      %v4651 = vsel %vm4648, %v4650, %v4646
      %v4652 = vmul.f32 %v2645, %v4651
      %v4653 = vrcp.pop %v2903
      %v4654 = vmul.f32 %v2903, %v4653
      %v4655 = vsub.f32 1.0, %v4654
      %v4656 = vmul.f32 %v4653, %v4655
      %v4657 = vadd.f32 %v4653, %v4656
      %vm4658 = vweird.f32 %v2903
      %vm4659 = vweird.f32 %v4653
      %vm4660 = vmor %vm4658, %vm4659
      %v4661 = vsel %vm4660, %v4653, %v4657
      %v4662 = vand.u32 2147483647, %v2903
      %vm4663 = vcmp.eq.f32.partialorder %v4662, 8.507059e+37
      %v4664 = vand.u32 %v2903, 2147483648
      %v4665 = vor.u32 1.1754944e-38, %v4664
      %v4666 = vsel %vm4663, %v4665, %v4661
      %v4667 = vmul.f32 %v2647, %v4666
      %v4668 = vrcp.pop %v2905
      %v4669 = vmul.f32 %v2905, %v4668
      %v4670 = vsub.f32 1.0, %v4669
      %v4671 = vmul.f32 %v4668, %v4670
      %v4672 = vadd.f32 %v4668, %v4671
      %vm4673 = vweird.f32 %v2905
      %vm4674 = vweird.f32 %v4668
      %vm4675 = vmor %vm4673, %vm4674
      %v4676 = vsel %vm4675, %v4668, %v4672
      %v4677 = vand.u32 2147483647, %v2905
      %vm4678 = vcmp.eq.f32.partialorder %v4677, 8.507059e+37
      %v4679 = vand.u32 %v2905, 2147483648
      %v4680 = vor.u32 1.1754944e-38, %v4679
      %v4681 = vsel %vm4678, %v4680, %v4676
      %v4682 = vmul.f32 %v2649, %v4681
      %v4683 = vrcp.pop %v2907
      %v4684 = vmul.f32 %v2907, %v4683
      %v4685 = vsub.f32 1.0, %v4684
      %v4686 = vmul.f32 %v4683, %v4685
      %v4687 = vadd.f32 %v4683, %v4686
      %vm4688 = vweird.f32 %v2907
      %vm4689 = vweird.f32 %v4683
      %vm4690 = vmor %vm4688, %vm4689
      %v4691 = vsel %vm4690, %v4683, %v4687
      %v4692 = vand.u32 2147483647, %v2907
      %vm4693 = vcmp.eq.f32.partialorder %v4692, 8.507059e+37
      %v4694 = vand.u32 %v2907, 2147483648
      %v4695 = vor.u32 1.1754944e-38, %v4694
      %v4696 = vsel %vm4693, %v4695, %v4691
      %v4697 = vmul.f32 %v2651, %v4696
      %v4698 = vrcp.pop %v2909
      %v4699 = vmul.f32 %v2909, %v4698
      %v4700 = vsub.f32 1.0, %v4699
      %v4701 = vmul.f32 %v4698, %v4700
      %v4702 = vadd.f32 %v4698, %v4701
      %vm4703 = vweird.f32 %v2909
      %vm4704 = vweird.f32 %v4698
      %vm4705 = vmor %vm4703, %vm4704
      %v4706 = vsel %vm4705, %v4698, %v4702
      %v4707 = vand.u32 2147483647, %v2909
      %vm4708 = vcmp.eq.f32.partialorder %v4707, 8.507059e+37
      %v4709 = vand.u32 %v2909, 2147483648
      %v4710 = vor.u32 1.1754944e-38, %v4709
      %v4711 = vsel %vm4708, %v4710, %v4706
      %v4712 = vmul.f32 %v2653, %v4711
      %v4713 = vrcp.pop %v2911
      %v4714 = vmul.f32 %v2911, %v4713
      %v4715 = vsub.f32 1.0, %v4714
      %v4716 = vmul.f32 %v4713, %v4715
      %v4717 = vadd.f32 %v4713, %v4716
      %vm4718 = vweird.f32 %v2911
      %vm4719 = vweird.f32 %v4713
      %vm4720 = vmor %vm4718, %vm4719
      %v4721 = vsel %vm4720, %v4713, %v4717
      %v4722 = vand.u32 2147483647, %v2911
      %vm4723 = vcmp.eq.f32.partialorder %v4722, 8.507059e+37
      %v4724 = vand.u32 %v2911, 2147483648
      %v4725 = vor.u32 1.1754944e-38, %v4724
      %v4726 = vsel %vm4723, %v4725, %v4721
      %v4727 = vmul.f32 %v2655, %v4726
      %v4728 = vrcp.pop %v2913
      %v4729 = vmul.f32 %v2913, %v4728
      %v4730 = vsub.f32 1.0, %v4729
      %v4731 = vmul.f32 %v4728, %v4730
      %v4732 = vadd.f32 %v4728, %v4731
      %vm4733 = vweird.f32 %v2913
      %vm4734 = vweird.f32 %v4728
      %vm4735 = vmor %vm4733, %vm4734
      %v4736 = vsel %vm4735, %v4728, %v4732
      %v4737 = vand.u32 2147483647, %v2913
      %vm4738 = vcmp.eq.f32.partialorder %v4737, 8.507059e+37
      %v4739 = vand.u32 %v2913, 2147483648
      %v4740 = vor.u32 1.1754944e-38, %v4739
      %v4741 = vsel %vm4738, %v4740, %v4736
      %v4742 = vmul.f32 %v2657, %v4741
      %v4743 = vrcp.pop %v2915
      %v4744 = vmul.f32 %v2915, %v4743
      %v4745 = vsub.f32 1.0, %v4744
      %v4746 = vmul.f32 %v4743, %v4745
      %v4747 = vadd.f32 %v4743, %v4746
      %vm4748 = vweird.f32 %v2915
      %vm4749 = vweird.f32 %v4743
      %vm4750 = vmor %vm4748, %vm4749
      %v4751 = vsel %vm4750, %v4743, %v4747
      %v4752 = vand.u32 2147483647, %v2915
      %vm4753 = vcmp.eq.f32.partialorder %v4752, 8.507059e+37
      %v4754 = vand.u32 %v2915, 2147483648
      %v4755 = vor.u32 1.1754944e-38, %v4754
      %v4756 = vsel %vm4753, %v4755, %v4751
      %v4757 = vmul.f32 %v2659, %v4756
      %v4758 = vrcp.pop %v2917
      %v4759 = vmul.f32 %v2917, %v4758
      %v4760 = vsub.f32 1.0, %v4759
      %v4761 = vmul.f32 %v4758, %v4760
      %v4762 = vadd.f32 %v4758, %v4761
      %vm4763 = vweird.f32 %v2917
      %vm4764 = vweird.f32 %v4758
      %vm4765 = vmor %vm4763, %vm4764
      %v4766 = vsel %vm4765, %v4758, %v4762
      %v4767 = vand.u32 2147483647, %v2917
      %vm4768 = vcmp.eq.f32.partialorder %v4767, 8.507059e+37
      %v4769 = vand.u32 %v2917, 2147483648
      %v4770 = vor.u32 1.1754944e-38, %v4769
      %v4771 = vsel %vm4768, %v4770, %v4766
      %v4772 = vmul.f32 %v2661, %v4771
      %v4773 = vrcp.pop %v2919
      %v4774 = vmul.f32 %v2919, %v4773
      %v4775 = vsub.f32 1.0, %v4774
      %v4776 = vmul.f32 %v4773, %v4775
      %v4777 = vadd.f32 %v4773, %v4776
      %vm4778 = vweird.f32 %v2919
      %vm4779 = vweird.f32 %v4773
      %vm4780 = vmor %vm4778, %vm4779
      %v4781 = vsel %vm4780, %v4773, %v4777
      %v4782 = vand.u32 2147483647, %v2919
      %vm4783 = vcmp.eq.f32.partialorder %v4782, 8.507059e+37
      %v4784 = vand.u32 %v2919, 2147483648
      %v4785 = vor.u32 1.1754944e-38, %v4784
      %v4786 = vsel %vm4783, %v4785, %v4781
      %v4787 = vmul.f32 %v2663, %v4786
      %v4788 = vrcp.pop %v2921
      %v4789 = vmul.f32 %v2921, %v4788
      %v4790 = vsub.f32 1.0, %v4789
      %v4791 = vmul.f32 %v4788, %v4790
      %v4792 = vadd.f32 %v4788, %v4791
      %vm4793 = vweird.f32 %v2921
      %vm4794 = vweird.f32 %v4788
      %vm4795 = vmor %vm4793, %vm4794
      %v4796 = vsel %vm4795, %v4788, %v4792
      %v4797 = vand.u32 2147483647, %v2921
      %vm4798 = vcmp.eq.f32.partialorder %v4797, 8.507059e+37
      %v4799 = vand.u32 %v2921, 2147483648
      %v4800 = vor.u32 1.1754944e-38, %v4799
      %v4801 = vsel %vm4798, %v4800, %v4796
      %v4802 = vmul.f32 %v2665, %v4801
      %v4803 = vrcp.pop %v2923
      %v4804 = vmul.f32 %v2923, %v4803
      %v4805 = vsub.f32 1.0, %v4804
      %v4806 = vmul.f32 %v4803, %v4805
      %v4807 = vadd.f32 %v4803, %v4806
      %vm4808 = vweird.f32 %v2923
      %vm4809 = vweird.f32 %v4803
      %vm4810 = vmor %vm4808, %vm4809
      %v4811 = vsel %vm4810, %v4803, %v4807
      %v4812 = vand.u32 2147483647, %v2923
      %vm4813 = vcmp.eq.f32.partialorder %v4812, 8.507059e+37
      %v4814 = vand.u32 %v2923, 2147483648
      %v4815 = vor.u32 1.1754944e-38, %v4814
      %v4816 = vsel %vm4813, %v4815, %v4811
      %v4817 = vmul.f32 %v2667, %v4816
      %v4818 = vrcp.pop %v2925
      %v4819 = vmul.f32 %v2925, %v4818
      %v4820 = vsub.f32 1.0, %v4819
      %v4821 = vmul.f32 %v4818, %v4820
      %v4822 = vadd.f32 %v4818, %v4821
      %vm4823 = vweird.f32 %v2925
      %vm4824 = vweird.f32 %v4818
      %vm4825 = vmor %vm4823, %vm4824
      %v4826 = vsel %vm4825, %v4818, %v4822
      %v4827 = vand.u32 2147483647, %v2925
      %vm4828 = vcmp.eq.f32.partialorder %v4827, 8.507059e+37
      %v4829 = vand.u32 %v2925, 2147483648
      %v4830 = vor.u32 1.1754944e-38, %v4829
      %v4831 = vsel %vm4828, %v4830, %v4826
      %v4832 = vmul.f32 %v2669, %v4831
      %v4833 = vrcp.pop %v2927
      %v4834 = vmul.f32 %v2927, %v4833
      %v4835 = vsub.f32 1.0, %v4834
      %v4836 = vmul.f32 %v4833, %v4835
      %v4837 = vadd.f32 %v4833, %v4836
      %vm4838 = vweird.f32 %v2927
      %vm4839 = vweird.f32 %v4833
      %vm4840 = vmor %vm4838, %vm4839
      %v4841 = vsel %vm4840, %v4833, %v4837
      %v4842 = vand.u32 2147483647, %v2927
      %vm4843 = vcmp.eq.f32.partialorder %v4842, 8.507059e+37
      %v4844 = vand.u32 %v2927, 2147483648
      %v4845 = vor.u32 1.1754944e-38, %v4844
      %v4846 = vsel %vm4843, %v4845, %v4841
      %v4847 = vmul.f32 %v2671, %v4846
      %v4848 = vpack.c.bf16 %v2942, %v2942
      %v4849 = vpack.c.bf16 %v2957, %v2957
      %v4850 = vpack.c.bf16 %v2972, %v2972
      %v4851 = vpack.c.bf16 %v2987, %v2987
      %v4852 = vpack.c.bf16 %v3002, %v3002
      %v4853 = vpack.c.bf16 %v3017, %v3017
      %v4854 = vpack.c.bf16 %v3032, %v3032
      %v4855 = vpack.c.bf16 %v3047, %v3047
      %v4856 = vpack.c.bf16 %v3062, %v3062
      %v4857 = vpack.c.bf16 %v3077, %v3077
      %v4858 = vpack.c.bf16 %v3092, %v3092
      %v4859 = vpack.c.bf16 %v3107, %v3107
      %v4860 = vpack.c.bf16 %v3122, %v3122
      %v4861 = vpack.c.bf16 %v3137, %v3137
      %v4862 = vpack.c.bf16 %v3152, %v3152
      %v4863 = vpack.c.bf16 %v3167, %v3167
      %v4864 = vpack.c.bf16 %v3182, %v3182
      %v4865 = vpack.c.bf16 %v3197, %v3197
      %v4866 = vpack.c.bf16 %v3212, %v3212
      %v4867 = vpack.c.bf16 %v3227, %v3227
      %v4868 = vpack.c.bf16 %v3242, %v3242
      %v4869 = vpack.c.bf16 %v3257, %v3257
      %v4870 = vpack.c.bf16 %v3272, %v3272
      %v4871 = vpack.c.bf16 %v3287, %v3287
      %v4872 = vpack.c.bf16 %v3302, %v3302
      %v4873 = vpack.c.bf16 %v3317, %v3317
      %v4874 = vpack.c.bf16 %v3332, %v3332
      %v4875 = vpack.c.bf16 %v3347, %v3347
      %v4876 = vpack.c.bf16 %v3362, %v3362
      %v4877 = vpack.c.bf16 %v3377, %v3377
      %v4878 = vpack.c.bf16 %v3392, %v3392
      %v4879 = vpack.c.bf16 %v3407, %v3407
      %v4880 = vpack.c.bf16 %v3422, %v3422
      %v4881 = vpack.c.bf16 %v3437, %v3437
      %v4882 = vpack.c.bf16 %v3452, %v3452
      %v4883 = vpack.c.bf16 %v3467, %v3467
      %v4884 = vpack.c.bf16 %v3482, %v3482
      %v4885 = vpack.c.bf16 %v3497, %v3497
      %v4886 = vpack.c.bf16 %v3512, %v3512
      %v4887 = vpack.c.bf16 %v3527, %v3527
      %v4888 = vpack.c.bf16 %v3542, %v3542
      %v4889 = vpack.c.bf16 %v3557, %v3557
      %v4890 = vpack.c.bf16 %v3572, %v3572
      %v4891 = vpack.c.bf16 %v3587, %v3587
      %v4892 = vpack.c.bf16 %v3602, %v3602
      %v4893 = vpack.c.bf16 %v3617, %v3617
      %v4894 = vpack.c.bf16 %v3632, %v3632
      %v4895 = vpack.c.bf16 %v3647, %v3647
      %v4896 = vpack.c.bf16 %v3662, %v3662
      %v4897 = vpack.c.bf16 %v3677, %v3677
      %v4898 = vpack.c.bf16 %v3692, %v3692
      %v4899 = vpack.c.bf16 %v3707, %v3707
      %v4900 = vpack.c.bf16 %v3722, %v3722
      %v4901 = vpack.c.bf16 %v3737, %v3737
      %v4902 = vpack.c.bf16 %v3752, %v3752
      %v4903 = vpack.c.bf16 %v3767, %v3767
      %v4904 = vpack.c.bf16 %v3782, %v3782
      %v4905 = vpack.c.bf16 %v3797, %v3797
      %v4906 = vpack.c.bf16 %v3812, %v3812
      %v4907 = vpack.c.bf16 %v3827, %v3827
      %v4908 = vpack.c.bf16 %v3842, %v3842
      %v4909 = vpack.c.bf16 %v3857, %v3857
      %v4910 = vpack.c.bf16 %v3872, %v3872
      %v4911 = vpack.c.bf16 %v3887, %v3887
      %v4912 = vpack.c.bf16 %v3902, %v3902
      %v4913 = vpack.c.bf16 %v3917, %v3917
      %v4914 = vpack.c.bf16 %v3932, %v3932
      %v4915 = vpack.c.bf16 %v3947, %v3947
      %v4916 = vpack.c.bf16 %v3962, %v3962
      %v4917 = vpack.c.bf16 %v3977, %v3977
      %v4918 = vpack.c.bf16 %v3992, %v3992
      %v4919 = vpack.c.bf16 %v4007, %v4007
      %v4920 = vpack.c.bf16 %v4022, %v4022
      %v4921 = vpack.c.bf16 %v4037, %v4037
      %v4922 = vpack.c.bf16 %v4052, %v4052
      %v4923 = vpack.c.bf16 %v4067, %v4067
      %v4924 = vpack.c.bf16 %v4082, %v4082
      %v4925 = vpack.c.bf16 %v4097, %v4097
      %v4926 = vpack.c.bf16 %v4112, %v4112
      %v4927 = vpack.c.bf16 %v4127, %v4127
      %v4928 = vpack.c.bf16 %v4142, %v4142
      %v4929 = vpack.c.bf16 %v4157, %v4157
      %v4930 = vpack.c.bf16 %v4172, %v4172
      %v4931 = vpack.c.bf16 %v4187, %v4187
      %v4932 = vpack.c.bf16 %v4202, %v4202
      %v4933 = vpack.c.bf16 %v4217, %v4217
      %v4934 = vpack.c.bf16 %v4232, %v4232
      %v4935 = vpack.c.bf16 %v4247, %v4247
      %v4936 = vpack.c.bf16 %v4262, %v4262
      %v4937 = vpack.c.bf16 %v4277, %v4277
      %v4938 = vpack.c.bf16 %v4292, %v4292
      %v4939 = vpack.c.bf16 %v4307, %v4307
      %v4940 = vpack.c.bf16 %v4322, %v4322
      %v4941 = vpack.c.bf16 %v4337, %v4337
      %v4942 = vpack.c.bf16 %v4352, %v4352
      %v4943 = vpack.c.bf16 %v4367, %v4367
      %v4944 = vpack.c.bf16 %v4382, %v4382
      %v4945 = vpack.c.bf16 %v4397, %v4397
      %v4946 = vpack.c.bf16 %v4412, %v4412
      %v4947 = vpack.c.bf16 %v4427, %v4427
      %v4948 = vpack.c.bf16 %v4442, %v4442
      %v4949 = vpack.c.bf16 %v4457, %v4457
      %v4950 = vpack.c.bf16 %v4472, %v4472
      %v4951 = vpack.c.bf16 %v4487, %v4487
      %v4952 = vpack.c.bf16 %v4502, %v4502
      %v4953 = vpack.c.bf16 %v4517, %v4517
      %v4954 = vpack.c.bf16 %v4532, %v4532
      %v4955 = vpack.c.bf16 %v4547, %v4547
      %v4956 = vpack.c.bf16 %v4562, %v4562
      %v4957 = vpack.c.bf16 %v4577, %v4577
      %v4958 = vpack.c.bf16 %v4592, %v4592
      %v4959 = vpack.c.bf16 %v4607, %v4607
      %v4960 = vpack.c.bf16 %v4622, %v4622
      %v4961 = vpack.c.bf16 %v4637, %v4637
      %v4962 = vpack.c.bf16 %v4652, %v4652
      %v4963 = vpack.c.bf16 %v4667, %v4667
      %v4964 = vpack.c.bf16 %v4682, %v4682
      %v4965 = vpack.c.bf16 %v4697, %v4697
      %v4966 = vpack.c.bf16 %v4712, %v4712
      %v4967 = vpack.c.bf16 %v4727, %v4727
      %v4968 = vpack.c.bf16 %v4742, %v4742
      %v4969 = vpack.c.bf16 %v4757, %v4757
      %v4970 = vpack.c.bf16 %v4772, %v4772
      %v4971 = vpack.c.bf16 %v4787, %v4787
      %v4972 = vpack.c.bf16 %v4802, %v4802
      %v4973 = vpack.c.bf16 %v4817, %v4817
      %v4974 = vpack.c.bf16 %v4832, %v4832
      %v4975 = vpack.c.bf16 %v4847, %v4847
      %v4992 = vunpack.c.l.b16 %v4848
      %v4993 = vunpack.c.l.b16 %v4849
      %v4994 = vunpack.c.l.b16 %v4850
      %v4995 = vunpack.c.l.b16 %v4851
      %v4996 = vunpack.c.l.b16 %v4852
      %v4997 = vunpack.c.l.b16 %v4853
      %v4998 = vunpack.c.l.b16 %v4854
      %v4999 = vunpack.c.l.b16 %v4855
      %v5000 = vunpack.c.l.b16 %v4856
      %v5001 = vunpack.c.l.b16 %v4857
      %v5002 = vunpack.c.l.b16 %v4858
      %v5003 = vunpack.c.l.b16 %v4859
      %v5004 = vunpack.c.l.b16 %v4860
      %v5005 = vunpack.c.l.b16 %v4861
      %v5006 = vunpack.c.l.b16 %v4862
      %v5007 = vunpack.c.l.b16 %v4863
      %v5008 = vpack.c.b16 %v4993, %v4992
      %v5009 = vpack.c.b16 %v4995, %v4994
      %v5010 = vpack.c.b16 %v4997, %v4996
      %v5011 = vpack.c.b16 %v4999, %v4998
      %v5012 = vpack.c.b16 %v5001, %v5000
      %v5013 = vpack.c.b16 %v5003, %v5002
      %v5014 = vpack.c.b16 %v5005, %v5004
      %v5015 = vpack.c.b16 %v5007, %v5006
      %v5040 = vunpack.c.l.b16 %v485
      %v5041 = vunpack.c.l.b16 %v486
      %v5042 = vunpack.c.l.b16 %v487
      %v5043 = vunpack.c.l.b16 %v488
      %v5044 = vunpack.c.l.b16 %v489
      %v5045 = vunpack.c.l.b16 %v490
      %v5046 = vunpack.c.l.b16 %v491
      %v5047 = vunpack.c.l.b16 %v492
      %v5048 = vunpack.c.l.b16 %v493
      %v5049 = vunpack.c.l.b16 %v494
      %v5050 = vunpack.c.l.b16 %v495
      %v5051 = vunpack.c.l.b16 %v496
      %v5052 = vunpack.c.l.b16 %v497
      %v5053 = vunpack.c.l.b16 %v498
      %v5054 = vunpack.c.l.b16 %v499
      %v5055 = vunpack.c.l.b16 %v500
      %v5056 = vpack.c.b16 %v5041, %v5040
      %v5057 = vpack.c.b16 %v5043, %v5042
      %v5058 = vpack.c.b16 %v5045, %v5044
      %v5059 = vpack.c.b16 %v5047, %v5046
      %v5060 = vpack.c.b16 %v5049, %v5048
      %v5061 = vpack.c.b16 %v5051, %v5050
      %v5062 = vpack.c.b16 %v5053, %v5052
      %v5063 = vpack.c.b16 %v5055, %v5054
      %5072 = vmatpush.bf16.msra.mxu0 %v5063
      %5073 = vmatpush.bf16.msra.mxu0 %v5062
      %5074 = vmatpush.bf16.msra.mxu0 %v5061
      %5075 = vmatpush.bf16.msra.mxu0 %v5060
      %5076 = vmatpush.bf16.msra.mxu0 %v5059
      %5077 = vmatpush.bf16.msra.mxu0 %v5058
      %5078 = vmatpush.bf16.msra.mxu0 %v5057
      %5079 = vmatpush.bf16.msra.mxu0 %v5056
      %5080 = vmatmul.bf16.gmra.mxu0 %v5008
      %v5081 = vpop.f32.mrf.mxu0
      %v5082 = vadd.f32 0.0, %v5081
      %v5083 = vpop.f32.mrf.mxu0
      %v5084 = vadd.f32 0.0, %v5083
      %5085 = vmatmul.bf16.gmra.mxu0 %v5009
      %v5086 = vpop.f32.mrf.mxu0
      %v5087 = vadd.f32 0.0, %v5086
      %v5088 = vpop.f32.mrf.mxu0
      %v5089 = vadd.f32 0.0, %v5088
      %5090 = vmatmul.bf16.gmra.mxu0 %v5010
      %v5091 = vpop.f32.mrf.mxu0
      %v5092 = vadd.f32 0.0, %v5091
      %v5093 = vpop.f32.mrf.mxu0
      %v5094 = vadd.f32 0.0, %v5093
      %5095 = vmatmul.bf16.gmra.mxu0 %v5011
      %v5096 = vpop.f32.mrf.mxu0
      %v5097 = vadd.f32 0.0, %v5096
      %v5098 = vpop.f32.mrf.mxu0
      %v5099 = vadd.f32 0.0, %v5098
      %5100 = vmatmul.bf16.gmra.mxu0 %v5012
      %v5101 = vpop.f32.mrf.mxu0
      %v5102 = vadd.f32 0.0, %v5101
      %v5103 = vpop.f32.mrf.mxu0
      %v5104 = vadd.f32 0.0, %v5103
      %5105 = vmatmul.bf16.gmra.mxu0 %v5013
      %v5106 = vpop.f32.mrf.mxu0
      %v5107 = vadd.f32 0.0, %v5106
      %v5108 = vpop.f32.mrf.mxu0
      %v5109 = vadd.f32 0.0, %v5108
      %5110 = vmatmul.bf16.gmra.mxu0 %v5014
      %v5111 = vpop.f32.mrf.mxu0
      %v5112 = vadd.f32 0.0, %v5111
      %v5113 = vpop.f32.mrf.mxu0
      %v5114 = vadd.f32 0.0, %v5113
      %5115 = vmatmul.bf16.gmra.mxu0 %v5015
      %v5116 = vpop.f32.mrf.mxu0
      %v5117 = vadd.f32 0.0, %v5116
      %v5118 = vpop.f32.mrf.mxu0
      %v5119 = vadd.f32 0.0, %v5118
      %5120 = vdwg.mxu0
      %v5137 = vunpack.c.l.b16 %v4864
      %v5138 = vunpack.c.l.b16 %v4865
      %v5139 = vunpack.c.l.b16 %v4866
      %v5140 = vunpack.c.l.b16 %v4867
      %v5141 = vunpack.c.l.b16 %v4868
      %v5142 = vunpack.c.l.b16 %v4869
      %v5143 = vunpack.c.l.b16 %v4870
      %v5144 = vunpack.c.l.b16 %v4871
      %v5145 = vunpack.c.l.b16 %v4872
      %v5146 = vunpack.c.l.b16 %v4873
      %v5147 = vunpack.c.l.b16 %v4874
      %v5148 = vunpack.c.l.b16 %v4875
      %v5149 = vunpack.c.l.b16 %v4876
      %v5150 = vunpack.c.l.b16 %v4877
      %v5151 = vunpack.c.l.b16 %v4878
      %v5152 = vunpack.c.l.b16 %v4879
      %v5153 = vpack.c.b16 %v5138, %v5137
      %v5154 = vpack.c.b16 %v5140, %v5139
      %v5155 = vpack.c.b16 %v5142, %v5141
      %v5156 = vpack.c.b16 %v5144, %v5143
      %v5157 = vpack.c.b16 %v5146, %v5145
      %v5158 = vpack.c.b16 %v5148, %v5147
      %v5159 = vpack.c.b16 %v5150, %v5149
      %v5160 = vpack.c.b16 %v5152, %v5151
      %v5185 = vunpack.c.l.b16 %v501
      %v5186 = vunpack.c.l.b16 %v502
      %v5187 = vunpack.c.l.b16 %v503
      %v5188 = vunpack.c.l.b16 %v504
      %v5189 = vunpack.c.l.b16 %v505
      %v5190 = vunpack.c.l.b16 %v506
      %v5191 = vunpack.c.l.b16 %v507
      %v5192 = vunpack.c.l.b16 %v508
      %v5193 = vunpack.c.l.b16 %v509
      %v5194 = vunpack.c.l.b16 %v510
      %v5195 = vunpack.c.l.b16 %v511
      %v5196 = vunpack.c.l.b16 %v512
      %v5197 = vunpack.c.l.b16 %v513
      %v5198 = vunpack.c.l.b16 %v514
      %v5199 = vunpack.c.l.b16 %v515
      %v5200 = vunpack.c.l.b16 %v516
      %v5201 = vpack.c.b16 %v5186, %v5185
      %v5202 = vpack.c.b16 %v5188, %v5187
      %v5203 = vpack.c.b16 %v5190, %v5189
      %v5204 = vpack.c.b16 %v5192, %v5191
      %v5205 = vpack.c.b16 %v5194, %v5193
      %v5206 = vpack.c.b16 %v5196, %v5195
      %v5207 = vpack.c.b16 %v5198, %v5197
      %v5208 = vpack.c.b16 %v5200, %v5199
      %5217 = vmatpush.bf16.msra.mxu0 %v5208
      %5218 = vmatpush.bf16.msra.mxu0 %v5207
      %5219 = vmatpush.bf16.msra.mxu0 %v5206
      %5220 = vmatpush.bf16.msra.mxu0 %v5205
      %5221 = vmatpush.bf16.msra.mxu0 %v5204
      %5222 = vmatpush.bf16.msra.mxu0 %v5203
      %5223 = vmatpush.bf16.msra.mxu0 %v5202
      %5224 = vmatpush.bf16.msra.mxu0 %v5201
      %5225 = vmatmul.bf16.gmra.mxu0 %v5153
      %v5226 = vpop.f32.mrf.mxu0
      %v5227 = vadd.f32 0.0, %v5226
      %v5228 = vpop.f32.mrf.mxu0
      %v5229 = vadd.f32 0.0, %v5228
      %5230 = vmatmul.bf16.gmra.mxu0 %v5154
      %v5231 = vpop.f32.mrf.mxu0
      %v5232 = vadd.f32 0.0, %v5231
      %v5233 = vpop.f32.mrf.mxu0
      %v5234 = vadd.f32 0.0, %v5233
      %5235 = vmatmul.bf16.gmra.mxu0 %v5155
      %v5236 = vpop.f32.mrf.mxu0
      %v5237 = vadd.f32 0.0, %v5236
      %v5238 = vpop.f32.mrf.mxu0
      %v5239 = vadd.f32 0.0, %v5238
      %5240 = vmatmul.bf16.gmra.mxu0 %v5156
      %v5241 = vpop.f32.mrf.mxu0
      %v5242 = vadd.f32 0.0, %v5241
      %v5243 = vpop.f32.mrf.mxu0
      %v5244 = vadd.f32 0.0, %v5243
      %5245 = vmatmul.bf16.gmra.mxu0 %v5157
      %v5246 = vpop.f32.mrf.mxu0
      %v5247 = vadd.f32 0.0, %v5246
      %v5248 = vpop.f32.mrf.mxu0
      %v5249 = vadd.f32 0.0, %v5248
      %5250 = vmatmul.bf16.gmra.mxu0 %v5158
      %v5251 = vpop.f32.mrf.mxu0
      %v5252 = vadd.f32 0.0, %v5251
      %v5253 = vpop.f32.mrf.mxu0
      %v5254 = vadd.f32 0.0, %v5253
      %5255 = vmatmul.bf16.gmra.mxu0 %v5159
      %v5256 = vpop.f32.mrf.mxu0
      %v5257 = vadd.f32 0.0, %v5256
      %v5258 = vpop.f32.mrf.mxu0
      %v5259 = vadd.f32 0.0, %v5258
      %5260 = vmatmul.bf16.gmra.mxu0 %v5160
      %v5261 = vpop.f32.mrf.mxu0
      %v5262 = vadd.f32 0.0, %v5261
      %v5263 = vpop.f32.mrf.mxu0
      %v5264 = vadd.f32 0.0, %v5263
      %5265 = vdwg.mxu0
      %v5282 = vunpack.c.l.b16 %v4880
      %v5283 = vunpack.c.l.b16 %v4881
      %v5284 = vunpack.c.l.b16 %v4882
      %v5285 = vunpack.c.l.b16 %v4883
      %v5286 = vunpack.c.l.b16 %v4884
      %v5287 = vunpack.c.l.b16 %v4885
      %v5288 = vunpack.c.l.b16 %v4886
      %v5289 = vunpack.c.l.b16 %v4887
      %v5290 = vunpack.c.l.b16 %v4888
      %v5291 = vunpack.c.l.b16 %v4889
      %v5292 = vunpack.c.l.b16 %v4890
      %v5293 = vunpack.c.l.b16 %v4891
      %v5294 = vunpack.c.l.b16 %v4892
      %v5295 = vunpack.c.l.b16 %v4893
      %v5296 = vunpack.c.l.b16 %v4894
      %v5297 = vunpack.c.l.b16 %v4895
      %v5298 = vpack.c.b16 %v5283, %v5282
      %v5299 = vpack.c.b16 %v5285, %v5284
      %v5300 = vpack.c.b16 %v5287, %v5286
      %v5301 = vpack.c.b16 %v5289, %v5288
      %v5302 = vpack.c.b16 %v5291, %v5290
      %v5303 = vpack.c.b16 %v5293, %v5292
      %v5304 = vpack.c.b16 %v5295, %v5294
      %v5305 = vpack.c.b16 %v5297, %v5296
      %v5330 = vunpack.c.l.b16 %v517
      %v5331 = vunpack.c.l.b16 %v518
      %v5332 = vunpack.c.l.b16 %v519
      %v5333 = vunpack.c.l.b16 %v520
      %v5334 = vunpack.c.l.b16 %v521
      %v5335 = vunpack.c.l.b16 %v522
      %v5336 = vunpack.c.l.b16 %v523
      %v5337 = vunpack.c.l.b16 %v524
      %v5338 = vunpack.c.l.b16 %v525
      %v5339 = vunpack.c.l.b16 %v526
      %v5340 = vunpack.c.l.b16 %v527
      %v5341 = vunpack.c.l.b16 %v528
      %v5342 = vunpack.c.l.b16 %v529
      %v5343 = vunpack.c.l.b16 %v530
      %v5344 = vunpack.c.l.b16 %v531
      %v5345 = vunpack.c.l.b16 %v532
      %v5346 = vpack.c.b16 %v5331, %v5330
      %v5347 = vpack.c.b16 %v5333, %v5332
      %v5348 = vpack.c.b16 %v5335, %v5334
      %v5349 = vpack.c.b16 %v5337, %v5336
      %v5350 = vpack.c.b16 %v5339, %v5338
      %v5351 = vpack.c.b16 %v5341, %v5340
      %v5352 = vpack.c.b16 %v5343, %v5342
      %v5353 = vpack.c.b16 %v5345, %v5344
      %5362 = vmatpush.bf16.msra.mxu0 %v5353
      %5363 = vmatpush.bf16.msra.mxu0 %v5352
      %5364 = vmatpush.bf16.msra.mxu0 %v5351
      %5365 = vmatpush.bf16.msra.mxu0 %v5350
      %5366 = vmatpush.bf16.msra.mxu0 %v5349
      %5367 = vmatpush.bf16.msra.mxu0 %v5348
      %5368 = vmatpush.bf16.msra.mxu0 %v5347
      %5369 = vmatpush.bf16.msra.mxu0 %v5346
      %5370 = vmatmul.bf16.gmra.mxu0 %v5298
      %v5371 = vpop.f32.mrf.mxu0
      %v5372 = vadd.f32 0.0, %v5371
      %v5373 = vpop.f32.mrf.mxu0
      %v5374 = vadd.f32 0.0, %v5373
      %5375 = vmatmul.bf16.gmra.mxu0 %v5299
      %v5376 = vpop.f32.mrf.mxu0
      %v5377 = vadd.f32 0.0, %v5376
      %v5378 = vpop.f32.mrf.mxu0
      %v5379 = vadd.f32 0.0, %v5378
      %5380 = vmatmul.bf16.gmra.mxu0 %v5300
      %v5381 = vpop.f32.mrf.mxu0
      %v5382 = vadd.f32 0.0, %v5381
      %v5383 = vpop.f32.mrf.mxu0
      %v5384 = vadd.f32 0.0, %v5383
      %5385 = vmatmul.bf16.gmra.mxu0 %v5301
      %v5386 = vpop.f32.mrf.mxu0
      %v5387 = vadd.f32 0.0, %v5386
      %v5388 = vpop.f32.mrf.mxu0
      %v5389 = vadd.f32 0.0, %v5388
      %5390 = vmatmul.bf16.gmra.mxu0 %v5302
      %v5391 = vpop.f32.mrf.mxu0
      %v5392 = vadd.f32 0.0, %v5391
      %v5393 = vpop.f32.mrf.mxu0
      %v5394 = vadd.f32 0.0, %v5393
      %5395 = vmatmul.bf16.gmra.mxu0 %v5303
      %v5396 = vpop.f32.mrf.mxu0
      %v5397 = vadd.f32 0.0, %v5396
      %v5398 = vpop.f32.mrf.mxu0
      %v5399 = vadd.f32 0.0, %v5398
      %5400 = vmatmul.bf16.gmra.mxu0 %v5304
      %v5401 = vpop.f32.mrf.mxu0
      %v5402 = vadd.f32 0.0, %v5401
      %v5403 = vpop.f32.mrf.mxu0
      %v5404 = vadd.f32 0.0, %v5403
      %5405 = vmatmul.bf16.gmra.mxu0 %v5305
      %v5406 = vpop.f32.mrf.mxu0
      %v5407 = vadd.f32 0.0, %v5406
      %v5408 = vpop.f32.mrf.mxu0
      %v5409 = vadd.f32 0.0, %v5408
      %5410 = vdwg.mxu0
      %v5427 = vunpack.c.l.b16 %v4896
      %v5428 = vunpack.c.l.b16 %v4897
      %v5429 = vunpack.c.l.b16 %v4898
      %v5430 = vunpack.c.l.b16 %v4899
      %v5431 = vunpack.c.l.b16 %v4900
      %v5432 = vunpack.c.l.b16 %v4901
      %v5433 = vunpack.c.l.b16 %v4902
      %v5434 = vunpack.c.l.b16 %v4903
      %v5435 = vunpack.c.l.b16 %v4904
      %v5436 = vunpack.c.l.b16 %v4905
      %v5437 = vunpack.c.l.b16 %v4906
      %v5438 = vunpack.c.l.b16 %v4907
      %v5439 = vunpack.c.l.b16 %v4908
      %v5440 = vunpack.c.l.b16 %v4909
      %v5441 = vunpack.c.l.b16 %v4910
      %v5442 = vunpack.c.l.b16 %v4911
      %v5443 = vpack.c.b16 %v5428, %v5427
      %v5444 = vpack.c.b16 %v5430, %v5429
      %v5445 = vpack.c.b16 %v5432, %v5431
      %v5446 = vpack.c.b16 %v5434, %v5433
      %v5447 = vpack.c.b16 %v5436, %v5435
      %v5448 = vpack.c.b16 %v5438, %v5437
      %v5449 = vpack.c.b16 %v5440, %v5439
      %v5450 = vpack.c.b16 %v5442, %v5441
      %v5475 = vunpack.c.l.b16 %v533
      %v5476 = vunpack.c.l.b16 %v534
      %v5477 = vunpack.c.l.b16 %v535
      %v5478 = vunpack.c.l.b16 %v536
      %v5479 = vunpack.c.l.b16 %v537
      %v5480 = vunpack.c.l.b16 %v538
      %v5481 = vunpack.c.l.b16 %v539
      %v5482 = vunpack.c.l.b16 %v540
      %v5483 = vunpack.c.l.b16 %v541
      %v5484 = vunpack.c.l.b16 %v542
      %v5485 = vunpack.c.l.b16 %v543
      %v5486 = vunpack.c.l.b16 %v544
      %v5487 = vunpack.c.l.b16 %v545
      %v5488 = vunpack.c.l.b16 %v546
      %v5489 = vunpack.c.l.b16 %v547
      %v5490 = vunpack.c.l.b16 %v548
      %v5491 = vpack.c.b16 %v5476, %v5475
      %v5492 = vpack.c.b16 %v5478, %v5477
      %v5493 = vpack.c.b16 %v5480, %v5479
      %v5494 = vpack.c.b16 %v5482, %v5481
      %v5495 = vpack.c.b16 %v5484, %v5483
      %v5496 = vpack.c.b16 %v5486, %v5485
      %v5497 = vpack.c.b16 %v5488, %v5487
      %v5498 = vpack.c.b16 %v5490, %v5489
      %5507 = vmatpush.bf16.msra.mxu0 %v5498
      %5508 = vmatpush.bf16.msra.mxu0 %v5497
      %5509 = vmatpush.bf16.msra.mxu0 %v5496
      %5510 = vmatpush.bf16.msra.mxu0 %v5495
      %5511 = vmatpush.bf16.msra.mxu0 %v5494
      %5512 = vmatpush.bf16.msra.mxu0 %v5493
      %5513 = vmatpush.bf16.msra.mxu0 %v5492
      %5514 = vmatpush.bf16.msra.mxu0 %v5491
      %5515 = vmatmul.bf16.gmra.mxu0 %v5443
      %v5516 = vpop.f32.mrf.mxu0
      %v5517 = vadd.f32 0.0, %v5516
      %v5518 = vpop.f32.mrf.mxu0
      %v5519 = vadd.f32 0.0, %v5518
      %5520 = vmatmul.bf16.gmra.mxu0 %v5444
      %v5521 = vpop.f32.mrf.mxu0
      %v5522 = vadd.f32 0.0, %v5521
      %v5523 = vpop.f32.mrf.mxu0
      %v5524 = vadd.f32 0.0, %v5523
      %5525 = vmatmul.bf16.gmra.mxu0 %v5445
      %v5526 = vpop.f32.mrf.mxu0
      %v5527 = vadd.f32 0.0, %v5526
      %v5528 = vpop.f32.mrf.mxu0
      %v5529 = vadd.f32 0.0, %v5528
      %5530 = vmatmul.bf16.gmra.mxu0 %v5446
      %v5531 = vpop.f32.mrf.mxu0
      %v5532 = vadd.f32 0.0, %v5531
      %v5533 = vpop.f32.mrf.mxu0
      %v5534 = vadd.f32 0.0, %v5533
      %5535 = vmatmul.bf16.gmra.mxu0 %v5447
      %v5536 = vpop.f32.mrf.mxu0
      %v5537 = vadd.f32 0.0, %v5536
      %v5538 = vpop.f32.mrf.mxu0
      %v5539 = vadd.f32 0.0, %v5538
      %5540 = vmatmul.bf16.gmra.mxu0 %v5448
      %v5541 = vpop.f32.mrf.mxu0
      %v5542 = vadd.f32 0.0, %v5541
      %v5543 = vpop.f32.mrf.mxu0
      %v5544 = vadd.f32 0.0, %v5543
      %5545 = vmatmul.bf16.gmra.mxu0 %v5449
      %v5546 = vpop.f32.mrf.mxu0
      %v5547 = vadd.f32 0.0, %v5546
      %v5548 = vpop.f32.mrf.mxu0
      %v5549 = vadd.f32 0.0, %v5548
      %5550 = vmatmul.bf16.gmra.mxu0 %v5450
      %v5551 = vpop.f32.mrf.mxu0
      %v5552 = vadd.f32 0.0, %v5551
      %v5553 = vpop.f32.mrf.mxu0
      %v5554 = vadd.f32 0.0, %v5553
      %5555 = vdwg.mxu0
      %v5572 = vunpack.c.l.b16 %v4912
      %v5573 = vunpack.c.l.b16 %v4913
      %v5574 = vunpack.c.l.b16 %v4914
      %v5575 = vunpack.c.l.b16 %v4915
      %v5576 = vunpack.c.l.b16 %v4916
      %v5577 = vunpack.c.l.b16 %v4917
      %v5578 = vunpack.c.l.b16 %v4918
      %v5579 = vunpack.c.l.b16 %v4919
      %v5580 = vunpack.c.l.b16 %v4920
      %v5581 = vunpack.c.l.b16 %v4921
      %v5582 = vunpack.c.l.b16 %v4922
      %v5583 = vunpack.c.l.b16 %v4923
      %v5584 = vunpack.c.l.b16 %v4924
      %v5585 = vunpack.c.l.b16 %v4925
      %v5586 = vunpack.c.l.b16 %v4926
      %v5587 = vunpack.c.l.b16 %v4927
      %v5588 = vpack.c.b16 %v5573, %v5572
      %v5589 = vpack.c.b16 %v5575, %v5574
      %v5590 = vpack.c.b16 %v5577, %v5576
      %v5591 = vpack.c.b16 %v5579, %v5578
      %v5592 = vpack.c.b16 %v5581, %v5580
      %v5593 = vpack.c.b16 %v5583, %v5582
      %v5594 = vpack.c.b16 %v5585, %v5584
      %v5595 = vpack.c.b16 %v5587, %v5586
      %v5620 = vunpack.c.l.b16 %v549
      %v5621 = vunpack.c.l.b16 %v550
      %v5622 = vunpack.c.l.b16 %v551
      %v5623 = vunpack.c.l.b16 %v552
      %v5624 = vunpack.c.l.b16 %v553
      %v5625 = vunpack.c.l.b16 %v554
      %v5626 = vunpack.c.l.b16 %v555
      %v5627 = vunpack.c.l.b16 %v556
      %v5628 = vunpack.c.l.b16 %v557
      %v5629 = vunpack.c.l.b16 %v558
      %v5630 = vunpack.c.l.b16 %v559
      %v5631 = vunpack.c.l.b16 %v560
      %v5632 = vunpack.c.l.b16 %v561
      %v5633 = vunpack.c.l.b16 %v562
      %v5634 = vunpack.c.l.b16 %v563
      %v5635 = vunpack.c.l.b16 %v564
      %v5636 = vpack.c.b16 %v5621, %v5620
      %v5637 = vpack.c.b16 %v5623, %v5622
      %v5638 = vpack.c.b16 %v5625, %v5624
      %v5639 = vpack.c.b16 %v5627, %v5626
      %v5640 = vpack.c.b16 %v5629, %v5628
      %v5641 = vpack.c.b16 %v5631, %v5630
      %v5642 = vpack.c.b16 %v5633, %v5632
      %v5643 = vpack.c.b16 %v5635, %v5634
      %5652 = vmatpush.bf16.msra.mxu0 %v5643
      %5653 = vmatpush.bf16.msra.mxu0 %v5642
      %5654 = vmatpush.bf16.msra.mxu0 %v5641
      %5655 = vmatpush.bf16.msra.mxu0 %v5640
      %5656 = vmatpush.bf16.msra.mxu0 %v5639
      %5657 = vmatpush.bf16.msra.mxu0 %v5638
      %5658 = vmatpush.bf16.msra.mxu0 %v5637
      %5659 = vmatpush.bf16.msra.mxu0 %v5636
      %5660 = vmatmul.bf16.gmra.mxu0 %v5588
      %v5661 = vpop.f32.mrf.mxu0
      %v5662 = vadd.f32 0.0, %v5661
      %v5663 = vpop.f32.mrf.mxu0
      %v5664 = vadd.f32 0.0, %v5663
      %5665 = vmatmul.bf16.gmra.mxu0 %v5589
      %v5666 = vpop.f32.mrf.mxu0
      %v5667 = vadd.f32 0.0, %v5666
      %v5668 = vpop.f32.mrf.mxu0
      %v5669 = vadd.f32 0.0, %v5668
      %5670 = vmatmul.bf16.gmra.mxu0 %v5590
      %v5671 = vpop.f32.mrf.mxu0
      %v5672 = vadd.f32 0.0, %v5671
      %v5673 = vpop.f32.mrf.mxu0
      %v5674 = vadd.f32 0.0, %v5673
      %5675 = vmatmul.bf16.gmra.mxu0 %v5591
      %v5676 = vpop.f32.mrf.mxu0
      %v5677 = vadd.f32 0.0, %v5676
      %v5678 = vpop.f32.mrf.mxu0
      %v5679 = vadd.f32 0.0, %v5678
      %5680 = vmatmul.bf16.gmra.mxu0 %v5592
      %v5681 = vpop.f32.mrf.mxu0
      %v5682 = vadd.f32 0.0, %v5681
      %v5683 = vpop.f32.mrf.mxu0
      %v5684 = vadd.f32 0.0, %v5683
      %5685 = vmatmul.bf16.gmra.mxu0 %v5593
      %v5686 = vpop.f32.mrf.mxu0
      %v5687 = vadd.f32 0.0, %v5686
      %v5688 = vpop.f32.mrf.mxu0
      %v5689 = vadd.f32 0.0, %v5688
      %5690 = vmatmul.bf16.gmra.mxu0 %v5594
      %v5691 = vpop.f32.mrf.mxu0
      %v5692 = vadd.f32 0.0, %v5691
      %v5693 = vpop.f32.mrf.mxu0
      %v5694 = vadd.f32 0.0, %v5693
      %5695 = vmatmul.bf16.gmra.mxu0 %v5595
      %v5696 = vpop.f32.mrf.mxu0
      %v5697 = vadd.f32 0.0, %v5696
      %v5698 = vpop.f32.mrf.mxu0
      %v5699 = vadd.f32 0.0, %v5698
      %5700 = vdwg.mxu0
      %v5717 = vunpack.c.l.b16 %v4928
      %v5718 = vunpack.c.l.b16 %v4929
      %v5719 = vunpack.c.l.b16 %v4930
      %v5720 = vunpack.c.l.b16 %v4931
      %v5721 = vunpack.c.l.b16 %v4932
      %v5722 = vunpack.c.l.b16 %v4933
      %v5723 = vunpack.c.l.b16 %v4934
      %v5724 = vunpack.c.l.b16 %v4935
      %v5725 = vunpack.c.l.b16 %v4936
      %v5726 = vunpack.c.l.b16 %v4937
      %v5727 = vunpack.c.l.b16 %v4938
      %v5728 = vunpack.c.l.b16 %v4939
      %v5729 = vunpack.c.l.b16 %v4940
      %v5730 = vunpack.c.l.b16 %v4941
      %v5731 = vunpack.c.l.b16 %v4942
      %v5732 = vunpack.c.l.b16 %v4943
      %v5733 = vpack.c.b16 %v5718, %v5717
      %v5734 = vpack.c.b16 %v5720, %v5719
      %v5735 = vpack.c.b16 %v5722, %v5721
      %v5736 = vpack.c.b16 %v5724, %v5723
      %v5737 = vpack.c.b16 %v5726, %v5725
      %v5738 = vpack.c.b16 %v5728, %v5727
      %v5739 = vpack.c.b16 %v5730, %v5729
      %v5740 = vpack.c.b16 %v5732, %v5731
      %v5765 = vunpack.c.l.b16 %v565
      %v5766 = vunpack.c.l.b16 %v566
      %v5767 = vunpack.c.l.b16 %v567
      %v5768 = vunpack.c.l.b16 %v568
      %v5769 = vunpack.c.l.b16 %v569
      %v5770 = vunpack.c.l.b16 %v570
      %v5771 = vunpack.c.l.b16 %v571
      %v5772 = vunpack.c.l.b16 %v572
      %v5773 = vunpack.c.l.b16 %v573
      %v5774 = vunpack.c.l.b16 %v574
      %v5775 = vunpack.c.l.b16 %v575
      %v5776 = vunpack.c.l.b16 %v576
      %v5777 = vunpack.c.l.b16 %v577
      %v5778 = vunpack.c.l.b16 %v578
      %v5779 = vunpack.c.l.b16 %v579
      %v5780 = vunpack.c.l.b16 %v580
      %v5781 = vpack.c.b16 %v5766, %v5765
      %v5782 = vpack.c.b16 %v5768, %v5767
      %v5783 = vpack.c.b16 %v5770, %v5769
      %v5784 = vpack.c.b16 %v5772, %v5771
      %v5785 = vpack.c.b16 %v5774, %v5773
      %v5786 = vpack.c.b16 %v5776, %v5775
      %v5787 = vpack.c.b16 %v5778, %v5777
      %v5788 = vpack.c.b16 %v5780, %v5779
      %5797 = vmatpush.bf16.msra.mxu0 %v5788
      %5798 = vmatpush.bf16.msra.mxu0 %v5787
      %5799 = vmatpush.bf16.msra.mxu0 %v5786
      %5800 = vmatpush.bf16.msra.mxu0 %v5785
      %5801 = vmatpush.bf16.msra.mxu0 %v5784
      %5802 = vmatpush.bf16.msra.mxu0 %v5783
      %5803 = vmatpush.bf16.msra.mxu0 %v5782
      %5804 = vmatpush.bf16.msra.mxu0 %v5781
      %5805 = vmatmul.bf16.gmra.mxu0 %v5733
      %v5806 = vpop.f32.mrf.mxu0
      %v5807 = vadd.f32 0.0, %v5806
      %v5808 = vpop.f32.mrf.mxu0
      %v5809 = vadd.f32 0.0, %v5808
      %5810 = vmatmul.bf16.gmra.mxu0 %v5734
      %v5811 = vpop.f32.mrf.mxu0
      %v5812 = vadd.f32 0.0, %v5811
      %v5813 = vpop.f32.mrf.mxu0
      %v5814 = vadd.f32 0.0, %v5813
      %5815 = vmatmul.bf16.gmra.mxu0 %v5735
      %v5816 = vpop.f32.mrf.mxu0
      %v5817 = vadd.f32 0.0, %v5816
      %v5818 = vpop.f32.mrf.mxu0
      %v5819 = vadd.f32 0.0, %v5818
      %5820 = vmatmul.bf16.gmra.mxu0 %v5736
      %v5821 = vpop.f32.mrf.mxu0
      %v5822 = vadd.f32 0.0, %v5821
      %v5823 = vpop.f32.mrf.mxu0
      %v5824 = vadd.f32 0.0, %v5823
      %5825 = vmatmul.bf16.gmra.mxu0 %v5737
      %v5826 = vpop.f32.mrf.mxu0
      %v5827 = vadd.f32 0.0, %v5826
      %v5828 = vpop.f32.mrf.mxu0
      %v5829 = vadd.f32 0.0, %v5828
      %5830 = vmatmul.bf16.gmra.mxu0 %v5738
      %v5831 = vpop.f32.mrf.mxu0
      %v5832 = vadd.f32 0.0, %v5831
      %v5833 = vpop.f32.mrf.mxu0
      %v5834 = vadd.f32 0.0, %v5833
      %5835 = vmatmul.bf16.gmra.mxu0 %v5739
      %v5836 = vpop.f32.mrf.mxu0
      %v5837 = vadd.f32 0.0, %v5836
      %v5838 = vpop.f32.mrf.mxu0
      %v5839 = vadd.f32 0.0, %v5838
      %5840 = vmatmul.bf16.gmra.mxu0 %v5740
      %v5841 = vpop.f32.mrf.mxu0
      %v5842 = vadd.f32 0.0, %v5841
      %v5843 = vpop.f32.mrf.mxu0
      %v5844 = vadd.f32 0.0, %v5843
      %5845 = vdwg.mxu0
      %v5862 = vunpack.c.l.b16 %v4944
      %v5863 = vunpack.c.l.b16 %v4945
      %v5864 = vunpack.c.l.b16 %v4946
      %v5865 = vunpack.c.l.b16 %v4947
      %v5866 = vunpack.c.l.b16 %v4948
      %v5867 = vunpack.c.l.b16 %v4949
      %v5868 = vunpack.c.l.b16 %v4950
      %v5869 = vunpack.c.l.b16 %v4951
      %v5870 = vunpack.c.l.b16 %v4952
      %v5871 = vunpack.c.l.b16 %v4953
      %v5872 = vunpack.c.l.b16 %v4954
      %v5873 = vunpack.c.l.b16 %v4955
      %v5874 = vunpack.c.l.b16 %v4956
      %v5875 = vunpack.c.l.b16 %v4957
      %v5876 = vunpack.c.l.b16 %v4958
      %v5877 = vunpack.c.l.b16 %v4959
      %v5878 = vpack.c.b16 %v5863, %v5862
      %v5879 = vpack.c.b16 %v5865, %v5864
      %v5880 = vpack.c.b16 %v5867, %v5866
      %v5881 = vpack.c.b16 %v5869, %v5868
      %v5882 = vpack.c.b16 %v5871, %v5870
      %v5883 = vpack.c.b16 %v5873, %v5872
      %v5884 = vpack.c.b16 %v5875, %v5874
      %v5885 = vpack.c.b16 %v5877, %v5876
      %v5910 = vunpack.c.l.b16 %v581
      %v5911 = vunpack.c.l.b16 %v582
      %v5912 = vunpack.c.l.b16 %v583
      %v5913 = vunpack.c.l.b16 %v584
      %v5914 = vunpack.c.l.b16 %v585
      %v5915 = vunpack.c.l.b16 %v586
      %v5916 = vunpack.c.l.b16 %v587
      %v5917 = vunpack.c.l.b16 %v588
      %v5918 = vunpack.c.l.b16 %v589
      %v5919 = vunpack.c.l.b16 %v590
      %v5920 = vunpack.c.l.b16 %v591
      %v5921 = vunpack.c.l.b16 %v592
      %v5922 = vunpack.c.l.b16 %v593
      %v5923 = vunpack.c.l.b16 %v594
      %v5924 = vunpack.c.l.b16 %v595
      %v5925 = vunpack.c.l.b16 %v596
      %v5926 = vpack.c.b16 %v5911, %v5910
      %v5927 = vpack.c.b16 %v5913, %v5912
      %v5928 = vpack.c.b16 %v5915, %v5914
      %v5929 = vpack.c.b16 %v5917, %v5916
      %v5930 = vpack.c.b16 %v5919, %v5918
      %v5931 = vpack.c.b16 %v5921, %v5920
      %v5932 = vpack.c.b16 %v5923, %v5922
      %v5933 = vpack.c.b16 %v5925, %v5924
      %5942 = vmatpush.bf16.msra.mxu0 %v5933
      %5943 = vmatpush.bf16.msra.mxu0 %v5932
      %5944 = vmatpush.bf16.msra.mxu0 %v5931
      %5945 = vmatpush.bf16.msra.mxu0 %v5930
      %5946 = vmatpush.bf16.msra.mxu0 %v5929
      %5947 = vmatpush.bf16.msra.mxu0 %v5928
      %5948 = vmatpush.bf16.msra.mxu0 %v5927
      %5949 = vmatpush.bf16.msra.mxu0 %v5926
      %5950 = vmatmul.bf16.gmra.mxu0 %v5878
      %v5951 = vpop.f32.mrf.mxu0
      %v5952 = vadd.f32 0.0, %v5951
      %v5953 = vpop.f32.mrf.mxu0
      %v5954 = vadd.f32 0.0, %v5953
      %5955 = vmatmul.bf16.gmra.mxu0 %v5879
      %v5956 = vpop.f32.mrf.mxu0
      %v5957 = vadd.f32 0.0, %v5956
      %v5958 = vpop.f32.mrf.mxu0
      %v5959 = vadd.f32 0.0, %v5958
      %5960 = vmatmul.bf16.gmra.mxu0 %v5880
      %v5961 = vpop.f32.mrf.mxu0
      %v5962 = vadd.f32 0.0, %v5961
      %v5963 = vpop.f32.mrf.mxu0
      %v5964 = vadd.f32 0.0, %v5963
      %5965 = vmatmul.bf16.gmra.mxu0 %v5881
      %v5966 = vpop.f32.mrf.mxu0
      %v5967 = vadd.f32 0.0, %v5966
      %v5968 = vpop.f32.mrf.mxu0
      %v5969 = vadd.f32 0.0, %v5968
      %5970 = vmatmul.bf16.gmra.mxu0 %v5882
      %v5971 = vpop.f32.mrf.mxu0
      %v5972 = vadd.f32 0.0, %v5971
      %v5973 = vpop.f32.mrf.mxu0
      %v5974 = vadd.f32 0.0, %v5973
      %5975 = vmatmul.bf16.gmra.mxu0 %v5883
      %v5976 = vpop.f32.mrf.mxu0
      %v5977 = vadd.f32 0.0, %v5976
      %v5978 = vpop.f32.mrf.mxu0
      %v5979 = vadd.f32 0.0, %v5978
      %5980 = vmatmul.bf16.gmra.mxu0 %v5884
      %v5981 = vpop.f32.mrf.mxu0
      %v5982 = vadd.f32 0.0, %v5981
      %v5983 = vpop.f32.mrf.mxu0
      %v5984 = vadd.f32 0.0, %v5983
      %5985 = vmatmul.bf16.gmra.mxu0 %v5885
      %v5986 = vpop.f32.mrf.mxu0
      %v5987 = vadd.f32 0.0, %v5986
      %v5988 = vpop.f32.mrf.mxu0
      %v5989 = vadd.f32 0.0, %v5988
      %5990 = vdwg.mxu0
      %v6007 = vunpack.c.l.b16 %v4960
      %v6008 = vunpack.c.l.b16 %v4961
      %v6009 = vunpack.c.l.b16 %v4962
      %v6010 = vunpack.c.l.b16 %v4963
      %v6011 = vunpack.c.l.b16 %v4964
      %v6012 = vunpack.c.l.b16 %v4965
      %v6013 = vunpack.c.l.b16 %v4966
      %v6014 = vunpack.c.l.b16 %v4967
      %v6015 = vunpack.c.l.b16 %v4968
      %v6016 = vunpack.c.l.b16 %v4969
      %v6017 = vunpack.c.l.b16 %v4970
      %v6018 = vunpack.c.l.b16 %v4971
      %v6019 = vunpack.c.l.b16 %v4972
      %v6020 = vunpack.c.l.b16 %v4973
      %v6021 = vunpack.c.l.b16 %v4974
      %v6022 = vunpack.c.l.b16 %v4975
      %v6023 = vpack.c.b16 %v6008, %v6007
      %v6024 = vpack.c.b16 %v6010, %v6009
      %v6025 = vpack.c.b16 %v6012, %v6011
      %v6026 = vpack.c.b16 %v6014, %v6013
      %v6027 = vpack.c.b16 %v6016, %v6015
      %v6028 = vpack.c.b16 %v6018, %v6017
      %v6029 = vpack.c.b16 %v6020, %v6019
      %v6030 = vpack.c.b16 %v6022, %v6021
      %v6055 = vunpack.c.l.b16 %v597
      %v6056 = vunpack.c.l.b16 %v598
      %v6057 = vunpack.c.l.b16 %v599
      %v6058 = vunpack.c.l.b16 %v600
      %v6059 = vunpack.c.l.b16 %v601
      %v6060 = vunpack.c.l.b16 %v602
      %v6061 = vunpack.c.l.b16 %v603
      %v6062 = vunpack.c.l.b16 %v604
      %v6063 = vunpack.c.l.b16 %v605
      %v6064 = vunpack.c.l.b16 %v606
      %v6065 = vunpack.c.l.b16 %v607
      %v6066 = vunpack.c.l.b16 %v608
      %v6067 = vunpack.c.l.b16 %v609
      %v6068 = vunpack.c.l.b16 %v610
      %v6069 = vunpack.c.l.b16 %v611
      %v6070 = vunpack.c.l.b16 %v612
      %v6071 = vpack.c.b16 %v6056, %v6055
      %v6072 = vpack.c.b16 %v6058, %v6057
      %v6073 = vpack.c.b16 %v6060, %v6059
      %v6074 = vpack.c.b16 %v6062, %v6061
      %v6075 = vpack.c.b16 %v6064, %v6063
      %v6076 = vpack.c.b16 %v6066, %v6065
      %v6077 = vpack.c.b16 %v6068, %v6067
      %v6078 = vpack.c.b16 %v6070, %v6069
      %6087 = vmatpush.bf16.msra.mxu0 %v6078
      %6088 = vmatpush.bf16.msra.mxu0 %v6077
      %6089 = vmatpush.bf16.msra.mxu0 %v6076
      %6090 = vmatpush.bf16.msra.mxu0 %v6075
      %6091 = vmatpush.bf16.msra.mxu0 %v6074
      %6092 = vmatpush.bf16.msra.mxu0 %v6073
      %6093 = vmatpush.bf16.msra.mxu0 %v6072
      %6094 = vmatpush.bf16.msra.mxu0 %v6071
      %6095 = vmatmul.bf16.gmra.mxu0 %v6023
      %v6096 = vpop.f32.mrf.mxu0
      %v6097 = vadd.f32 0.0, %v6096
      %v6098 = vpop.f32.mrf.mxu0
      %v6099 = vadd.f32 0.0, %v6098
      %6100 = vmatmul.bf16.gmra.mxu0 %v6024
      %v6101 = vpop.f32.mrf.mxu0
      %v6102 = vadd.f32 0.0, %v6101
      %v6103 = vpop.f32.mrf.mxu0
      %v6104 = vadd.f32 0.0, %v6103
      %6105 = vmatmul.bf16.gmra.mxu0 %v6025
      %v6106 = vpop.f32.mrf.mxu0
      %v6107 = vadd.f32 0.0, %v6106
      %v6108 = vpop.f32.mrf.mxu0
      %v6109 = vadd.f32 0.0, %v6108
      %6110 = vmatmul.bf16.gmra.mxu0 %v6026
      %v6111 = vpop.f32.mrf.mxu0
      %v6112 = vadd.f32 0.0, %v6111
      %v6113 = vpop.f32.mrf.mxu0
      %v6114 = vadd.f32 0.0, %v6113
      %6115 = vmatmul.bf16.gmra.mxu0 %v6027
      %v6116 = vpop.f32.mrf.mxu0
      %v6117 = vadd.f32 0.0, %v6116
      %v6118 = vpop.f32.mrf.mxu0
      %v6119 = vadd.f32 0.0, %v6118
      %6120 = vmatmul.bf16.gmra.mxu0 %v6028
      %v6121 = vpop.f32.mrf.mxu0
      %v6122 = vadd.f32 0.0, %v6121
      %v6123 = vpop.f32.mrf.mxu0
      %v6124 = vadd.f32 0.0, %v6123
      %6125 = vmatmul.bf16.gmra.mxu0 %v6029
      %v6126 = vpop.f32.mrf.mxu0
      %v6127 = vadd.f32 0.0, %v6126
      %v6128 = vpop.f32.mrf.mxu0
      %v6129 = vadd.f32 0.0, %v6128
      %6130 = vmatmul.bf16.gmra.mxu0 %v6030
      %v6131 = vpop.f32.mrf.mxu0
      %v6132 = vadd.f32 0.0, %v6131
      %v6133 = vpop.f32.mrf.mxu0
      %v6134 = vadd.f32 0.0, %v6133
      %6135 = vdwg.mxu0
      %6136 = vst [vmem:[%s227] sm:$0xff] %v5082
      %6137 = vst [vmem:[%s227 + $0x8] sm:$0xff] %v5084
      %6138 = vst [vmem:[%s227 + $0x10] sm:$0xff] %v5087
      %6139 = vst [vmem:[%s227 + $0x18] sm:$0xff] %v5089
      %6140 = vst [vmem:[%s227 + $0x20] sm:$0xff] %v5092
      %6141 = vst [vmem:[%s227 + $0x28] sm:$0xff] %v5094
      %6142 = vst [vmem:[%s227 + $0x30] sm:$0xff] %v5097
      %6143 = vst [vmem:[%s227 + $0x38] sm:$0xff] %v5099
      %6144 = vst [vmem:[%s227 + $0x40] sm:$0xff] %v5102
      %6145 = vst [vmem:[%s227 + $0x48] sm:$0xff] %v5104
      %6146 = vst [vmem:[%s227 + $0x50] sm:$0xff] %v5107
      %6147 = vst [vmem:[%s227 + $0x58] sm:$0xff] %v5109
      %6148 = vst [vmem:[%s227 + $0x60] sm:$0xff] %v5112
      %6149 = vst [vmem:[%s227 + $0x68] sm:$0xff] %v5114
      %6150 = vst [vmem:[%s227 + $0x70] sm:$0xff] %v5117
      %6151 = vst [vmem:[%s227 + $0x78] sm:$0xff] %v5119
      %6152 = vst [vmem:[%s227 + $0x80] sm:$0xff] %v5227
      %6153 = vst [vmem:[%s227 + $0x88] sm:$0xff] %v5229
      %6154 = vst [vmem:[%s227 + $0x90] sm:$0xff] %v5232
      %6155 = vst [vmem:[%s227 + $0x98] sm:$0xff] %v5234
      %6156 = vst [vmem:[%s227 + $0xa0] sm:$0xff] %v5237
      %6157 = vst [vmem:[%s227 + $0xa8] sm:$0xff] %v5239
      %6158 = vst [vmem:[%s227 + $0xb0] sm:$0xff] %v5242
      %6159 = vst [vmem:[%s227 + $0xb8] sm:$0xff] %v5244
      %6160 = vst [vmem:[%s227 + $0xc0] sm:$0xff] %v5247
      %6161 = vst [vmem:[%s227 + $0xc8] sm:$0xff] %v5249
      %6162 = vst [vmem:[%s227 + $0xd0] sm:$0xff] %v5252
      %6163 = vst [vmem:[%s227 + $0xd8] sm:$0xff] %v5254
      %6164 = vst [vmem:[%s227 + $0xe0] sm:$0xff] %v5257
      %6165 = vst [vmem:[%s227 + $0xe8] sm:$0xff] %v5259
      %6166 = vst [vmem:[%s227 + $0xf0] sm:$0xff] %v5262
      %6167 = vst [vmem:[%s227 + $0xf8] sm:$0xff] %v5264
      %6168 = vst [vmem:[%s227 + $0x100] sm:$0xff] %v5372
      %6169 = vst [vmem:[%s227 + $0x108] sm:$0xff] %v5374
      %6170 = vst [vmem:[%s227 + $0x110] sm:$0xff] %v5377
      %6171 = vst [vmem:[%s227 + $0x118] sm:$0xff] %v5379
      %6172 = vst [vmem:[%s227 + $0x120] sm:$0xff] %v5382
      %6173 = vst [vmem:[%s227 + $0x128] sm:$0xff] %v5384
      %6174 = vst [vmem:[%s227 + $0x130] sm:$0xff] %v5387
      %6175 = vst [vmem:[%s227 + $0x138] sm:$0xff] %v5389
      %6176 = vst [vmem:[%s227 + $0x140] sm:$0xff] %v5392
      %6177 = vst [vmem:[%s227 + $0x148] sm:$0xff] %v5394
      %6178 = vst [vmem:[%s227 + $0x150] sm:$0xff] %v5397
      %6179 = vst [vmem:[%s227 + $0x158] sm:$0xff] %v5399
      %6180 = vst [vmem:[%s227 + $0x160] sm:$0xff] %v5402
      %6181 = vst [vmem:[%s227 + $0x168] sm:$0xff] %v5404
      %6182 = vst [vmem:[%s227 + $0x170] sm:$0xff] %v5407
      %6183 = vst [vmem:[%s227 + $0x178] sm:$0xff] %v5409
      %6184 = vst [vmem:[%s227 + $0x180] sm:$0xff] %v5517
      %6185 = vst [vmem:[%s227 + $0x188] sm:$0xff] %v5519
      %6186 = vst [vmem:[%s227 + $0x190] sm:$0xff] %v5522
      %6187 = vst [vmem:[%s227 + $0x198] sm:$0xff] %v5524
      %6188 = vst [vmem:[%s227 + $0x1a0] sm:$0xff] %v5527
      %6189 = vst [vmem:[%s227 + $0x1a8] sm:$0xff] %v5529
      %6190 = vst [vmem:[%s227 + $0x1b0] sm:$0xff] %v5532
      %6191 = vst [vmem:[%s227 + $0x1b8] sm:$0xff] %v5534
      %6192 = vst [vmem:[%s227 + $0x1c0] sm:$0xff] %v5537
      %6193 = vst [vmem:[%s227 + $0x1c8] sm:$0xff] %v5539
      %6194 = vst [vmem:[%s227 + $0x1d0] sm:$0xff] %v5542
      %6195 = vst [vmem:[%s227 + $0x1d8] sm:$0xff] %v5544
      %6196 = vst [vmem:[%s227 + $0x1e0] sm:$0xff] %v5547
      %6197 = vst [vmem:[%s227 + $0x1e8] sm:$0xff] %v5549
      %6198 = vst [vmem:[%s227 + $0x1f0] sm:$0xff] %v5552
      %6199 = vst [vmem:[%s227 + $0x1f8] sm:$0xff] %v5554
      %6200 = vst [vmem:[%s227 + $0x200] sm:$0xff] %v5662
      %6201 = vst [vmem:[%s227 + $0x208] sm:$0xff] %v5664
      %6202 = vst [vmem:[%s227 + $0x210] sm:$0xff] %v5667
      %6203 = vst [vmem:[%s227 + $0x218] sm:$0xff] %v5669
      %6204 = vst [vmem:[%s227 + $0x220] sm:$0xff] %v5672
      %6205 = vst [vmem:[%s227 + $0x228] sm:$0xff] %v5674
      %6206 = vst [vmem:[%s227 + $0x230] sm:$0xff] %v5677
      %6207 = vst [vmem:[%s227 + $0x238] sm:$0xff] %v5679
      %6208 = vst [vmem:[%s227 + $0x240] sm:$0xff] %v5682
      %6209 = vst [vmem:[%s227 + $0x248] sm:$0xff] %v5684
      %6210 = vst [vmem:[%s227 + $0x250] sm:$0xff] %v5687
      %6211 = vst [vmem:[%s227 + $0x258] sm:$0xff] %v5689
      %6212 = vst [vmem:[%s227 + $0x260] sm:$0xff] %v5692
      %6213 = vst [vmem:[%s227 + $0x268] sm:$0xff] %v5694
      %6214 = vst [vmem:[%s227 + $0x270] sm:$0xff] %v5697
      %6215 = vst [vmem:[%s227 + $0x278] sm:$0xff] %v5699
      %6216 = vst [vmem:[%s227 + $0x280] sm:$0xff] %v5807
      %6217 = vst [vmem:[%s227 + $0x288] sm:$0xff] %v5809
      %6218 = vst [vmem:[%s227 + $0x290] sm:$0xff] %v5812
      %6219 = vst [vmem:[%s227 + $0x298] sm:$0xff] %v5814
      %6220 = vst [vmem:[%s227 + $0x2a0] sm:$0xff] %v5817
      %6221 = vst [vmem:[%s227 + $0x2a8] sm:$0xff] %v5819
      %6222 = vst [vmem:[%s227 + $0x2b0] sm:$0xff] %v5822
      %6223 = vst [vmem:[%s227 + $0x2b8] sm:$0xff] %v5824
      %6224 = vst [vmem:[%s227 + $0x2c0] sm:$0xff] %v5827
      %6225 = vst [vmem:[%s227 + $0x2c8] sm:$0xff] %v5829
      %6226 = vst [vmem:[%s227 + $0x2d0] sm:$0xff] %v5832
      %6227 = vst [vmem:[%s227 + $0x2d8] sm:$0xff] %v5834
      %6228 = vst [vmem:[%s227 + $0x2e0] sm:$0xff] %v5837
      %6229 = vst [vmem:[%s227 + $0x2e8] sm:$0xff] %v5839
      %6230 = vst [vmem:[%s227 + $0x2f0] sm:$0xff] %v5842
      %6231 = vst [vmem:[%s227 + $0x2f8] sm:$0xff] %v5844
      %6232 = vst [vmem:[%s227 + $0x300] sm:$0xff] %v5952
      %6233 = vst [vmem:[%s227 + $0x308] sm:$0xff] %v5954
      %6234 = vst [vmem:[%s227 + $0x310] sm:$0xff] %v5957
      %6235 = vst [vmem:[%s227 + $0x318] sm:$0xff] %v5959
      %6236 = vst [vmem:[%s227 + $0x320] sm:$0xff] %v5962
      %6237 = vst [vmem:[%s227 + $0x328] sm:$0xff] %v5964
      %6238 = vst [vmem:[%s227 + $0x330] sm:$0xff] %v5967
      %6239 = vst [vmem:[%s227 + $0x338] sm:$0xff] %v5969
      %6240 = vst [vmem:[%s227 + $0x340] sm:$0xff] %v5972
      %6241 = vst [vmem:[%s227 + $0x348] sm:$0xff] %v5974
      %6242 = vst [vmem:[%s227 + $0x350] sm:$0xff] %v5977
      %6243 = vst [vmem:[%s227 + $0x358] sm:$0xff] %v5979
      %6244 = vst [vmem:[%s227 + $0x360] sm:$0xff] %v5982
      %6245 = vst [vmem:[%s227 + $0x368] sm:$0xff] %v5984
      %6246 = vst [vmem:[%s227 + $0x370] sm:$0xff] %v5987
      %6247 = vst [vmem:[%s227 + $0x378] sm:$0xff] %v5989
      %6248 = vst [vmem:[%s227 + $0x380] sm:$0xff] %v6097
      %6249 = vst [vmem:[%s227 + $0x388] sm:$0xff] %v6099
      %6250 = vst [vmem:[%s227 + $0x390] sm:$0xff] %v6102
      %6251 = vst [vmem:[%s227 + $0x398] sm:$0xff] %v6104
      %6252 = vst [vmem:[%s227 + $0x3a0] sm:$0xff] %v6107
      %6253 = vst [vmem:[%s227 + $0x3a8] sm:$0xff] %v6109
      %6254 = vst [vmem:[%s227 + $0x3b0] sm:$0xff] %v6112
      %6255 = vst [vmem:[%s227 + $0x3b8] sm:$0xff] %v6114
      %6256 = vst [vmem:[%s227 + $0x3c0] sm:$0xff] %v6117
      %6257 = vst [vmem:[%s227 + $0x3c8] sm:$0xff] %v6119
      %6258 = vst [vmem:[%s227 + $0x3d0] sm:$0xff] %v6122
      %6259 = vst [vmem:[%s227 + $0x3d8] sm:$0xff] %v6124
      %6260 = vst [vmem:[%s227 + $0x3e0] sm:$0xff] %v6127
      %6261 = vst [vmem:[%s227 + $0x3e8] sm:$0xff] %v6129
      %6262 = vst [vmem:[%s227 + $0x3f0] sm:$0xff] %v6132
      %6263 = vst [vmem:[%s227 + $0x3f8] sm:$0xff] %v6134
      %s6264 = smul.u32 8, %s14
      %p6265 = scmp.lt.s32.totalorder %s6264, 23
      %s6266 = scalar_select %p6265, %s6264, 23
      %s6267 = smul.addr %s6266, 16
      %s6268 = smul.addr %s6267, 8
      %s6269 = scalar_lea.vmem %s3, %s6268
      // Predicated region
      $region33: #{self_attention_forward.4} parent=31 // pred_check
        %p6270 = pneg %p110
      $region34: #{self_attention_forward.4} parent=31 // pred_check_branch
        %6272 = sbr.rel (%p6270) target = $region36
      $region35: #{self_attention_forward.4} parent=31 // pred_region
        %s6273 = smul.u32 8, %s14
      $region36: #{self_attention_forward.4} parent=31 // pred_fallthru
        _
    $region32: #{self_attention_forward.4} parent=5 // pred_fallthru
      _
    %p6274 = scmp.le.s32.totalorder 2, %s9
    // Predicated region
    $region37: #{self_attention_forward.4} parent=5 // pred_check
      %p6275 = pneg %p6274
    $region38: #{self_attention_forward.4} parent=5 // pred_check_branch
      %6277 = sbr.rel (%p6275) target = $region40
    $region39: #{self_attention_forward.4} parent=5 // pred_region
      %s6278 = ssub.s32 %s9, 2
      // Predicated region
      $region41: #{self_attention_forward.4} parent=39 // pred_check
        %p6279 = pneg %p116
      $region42: #{self_attention_forward.4} parent=39 // pred_check_branch
        %6281 = sbr.rel (%p6279) target = $region44
      $region43: #{self_attention_forward.4} parent=39 // pred_region
        %s6282 = smul.u32 8, %s15
        %p6283 = scmp.lt.s32.totalorder %s6282, 23
        %s6284 = scalar_select %p6283, %s6282, 23
        %s6285 = smul.addr %s6284, 16
        %s6286 = smul.addr %s6285, 8
        %s6287 = scalar_lea.vmem %s3, %s6286
      $region44: #{self_attention_forward.4} parent=39 // pred_fallthru
        _
    $region40: #{self_attention_forward.4} parent=5 // pred_fallthru
      _
  $region6: #{self_attention_forward.4} parent=0 // loop_footer
    %s13 = sadd.s32 1, %s9
  $region7: #{self_attention_forward.4} parent=0 // loop_footer_branch
    %8 = sbr.rel target = $region3
  $region8: #{self_attention_forward.4} parent=0 // loop_exit
    _

// kernel: self_attention_forward.5
$region0: #{self_attention_forward.5}
  #allocation0 [shape = 'u32[]', space=smem, size = 0x4, offset = 0x4, fixed_abs, tag = 'smem constant byte address 0x4 - core index']
  #allocation1 [shape = 'u32[72,128]{1,0:T(1,128)}', space=vmem, size = 0x9000, scoped, tag = 'internal scratch']
  %s0 = inlined_call_operand.vmem [shape: bf16[256,768], index: 0, kind: input, shape index: {}]
  %s1 = inlined_call_operand.vmem [shape: bf16[768,768], index: 1, kind: input, shape index: {}]
  %s2 = inlined_call_operand.vmem [shape: f32[1,768], index: 2, kind: input, shape index: {}]
  %s3 = inlined_call_operand.hbm [shape: f32[256,768], index: 3, kind: output, shape index: {}]
  %s4 = sld [smem:[#allocation0]]
  $region83: #{self_attention_forward.5} parent=0
    _
  %s6 = ssub.s32 1, %s4
  %s7 = scalar_select 0, %s6, %s4
  $region1: #{self_attention_forward.5} parent=0
    #allocation2 [shape = 'u8[786432]{0}', space=vmem, size = 0xc0000, scoped, tag = 'input window, operand 1']
    #allocation3 [shape = 'u8[262144]{0}', space=vmem, size = 0x40000, scoped, tag = 'output window, operand 0']
    #allocation4 [shape = 's32[2]{0}', space=sflag, size = 0x8, scoped, tag = 'scoped memory for self_attention_forward.5']
    %8 = vsyncpa [#allocation4], 0
    %s9 = scalar_lea.sflag [#allocation4], 1
    %10 = vsyncpa %s9, 0
    loop: start=0, step=1, limit=8
    $region2: #{self_attention_forward.5} parent=1 // loop_pre_header
      _
    $region3: #{self_attention_forward.5} parent=1 // loop_header
      %s12 = sphi 0, %s16
      %p13 = scmp.ge.s32.totalorder %s12, 8
      %s19 = sphi 0, %s31
      %s20 = sphi 0, %s27
      %s21 = sphi 0, %s19
      %s22 = sphi 0, %s20
      %s23 = sphi 0, %s21
      %s24 = sphi 0, %s22
      %s34 = sphi 0, %s36
      %s37 = sphi 0, %s34
      %s38 = sphi 0, %s37
      %s54 = sphi 0, %s38
      %s60 = sphi 0, %s62
      %s63 = sphi 0, %s60
      %s64 = sphi 0, %s63
      %s80 = sphi 0, %s64
      %s86 = sphi 0, %s88
      %s89 = sphi 0, %s86
      %s90 = sphi 0, %s89
      %s106 = sphi 0, %s90
      %s114 = sphi 0, %s116
      %s117 = sphi 0, %s114
      %s118 = sphi 0, %s117
      %s134 = sphi 0, %s118
    $region4: #{self_attention_forward.5} parent=1 // loop_header_branch
      %15 = sbr.rel (%p13) target = $region8
    $region5: #{self_attention_forward.5} parent=1 // loop_body
      %s17 = ssub.s32 %s12, 1
      %s18 = ssub.s32 %s12, 2
      %s25 = sadd.s32 1, %s20
      %p26 = scmp.ge.s32.totalorder %s25, 3
      %s27 = scalar_select %p26, 0, %s25
      %s28 = sadd.s32 1, %s19
      %s29 = scalar_select %p26, %s28, %s19
      %p30 = scmp.ge.s32.totalorder %s29, 2
      %s31 = scalar_select %p30, 0, %s29
      %s32 = ssub.s32 %s19, %s31
      %p33 = scmp.eq.s32.totalorder %s32, 0
      %s35 = sadd.s32 %s34, 1
      %s36 = scalar_select %p33, %s34, %s35
      %p39 = pneg %p33
      %p40 = scmp.eq.s32.totalorder %s12, 5
      %p41 = por %p39, %p40
      %p42 = scmp.ne.s32.totalorder %s34, %s37
      %p43 = scmp.eq.s32.totalorder %s12, 0
      %p44 = por %p42, %p43
      %p45 = scmp.ne.s32.totalorder %s34, %s37
      %p46 = scmp.eq.s32.totalorder %s17, 5
      %p47 = por %p45, %p46
      %p48 = scmp.ne.s32.totalorder %s37, %s38
      %p49 = scmp.eq.s32.totalorder %s17, 0
      %p50 = por %p48, %p49
      %p51 = scmp.ne.s32.totalorder %s37, %s38
      %p52 = scmp.eq.s32.totalorder %s18, 5
      %p53 = por %p51, %p52
      %p55 = scmp.ne.s32.totalorder %s38, %s54
      %p56 = scmp.eq.s32.totalorder %s18, 0
      %p57 = por %p55, %p56
      %s58 = ssub.s32 %s20, %s27
      %p59 = scmp.eq.s32.totalorder %s58, 0
      %s61 = sadd.s32 %s60, 1
      %s62 = scalar_select %p59, %s60, %s61
      %p65 = pneg %p59
      %p66 = scmp.eq.s32.totalorder %s12, 5
      %p67 = por %p65, %p66
      %p68 = scmp.ne.s32.totalorder %s60, %s63
      %p69 = scmp.eq.s32.totalorder %s12, 0
      %p70 = por %p68, %p69
      %p71 = scmp.ne.s32.totalorder %s60, %s63
      %p72 = scmp.eq.s32.totalorder %s17, 5
      %p73 = por %p71, %p72
      %p74 = scmp.ne.s32.totalorder %s63, %s64
      %p75 = scmp.eq.s32.totalorder %s17, 0
      %p76 = por %p74, %p75
      %p77 = scmp.ne.s32.totalorder %s63, %s64
      %p78 = scmp.eq.s32.totalorder %s18, 5
      %p79 = por %p77, %p78
      %p81 = scmp.ne.s32.totalorder %s64, %s80
      %p82 = scmp.eq.s32.totalorder %s18, 0
      %p83 = por %p81, %p82
      %s84 = ssub.s32 %s20, %s27
      %p85 = scmp.eq.s32.totalorder %s84, 0
      %s87 = sadd.s32 %s86, 1
      %s88 = scalar_select %p85, %s86, %s87
      %p91 = pneg %p85
      %p92 = scmp.eq.s32.totalorder %s12, 5
      %p93 = por %p91, %p92
      %p94 = scmp.ne.s32.totalorder %s86, %s89
      %p95 = scmp.eq.s32.totalorder %s12, 0
      %p96 = por %p94, %p95
      %p97 = scmp.ne.s32.totalorder %s86, %s89
      %p98 = scmp.eq.s32.totalorder %s17, 5
      %p99 = por %p97, %p98
      %p100 = scmp.ne.s32.totalorder %s89, %s90
      %p101 = scmp.eq.s32.totalorder %s17, 0
      %p102 = por %p100, %p101
      %p103 = scmp.ne.s32.totalorder %s89, %s90
      %p104 = scmp.eq.s32.totalorder %s18, 5
      %p105 = por %p103, %p104
      %p107 = scmp.ne.s32.totalorder %s90, %s106
      %p108 = scmp.eq.s32.totalorder %s18, 0
      %p109 = por %p107, %p108
      %s110 = ssub.s32 %s19, %s31
      %s111 = ssub.s32 %s20, %s27
      %s112 = sor.u32 %s110, %s111
      %p113 = scmp.eq.s32.totalorder %s112, 0
      %s115 = sadd.s32 %s114, 1
      %s116 = scalar_select %p113, %s114, %s115
      %p119 = pneg %p113
      %p120 = scmp.eq.s32.totalorder %s12, 5
      %p121 = por %p119, %p120
      %p122 = scmp.ne.s32.totalorder %s114, %s117
      %p123 = scmp.eq.s32.totalorder %s12, 0
      %p124 = por %p122, %p123
      %p125 = scmp.ne.s32.totalorder %s114, %s117
      %p126 = scmp.eq.s32.totalorder %s17, 5
      %p127 = por %p125, %p126
      %p128 = scmp.ne.s32.totalorder %s117, %s118
      %p129 = scmp.eq.s32.totalorder %s17, 0
      %p130 = por %p128, %p129
      %p131 = scmp.ne.s32.totalorder %s117, %s118
      %p132 = scmp.eq.s32.totalorder %s18, 5
      %p133 = por %p131, %p132
      %p135 = scmp.ne.s32.totalorder %s118, %s134
      %p136 = scmp.eq.s32.totalorder %s18, 0
      %p137 = por %p135, %p136
      %p138 = scmp.le.s32.totalorder 1, %s12
      %p139 = scmp.lt.s32.totalorder %s12, 7
      %p140 = pnand %p138, %p139
      %p141 = pneg %p140
      // Predicated region
      $region9: #{self_attention_forward.5} parent=5 // pred_check
        _
      $region10: #{self_attention_forward.5} parent=5 // pred_check_branch
        %143 = sbr.rel (%p140) target = $region12
      $region11: #{self_attention_forward.5} parent=5 // pred_region
        %s144 = ssub.s32 %s12, 1
      $region12: #{self_attention_forward.5} parent=5 // pred_fallthru
        _
      %p145 = scmp.lt.s32.totalorder %s12, 6
      // Predicated region
      $region13: #{self_attention_forward.5} parent=5 // pred_check
        %p146 = pneg %p145
      $region14: #{self_attention_forward.5} parent=5 // pred_check_branch
        %148 = sbr.rel (%p146) target = $region16
      $region15: #{self_attention_forward.5} parent=5 // pred_region
        // Predicated region
        $region17: #{self_attention_forward.5} parent=15 // pred_check
          %p149 = pneg %p44
        $region18: #{self_attention_forward.5} parent=15 // pred_check_branch
          %151 = sbr.rel (%p149) target = $region20
        $region19: #{self_attention_forward.5} parent=15 // pred_region
          %s152 = smul.u32 16, %s19
          %p153 = scmp.lt.s32.totalorder %s152, 31
          %s154 = scalar_select %p153, %s152, 31
          %s155 = smul.addr %s154, 6
          %s156 = smul.addr %s155, 4
          %s157 = scalar_lea.vmem %s0, %s156
          %s158 = smul.u32 16, %s19
        $region20: #{self_attention_forward.5} parent=15 // pred_fallthru
          _
        // Predicated region
        $region21: #{self_attention_forward.5} parent=15 // pred_check
          %p159 = pneg %p70
        $region22: #{self_attention_forward.5} parent=15 // pred_check_branch
          %161 = sbr.rel (%p159) target = $region24
        $region23: #{self_attention_forward.5} parent=15 // pred_region
          %s162 = sand.u32 %s60, 1
          %s163 = sand.u32 %s60, 1
          %s164 = smul.addr %s163, 768
          %s165 = scalar_lea.vmem [#allocation2], %s164
          %s166 = smul.u32 2, %s20
          %s167 = smul.addr %s166, 4
          %s168 = scalar_lea.vmem %s1, %s167
          // Predicated region
          $region25: #{self_attention_forward.5} parent=23 // pred_check
            _
          $region26: #{self_attention_forward.5} parent=23 // pred_check_branch
            %170 = sbr.rel (0) target = $region28
          $region27: #{self_attention_forward.5} parent=23 // pred_region
            // Predicated region
            $region29: #{self_attention_forward.5} parent=27 // pred_check
              _
            $region30: #{self_attention_forward.5} parent=27 // pred_check_branch
              %172 = sbr.rel (0) target = $region32
            $region31: #{self_attention_forward.5} parent=27 // pred_region
              // Predicated region
              $region44: #{self_attention_forward.5} parent=31 // pred_check
                _
              $region45: #{self_attention_forward.5} parent=31 // pred_check_branch
                %378 = sbr.rel (0) target = $region47
              $region46: #{self_attention_forward.5} parent=31 // pred_region
                loop: start=0, step=1, limit=1
                $region48: #{self_attention_forward.5} parent=46 // loop_pre_header
                  _
                $region49: #{self_attention_forward.5} parent=46 // loop_header
                  %s380 = sphi 0, %s384
                  %p381 = scmp.ge.s32.totalorder %s380, 1
                  %s385 = sphi %s168, %s168
                  %s386 = sphi %s165, %s165
                $region50: #{self_attention_forward.5} parent=46 // loop_header_branch
                  %383 = sbr.rel (%p381) target = $region54
                $region51: #{self_attention_forward.5} parent=46 // loop_body
                  %v387 = vld [vmem:[%s385] sm:$0xff]
                  %388 = vst [vmem:[%s386] sm:$0xff] %v387
                  %v389 = vld [vmem:[%s385 + $0x18] sm:$0xff]
                  %390 = vst [vmem:[%s386 + $0x8] sm:$0xff] %v389
                  %v391 = vld [vmem:[%s385 + $0x30] sm:$0xff]
                  %392 = vst [vmem:[%s386 + $0x10] sm:$0xff] %v391
                  %v393 = vld [vmem:[%s385 + $0x48] sm:$0xff]
                  %394 = vst [vmem:[%s386 + $0x18] sm:$0xff] %v393
                  %v395 = vld [vmem:[%s385 + $0x60] sm:$0xff]
                  %396 = vst [vmem:[%s386 + $0x20] sm:$0xff] %v395
                  %v397 = vld [vmem:[%s385 + $0x78] sm:$0xff]
                  %398 = vst [vmem:[%s386 + $0x28] sm:$0xff] %v397
                  %v399 = vld [vmem:[%s385 + $0x90] sm:$0xff]
                  %400 = vst [vmem:[%s386 + $0x30] sm:$0xff] %v399
                  %v401 = vld [vmem:[%s385 + $0xa8] sm:$0xff]
                  %402 = vst [vmem:[%s386 + $0x38] sm:$0xff] %v401
                  %v403 = vld [vmem:[%s385 + $0xc0] sm:$0xff]
                  %404 = vst [vmem:[%s386 + $0x40] sm:$0xff] %v403
                  %v405 = vld [vmem:[%s385 + $0xd8] sm:$0xff]
                  %406 = vst [vmem:[%s386 + $0x48] sm:$0xff] %v405
                  %v407 = vld [vmem:[%s385 + $0xf0] sm:$0xff]
                  %408 = vst [vmem:[%s386 + $0x50] sm:$0xff] %v407
                  %v409 = vld [vmem:[%s385 + $0x108] sm:$0xff]
                  %410 = vst [vmem:[%s386 + $0x58] sm:$0xff] %v409
                  %v411 = vld [vmem:[%s385 + $0x120] sm:$0xff]
                  %412 = vst [vmem:[%s386 + $0x60] sm:$0xff] %v411
                  %v413 = vld [vmem:[%s385 + $0x138] sm:$0xff]
                  %414 = vst [vmem:[%s386 + $0x68] sm:$0xff] %v413
                  %v415 = vld [vmem:[%s385 + $0x150] sm:$0xff]
                  %416 = vst [vmem:[%s386 + $0x70] sm:$0xff] %v415
                  %v417 = vld [vmem:[%s385 + $0x168] sm:$0xff]
                  %418 = vst [vmem:[%s386 + $0x78] sm:$0xff] %v417
                  %v419 = vld [vmem:[%s385 + $0x180] sm:$0xff]
                  %420 = vst [vmem:[%s386 + $0x80] sm:$0xff] %v419
                  %v421 = vld [vmem:[%s385 + $0x198] sm:$0xff]
                  %422 = vst [vmem:[%s386 + $0x88] sm:$0xff] %v421
                  %v423 = vld [vmem:[%s385 + $0x1b0] sm:$0xff]
                  %424 = vst [vmem:[%s386 + $0x90] sm:$0xff] %v423
                  %v425 = vld [vmem:[%s385 + $0x1c8] sm:$0xff]
                  %426 = vst [vmem:[%s386 + $0x98] sm:$0xff] %v425
                  %v427 = vld [vmem:[%s385 + $0x1e0] sm:$0xff]
                  %428 = vst [vmem:[%s386 + $0xa0] sm:$0xff] %v427
                  %v429 = vld [vmem:[%s385 + $0x1f8] sm:$0xff]
                  %430 = vst [vmem:[%s386 + $0xa8] sm:$0xff] %v429
                  %v431 = vld [vmem:[%s385 + $0x210] sm:$0xff]
                  %432 = vst [vmem:[%s386 + $0xb0] sm:$0xff] %v431
                  %v433 = vld [vmem:[%s385 + $0x228] sm:$0xff]
                  %434 = vst [vmem:[%s386 + $0xb8] sm:$0xff] %v433
                  %v435 = vld [vmem:[%s385 + $0x240] sm:$0xff]
                  %436 = vst [vmem:[%s386 + $0xc0] sm:$0xff] %v435
                  %v437 = vld [vmem:[%s385 + $0x258] sm:$0xff]
                  %438 = vst [vmem:[%s386 + $0xc8] sm:$0xff] %v437
                  %v439 = vld [vmem:[%s385 + $0x270] sm:$0xff]
                  %440 = vst [vmem:[%s386 + $0xd0] sm:$0xff] %v439
                  %v441 = vld [vmem:[%s385 + $0x288] sm:$0xff]
                  %442 = vst [vmem:[%s386 + $0xd8] sm:$0xff] %v441
                  %v443 = vld [vmem:[%s385 + $0x2a0] sm:$0xff]
                  %444 = vst [vmem:[%s386 + $0xe0] sm:$0xff] %v443
                  %v445 = vld [vmem:[%s385 + $0x2b8] sm:$0xff]
                  %446 = vst [vmem:[%s386 + $0xe8] sm:$0xff] %v445
                  %v447 = vld [vmem:[%s385 + $0x2d0] sm:$0xff]
                  %448 = vst [vmem:[%s386 + $0xf0] sm:$0xff] %v447
                  %v449 = vld [vmem:[%s385 + $0x2e8] sm:$0xff]
                  %450 = vst [vmem:[%s386 + $0xf8] sm:$0xff] %v449
                  %v451 = vld [vmem:[%s385 + $0x300] sm:$0xff]
                  %452 = vst [vmem:[%s386 + $0x100] sm:$0xff] %v451
                  %v453 = vld [vmem:[%s385 + $0x318] sm:$0xff]
                  %454 = vst [vmem:[%s386 + $0x108] sm:$0xff] %v453
                  %v455 = vld [vmem:[%s385 + $0x330] sm:$0xff]
                  %456 = vst [vmem:[%s386 + $0x110] sm:$0xff] %v455
                  %v457 = vld [vmem:[%s385 + $0x348] sm:$0xff]
                  %458 = vst [vmem:[%s386 + $0x118] sm:$0xff] %v457
                  %v459 = vld [vmem:[%s385 + $0x360] sm:$0xff]
                  %460 = vst [vmem:[%s386 + $0x120] sm:$0xff] %v459
                  %v461 = vld [vmem:[%s385 + $0x378] sm:$0xff]
                  %462 = vst [vmem:[%s386 + $0x128] sm:$0xff] %v461
                  %v463 = vld [vmem:[%s385 + $0x390] sm:$0xff]
                  %464 = vst [vmem:[%s386 + $0x130] sm:$0xff] %v463
                  %v465 = vld [vmem:[%s385 + $0x3a8] sm:$0xff]
                  %466 = vst [vmem:[%s386 + $0x138] sm:$0xff] %v465
                  %v467 = vld [vmem:[%s385 + $0x3c0] sm:$0xff]
                  %468 = vst [vmem:[%s386 + $0x140] sm:$0xff] %v467
                  %v469 = vld [vmem:[%s385 + $0x3d8] sm:$0xff]
                  %470 = vst [vmem:[%s386 + $0x148] sm:$0xff] %v469
                  %v471 = vld [vmem:[%s385 + $0x3f0] sm:$0xff]
                  %472 = vst [vmem:[%s386 + $0x150] sm:$0xff] %v471
                  %v473 = vld [vmem:[%s385 + $0x408] sm:$0xff]
                  %474 = vst [vmem:[%s386 + $0x158] sm:$0xff] %v473
                  %v475 = vld [vmem:[%s385 + $0x420] sm:$0xff]
                  %476 = vst [vmem:[%s386 + $0x160] sm:$0xff] %v475
                  %v477 = vld [vmem:[%s385 + $0x438] sm:$0xff]
                  %478 = vst [vmem:[%s386 + $0x168] sm:$0xff] %v477
                  %v479 = vld [vmem:[%s385 + $0x450] sm:$0xff]
                  %480 = vst [vmem:[%s386 + $0x170] sm:$0xff] %v479
                  %v481 = vld [vmem:[%s385 + $0x468] sm:$0xff]
                  %482 = vst [vmem:[%s386 + $0x178] sm:$0xff] %v481
                  %v483 = vld [vmem:[%s385 + $0x480] sm:$0xff]
                  %484 = vst [vmem:[%s386 + $0x180] sm:$0xff] %v483
                  %v485 = vld [vmem:[%s385 + $0x498] sm:$0xff]
                  %486 = vst [vmem:[%s386 + $0x188] sm:$0xff] %v485
                  %v487 = vld [vmem:[%s385 + $0x4b0] sm:$0xff]
                  %488 = vst [vmem:[%s386 + $0x190] sm:$0xff] %v487
                  %v489 = vld [vmem:[%s385 + $0x4c8] sm:$0xff]
                  %490 = vst [vmem:[%s386 + $0x198] sm:$0xff] %v489
                  %v491 = vld [vmem:[%s385 + $0x4e0] sm:$0xff]
                  %492 = vst [vmem:[%s386 + $0x1a0] sm:$0xff] %v491
                  %v493 = vld [vmem:[%s385 + $0x4f8] sm:$0xff]
                  %494 = vst [vmem:[%s386 + $0x1a8] sm:$0xff] %v493
                  %v495 = vld [vmem:[%s385 + $0x510] sm:$0xff]
                  %496 = vst [vmem:[%s386 + $0x1b0] sm:$0xff] %v495
                  %v497 = vld [vmem:[%s385 + $0x528] sm:$0xff]
                  %498 = vst [vmem:[%s386 + $0x1b8] sm:$0xff] %v497
                  %v499 = vld [vmem:[%s385 + $0x540] sm:$0xff]
                  %500 = vst [vmem:[%s386 + $0x1c0] sm:$0xff] %v499
                  %v501 = vld [vmem:[%s385 + $0x558] sm:$0xff]
                  %502 = vst [vmem:[%s386 + $0x1c8] sm:$0xff] %v501
                  %v503 = vld [vmem:[%s385 + $0x570] sm:$0xff]
                  %504 = vst [vmem:[%s386 + $0x1d0] sm:$0xff] %v503
                  %v505 = vld [vmem:[%s385 + $0x588] sm:$0xff]
                  %506 = vst [vmem:[%s386 + $0x1d8] sm:$0xff] %v505
                  %v507 = vld [vmem:[%s385 + $0x5a0] sm:$0xff]
                  %508 = vst [vmem:[%s386 + $0x1e0] sm:$0xff] %v507
                  %v509 = vld [vmem:[%s385 + $0x5b8] sm:$0xff]
                  %510 = vst [vmem:[%s386 + $0x1e8] sm:$0xff] %v509
                  %v511 = vld [vmem:[%s385 + $0x5d0] sm:$0xff]
                  %512 = vst [vmem:[%s386 + $0x1f0] sm:$0xff] %v511
                  %v513 = vld [vmem:[%s385 + $0x5e8] sm:$0xff]
                  %514 = vst [vmem:[%s386 + $0x1f8] sm:$0xff] %v513
                  %v515 = vld [vmem:[%s385 + $0x600] sm:$0xff]
                  %516 = vst [vmem:[%s386 + $0x200] sm:$0xff] %v515
                  %v517 = vld [vmem:[%s385 + $0x618] sm:$0xff]
                  %518 = vst [vmem:[%s386 + $0x208] sm:$0xff] %v517
                  %v519 = vld [vmem:[%s385 + $0x630] sm:$0xff]
                  %520 = vst [vmem:[%s386 + $0x210] sm:$0xff] %v519
                  %v521 = vld [vmem:[%s385 + $0x648] sm:$0xff]
                  %522 = vst [vmem:[%s386 + $0x218] sm:$0xff] %v521
                  %v523 = vld [vmem:[%s385 + $0x660] sm:$0xff]
                  %524 = vst [vmem:[%s386 + $0x220] sm:$0xff] %v523
                  %v525 = vld [vmem:[%s385 + $0x678] sm:$0xff]
                  %526 = vst [vmem:[%s386 + $0x228] sm:$0xff] %v525
                  %v527 = vld [vmem:[%s385 + $0x690] sm:$0xff]
                  %528 = vst [vmem:[%s386 + $0x230] sm:$0xff] %v527
                  %v529 = vld [vmem:[%s385 + $0x6a8] sm:$0xff]
                  %530 = vst [vmem:[%s386 + $0x238] sm:$0xff] %v529
                  %v531 = vld [vmem:[%s385 + $0x6c0] sm:$0xff]
                  %532 = vst [vmem:[%s386 + $0x240] sm:$0xff] %v531
                  %v533 = vld [vmem:[%s385 + $0x6d8] sm:$0xff]
                  %534 = vst [vmem:[%s386 + $0x248] sm:$0xff] %v533
                  %v535 = vld [vmem:[%s385 + $0x6f0] sm:$0xff]
                  %536 = vst [vmem:[%s386 + $0x250] sm:$0xff] %v535
                  %v537 = vld [vmem:[%s385 + $0x708] sm:$0xff]
                  %538 = vst [vmem:[%s386 + $0x258] sm:$0xff] %v537
                  %v539 = vld [vmem:[%s385 + $0x720] sm:$0xff]
                  %540 = vst [vmem:[%s386 + $0x260] sm:$0xff] %v539
                  %v541 = vld [vmem:[%s385 + $0x738] sm:$0xff]
                  %542 = vst [vmem:[%s386 + $0x268] sm:$0xff] %v541
                  %v543 = vld [vmem:[%s385 + $0x750] sm:$0xff]
                  %544 = vst [vmem:[%s386 + $0x270] sm:$0xff] %v543
                  %v545 = vld [vmem:[%s385 + $0x768] sm:$0xff]
                  %546 = vst [vmem:[%s386 + $0x278] sm:$0xff] %v545
                  %v547 = vld [vmem:[%s385 + $0x780] sm:$0xff]
                  %548 = vst [vmem:[%s386 + $0x280] sm:$0xff] %v547
                  %v549 = vld [vmem:[%s385 + $0x798] sm:$0xff]
                  %550 = vst [vmem:[%s386 + $0x288] sm:$0xff] %v549
                  %v551 = vld [vmem:[%s385 + $0x7b0] sm:$0xff]
                  %552 = vst [vmem:[%s386 + $0x290] sm:$0xff] %v551
                  %v553 = vld [vmem:[%s385 + $0x7c8] sm:$0xff]
                  %554 = vst [vmem:[%s386 + $0x298] sm:$0xff] %v553
                  %v555 = vld [vmem:[%s385 + $0x7e0] sm:$0xff]
                  %556 = vst [vmem:[%s386 + $0x2a0] sm:$0xff] %v555
                  %v557 = vld [vmem:[%s385 + $0x7f8] sm:$0xff]
                  %558 = vst [vmem:[%s386 + $0x2a8] sm:$0xff] %v557
                  %v559 = vld [vmem:[%s385 + $0x810] sm:$0xff]
                  %560 = vst [vmem:[%s386 + $0x2b0] sm:$0xff] %v559
                  %v561 = vld [vmem:[%s385 + $0x828] sm:$0xff]
                  %562 = vst [vmem:[%s386 + $0x2b8] sm:$0xff] %v561
                  %v563 = vld [vmem:[%s385 + $0x840] sm:$0xff]
                  %564 = vst [vmem:[%s386 + $0x2c0] sm:$0xff] %v563
                  %v565 = vld [vmem:[%s385 + $0x858] sm:$0xff]
                  %566 = vst [vmem:[%s386 + $0x2c8] sm:$0xff] %v565
                  %v567 = vld [vmem:[%s385 + $0x870] sm:$0xff]
                  %568 = vst [vmem:[%s386 + $0x2d0] sm:$0xff] %v567
                  %v569 = vld [vmem:[%s385 + $0x888] sm:$0xff]
                  %570 = vst [vmem:[%s386 + $0x2d8] sm:$0xff] %v569
                  %v571 = vld [vmem:[%s385 + $0x8a0] sm:$0xff]
                  %572 = vst [vmem:[%s386 + $0x2e0] sm:$0xff] %v571
                  %v573 = vld [vmem:[%s385 + $0x8b8] sm:$0xff]
                  %574 = vst [vmem:[%s386 + $0x2e8] sm:$0xff] %v573
                  %v575 = vld [vmem:[%s385 + $0x8d0] sm:$0xff]
                  %576 = vst [vmem:[%s386 + $0x2f0] sm:$0xff] %v575
                  %v577 = vld [vmem:[%s385 + $0x8e8] sm:$0xff]
                  %578 = vst [vmem:[%s386 + $0x2f8] sm:$0xff] %v577
                $region52: #{self_attention_forward.5} parent=46 // loop_footer
                  %s384 = sadd.s32 1, %s380
                $region53: #{self_attention_forward.5} parent=46 // loop_footer_branch
                  %379 = sbr.rel target = $region49
                $region54: #{self_attention_forward.5} parent=46 // loop_exit
                  _
              $region47: #{self_attention_forward.5} parent=31 // pred_fallthru
                _
              // Predicated region
              $region55: #{self_attention_forward.5} parent=31 // pred_check
                _
              $region56: #{self_attention_forward.5} parent=31 // pred_check_branch
                %580 = sbr.rel target = $region58
              $region57: #{self_attention_forward.5} parent=31 // pred_region
                _
              $region58: #{self_attention_forward.5} parent=31 // pred_fallthru
                _
            $region32: #{self_attention_forward.5} parent=27 // pred_fallthru
              _
            // Predicated region
            $region33: #{self_attention_forward.5} parent=27 // pred_check
              _
            $region34: #{self_attention_forward.5} parent=27 // pred_check_branch
              %174 = sbr.rel target = $region36
            $region35: #{self_attention_forward.5} parent=27 // pred_region
              %s176 = ssub.s32 256, 1
              loop: start=0, step=1, limit=1
              $region37: #{self_attention_forward.5} parent=35 // loop_pre_header
                _
              $region38: #{self_attention_forward.5} parent=35 // loop_header
                %s178 = sphi 0, %s182
                %p179 = scmp.ge.s32.totalorder %s178, 1
                %s183 = sphi %s168, %s168
                %s184 = sphi %s165, %s165
              $region39: #{self_attention_forward.5} parent=35 // loop_header_branch
                %181 = sbr.rel (%p179) target = $region43
              $region40: #{self_attention_forward.5} parent=35 // loop_body
                %v185 = vld [vmem:[%s183] sm:%s176]
                %186 = vst [vmem:[%s184] sm:%s176] %v185
                %v187 = vld [vmem:[%s183 + $0x18] sm:%s176]
                %188 = vst [vmem:[%s184 + $0x8] sm:%s176] %v187
                %v189 = vld [vmem:[%s183 + $0x30] sm:%s176]
                %190 = vst [vmem:[%s184 + $0x10] sm:%s176] %v189
                %v191 = vld [vmem:[%s183 + $0x48] sm:%s176]
                %192 = vst [vmem:[%s184 + $0x18] sm:%s176] %v191
                %v193 = vld [vmem:[%s183 + $0x60] sm:%s176]
                %194 = vst [vmem:[%s184 + $0x20] sm:%s176] %v193
                %v195 = vld [vmem:[%s183 + $0x78] sm:%s176]
                %196 = vst [vmem:[%s184 + $0x28] sm:%s176] %v195
                %v197 = vld [vmem:[%s183 + $0x90] sm:%s176]
                %198 = vst [vmem:[%s184 + $0x30] sm:%s176] %v197
                %v199 = vld [vmem:[%s183 + $0xa8] sm:%s176]
                %200 = vst [vmem:[%s184 + $0x38] sm:%s176] %v199
                %v201 = vld [vmem:[%s183 + $0xc0] sm:%s176]
                %202 = vst [vmem:[%s184 + $0x40] sm:%s176] %v201
                %v203 = vld [vmem:[%s183 + $0xd8] sm:%s176]
                %204 = vst [vmem:[%s184 + $0x48] sm:%s176] %v203
                %v205 = vld [vmem:[%s183 + $0xf0] sm:%s176]
                %206 = vst [vmem:[%s184 + $0x50] sm:%s176] %v205
                %v207 = vld [vmem:[%s183 + $0x108] sm:%s176]
                %208 = vst [vmem:[%s184 + $0x58] sm:%s176] %v207
                %v209 = vld [vmem:[%s183 + $0x120] sm:%s176]
                %210 = vst [vmem:[%s184 + $0x60] sm:%s176] %v209
                %v211 = vld [vmem:[%s183 + $0x138] sm:%s176]
                %212 = vst [vmem:[%s184 + $0x68] sm:%s176] %v211
                %v213 = vld [vmem:[%s183 + $0x150] sm:%s176]
                %214 = vst [vmem:[%s184 + $0x70] sm:%s176] %v213
                %v215 = vld [vmem:[%s183 + $0x168] sm:%s176]
                %216 = vst [vmem:[%s184 + $0x78] sm:%s176] %v215
                %v217 = vld [vmem:[%s183 + $0x180] sm:%s176]
                %218 = vst [vmem:[%s184 + $0x80] sm:%s176] %v217
                %v219 = vld [vmem:[%s183 + $0x198] sm:%s176]
                %220 = vst [vmem:[%s184 + $0x88] sm:%s176] %v219
                %v221 = vld [vmem:[%s183 + $0x1b0] sm:%s176]
                %222 = vst [vmem:[%s184 + $0x90] sm:%s176] %v221
                %v223 = vld [vmem:[%s183 + $0x1c8] sm:%s176]
                %224 = vst [vmem:[%s184 + $0x98] sm:%s176] %v223
                %v225 = vld [vmem:[%s183 + $0x1e0] sm:%s176]
                %226 = vst [vmem:[%s184 + $0xa0] sm:%s176] %v225
                %v227 = vld [vmem:[%s183 + $0x1f8] sm:%s176]
                %228 = vst [vmem:[%s184 + $0xa8] sm:%s176] %v227
                %v229 = vld [vmem:[%s183 + $0x210] sm:%s176]
                %230 = vst [vmem:[%s184 + $0xb0] sm:%s176] %v229
                %v231 = vld [vmem:[%s183 + $0x228] sm:%s176]
                %232 = vst [vmem:[%s184 + $0xb8] sm:%s176] %v231
                %v233 = vld [vmem:[%s183 + $0x240] sm:%s176]
                %234 = vst [vmem:[%s184 + $0xc0] sm:%s176] %v233
                %v235 = vld [vmem:[%s183 + $0x258] sm:%s176]
                %236 = vst [vmem:[%s184 + $0xc8] sm:%s176] %v235
                %v237 = vld [vmem:[%s183 + $0x270] sm:%s176]
                %238 = vst [vmem:[%s184 + $0xd0] sm:%s176] %v237
                %v239 = vld [vmem:[%s183 + $0x288] sm:%s176]
                %240 = vst [vmem:[%s184 + $0xd8] sm:%s176] %v239
                %v241 = vld [vmem:[%s183 + $0x2a0] sm:%s176]
                %242 = vst [vmem:[%s184 + $0xe0] sm:%s176] %v241
                %v243 = vld [vmem:[%s183 + $0x2b8] sm:%s176]
                %244 = vst [vmem:[%s184 + $0xe8] sm:%s176] %v243
                %v245 = vld [vmem:[%s183 + $0x2d0] sm:%s176]
                %246 = vst [vmem:[%s184 + $0xf0] sm:%s176] %v245
                %v247 = vld [vmem:[%s183 + $0x2e8] sm:%s176]
                %248 = vst [vmem:[%s184 + $0xf8] sm:%s176] %v247
                %v249 = vld [vmem:[%s183 + $0x300] sm:%s176]
                %250 = vst [vmem:[%s184 + $0x100] sm:%s176] %v249
                %v251 = vld [vmem:[%s183 + $0x318] sm:%s176]
                %252 = vst [vmem:[%s184 + $0x108] sm:%s176] %v251
                %v253 = vld [vmem:[%s183 + $0x330] sm:%s176]
                %254 = vst [vmem:[%s184 + $0x110] sm:%s176] %v253
                %v255 = vld [vmem:[%s183 + $0x348] sm:%s176]
                %256 = vst [vmem:[%s184 + $0x118] sm:%s176] %v255
                %v257 = vld [vmem:[%s183 + $0x360] sm:%s176]
                %258 = vst [vmem:[%s184 + $0x120] sm:%s176] %v257
                %v259 = vld [vmem:[%s183 + $0x378] sm:%s176]
                %260 = vst [vmem:[%s184 + $0x128] sm:%s176] %v259
                %v261 = vld [vmem:[%s183 + $0x390] sm:%s176]
                %262 = vst [vmem:[%s184 + $0x130] sm:%s176] %v261
                %v263 = vld [vmem:[%s183 + $0x3a8] sm:%s176]
                %264 = vst [vmem:[%s184 + $0x138] sm:%s176] %v263
                %v265 = vld [vmem:[%s183 + $0x3c0] sm:%s176]
                %266 = vst [vmem:[%s184 + $0x140] sm:%s176] %v265
                %v267 = vld [vmem:[%s183 + $0x3d8] sm:%s176]
                %268 = vst [vmem:[%s184 + $0x148] sm:%s176] %v267
                %v269 = vld [vmem:[%s183 + $0x3f0] sm:%s176]
                %270 = vst [vmem:[%s184 + $0x150] sm:%s176] %v269
                %v271 = vld [vmem:[%s183 + $0x408] sm:%s176]
                %272 = vst [vmem:[%s184 + $0x158] sm:%s176] %v271
                %v273 = vld [vmem:[%s183 + $0x420] sm:%s176]
                %274 = vst [vmem:[%s184 + $0x160] sm:%s176] %v273
                %v275 = vld [vmem:[%s183 + $0x438] sm:%s176]
                %276 = vst [vmem:[%s184 + $0x168] sm:%s176] %v275
                %v277 = vld [vmem:[%s183 + $0x450] sm:%s176]
                %278 = vst [vmem:[%s184 + $0x170] sm:%s176] %v277
                %v279 = vld [vmem:[%s183 + $0x468] sm:%s176]
                %280 = vst [vmem:[%s184 + $0x178] sm:%s176] %v279
                %v281 = vld [vmem:[%s183 + $0x480] sm:%s176]
                %282 = vst [vmem:[%s184 + $0x180] sm:%s176] %v281
                %v283 = vld [vmem:[%s183 + $0x498] sm:%s176]
                %284 = vst [vmem:[%s184 + $0x188] sm:%s176] %v283
                %v285 = vld [vmem:[%s183 + $0x4b0] sm:%s176]
                %286 = vst [vmem:[%s184 + $0x190] sm:%s176] %v285
                %v287 = vld [vmem:[%s183 + $0x4c8] sm:%s176]
                %288 = vst [vmem:[%s184 + $0x198] sm:%s176] %v287
                %v289 = vld [vmem:[%s183 + $0x4e0] sm:%s176]
                %290 = vst [vmem:[%s184 + $0x1a0] sm:%s176] %v289
                %v291 = vld [vmem:[%s183 + $0x4f8] sm:%s176]
                %292 = vst [vmem:[%s184 + $0x1a8] sm:%s176] %v291
                %v293 = vld [vmem:[%s183 + $0x510] sm:%s176]
                %294 = vst [vmem:[%s184 + $0x1b0] sm:%s176] %v293
                %v295 = vld [vmem:[%s183 + $0x528] sm:%s176]
                %296 = vst [vmem:[%s184 + $0x1b8] sm:%s176] %v295
                %v297 = vld [vmem:[%s183 + $0x540] sm:%s176]
                %298 = vst [vmem:[%s184 + $0x1c0] sm:%s176] %v297
                %v299 = vld [vmem:[%s183 + $0x558] sm:%s176]
                %300 = vst [vmem:[%s184 + $0x1c8] sm:%s176] %v299
                %v301 = vld [vmem:[%s183 + $0x570] sm:%s176]
                %302 = vst [vmem:[%s184 + $0x1d0] sm:%s176] %v301
                %v303 = vld [vmem:[%s183 + $0x588] sm:%s176]
                %304 = vst [vmem:[%s184 + $0x1d8] sm:%s176] %v303
                %v305 = vld [vmem:[%s183 + $0x5a0] sm:%s176]
                %306 = vst [vmem:[%s184 + $0x1e0] sm:%s176] %v305
                %v307 = vld [vmem:[%s183 + $0x5b8] sm:%s176]
                %308 = vst [vmem:[%s184 + $0x1e8] sm:%s176] %v307
                %v309 = vld [vmem:[%s183 + $0x5d0] sm:%s176]
                %310 = vst [vmem:[%s184 + $0x1f0] sm:%s176] %v309
                %v311 = vld [vmem:[%s183 + $0x5e8] sm:%s176]
                %312 = vst [vmem:[%s184 + $0x1f8] sm:%s176] %v311
                %v313 = vld [vmem:[%s183 + $0x600] sm:%s176]
                %314 = vst [vmem:[%s184 + $0x200] sm:%s176] %v313
                %v315 = vld [vmem:[%s183 + $0x618] sm:%s176]
                %316 = vst [vmem:[%s184 + $0x208] sm:%s176] %v315
                %v317 = vld [vmem:[%s183 + $0x630] sm:%s176]
                %318 = vst [vmem:[%s184 + $0x210] sm:%s176] %v317
                %v319 = vld [vmem:[%s183 + $0x648] sm:%s176]
                %320 = vst [vmem:[%s184 + $0x218] sm:%s176] %v319
                %v321 = vld [vmem:[%s183 + $0x660] sm:%s176]
                %322 = vst [vmem:[%s184 + $0x220] sm:%s176] %v321
                %v323 = vld [vmem:[%s183 + $0x678] sm:%s176]
                %324 = vst [vmem:[%s184 + $0x228] sm:%s176] %v323
                %v325 = vld [vmem:[%s183 + $0x690] sm:%s176]
                %326 = vst [vmem:[%s184 + $0x230] sm:%s176] %v325
                %v327 = vld [vmem:[%s183 + $0x6a8] sm:%s176]
                %328 = vst [vmem:[%s184 + $0x238] sm:%s176] %v327
                %v329 = vld [vmem:[%s183 + $0x6c0] sm:%s176]
                %330 = vst [vmem:[%s184 + $0x240] sm:%s176] %v329
                %v331 = vld [vmem:[%s183 + $0x6d8] sm:%s176]
                %332 = vst [vmem:[%s184 + $0x248] sm:%s176] %v331
                %v333 = vld [vmem:[%s183 + $0x6f0] sm:%s176]
                %334 = vst [vmem:[%s184 + $0x250] sm:%s176] %v333
                %v335 = vld [vmem:[%s183 + $0x708] sm:%s176]
                %336 = vst [vmem:[%s184 + $0x258] sm:%s176] %v335
                %v337 = vld [vmem:[%s183 + $0x720] sm:%s176]
                %338 = vst [vmem:[%s184 + $0x260] sm:%s176] %v337
                %v339 = vld [vmem:[%s183 + $0x738] sm:%s176]
                %340 = vst [vmem:[%s184 + $0x268] sm:%s176] %v339
                %v341 = vld [vmem:[%s183 + $0x750] sm:%s176]
                %342 = vst [vmem:[%s184 + $0x270] sm:%s176] %v341
                %v343 = vld [vmem:[%s183 + $0x768] sm:%s176]
                %344 = vst [vmem:[%s184 + $0x278] sm:%s176] %v343
                %v345 = vld [vmem:[%s183 + $0x780] sm:%s176]
                %346 = vst [vmem:[%s184 + $0x280] sm:%s176] %v345
                %v347 = vld [vmem:[%s183 + $0x798] sm:%s176]
                %348 = vst [vmem:[%s184 + $0x288] sm:%s176] %v347
                %v349 = vld [vmem:[%s183 + $0x7b0] sm:%s176]
                %350 = vst [vmem:[%s184 + $0x290] sm:%s176] %v349
                %v351 = vld [vmem:[%s183 + $0x7c8] sm:%s176]
                %352 = vst [vmem:[%s184 + $0x298] sm:%s176] %v351
                %v353 = vld [vmem:[%s183 + $0x7e0] sm:%s176]
                %354 = vst [vmem:[%s184 + $0x2a0] sm:%s176] %v353
                %v355 = vld [vmem:[%s183 + $0x7f8] sm:%s176]
                %356 = vst [vmem:[%s184 + $0x2a8] sm:%s176] %v355
                %v357 = vld [vmem:[%s183 + $0x810] sm:%s176]
                %358 = vst [vmem:[%s184 + $0x2b0] sm:%s176] %v357
                %v359 = vld [vmem:[%s183 + $0x828] sm:%s176]
                %360 = vst [vmem:[%s184 + $0x2b8] sm:%s176] %v359
                %v361 = vld [vmem:[%s183 + $0x840] sm:%s176]
                %362 = vst [vmem:[%s184 + $0x2c0] sm:%s176] %v361
                %v363 = vld [vmem:[%s183 + $0x858] sm:%s176]
                %364 = vst [vmem:[%s184 + $0x2c8] sm:%s176] %v363
                %v365 = vld [vmem:[%s183 + $0x870] sm:%s176]
                %366 = vst [vmem:[%s184 + $0x2d0] sm:%s176] %v365
                %v367 = vld [vmem:[%s183 + $0x888] sm:%s176]
                %368 = vst [vmem:[%s184 + $0x2d8] sm:%s176] %v367
                %v369 = vld [vmem:[%s183 + $0x8a0] sm:%s176]
                %370 = vst [vmem:[%s184 + $0x2e0] sm:%s176] %v369
                %v371 = vld [vmem:[%s183 + $0x8b8] sm:%s176]
                %372 = vst [vmem:[%s184 + $0x2e8] sm:%s176] %v371
                %v373 = vld [vmem:[%s183 + $0x8d0] sm:%s176]
                %374 = vst [vmem:[%s184 + $0x2f0] sm:%s176] %v373
                %v375 = vld [vmem:[%s183 + $0x8e8] sm:%s176]
                %376 = vst [vmem:[%s184 + $0x2f8] sm:%s176] %v375
              $region41: #{self_attention_forward.5} parent=35 // loop_footer
                %s182 = sadd.s32 1, %s178
              $region42: #{self_attention_forward.5} parent=35 // loop_footer_branch
                %177 = sbr.rel target = $region38
              $region43: #{self_attention_forward.5} parent=35 // loop_exit
                _
            $region36: #{self_attention_forward.5} parent=27 // pred_fallthru
              _
          $region28: #{self_attention_forward.5} parent=23 // pred_fallthru
            _
          %581 = vnop
        $region24: #{self_attention_forward.5} parent=15 // pred_fallthru
          _
        // Predicated region
        $region59: #{self_attention_forward.5} parent=15 // pred_check
          %p582 = pneg %p96
        $region60: #{self_attention_forward.5} parent=15 // pred_check_branch
          %584 = sbr.rel (%p582) target = $region62
        $region61: #{self_attention_forward.5} parent=15 // pred_region
          %s585 = smul.u32 2, %s20
          %p586 = scmp.lt.s32.totalorder %s585, 5
          %s587 = scalar_select %p586, %s585, 5
          %s588 = scalar_lea.vmem %s2, %s587
          %s589 = smul.u32 2, %s20
        $region62: #{self_attention_forward.5} parent=15 // pred_fallthru
          _
      $region16: #{self_attention_forward.5} parent=5 // pred_fallthru
        _
      %p590 = scmp.le.s32.totalorder 1, %s12
      %p591 = scmp.lt.s32.totalorder %s12, 7
      %p592 = pnand %p590, %p591
      %p593 = pneg %p592
      // Predicated region
      $region63: #{self_attention_forward.5} parent=5 // pred_check
        _
      $region64: #{self_attention_forward.5} parent=5 // pred_check_branch
        %595 = sbr.rel (%p592) target = $region66
      $region65: #{self_attention_forward.5} parent=5 // pred_region
        %s596 = ssub.s32 %s12, 1
        %s597 = sand.u32 %s63, 1
        %s598 = sand.u32 %s63, 1
        %s599 = smul.addr %s598, 768
        %s600 = scalar_lea.vmem [#allocation2], %s599
        // Predicated region
        $region67: #{self_attention_forward.5} parent=65 // pred_check
          %p601 = pneg %p76
        $region68: #{self_attention_forward.5} parent=65 // pred_check_branch
          %603 = sbr.rel (%p601) target = $region70
        $region69: #{self_attention_forward.5} parent=65 // pred_region
          _
        $region70: #{self_attention_forward.5} parent=65 // pred_fallthru
          _
        %s604 = smul.u32 16, %s21
        %p605 = scmp.lt.s32.totalorder %s604, 31
        %s606 = scalar_select %p605, %s604, 31
        %s607 = smul.addr %s606, 6
        %s608 = smul.addr %s607, 4
        %s609 = scalar_lea.vmem %s0, %s608
        %p610 = pneg %p50
        %p611 = pneg %p47
        %s612 = sand.u32 %s63, 1
        %s613 = sand.u32 %s63, 1
        %s614 = smul.addr %s613, 768
        %s615 = scalar_lea.vmem [#allocation2], %s614
        %p616 = pneg %p76
        %p617 = pneg %p73
        %s618 = smul.u32 2, %s22
        %p619 = scmp.lt.s32.totalorder %s618, 5
        %s620 = scalar_select %p619, %s618, 5
        %s621 = scalar_lea.vmem %s2, %s620
        %p622 = pneg %p102
        %p623 = pneg %p99
        %p624 = pneg %p130
        %p625 = pneg %p127
        %s626 = sand.u32 %s117, 1
        %s627 = scalar_lea.sflag [#allocation4], %s626
        %s628 = sand.u32 %s117, 1
        %s629 = smul.addr %s628, 256
        %s630 = scalar_lea.vmem [#allocation3], %s629
        %s631 = smul.u32 16, %s21
        %p632 = scmp.lt.s32.totalorder %s631, 31
        %s633 = scalar_select %p632, %s631, 31
        %s634 = smul.addr %s633, 6
        %s635 = smul.addr %s634, 4
        %s636 = scalar_lea.vmem %s0, %s635
        %s637 = smul.u32 16, %s21
        %s638 = smul.u32 2, %s22
        %s639 = smul.u32 2, %s22
        %p640 = scmp.lt.s32.totalorder %s639, 5
        %s641 = scalar_select %p640, %s639, 5
        %s642 = scalar_lea.vmem %s2, %s641
        %s643 = smul.u32 2, %s22
        %s644 = smul.u32 16, %s21
        %s645 = smul.u32 2, %s22
        %v646 = vld [vmem:[%s636] sm:$0xff]
        %v647 = vld [vmem:[%s636 + $0x8] sm:$0xff]
        %v648 = vld [vmem:[%s636 + $0x10] sm:$0xff]
        %v649 = vld [vmem:[%s636 + $0x18] sm:$0xff]
        %v650 = vld [vmem:[%s636 + $0x20] sm:$0xff]
        %v651 = vld [vmem:[%s636 + $0x28] sm:$0xff]
        %v652 = vld [vmem:[%s636 + $0x30] sm:$0xff]
        %v653 = vld [vmem:[%s636 + $0x38] sm:$0xff]
        %v654 = vld [vmem:[%s636 + $0x40] sm:$0xff]
        %v655 = vld [vmem:[%s636 + $0x48] sm:$0xff]
        %v656 = vld [vmem:[%s636 + $0x50] sm:$0xff]
        %v657 = vld [vmem:[%s636 + $0x58] sm:$0xff]
        %v658 = vld [vmem:[%s636 + $0x60] sm:$0xff]
        %v659 = vld [vmem:[%s636 + $0x68] sm:$0xff]
        %v660 = vld [vmem:[%s636 + $0x70] sm:$0xff]
        %v661 = vld [vmem:[%s636 + $0x78] sm:$0xff]
        %v662 = vld [vmem:[%s636 + $0x80] sm:$0xff]
        %v663 = vld [vmem:[%s636 + $0x88] sm:$0xff]
        %v664 = vld [vmem:[%s636 + $0x90] sm:$0xff]
        %v665 = vld [vmem:[%s636 + $0x98] sm:$0xff]
        %v666 = vld [vmem:[%s636 + $0xa0] sm:$0xff]
        %v667 = vld [vmem:[%s636 + $0xa8] sm:$0xff]
        %v668 = vld [vmem:[%s636 + $0xb0] sm:$0xff]
        %v669 = vld [vmem:[%s636 + $0xb8] sm:$0xff]
        %v670 = vld [vmem:[%s636 + $0xc0] sm:$0xff]
        %v671 = vld [vmem:[%s636 + $0xc8] sm:$0xff]
        %v672 = vld [vmem:[%s636 + $0xd0] sm:$0xff]
        %v673 = vld [vmem:[%s636 + $0xd8] sm:$0xff]
        %v674 = vld [vmem:[%s636 + $0xe0] sm:$0xff]
        %v675 = vld [vmem:[%s636 + $0xe8] sm:$0xff]
        %v676 = vld [vmem:[%s636 + $0xf0] sm:$0xff]
        %v677 = vld [vmem:[%s636 + $0xf8] sm:$0xff]
        %v678 = vld [vmem:[%s636 + $0x100] sm:$0xff]
        %v679 = vld [vmem:[%s636 + $0x108] sm:$0xff]
        %v680 = vld [vmem:[%s636 + $0x110] sm:$0xff]
        %v681 = vld [vmem:[%s636 + $0x118] sm:$0xff]
        %v682 = vld [vmem:[%s636 + $0x120] sm:$0xff]
        %v683 = vld [vmem:[%s636 + $0x128] sm:$0xff]
        %v684 = vld [vmem:[%s636 + $0x130] sm:$0xff]
        %v685 = vld [vmem:[%s636 + $0x138] sm:$0xff]
        %v686 = vld [vmem:[%s636 + $0x140] sm:$0xff]
        %v687 = vld [vmem:[%s636 + $0x148] sm:$0xff]
        %v688 = vld [vmem:[%s636 + $0x150] sm:$0xff]
        %v689 = vld [vmem:[%s636 + $0x158] sm:$0xff]
        %v690 = vld [vmem:[%s636 + $0x160] sm:$0xff]
        %v691 = vld [vmem:[%s636 + $0x168] sm:$0xff]
        %v692 = vld [vmem:[%s636 + $0x170] sm:$0xff]
        %v693 = vld [vmem:[%s636 + $0x178] sm:$0xff]
        %v694 = vld [vmem:[%s600] sm:$0xff]
        %v695 = vld [vmem:[%s600 + $0x8] sm:$0xff]
        %v696 = vld [vmem:[%s600 + $0x10] sm:$0xff]
        %v697 = vld [vmem:[%s600 + $0x18] sm:$0xff]
        %v698 = vld [vmem:[%s600 + $0x20] sm:$0xff]
        %v699 = vld [vmem:[%s600 + $0x28] sm:$0xff]
        %v700 = vld [vmem:[%s600 + $0x30] sm:$0xff]
        %v701 = vld [vmem:[%s600 + $0x38] sm:$0xff]
        %v702 = vld [vmem:[%s600 + $0x40] sm:$0xff]
        %v703 = vld [vmem:[%s600 + $0x48] sm:$0xff]
        %v704 = vld [vmem:[%s600 + $0x50] sm:$0xff]
        %v705 = vld [vmem:[%s600 + $0x58] sm:$0xff]
        %v706 = vld [vmem:[%s600 + $0x60] sm:$0xff]
        %v707 = vld [vmem:[%s600 + $0x68] sm:$0xff]
        %v708 = vld [vmem:[%s600 + $0x70] sm:$0xff]
        %v709 = vld [vmem:[%s600 + $0x78] sm:$0xff]
        %v710 = vld [vmem:[%s600 + $0x80] sm:$0xff]
        %v711 = vld [vmem:[%s600 + $0x88] sm:$0xff]
        %v712 = vld [vmem:[%s600 + $0x90] sm:$0xff]
        %v713 = vld [vmem:[%s600 + $0x98] sm:$0xff]
        %v714 = vld [vmem:[%s600 + $0xa0] sm:$0xff]
        %v715 = vld [vmem:[%s600 + $0xa8] sm:$0xff]
        %v716 = vld [vmem:[%s600 + $0xb0] sm:$0xff]
        %v717 = vld [vmem:[%s600 + $0xb8] sm:$0xff]
        %v718 = vld [vmem:[%s600 + $0xc0] sm:$0xff]
        %v719 = vld [vmem:[%s600 + $0xc8] sm:$0xff]
        %v720 = vld [vmem:[%s600 + $0xd0] sm:$0xff]
        %v721 = vld [vmem:[%s600 + $0xd8] sm:$0xff]
        %v722 = vld [vmem:[%s600 + $0xe0] sm:$0xff]
        %v723 = vld [vmem:[%s600 + $0xe8] sm:$0xff]
        %v724 = vld [vmem:[%s600 + $0xf0] sm:$0xff]
        %v725 = vld [vmem:[%s600 + $0xf8] sm:$0xff]
        %v726 = vld [vmem:[%s600 + $0x100] sm:$0xff]
        %v727 = vld [vmem:[%s600 + $0x108] sm:$0xff]
        %v728 = vld [vmem:[%s600 + $0x110] sm:$0xff]
        %v729 = vld [vmem:[%s600 + $0x118] sm:$0xff]
        %v730 = vld [vmem:[%s600 + $0x120] sm:$0xff]
        %v731 = vld [vmem:[%s600 + $0x128] sm:$0xff]
        %v732 = vld [vmem:[%s600 + $0x130] sm:$0xff]
        %v733 = vld [vmem:[%s600 + $0x138] sm:$0xff]
        %v734 = vld [vmem:[%s600 + $0x140] sm:$0xff]
        %v735 = vld [vmem:[%s600 + $0x148] sm:$0xff]
        %v736 = vld [vmem:[%s600 + $0x150] sm:$0xff]
        %v737 = vld [vmem:[%s600 + $0x158] sm:$0xff]
        %v738 = vld [vmem:[%s600 + $0x160] sm:$0xff]
        %v739 = vld [vmem:[%s600 + $0x168] sm:$0xff]
        %v740 = vld [vmem:[%s600 + $0x170] sm:$0xff]
        %v741 = vld [vmem:[%s600 + $0x178] sm:$0xff]
        %v742 = vld [vmem:[%s600 + $0x180] sm:$0xff]
        %v743 = vld [vmem:[%s600 + $0x188] sm:$0xff]
        %v744 = vld [vmem:[%s600 + $0x190] sm:$0xff]
        %v745 = vld [vmem:[%s600 + $0x198] sm:$0xff]
        %v746 = vld [vmem:[%s600 + $0x1a0] sm:$0xff]
        %v747 = vld [vmem:[%s600 + $0x1a8] sm:$0xff]
        %v748 = vld [vmem:[%s600 + $0x1b0] sm:$0xff]
        %v749 = vld [vmem:[%s600 + $0x1b8] sm:$0xff]
        %v750 = vld [vmem:[%s600 + $0x1c0] sm:$0xff]
        %v751 = vld [vmem:[%s600 + $0x1c8] sm:$0xff]
        %v752 = vld [vmem:[%s600 + $0x1d0] sm:$0xff]
        %v753 = vld [vmem:[%s600 + $0x1d8] sm:$0xff]
        %v754 = vld [vmem:[%s600 + $0x1e0] sm:$0xff]
        %v755 = vld [vmem:[%s600 + $0x1e8] sm:$0xff]
        %v756 = vld [vmem:[%s600 + $0x1f0] sm:$0xff]
        %v757 = vld [vmem:[%s600 + $0x1f8] sm:$0xff]
        %v758 = vld [vmem:[%s600 + $0x200] sm:$0xff]
        %v759 = vld [vmem:[%s600 + $0x208] sm:$0xff]
        %v760 = vld [vmem:[%s600 + $0x210] sm:$0xff]
        %v761 = vld [vmem:[%s600 + $0x218] sm:$0xff]
        %v762 = vld [vmem:[%s600 + $0x220] sm:$0xff]
        %v763 = vld [vmem:[%s600 + $0x228] sm:$0xff]
        %v764 = vld [vmem:[%s600 + $0x230] sm:$0xff]
        %v765 = vld [vmem:[%s600 + $0x238] sm:$0xff]
        %v766 = vld [vmem:[%s600 + $0x240] sm:$0xff]
        %v767 = vld [vmem:[%s600 + $0x248] sm:$0xff]
        %v768 = vld [vmem:[%s600 + $0x250] sm:$0xff]
        %v769 = vld [vmem:[%s600 + $0x258] sm:$0xff]
        %v770 = vld [vmem:[%s600 + $0x260] sm:$0xff]
        %v771 = vld [vmem:[%s600 + $0x268] sm:$0xff]
        %v772 = vld [vmem:[%s600 + $0x270] sm:$0xff]
        %v773 = vld [vmem:[%s600 + $0x278] sm:$0xff]
        %v774 = vld [vmem:[%s600 + $0x280] sm:$0xff]
        %v775 = vld [vmem:[%s600 + $0x288] sm:$0xff]
        %v776 = vld [vmem:[%s600 + $0x290] sm:$0xff]
        %v777 = vld [vmem:[%s600 + $0x298] sm:$0xff]
        %v778 = vld [vmem:[%s600 + $0x2a0] sm:$0xff]
        %v779 = vld [vmem:[%s600 + $0x2a8] sm:$0xff]
        %v780 = vld [vmem:[%s600 + $0x2b0] sm:$0xff]
        %v781 = vld [vmem:[%s600 + $0x2b8] sm:$0xff]
        %v782 = vld [vmem:[%s600 + $0x2c0] sm:$0xff]
        %v783 = vld [vmem:[%s600 + $0x2c8] sm:$0xff]
        %v784 = vld [vmem:[%s600 + $0x2d0] sm:$0xff]
        %v785 = vld [vmem:[%s600 + $0x2d8] sm:$0xff]
        %v786 = vld [vmem:[%s600 + $0x2e0] sm:$0xff]
        %v787 = vld [vmem:[%s600 + $0x2e8] sm:$0xff]
        %v788 = vld [vmem:[%s600 + $0x2f0] sm:$0xff]
        %v789 = vld [vmem:[%s600 + $0x2f8] sm:$0xff]
        %v790 = vld [vmem:[%s642] sm:$0x3]
        %v792 = vperm.slane %v790, 0
        %v793 = vperm.slane %v790, 1
        %v844 = vunpack.c.l.b16 %v646
        %v845 = vunpack.c.h.b16 %v646
        %v846 = vunpack.c.l.b16 %v647
        %v847 = vunpack.c.h.b16 %v647
        %v848 = vunpack.c.l.b16 %v648
        %v849 = vunpack.c.h.b16 %v648
        %v850 = vunpack.c.l.b16 %v649
        %v851 = vunpack.c.h.b16 %v649
        %v852 = vunpack.c.l.b16 %v650
        %v853 = vunpack.c.h.b16 %v650
        %v854 = vunpack.c.l.b16 %v651
        %v855 = vunpack.c.h.b16 %v651
        %v856 = vunpack.c.l.b16 %v652
        %v857 = vunpack.c.h.b16 %v652
        %v858 = vunpack.c.l.b16 %v653
        %v859 = vunpack.c.h.b16 %v653
        %v860 = vunpack.c.l.b16 %v654
        %v861 = vunpack.c.h.b16 %v654
        %v862 = vunpack.c.l.b16 %v655
        %v863 = vunpack.c.h.b16 %v655
        %v864 = vunpack.c.l.b16 %v656
        %v865 = vunpack.c.h.b16 %v656
        %v866 = vunpack.c.l.b16 %v657
        %v867 = vunpack.c.h.b16 %v657
        %v868 = vunpack.c.l.b16 %v658
        %v869 = vunpack.c.h.b16 %v658
        %v870 = vunpack.c.l.b16 %v659
        %v871 = vunpack.c.h.b16 %v659
        %v872 = vunpack.c.l.b16 %v660
        %v873 = vunpack.c.h.b16 %v660
        %v874 = vunpack.c.l.b16 %v661
        %v875 = vunpack.c.h.b16 %v661
        %v876 = vunpack.c.l.b16 %v662
        %v877 = vunpack.c.h.b16 %v662
        %v878 = vunpack.c.l.b16 %v663
        %v879 = vunpack.c.h.b16 %v663
        %v880 = vunpack.c.l.b16 %v664
        %v881 = vunpack.c.h.b16 %v664
        %v882 = vunpack.c.l.b16 %v665
        %v883 = vunpack.c.h.b16 %v665
        %v884 = vunpack.c.l.b16 %v666
        %v885 = vunpack.c.h.b16 %v666
        %v886 = vunpack.c.l.b16 %v667
        %v887 = vunpack.c.h.b16 %v667
        %v888 = vunpack.c.l.b16 %v668
        %v889 = vunpack.c.h.b16 %v668
        %v890 = vunpack.c.l.b16 %v669
        %v891 = vunpack.c.h.b16 %v669
        %v892 = vunpack.c.l.b16 %v670
        %v893 = vunpack.c.h.b16 %v670
        %v894 = vunpack.c.l.b16 %v671
        %v895 = vunpack.c.h.b16 %v671
        %v896 = vunpack.c.l.b16 %v672
        %v897 = vunpack.c.h.b16 %v672
        %v898 = vunpack.c.l.b16 %v673
        %v899 = vunpack.c.h.b16 %v673
        %v900 = vunpack.c.l.b16 %v674
        %v901 = vunpack.c.h.b16 %v674
        %v902 = vunpack.c.l.b16 %v675
        %v903 = vunpack.c.h.b16 %v675
        %v904 = vunpack.c.l.b16 %v676
        %v905 = vunpack.c.h.b16 %v676
        %v906 = vunpack.c.l.b16 %v677
        %v907 = vunpack.c.h.b16 %v677
        %v908 = vunpack.c.l.b16 %v678
        %v909 = vunpack.c.h.b16 %v678
        %v910 = vunpack.c.l.b16 %v679
        %v911 = vunpack.c.h.b16 %v679
        %v912 = vunpack.c.l.b16 %v680
        %v913 = vunpack.c.h.b16 %v680
        %v914 = vunpack.c.l.b16 %v681
        %v915 = vunpack.c.h.b16 %v681
        %v916 = vunpack.c.l.b16 %v682
        %v917 = vunpack.c.h.b16 %v682
        %v918 = vunpack.c.l.b16 %v683
        %v919 = vunpack.c.h.b16 %v683
        %v920 = vunpack.c.l.b16 %v684
        %v921 = vunpack.c.h.b16 %v684
        %v922 = vunpack.c.l.b16 %v685
        %v923 = vunpack.c.h.b16 %v685
        %v924 = vunpack.c.l.b16 %v686
        %v925 = vunpack.c.h.b16 %v686
        %v926 = vunpack.c.l.b16 %v687
        %v927 = vunpack.c.h.b16 %v687
        %v928 = vunpack.c.l.b16 %v688
        %v929 = vunpack.c.h.b16 %v688
        %v930 = vunpack.c.l.b16 %v689
        %v931 = vunpack.c.h.b16 %v689
        %v932 = vunpack.c.l.b16 %v690
        %v933 = vunpack.c.h.b16 %v690
        %v934 = vunpack.c.l.b16 %v691
        %v935 = vunpack.c.h.b16 %v691
        %v936 = vunpack.c.l.b16 %v692
        %v937 = vunpack.c.h.b16 %v692
        %v938 = vunpack.c.l.b16 %v693
        %v939 = vunpack.c.h.b16 %v693
        %v940 = vpack.c.b16 %v850, %v844
        %v941 = vpack.c.b16 %v851, %v845
        %v942 = vpack.c.b16 %v852, %v846
        %v943 = vpack.c.b16 %v853, %v847
        %v944 = vpack.c.b16 %v854, %v848
        %v945 = vpack.c.b16 %v855, %v849
        %v946 = vpack.c.b16 %v862, %v856
        %v947 = vpack.c.b16 %v863, %v857
        %v948 = vpack.c.b16 %v864, %v858
        %v949 = vpack.c.b16 %v865, %v859
        %v950 = vpack.c.b16 %v866, %v860
        %v951 = vpack.c.b16 %v867, %v861
        %v952 = vpack.c.b16 %v874, %v868
        %v953 = vpack.c.b16 %v875, %v869
        %v954 = vpack.c.b16 %v876, %v870
        %v955 = vpack.c.b16 %v877, %v871
        %v956 = vpack.c.b16 %v878, %v872
        %v957 = vpack.c.b16 %v879, %v873
        %v958 = vpack.c.b16 %v886, %v880
        %v959 = vpack.c.b16 %v887, %v881
        %v960 = vpack.c.b16 %v888, %v882
        %v961 = vpack.c.b16 %v889, %v883
        %v962 = vpack.c.b16 %v890, %v884
        %v963 = vpack.c.b16 %v891, %v885
        %v964 = vpack.c.b16 %v898, %v892
        %v965 = vpack.c.b16 %v899, %v893
        %v966 = vpack.c.b16 %v900, %v894
        %v967 = vpack.c.b16 %v901, %v895
        %v968 = vpack.c.b16 %v902, %v896
        %v969 = vpack.c.b16 %v903, %v897
        %v970 = vpack.c.b16 %v910, %v904
        %v971 = vpack.c.b16 %v911, %v905
        %v972 = vpack.c.b16 %v912, %v906
        %v973 = vpack.c.b16 %v913, %v907
        %v974 = vpack.c.b16 %v914, %v908
        %v975 = vpack.c.b16 %v915, %v909
        %v976 = vpack.c.b16 %v922, %v916
        %v977 = vpack.c.b16 %v923, %v917
        %v978 = vpack.c.b16 %v924, %v918
        %v979 = vpack.c.b16 %v925, %v919
        %v980 = vpack.c.b16 %v926, %v920
        %v981 = vpack.c.b16 %v927, %v921
        %v982 = vpack.c.b16 %v934, %v928
        %v983 = vpack.c.b16 %v935, %v929
        %v984 = vpack.c.b16 %v936, %v930
        %v985 = vpack.c.b16 %v937, %v931
        %v986 = vpack.c.b16 %v938, %v932
        %v987 = vpack.c.b16 %v939, %v933
        %v1132 = vunpack.c.l.b16 %v694
        %v1133 = vunpack.c.h.b16 %v694
        %v1134 = vunpack.c.l.b16 %v695
        %v1135 = vunpack.c.h.b16 %v695
        %v1136 = vunpack.c.l.b16 %v696
        %v1137 = vunpack.c.h.b16 %v696
        %v1138 = vunpack.c.l.b16 %v697
        %v1139 = vunpack.c.h.b16 %v697
        %v1140 = vunpack.c.l.b16 %v698
        %v1141 = vunpack.c.h.b16 %v698
        %v1142 = vunpack.c.l.b16 %v699
        %v1143 = vunpack.c.h.b16 %v699
        %v1144 = vunpack.c.l.b16 %v700
        %v1145 = vunpack.c.h.b16 %v700
        %v1146 = vunpack.c.l.b16 %v701
        %v1147 = vunpack.c.h.b16 %v701
        %v1148 = vunpack.c.l.b16 %v702
        %v1149 = vunpack.c.h.b16 %v702
        %v1150 = vunpack.c.l.b16 %v703
        %v1151 = vunpack.c.h.b16 %v703
        %v1152 = vunpack.c.l.b16 %v704
        %v1153 = vunpack.c.h.b16 %v704
        %v1154 = vunpack.c.l.b16 %v705
        %v1155 = vunpack.c.h.b16 %v705
        %v1156 = vunpack.c.l.b16 %v706
        %v1157 = vunpack.c.h.b16 %v706
        %v1158 = vunpack.c.l.b16 %v707
        %v1159 = vunpack.c.h.b16 %v707
        %v1160 = vunpack.c.l.b16 %v708
        %v1161 = vunpack.c.h.b16 %v708
        %v1162 = vunpack.c.l.b16 %v709
        %v1163 = vunpack.c.h.b16 %v709
        %v1164 = vunpack.c.l.b16 %v710
        %v1165 = vunpack.c.h.b16 %v710
        %v1166 = vunpack.c.l.b16 %v711
        %v1167 = vunpack.c.h.b16 %v711
        %v1168 = vunpack.c.l.b16 %v712
        %v1169 = vunpack.c.h.b16 %v712
        %v1170 = vunpack.c.l.b16 %v713
        %v1171 = vunpack.c.h.b16 %v713
        %v1172 = vunpack.c.l.b16 %v714
        %v1173 = vunpack.c.h.b16 %v714
        %v1174 = vunpack.c.l.b16 %v715
        %v1175 = vunpack.c.h.b16 %v715
        %v1176 = vunpack.c.l.b16 %v716
        %v1177 = vunpack.c.h.b16 %v716
        %v1178 = vunpack.c.l.b16 %v717
        %v1179 = vunpack.c.h.b16 %v717
        %v1180 = vunpack.c.l.b16 %v718
        %v1181 = vunpack.c.h.b16 %v718
        %v1182 = vunpack.c.l.b16 %v719
        %v1183 = vunpack.c.h.b16 %v719
        %v1184 = vunpack.c.l.b16 %v720
        %v1185 = vunpack.c.h.b16 %v720
        %v1186 = vunpack.c.l.b16 %v721
        %v1187 = vunpack.c.h.b16 %v721
        %v1188 = vunpack.c.l.b16 %v722
        %v1189 = vunpack.c.h.b16 %v722
        %v1190 = vunpack.c.l.b16 %v723
        %v1191 = vunpack.c.h.b16 %v723
        %v1192 = vunpack.c.l.b16 %v724
        %v1193 = vunpack.c.h.b16 %v724
        %v1194 = vunpack.c.l.b16 %v725
        %v1195 = vunpack.c.h.b16 %v725
        %v1196 = vunpack.c.l.b16 %v726
        %v1197 = vunpack.c.h.b16 %v726
        %v1198 = vunpack.c.l.b16 %v727
        %v1199 = vunpack.c.h.b16 %v727
        %v1200 = vunpack.c.l.b16 %v728
        %v1201 = vunpack.c.h.b16 %v728
        %v1202 = vunpack.c.l.b16 %v729
        %v1203 = vunpack.c.h.b16 %v729
        %v1204 = vunpack.c.l.b16 %v730
        %v1205 = vunpack.c.h.b16 %v730
        %v1206 = vunpack.c.l.b16 %v731
        %v1207 = vunpack.c.h.b16 %v731
        %v1208 = vunpack.c.l.b16 %v732
        %v1209 = vunpack.c.h.b16 %v732
        %v1210 = vunpack.c.l.b16 %v733
        %v1211 = vunpack.c.h.b16 %v733
        %v1212 = vunpack.c.l.b16 %v734
        %v1213 = vunpack.c.h.b16 %v734
        %v1214 = vunpack.c.l.b16 %v735
        %v1215 = vunpack.c.h.b16 %v735
        %v1216 = vunpack.c.l.b16 %v736
        %v1217 = vunpack.c.h.b16 %v736
        %v1218 = vunpack.c.l.b16 %v737
        %v1219 = vunpack.c.h.b16 %v737
        %v1220 = vunpack.c.l.b16 %v738
        %v1221 = vunpack.c.h.b16 %v738
        %v1222 = vunpack.c.l.b16 %v739
        %v1223 = vunpack.c.h.b16 %v739
        %v1224 = vunpack.c.l.b16 %v740
        %v1225 = vunpack.c.h.b16 %v740
        %v1226 = vunpack.c.l.b16 %v741
        %v1227 = vunpack.c.h.b16 %v741
        %v1228 = vunpack.c.l.b16 %v742
        %v1229 = vunpack.c.h.b16 %v742
        %v1230 = vunpack.c.l.b16 %v743
        %v1231 = vunpack.c.h.b16 %v743
        %v1232 = vunpack.c.l.b16 %v744
        %v1233 = vunpack.c.h.b16 %v744
        %v1234 = vunpack.c.l.b16 %v745
        %v1235 = vunpack.c.h.b16 %v745
        %v1236 = vunpack.c.l.b16 %v746
        %v1237 = vunpack.c.h.b16 %v746
        %v1238 = vunpack.c.l.b16 %v747
        %v1239 = vunpack.c.h.b16 %v747
        %v1240 = vunpack.c.l.b16 %v748
        %v1241 = vunpack.c.h.b16 %v748
        %v1242 = vunpack.c.l.b16 %v749
        %v1243 = vunpack.c.h.b16 %v749
        %v1244 = vunpack.c.l.b16 %v750
        %v1245 = vunpack.c.h.b16 %v750
        %v1246 = vunpack.c.l.b16 %v751
        %v1247 = vunpack.c.h.b16 %v751
        %v1248 = vunpack.c.l.b16 %v752
        %v1249 = vunpack.c.h.b16 %v752
        %v1250 = vunpack.c.l.b16 %v753
        %v1251 = vunpack.c.h.b16 %v753
        %v1252 = vunpack.c.l.b16 %v754
        %v1253 = vunpack.c.h.b16 %v754
        %v1254 = vunpack.c.l.b16 %v755
        %v1255 = vunpack.c.h.b16 %v755
        %v1256 = vunpack.c.l.b16 %v756
        %v1257 = vunpack.c.h.b16 %v756
        %v1258 = vunpack.c.l.b16 %v757
        %v1259 = vunpack.c.h.b16 %v757
        %v1260 = vunpack.c.l.b16 %v758
        %v1261 = vunpack.c.h.b16 %v758
        %v1262 = vunpack.c.l.b16 %v759
        %v1263 = vunpack.c.h.b16 %v759
        %v1264 = vunpack.c.l.b16 %v760
        %v1265 = vunpack.c.h.b16 %v760
        %v1266 = vunpack.c.l.b16 %v761
        %v1267 = vunpack.c.h.b16 %v761
        %v1268 = vunpack.c.l.b16 %v762
        %v1269 = vunpack.c.h.b16 %v762
        %v1270 = vunpack.c.l.b16 %v763
        %v1271 = vunpack.c.h.b16 %v763
        %v1272 = vunpack.c.l.b16 %v764
        %v1273 = vunpack.c.h.b16 %v764
        %v1274 = vunpack.c.l.b16 %v765
        %v1275 = vunpack.c.h.b16 %v765
        %v1276 = vunpack.c.l.b16 %v766
        %v1277 = vunpack.c.h.b16 %v766
        %v1278 = vunpack.c.l.b16 %v767
        %v1279 = vunpack.c.h.b16 %v767
        %v1280 = vunpack.c.l.b16 %v768
        %v1281 = vunpack.c.h.b16 %v768
        %v1282 = vunpack.c.l.b16 %v769
        %v1283 = vunpack.c.h.b16 %v769
        %v1284 = vunpack.c.l.b16 %v770
        %v1285 = vunpack.c.h.b16 %v770
        %v1286 = vunpack.c.l.b16 %v771
        %v1287 = vunpack.c.h.b16 %v771
        %v1288 = vunpack.c.l.b16 %v772
        %v1289 = vunpack.c.h.b16 %v772
        %v1290 = vunpack.c.l.b16 %v773
        %v1291 = vunpack.c.h.b16 %v773
        %v1292 = vunpack.c.l.b16 %v774
        %v1293 = vunpack.c.h.b16 %v774
        %v1294 = vunpack.c.l.b16 %v775
        %v1295 = vunpack.c.h.b16 %v775
        %v1296 = vunpack.c.l.b16 %v776
        %v1297 = vunpack.c.h.b16 %v776
        %v1298 = vunpack.c.l.b16 %v777
        %v1299 = vunpack.c.h.b16 %v777
        %v1300 = vunpack.c.l.b16 %v778
        %v1301 = vunpack.c.h.b16 %v778
        %v1302 = vunpack.c.l.b16 %v779
        %v1303 = vunpack.c.h.b16 %v779
        %v1304 = vunpack.c.l.b16 %v780
        %v1305 = vunpack.c.h.b16 %v780
        %v1306 = vunpack.c.l.b16 %v781
        %v1307 = vunpack.c.h.b16 %v781
        %v1308 = vunpack.c.l.b16 %v782
        %v1309 = vunpack.c.h.b16 %v782
        %v1310 = vunpack.c.l.b16 %v783
        %v1311 = vunpack.c.h.b16 %v783
        %v1312 = vunpack.c.l.b16 %v784
        %v1313 = vunpack.c.h.b16 %v784
        %v1314 = vunpack.c.l.b16 %v785
        %v1315 = vunpack.c.h.b16 %v785
        %v1316 = vunpack.c.l.b16 %v786
        %v1317 = vunpack.c.h.b16 %v786
        %v1318 = vunpack.c.l.b16 %v787
        %v1319 = vunpack.c.h.b16 %v787
        %v1320 = vunpack.c.l.b16 %v788
        %v1321 = vunpack.c.h.b16 %v788
        %v1322 = vunpack.c.l.b16 %v789
        %v1323 = vunpack.c.h.b16 %v789
        %v1324 = vpack.c.b16 %v1134, %v1132
        %v1325 = vpack.c.b16 %v1135, %v1133
        %v1326 = vpack.c.b16 %v1138, %v1136
        %v1327 = vpack.c.b16 %v1139, %v1137
        %v1328 = vpack.c.b16 %v1142, %v1140
        %v1329 = vpack.c.b16 %v1143, %v1141
        %v1330 = vpack.c.b16 %v1146, %v1144
        %v1331 = vpack.c.b16 %v1147, %v1145
        %v1332 = vpack.c.b16 %v1150, %v1148
        %v1333 = vpack.c.b16 %v1151, %v1149
        %v1334 = vpack.c.b16 %v1154, %v1152
        %v1335 = vpack.c.b16 %v1155, %v1153
        %v1336 = vpack.c.b16 %v1158, %v1156
        %v1337 = vpack.c.b16 %v1159, %v1157
        %v1338 = vpack.c.b16 %v1162, %v1160
        %v1339 = vpack.c.b16 %v1163, %v1161
        %v1340 = vpack.c.b16 %v1166, %v1164
        %v1341 = vpack.c.b16 %v1167, %v1165
        %v1342 = vpack.c.b16 %v1170, %v1168
        %v1343 = vpack.c.b16 %v1171, %v1169
        %v1344 = vpack.c.b16 %v1174, %v1172
        %v1345 = vpack.c.b16 %v1175, %v1173
        %v1346 = vpack.c.b16 %v1178, %v1176
        %v1347 = vpack.c.b16 %v1179, %v1177
        %v1348 = vpack.c.b16 %v1182, %v1180
        %v1349 = vpack.c.b16 %v1183, %v1181
        %v1350 = vpack.c.b16 %v1186, %v1184
        %v1351 = vpack.c.b16 %v1187, %v1185
        %v1352 = vpack.c.b16 %v1190, %v1188
        %v1353 = vpack.c.b16 %v1191, %v1189
        %v1354 = vpack.c.b16 %v1194, %v1192
        %v1355 = vpack.c.b16 %v1195, %v1193
        %v1356 = vpack.c.b16 %v1198, %v1196
        %v1357 = vpack.c.b16 %v1199, %v1197
        %v1358 = vpack.c.b16 %v1202, %v1200
        %v1359 = vpack.c.b16 %v1203, %v1201
        %v1360 = vpack.c.b16 %v1206, %v1204
        %v1361 = vpack.c.b16 %v1207, %v1205
        %v1362 = vpack.c.b16 %v1210, %v1208
        %v1363 = vpack.c.b16 %v1211, %v1209
        %v1364 = vpack.c.b16 %v1214, %v1212
        %v1365 = vpack.c.b16 %v1215, %v1213
        %v1366 = vpack.c.b16 %v1218, %v1216
        %v1367 = vpack.c.b16 %v1219, %v1217
        %v1368 = vpack.c.b16 %v1222, %v1220
        %v1369 = vpack.c.b16 %v1223, %v1221
        %v1370 = vpack.c.b16 %v1226, %v1224
        %v1371 = vpack.c.b16 %v1227, %v1225
        %v1372 = vpack.c.b16 %v1230, %v1228
        %v1373 = vpack.c.b16 %v1231, %v1229
        %v1374 = vpack.c.b16 %v1234, %v1232
        %v1375 = vpack.c.b16 %v1235, %v1233
        %v1376 = vpack.c.b16 %v1238, %v1236
        %v1377 = vpack.c.b16 %v1239, %v1237
        %v1378 = vpack.c.b16 %v1242, %v1240
        %v1379 = vpack.c.b16 %v1243, %v1241
        %v1380 = vpack.c.b16 %v1246, %v1244
        %v1381 = vpack.c.b16 %v1247, %v1245
        %v1382 = vpack.c.b16 %v1250, %v1248
        %v1383 = vpack.c.b16 %v1251, %v1249
        %v1384 = vpack.c.b16 %v1254, %v1252
        %v1385 = vpack.c.b16 %v1255, %v1253
        %v1386 = vpack.c.b16 %v1258, %v1256
        %v1387 = vpack.c.b16 %v1259, %v1257
        %v1388 = vpack.c.b16 %v1262, %v1260
        %v1389 = vpack.c.b16 %v1263, %v1261
        %v1390 = vpack.c.b16 %v1266, %v1264
        %v1391 = vpack.c.b16 %v1267, %v1265
        %v1392 = vpack.c.b16 %v1270, %v1268
        %v1393 = vpack.c.b16 %v1271, %v1269
        %v1394 = vpack.c.b16 %v1274, %v1272
        %v1395 = vpack.c.b16 %v1275, %v1273
        %v1396 = vpack.c.b16 %v1278, %v1276
        %v1397 = vpack.c.b16 %v1279, %v1277
        %v1398 = vpack.c.b16 %v1282, %v1280
        %v1399 = vpack.c.b16 %v1283, %v1281
        %v1400 = vpack.c.b16 %v1286, %v1284
        %v1401 = vpack.c.b16 %v1287, %v1285
        %v1402 = vpack.c.b16 %v1290, %v1288
        %v1403 = vpack.c.b16 %v1291, %v1289
        %v1404 = vpack.c.b16 %v1294, %v1292
        %v1405 = vpack.c.b16 %v1295, %v1293
        %v1406 = vpack.c.b16 %v1298, %v1296
        %v1407 = vpack.c.b16 %v1299, %v1297
        %v1408 = vpack.c.b16 %v1302, %v1300
        %v1409 = vpack.c.b16 %v1303, %v1301
        %v1410 = vpack.c.b16 %v1306, %v1304
        %v1411 = vpack.c.b16 %v1307, %v1305
        %v1412 = vpack.c.b16 %v1310, %v1308
        %v1413 = vpack.c.b16 %v1311, %v1309
        %v1414 = vpack.c.b16 %v1314, %v1312
        %v1415 = vpack.c.b16 %v1315, %v1313
        %v1416 = vpack.c.b16 %v1318, %v1316
        %v1417 = vpack.c.b16 %v1319, %v1317
        %v1418 = vpack.c.b16 %v1322, %v1320
        %v1419 = vpack.c.b16 %v1323, %v1321
        %1516 = vmatpush.bf16.msra.mxu0 %v1338
        %1517 = vmatpush.bf16.msra.mxu0 %v1336
        %1518 = vmatpush.bf16.msra.mxu0 %v1334
        %1519 = vmatpush.bf16.msra.mxu0 %v1332
        %1520 = vmatpush.bf16.msra.mxu0 %v1330
        %1521 = vmatpush.bf16.msra.mxu0 %v1328
        %1522 = vmatpush.bf16.msra.mxu0 %v1326
        %1523 = vmatpush.bf16.msra.mxu0 %v1324
        %1524 = vmatmul.bf16.gmra.mxu0 %v940
        %v1525 = vpop.f32.mrf.mxu0
        %v1526 = vadd.f32 %v792, %v1525
        %v1527 = vpop.f32.mrf.mxu0
        %v1528 = vadd.f32 %v792, %v1527
        %1529 = vmatmul.bf16.gmra.mxu0 %v946
        %v1530 = vpop.f32.mrf.mxu0
        %v1531 = vadd.f32 %v792, %v1530
        %v1532 = vpop.f32.mrf.mxu0
        %v1533 = vadd.f32 %v792, %v1532
        %1534 = vmatmul.bf16.gmra.mxu0 %v952
        %v1535 = vpop.f32.mrf.mxu0
        %v1536 = vadd.f32 %v792, %v1535
        %v1537 = vpop.f32.mrf.mxu0
        %v1538 = vadd.f32 %v792, %v1537
        %1539 = vmatmul.bf16.gmra.mxu0 %v958
        %v1540 = vpop.f32.mrf.mxu0
        %v1541 = vadd.f32 %v792, %v1540
        %v1542 = vpop.f32.mrf.mxu0
        %v1543 = vadd.f32 %v792, %v1542
        %1544 = vmatmul.bf16.gmra.mxu0 %v964
        %v1545 = vpop.f32.mrf.mxu0
        %v1546 = vadd.f32 %v792, %v1545
        %v1547 = vpop.f32.mrf.mxu0
        %v1548 = vadd.f32 %v792, %v1547
        %1549 = vmatmul.bf16.gmra.mxu0 %v970
        %v1550 = vpop.f32.mrf.mxu0
        %v1551 = vadd.f32 %v792, %v1550
        %v1552 = vpop.f32.mrf.mxu0
        %v1553 = vadd.f32 %v792, %v1552
        %1554 = vmatmul.bf16.gmra.mxu0 %v976
        %v1555 = vpop.f32.mrf.mxu0
        %v1556 = vadd.f32 %v792, %v1555
        %v1557 = vpop.f32.mrf.mxu0
        %v1558 = vadd.f32 %v792, %v1557
        %1559 = vmatmul.bf16.gmra.mxu0 %v982
        %v1560 = vpop.f32.mrf.mxu0
        %v1561 = vadd.f32 %v792, %v1560
        %v1562 = vpop.f32.mrf.mxu0
        %v1563 = vadd.f32 %v792, %v1562
        %1564 = vdwg.mxu0
        %1565 = vmatpush.bf16.msra.mxu0 %v1354
        %1566 = vmatpush.bf16.msra.mxu0 %v1352
        %1567 = vmatpush.bf16.msra.mxu0 %v1350
        %1568 = vmatpush.bf16.msra.mxu0 %v1348
        %1569 = vmatpush.bf16.msra.mxu0 %v1346
        %1570 = vmatpush.bf16.msra.mxu0 %v1344
        %1571 = vmatpush.bf16.msra.mxu0 %v1342
        %1572 = vmatpush.bf16.msra.mxu0 %v1340
        %1573 = vmatmul.bf16.gmra.mxu0 %v941
        %v1574 = vpop.f32.mrf.mxu0
        %v1575 = vadd.f32 %v1526, %v1574
        %v1576 = vpop.f32.mrf.mxu0
        %v1577 = vadd.f32 %v1528, %v1576
        %1578 = vmatmul.bf16.gmra.mxu0 %v947
        %v1579 = vpop.f32.mrf.mxu0
        %v1580 = vadd.f32 %v1531, %v1579
        %v1581 = vpop.f32.mrf.mxu0
        %v1582 = vadd.f32 %v1533, %v1581
        %1583 = vmatmul.bf16.gmra.mxu0 %v953
        %v1584 = vpop.f32.mrf.mxu0
        %v1585 = vadd.f32 %v1536, %v1584
        %v1586 = vpop.f32.mrf.mxu0
        %v1587 = vadd.f32 %v1538, %v1586
        %1588 = vmatmul.bf16.gmra.mxu0 %v959
        %v1589 = vpop.f32.mrf.mxu0
        %v1590 = vadd.f32 %v1541, %v1589
        %v1591 = vpop.f32.mrf.mxu0
        %v1592 = vadd.f32 %v1543, %v1591
        %1593 = vmatmul.bf16.gmra.mxu0 %v965
        %v1594 = vpop.f32.mrf.mxu0
        %v1595 = vadd.f32 %v1546, %v1594
        %v1596 = vpop.f32.mrf.mxu0
        %v1597 = vadd.f32 %v1548, %v1596
        %1598 = vmatmul.bf16.gmra.mxu0 %v971
        %v1599 = vpop.f32.mrf.mxu0
        %v1600 = vadd.f32 %v1551, %v1599
        %v1601 = vpop.f32.mrf.mxu0
        %v1602 = vadd.f32 %v1553, %v1601
        %1603 = vmatmul.bf16.gmra.mxu0 %v977
        %v1604 = vpop.f32.mrf.mxu0
        %v1605 = vadd.f32 %v1556, %v1604
        %v1606 = vpop.f32.mrf.mxu0
        %v1607 = vadd.f32 %v1558, %v1606
        %1608 = vmatmul.bf16.gmra.mxu0 %v983
        %v1609 = vpop.f32.mrf.mxu0
        %v1610 = vadd.f32 %v1561, %v1609
        %v1611 = vpop.f32.mrf.mxu0
        %v1612 = vadd.f32 %v1563, %v1611
        %1613 = vdwg.mxu0
        %1614 = vmatpush.bf16.msra.mxu0 %v1370
        %1615 = vmatpush.bf16.msra.mxu0 %v1368
        %1616 = vmatpush.bf16.msra.mxu0 %v1366
        %1617 = vmatpush.bf16.msra.mxu0 %v1364
        %1618 = vmatpush.bf16.msra.mxu0 %v1362
        %1619 = vmatpush.bf16.msra.mxu0 %v1360
        %1620 = vmatpush.bf16.msra.mxu0 %v1358
        %1621 = vmatpush.bf16.msra.mxu0 %v1356
        %1622 = vmatmul.bf16.gmra.mxu0 %v942
        %v1623 = vpop.f32.mrf.mxu0
        %v1624 = vadd.f32 %v1575, %v1623
        %v1625 = vpop.f32.mrf.mxu0
        %v1626 = vadd.f32 %v1577, %v1625
        %1627 = vmatmul.bf16.gmra.mxu0 %v948
        %v1628 = vpop.f32.mrf.mxu0
        %v1629 = vadd.f32 %v1580, %v1628
        %v1630 = vpop.f32.mrf.mxu0
        %v1631 = vadd.f32 %v1582, %v1630
        %1632 = vmatmul.bf16.gmra.mxu0 %v954
        %v1633 = vpop.f32.mrf.mxu0
        %v1634 = vadd.f32 %v1585, %v1633
        %v1635 = vpop.f32.mrf.mxu0
        %v1636 = vadd.f32 %v1587, %v1635
        %1637 = vmatmul.bf16.gmra.mxu0 %v960
        %v1638 = vpop.f32.mrf.mxu0
        %v1639 = vadd.f32 %v1590, %v1638
        %v1640 = vpop.f32.mrf.mxu0
        %v1641 = vadd.f32 %v1592, %v1640
        %1642 = vmatmul.bf16.gmra.mxu0 %v966
        %v1643 = vpop.f32.mrf.mxu0
        %v1644 = vadd.f32 %v1595, %v1643
        %v1645 = vpop.f32.mrf.mxu0
        %v1646 = vadd.f32 %v1597, %v1645
        %1647 = vmatmul.bf16.gmra.mxu0 %v972
        %v1648 = vpop.f32.mrf.mxu0
        %v1649 = vadd.f32 %v1600, %v1648
        %v1650 = vpop.f32.mrf.mxu0
        %v1651 = vadd.f32 %v1602, %v1650
        %1652 = vmatmul.bf16.gmra.mxu0 %v978
        %v1653 = vpop.f32.mrf.mxu0
        %v1654 = vadd.f32 %v1605, %v1653
        %v1655 = vpop.f32.mrf.mxu0
        %v1656 = vadd.f32 %v1607, %v1655
        %1657 = vmatmul.bf16.gmra.mxu0 %v984
        %v1658 = vpop.f32.mrf.mxu0
        %v1659 = vadd.f32 %v1610, %v1658
        %v1660 = vpop.f32.mrf.mxu0
        %v1661 = vadd.f32 %v1612, %v1660
        %1662 = vdwg.mxu0
        %1663 = vmatpush.bf16.msra.mxu0 %v1386
        %1664 = vmatpush.bf16.msra.mxu0 %v1384
        %1665 = vmatpush.bf16.msra.mxu0 %v1382
        %1666 = vmatpush.bf16.msra.mxu0 %v1380
        %1667 = vmatpush.bf16.msra.mxu0 %v1378
        %1668 = vmatpush.bf16.msra.mxu0 %v1376
        %1669 = vmatpush.bf16.msra.mxu0 %v1374
        %1670 = vmatpush.bf16.msra.mxu0 %v1372
        %1671 = vmatmul.bf16.gmra.mxu0 %v943
        %v1672 = vpop.f32.mrf.mxu0
        %v1673 = vadd.f32 %v1624, %v1672
        %v1674 = vpop.f32.mrf.mxu0
        %v1675 = vadd.f32 %v1626, %v1674
        %1676 = vmatmul.bf16.gmra.mxu0 %v949
        %v1677 = vpop.f32.mrf.mxu0
        %v1678 = vadd.f32 %v1629, %v1677
        %v1679 = vpop.f32.mrf.mxu0
        %v1680 = vadd.f32 %v1631, %v1679
        %1681 = vmatmul.bf16.gmra.mxu0 %v955
        %v1682 = vpop.f32.mrf.mxu0
        %v1683 = vadd.f32 %v1634, %v1682
        %v1684 = vpop.f32.mrf.mxu0
        %v1685 = vadd.f32 %v1636, %v1684
        %1686 = vmatmul.bf16.gmra.mxu0 %v961
        %v1687 = vpop.f32.mrf.mxu0
        %v1688 = vadd.f32 %v1639, %v1687
        %v1689 = vpop.f32.mrf.mxu0
        %v1690 = vadd.f32 %v1641, %v1689
        %1691 = vmatmul.bf16.gmra.mxu0 %v967
        %v1692 = vpop.f32.mrf.mxu0
        %v1693 = vadd.f32 %v1644, %v1692
        %v1694 = vpop.f32.mrf.mxu0
        %v1695 = vadd.f32 %v1646, %v1694
        %1696 = vmatmul.bf16.gmra.mxu0 %v973
        %v1697 = vpop.f32.mrf.mxu0
        %v1698 = vadd.f32 %v1649, %v1697
        %v1699 = vpop.f32.mrf.mxu0
        %v1700 = vadd.f32 %v1651, %v1699
        %1701 = vmatmul.bf16.gmra.mxu0 %v979
        %v1702 = vpop.f32.mrf.mxu0
        %v1703 = vadd.f32 %v1654, %v1702
        %v1704 = vpop.f32.mrf.mxu0
        %v1705 = vadd.f32 %v1656, %v1704
        %1706 = vmatmul.bf16.gmra.mxu0 %v985
        %v1707 = vpop.f32.mrf.mxu0
        %v1708 = vadd.f32 %v1659, %v1707
        %v1709 = vpop.f32.mrf.mxu0
        %v1710 = vadd.f32 %v1661, %v1709
        %1711 = vdwg.mxu0
        %1712 = vmatpush.bf16.msra.mxu0 %v1402
        %1713 = vmatpush.bf16.msra.mxu0 %v1400
        %1714 = vmatpush.bf16.msra.mxu0 %v1398
        %1715 = vmatpush.bf16.msra.mxu0 %v1396
        %1716 = vmatpush.bf16.msra.mxu0 %v1394
        %1717 = vmatpush.bf16.msra.mxu0 %v1392
        %1718 = vmatpush.bf16.msra.mxu0 %v1390
        %1719 = vmatpush.bf16.msra.mxu0 %v1388
        %1720 = vmatmul.bf16.gmra.mxu0 %v944
        %v1721 = vpop.f32.mrf.mxu0
        %v1722 = vadd.f32 %v1673, %v1721
        %v1723 = vpop.f32.mrf.mxu0
        %v1724 = vadd.f32 %v1675, %v1723
        %1725 = vmatmul.bf16.gmra.mxu0 %v950
        %v1726 = vpop.f32.mrf.mxu0
        %v1727 = vadd.f32 %v1678, %v1726
        %v1728 = vpop.f32.mrf.mxu0
        %v1729 = vadd.f32 %v1680, %v1728
        %1730 = vmatmul.bf16.gmra.mxu0 %v956
        %v1731 = vpop.f32.mrf.mxu0
        %v1732 = vadd.f32 %v1683, %v1731
        %v1733 = vpop.f32.mrf.mxu0
        %v1734 = vadd.f32 %v1685, %v1733
        %1735 = vmatmul.bf16.gmra.mxu0 %v962
        %v1736 = vpop.f32.mrf.mxu0
        %v1737 = vadd.f32 %v1688, %v1736
        %v1738 = vpop.f32.mrf.mxu0
        %v1739 = vadd.f32 %v1690, %v1738
        %1740 = vmatmul.bf16.gmra.mxu0 %v968
        %v1741 = vpop.f32.mrf.mxu0
        %v1742 = vadd.f32 %v1693, %v1741
        %v1743 = vpop.f32.mrf.mxu0
        %v1744 = vadd.f32 %v1695, %v1743
        %1745 = vmatmul.bf16.gmra.mxu0 %v974
        %v1746 = vpop.f32.mrf.mxu0
        %v1747 = vadd.f32 %v1698, %v1746
        %v1748 = vpop.f32.mrf.mxu0
        %v1749 = vadd.f32 %v1700, %v1748
        %1750 = vmatmul.bf16.gmra.mxu0 %v980
        %v1751 = vpop.f32.mrf.mxu0
        %v1752 = vadd.f32 %v1703, %v1751
        %v1753 = vpop.f32.mrf.mxu0
        %v1754 = vadd.f32 %v1705, %v1753
        %1755 = vmatmul.bf16.gmra.mxu0 %v986
        %v1756 = vpop.f32.mrf.mxu0
        %v1757 = vadd.f32 %v1708, %v1756
        %v1758 = vpop.f32.mrf.mxu0
        %v1759 = vadd.f32 %v1710, %v1758
        %1760 = vdwg.mxu0
        %1761 = vmatpush.bf16.msra.mxu0 %v1418
        %1762 = vmatpush.bf16.msra.mxu0 %v1416
        %1763 = vmatpush.bf16.msra.mxu0 %v1414
        %1764 = vmatpush.bf16.msra.mxu0 %v1412
        %1765 = vmatpush.bf16.msra.mxu0 %v1410
        %1766 = vmatpush.bf16.msra.mxu0 %v1408
        %1767 = vmatpush.bf16.msra.mxu0 %v1406
        %1768 = vmatpush.bf16.msra.mxu0 %v1404
        %1769 = vmatmul.bf16.gmra.mxu0 %v945
        %v1770 = vpop.f32.mrf.mxu0
        %v1771 = vadd.f32 %v1722, %v1770
        %v1772 = vpop.f32.mrf.mxu0
        %v1773 = vadd.f32 %v1724, %v1772
        %1774 = vmatmul.bf16.gmra.mxu0 %v951
        %v1775 = vpop.f32.mrf.mxu0
        %v1776 = vadd.f32 %v1727, %v1775
        %v1777 = vpop.f32.mrf.mxu0
        %v1778 = vadd.f32 %v1729, %v1777
        %1779 = vmatmul.bf16.gmra.mxu0 %v957
        %v1780 = vpop.f32.mrf.mxu0
        %v1781 = vadd.f32 %v1732, %v1780
        %v1782 = vpop.f32.mrf.mxu0
        %v1783 = vadd.f32 %v1734, %v1782
        %1784 = vmatmul.bf16.gmra.mxu0 %v963
        %v1785 = vpop.f32.mrf.mxu0
        %v1786 = vadd.f32 %v1737, %v1785
        %v1787 = vpop.f32.mrf.mxu0
        %v1788 = vadd.f32 %v1739, %v1787
        %1789 = vmatmul.bf16.gmra.mxu0 %v969
        %v1790 = vpop.f32.mrf.mxu0
        %v1791 = vadd.f32 %v1742, %v1790
        %v1792 = vpop.f32.mrf.mxu0
        %v1793 = vadd.f32 %v1744, %v1792
        %1794 = vmatmul.bf16.gmra.mxu0 %v975
        %v1795 = vpop.f32.mrf.mxu0
        %v1796 = vadd.f32 %v1747, %v1795
        %v1797 = vpop.f32.mrf.mxu0
        %v1798 = vadd.f32 %v1749, %v1797
        %1799 = vmatmul.bf16.gmra.mxu0 %v981
        %v1800 = vpop.f32.mrf.mxu0
        %v1801 = vadd.f32 %v1752, %v1800
        %v1802 = vpop.f32.mrf.mxu0
        %v1803 = vadd.f32 %v1754, %v1802
        %1804 = vmatmul.bf16.gmra.mxu0 %v987
        %v1805 = vpop.f32.mrf.mxu0
        %v1806 = vadd.f32 %v1757, %v1805
        %v1807 = vpop.f32.mrf.mxu0
        %v1808 = vadd.f32 %v1759, %v1807
        %1809 = vdwg.mxu0
        %1810 = vmatpush.bf16.msra.mxu0 %v1339
        %1811 = vmatpush.bf16.msra.mxu0 %v1337
        %1812 = vmatpush.bf16.msra.mxu0 %v1335
        %1813 = vmatpush.bf16.msra.mxu0 %v1333
        %1814 = vmatpush.bf16.msra.mxu0 %v1331
        %1815 = vmatpush.bf16.msra.mxu0 %v1329
        %1816 = vmatpush.bf16.msra.mxu0 %v1327
        %1817 = vmatpush.bf16.msra.mxu0 %v1325
        %1818 = vmatmul.bf16.gmra.mxu0 %v940
        %v1819 = vpop.f32.mrf.mxu0
        %v1820 = vadd.f32 %v793, %v1819
        %v1821 = vpop.f32.mrf.mxu0
        %v1822 = vadd.f32 %v793, %v1821
        %1823 = vmatmul.bf16.gmra.mxu0 %v946
        %v1824 = vpop.f32.mrf.mxu0
        %v1825 = vadd.f32 %v793, %v1824
        %v1826 = vpop.f32.mrf.mxu0
        %v1827 = vadd.f32 %v793, %v1826
        %1828 = vmatmul.bf16.gmra.mxu0 %v952
        %v1829 = vpop.f32.mrf.mxu0
        %v1830 = vadd.f32 %v793, %v1829
        %v1831 = vpop.f32.mrf.mxu0
        %v1832 = vadd.f32 %v793, %v1831
        %1833 = vmatmul.bf16.gmra.mxu0 %v958
        %v1834 = vpop.f32.mrf.mxu0
        %v1835 = vadd.f32 %v793, %v1834
        %v1836 = vpop.f32.mrf.mxu0
        %v1837 = vadd.f32 %v793, %v1836
        %1838 = vmatmul.bf16.gmra.mxu0 %v964
        %v1839 = vpop.f32.mrf.mxu0
        %v1840 = vadd.f32 %v793, %v1839
        %v1841 = vpop.f32.mrf.mxu0
        %v1842 = vadd.f32 %v793, %v1841
        %1843 = vmatmul.bf16.gmra.mxu0 %v970
        %v1844 = vpop.f32.mrf.mxu0
        %v1845 = vadd.f32 %v793, %v1844
        %v1846 = vpop.f32.mrf.mxu0
        %v1847 = vadd.f32 %v793, %v1846
        %1848 = vmatmul.bf16.gmra.mxu0 %v976
        %v1849 = vpop.f32.mrf.mxu0
        %v1850 = vadd.f32 %v793, %v1849
        %v1851 = vpop.f32.mrf.mxu0
        %v1852 = vadd.f32 %v793, %v1851
        %1853 = vmatmul.bf16.gmra.mxu0 %v982
        %v1854 = vpop.f32.mrf.mxu0
        %v1855 = vadd.f32 %v793, %v1854
        %v1856 = vpop.f32.mrf.mxu0
        %v1857 = vadd.f32 %v793, %v1856
        %1858 = vdwg.mxu0
        %1859 = vmatpush.bf16.msra.mxu0 %v1355
        %1860 = vmatpush.bf16.msra.mxu0 %v1353
        %1861 = vmatpush.bf16.msra.mxu0 %v1351
        %1862 = vmatpush.bf16.msra.mxu0 %v1349
        %1863 = vmatpush.bf16.msra.mxu0 %v1347
        %1864 = vmatpush.bf16.msra.mxu0 %v1345
        %1865 = vmatpush.bf16.msra.mxu0 %v1343
        %1866 = vmatpush.bf16.msra.mxu0 %v1341
        %1867 = vmatmul.bf16.gmra.mxu0 %v941
        %v1868 = vpop.f32.mrf.mxu0
        %v1869 = vadd.f32 %v1820, %v1868
        %v1870 = vpop.f32.mrf.mxu0
        %v1871 = vadd.f32 %v1822, %v1870
        %1872 = vmatmul.bf16.gmra.mxu0 %v947
        %v1873 = vpop.f32.mrf.mxu0
        %v1874 = vadd.f32 %v1825, %v1873
        %v1875 = vpop.f32.mrf.mxu0
        %v1876 = vadd.f32 %v1827, %v1875
        %1877 = vmatmul.bf16.gmra.mxu0 %v953
        %v1878 = vpop.f32.mrf.mxu0
        %v1879 = vadd.f32 %v1830, %v1878
        %v1880 = vpop.f32.mrf.mxu0
        %v1881 = vadd.f32 %v1832, %v1880
        %1882 = vmatmul.bf16.gmra.mxu0 %v959
        %v1883 = vpop.f32.mrf.mxu0
        %v1884 = vadd.f32 %v1835, %v1883
        %v1885 = vpop.f32.mrf.mxu0
        %v1886 = vadd.f32 %v1837, %v1885
        %1887 = vmatmul.bf16.gmra.mxu0 %v965
        %v1888 = vpop.f32.mrf.mxu0
        %v1889 = vadd.f32 %v1840, %v1888
        %v1890 = vpop.f32.mrf.mxu0
        %v1891 = vadd.f32 %v1842, %v1890
        %1892 = vmatmul.bf16.gmra.mxu0 %v971
        %v1893 = vpop.f32.mrf.mxu0
        %v1894 = vadd.f32 %v1845, %v1893
        %v1895 = vpop.f32.mrf.mxu0
        %v1896 = vadd.f32 %v1847, %v1895
        %1897 = vmatmul.bf16.gmra.mxu0 %v977
        %v1898 = vpop.f32.mrf.mxu0
        %v1899 = vadd.f32 %v1850, %v1898
        %v1900 = vpop.f32.mrf.mxu0
        %v1901 = vadd.f32 %v1852, %v1900
        %1902 = vmatmul.bf16.gmra.mxu0 %v983
        %v1903 = vpop.f32.mrf.mxu0
        %v1904 = vadd.f32 %v1855, %v1903
        %v1905 = vpop.f32.mrf.mxu0
        %v1906 = vadd.f32 %v1857, %v1905
        %1907 = vdwg.mxu0
        %1908 = vmatpush.bf16.msra.mxu0 %v1371
        %1909 = vmatpush.bf16.msra.mxu0 %v1369
        %1910 = vmatpush.bf16.msra.mxu0 %v1367
        %1911 = vmatpush.bf16.msra.mxu0 %v1365
        %1912 = vmatpush.bf16.msra.mxu0 %v1363
        %1913 = vmatpush.bf16.msra.mxu0 %v1361
        %1914 = vmatpush.bf16.msra.mxu0 %v1359
        %1915 = vmatpush.bf16.msra.mxu0 %v1357
        %1916 = vmatmul.bf16.gmra.mxu0 %v942
        %v1917 = vpop.f32.mrf.mxu0
        %v1918 = vadd.f32 %v1869, %v1917
        %v1919 = vpop.f32.mrf.mxu0
        %v1920 = vadd.f32 %v1871, %v1919
        %1921 = vmatmul.bf16.gmra.mxu0 %v948
        %v1922 = vpop.f32.mrf.mxu0
        %v1923 = vadd.f32 %v1874, %v1922
        %v1924 = vpop.f32.mrf.mxu0
        %v1925 = vadd.f32 %v1876, %v1924
        %1926 = vmatmul.bf16.gmra.mxu0 %v954
        %v1927 = vpop.f32.mrf.mxu0
        %v1928 = vadd.f32 %v1879, %v1927
        %v1929 = vpop.f32.mrf.mxu0
        %v1930 = vadd.f32 %v1881, %v1929
        %1931 = vmatmul.bf16.gmra.mxu0 %v960
        %v1932 = vpop.f32.mrf.mxu0
        %v1933 = vadd.f32 %v1884, %v1932
        %v1934 = vpop.f32.mrf.mxu0
        %v1935 = vadd.f32 %v1886, %v1934
        %1936 = vmatmul.bf16.gmra.mxu0 %v966
        %v1937 = vpop.f32.mrf.mxu0
        %v1938 = vadd.f32 %v1889, %v1937
        %v1939 = vpop.f32.mrf.mxu0
        %v1940 = vadd.f32 %v1891, %v1939
        %1941 = vmatmul.bf16.gmra.mxu0 %v972
        %v1942 = vpop.f32.mrf.mxu0
        %v1943 = vadd.f32 %v1894, %v1942
        %v1944 = vpop.f32.mrf.mxu0
        %v1945 = vadd.f32 %v1896, %v1944
        %1946 = vmatmul.bf16.gmra.mxu0 %v978
        %v1947 = vpop.f32.mrf.mxu0
        %v1948 = vadd.f32 %v1899, %v1947
        %v1949 = vpop.f32.mrf.mxu0
        %v1950 = vadd.f32 %v1901, %v1949
        %1951 = vmatmul.bf16.gmra.mxu0 %v984
        %v1952 = vpop.f32.mrf.mxu0
        %v1953 = vadd.f32 %v1904, %v1952
        %v1954 = vpop.f32.mrf.mxu0
        %v1955 = vadd.f32 %v1906, %v1954
        %1956 = vdwg.mxu0
        %1957 = vmatpush.bf16.msra.mxu0 %v1387
        %1958 = vmatpush.bf16.msra.mxu0 %v1385
        %1959 = vmatpush.bf16.msra.mxu0 %v1383
        %1960 = vmatpush.bf16.msra.mxu0 %v1381
        %1961 = vmatpush.bf16.msra.mxu0 %v1379
        %1962 = vmatpush.bf16.msra.mxu0 %v1377
        %1963 = vmatpush.bf16.msra.mxu0 %v1375
        %1964 = vmatpush.bf16.msra.mxu0 %v1373
        %1965 = vmatmul.bf16.gmra.mxu0 %v943
        %v1966 = vpop.f32.mrf.mxu0
        %v1967 = vadd.f32 %v1918, %v1966
        %v1968 = vpop.f32.mrf.mxu0
        %v1969 = vadd.f32 %v1920, %v1968
        %1970 = vmatmul.bf16.gmra.mxu0 %v949
        %v1971 = vpop.f32.mrf.mxu0
        %v1972 = vadd.f32 %v1923, %v1971
        %v1973 = vpop.f32.mrf.mxu0
        %v1974 = vadd.f32 %v1925, %v1973
        %1975 = vmatmul.bf16.gmra.mxu0 %v955
        %v1976 = vpop.f32.mrf.mxu0
        %v1977 = vadd.f32 %v1928, %v1976
        %v1978 = vpop.f32.mrf.mxu0
        %v1979 = vadd.f32 %v1930, %v1978
        %1980 = vmatmul.bf16.gmra.mxu0 %v961
        %v1981 = vpop.f32.mrf.mxu0
        %v1982 = vadd.f32 %v1933, %v1981
        %v1983 = vpop.f32.mrf.mxu0
        %v1984 = vadd.f32 %v1935, %v1983
        %1985 = vmatmul.bf16.gmra.mxu0 %v967
        %v1986 = vpop.f32.mrf.mxu0
        %v1987 = vadd.f32 %v1938, %v1986
        %v1988 = vpop.f32.mrf.mxu0
        %v1989 = vadd.f32 %v1940, %v1988
        %1990 = vmatmul.bf16.gmra.mxu0 %v973
        %v1991 = vpop.f32.mrf.mxu0
        %v1992 = vadd.f32 %v1943, %v1991
        %v1993 = vpop.f32.mrf.mxu0
        %v1994 = vadd.f32 %v1945, %v1993
        %1995 = vmatmul.bf16.gmra.mxu0 %v979
        %v1996 = vpop.f32.mrf.mxu0
        %v1997 = vadd.f32 %v1948, %v1996
        %v1998 = vpop.f32.mrf.mxu0
        %v1999 = vadd.f32 %v1950, %v1998
        %2000 = vmatmul.bf16.gmra.mxu0 %v985
        %v2001 = vpop.f32.mrf.mxu0
        %v2002 = vadd.f32 %v1953, %v2001
        %v2003 = vpop.f32.mrf.mxu0
        %v2004 = vadd.f32 %v1955, %v2003
        %2005 = vdwg.mxu0
        %2006 = vmatpush.bf16.msra.mxu0 %v1403
        %2007 = vmatpush.bf16.msra.mxu0 %v1401
        %2008 = vmatpush.bf16.msra.mxu0 %v1399
        %2009 = vmatpush.bf16.msra.mxu0 %v1397
        %2010 = vmatpush.bf16.msra.mxu0 %v1395
        %2011 = vmatpush.bf16.msra.mxu0 %v1393
        %2012 = vmatpush.bf16.msra.mxu0 %v1391
        %2013 = vmatpush.bf16.msra.mxu0 %v1389
        %2014 = vmatmul.bf16.gmra.mxu0 %v944
        %v2015 = vpop.f32.mrf.mxu0
        %v2016 = vadd.f32 %v1967, %v2015
        %v2017 = vpop.f32.mrf.mxu0
        %v2018 = vadd.f32 %v1969, %v2017
        %2019 = vmatmul.bf16.gmra.mxu0 %v950
        %v2020 = vpop.f32.mrf.mxu0
        %v2021 = vadd.f32 %v1972, %v2020
        %v2022 = vpop.f32.mrf.mxu0
        %v2023 = vadd.f32 %v1974, %v2022
        %2024 = vmatmul.bf16.gmra.mxu0 %v956
        %v2025 = vpop.f32.mrf.mxu0
        %v2026 = vadd.f32 %v1977, %v2025
        %v2027 = vpop.f32.mrf.mxu0
        %v2028 = vadd.f32 %v1979, %v2027
        %2029 = vmatmul.bf16.gmra.mxu0 %v962
        %v2030 = vpop.f32.mrf.mxu0
        %v2031 = vadd.f32 %v1982, %v2030
        %v2032 = vpop.f32.mrf.mxu0
        %v2033 = vadd.f32 %v1984, %v2032
        %2034 = vmatmul.bf16.gmra.mxu0 %v968
        %v2035 = vpop.f32.mrf.mxu0
        %v2036 = vadd.f32 %v1987, %v2035
        %v2037 = vpop.f32.mrf.mxu0
        %v2038 = vadd.f32 %v1989, %v2037
        %2039 = vmatmul.bf16.gmra.mxu0 %v974
        %v2040 = vpop.f32.mrf.mxu0
        %v2041 = vadd.f32 %v1992, %v2040
        %v2042 = vpop.f32.mrf.mxu0
        %v2043 = vadd.f32 %v1994, %v2042
        %2044 = vmatmul.bf16.gmra.mxu0 %v980
        %v2045 = vpop.f32.mrf.mxu0
        %v2046 = vadd.f32 %v1997, %v2045
        %v2047 = vpop.f32.mrf.mxu0
        %v2048 = vadd.f32 %v1999, %v2047
        %2049 = vmatmul.bf16.gmra.mxu0 %v986
        %v2050 = vpop.f32.mrf.mxu0
        %v2051 = vadd.f32 %v2002, %v2050
        %v2052 = vpop.f32.mrf.mxu0
        %v2053 = vadd.f32 %v2004, %v2052
        %2054 = vdwg.mxu0
        %2055 = vmatpush.bf16.msra.mxu0 %v1419
        %2056 = vmatpush.bf16.msra.mxu0 %v1417
        %2057 = vmatpush.bf16.msra.mxu0 %v1415
        %2058 = vmatpush.bf16.msra.mxu0 %v1413
        %2059 = vmatpush.bf16.msra.mxu0 %v1411
        %2060 = vmatpush.bf16.msra.mxu0 %v1409
        %2061 = vmatpush.bf16.msra.mxu0 %v1407
        %2062 = vmatpush.bf16.msra.mxu0 %v1405
        %2063 = vmatmul.bf16.gmra.mxu0 %v945
        %v2064 = vpop.f32.mrf.mxu0
        %v2065 = vadd.f32 %v2016, %v2064
        %v2066 = vpop.f32.mrf.mxu0
        %v2067 = vadd.f32 %v2018, %v2066
        %2068 = vmatmul.bf16.gmra.mxu0 %v951
        %v2069 = vpop.f32.mrf.mxu0
        %v2070 = vadd.f32 %v2021, %v2069
        %v2071 = vpop.f32.mrf.mxu0
        %v2072 = vadd.f32 %v2023, %v2071
        %2073 = vmatmul.bf16.gmra.mxu0 %v957
        %v2074 = vpop.f32.mrf.mxu0
        %v2075 = vadd.f32 %v2026, %v2074
        %v2076 = vpop.f32.mrf.mxu0
        %v2077 = vadd.f32 %v2028, %v2076
        %2078 = vmatmul.bf16.gmra.mxu0 %v963
        %v2079 = vpop.f32.mrf.mxu0
        %v2080 = vadd.f32 %v2031, %v2079
        %v2081 = vpop.f32.mrf.mxu0
        %v2082 = vadd.f32 %v2033, %v2081
        %2083 = vmatmul.bf16.gmra.mxu0 %v969
        %v2084 = vpop.f32.mrf.mxu0
        %v2085 = vadd.f32 %v2036, %v2084
        %v2086 = vpop.f32.mrf.mxu0
        %v2087 = vadd.f32 %v2038, %v2086
        %2088 = vmatmul.bf16.gmra.mxu0 %v975
        %v2089 = vpop.f32.mrf.mxu0
        %v2090 = vadd.f32 %v2041, %v2089
        %v2091 = vpop.f32.mrf.mxu0
        %v2092 = vadd.f32 %v2043, %v2091
        %2093 = vmatmul.bf16.gmra.mxu0 %v981
        %v2094 = vpop.f32.mrf.mxu0
        %v2095 = vadd.f32 %v2046, %v2094
        %v2096 = vpop.f32.mrf.mxu0
        %v2097 = vadd.f32 %v2048, %v2096
        %2098 = vmatmul.bf16.gmra.mxu0 %v987
        %v2099 = vpop.f32.mrf.mxu0
        %v2100 = vadd.f32 %v2051, %v2099
        %v2101 = vpop.f32.mrf.mxu0
        %v2102 = vadd.f32 %v2053, %v2101
        %2103 = vdwg.mxu0
        %2104 = vst [vmem:[%s630] sm:$0xff] %v1771
        %2105 = vst [vmem:[%s630 + $0x8] sm:$0xff] %v2065
        %2106 = vst [vmem:[%s630 + $0x10] sm:$0xff] %v1773
        %2107 = vst [vmem:[%s630 + $0x18] sm:$0xff] %v2067
        %2108 = vst [vmem:[%s630 + $0x20] sm:$0xff] %v1776
        %2109 = vst [vmem:[%s630 + $0x28] sm:$0xff] %v2070
        %2110 = vst [vmem:[%s630 + $0x30] sm:$0xff] %v1778
        %2111 = vst [vmem:[%s630 + $0x38] sm:$0xff] %v2072
        %2112 = vst [vmem:[%s630 + $0x40] sm:$0xff] %v1781
        %2113 = vst [vmem:[%s630 + $0x48] sm:$0xff] %v2075
        %2114 = vst [vmem:[%s630 + $0x50] sm:$0xff] %v1783
        %2115 = vst [vmem:[%s630 + $0x58] sm:$0xff] %v2077
        %2116 = vst [vmem:[%s630 + $0x60] sm:$0xff] %v1786
        %2117 = vst [vmem:[%s630 + $0x68] sm:$0xff] %v2080
        %2118 = vst [vmem:[%s630 + $0x70] sm:$0xff] %v1788
        %2119 = vst [vmem:[%s630 + $0x78] sm:$0xff] %v2082
        %2120 = vst [vmem:[%s630 + $0x80] sm:$0xff] %v1791
        %2121 = vst [vmem:[%s630 + $0x88] sm:$0xff] %v2085
        %2122 = vst [vmem:[%s630 + $0x90] sm:$0xff] %v1793
        %2123 = vst [vmem:[%s630 + $0x98] sm:$0xff] %v2087
        %2124 = vst [vmem:[%s630 + $0xa0] sm:$0xff] %v1796
        %2125 = vst [vmem:[%s630 + $0xa8] sm:$0xff] %v2090
        %2126 = vst [vmem:[%s630 + $0xb0] sm:$0xff] %v1798
        %2127 = vst [vmem:[%s630 + $0xb8] sm:$0xff] %v2092
        %2128 = vst [vmem:[%s630 + $0xc0] sm:$0xff] %v1801
        %2129 = vst [vmem:[%s630 + $0xc8] sm:$0xff] %v2095
        %2130 = vst [vmem:[%s630 + $0xd0] sm:$0xff] %v1803
        %2131 = vst [vmem:[%s630 + $0xd8] sm:$0xff] %v2097
        %2132 = vst [vmem:[%s630 + $0xe0] sm:$0xff] %v1806
        %2133 = vst [vmem:[%s630 + $0xe8] sm:$0xff] %v2100
        %2134 = vst [vmem:[%s630 + $0xf0] sm:$0xff] %v1808
        %2135 = vst [vmem:[%s630 + $0xf8] sm:$0xff] %v2102
        %s2136 = sand.u32 %s117, 1
        %s2137 = scalar_lea.sflag [#allocation4], %s2136
        %s2138 = sand.u32 %s117, 1
        %s2139 = smul.addr %s2138, 256
        %s2140 = scalar_lea.vmem [#allocation3], %s2139
        // Predicated region
        $region71: #{self_attention_forward.5} parent=65 // pred_check
          %p2141 = pneg %p127
        $region72: #{self_attention_forward.5} parent=65 // pred_check_branch
          %2143 = sbr.rel (%p2141) target = $region74
        $region73: #{self_attention_forward.5} parent=65 // pred_region
          %s2144 = smul.u32 16, %s21
          %s2145 = smul.u32 2, %s22
          %2147 = vsyncadd %s2137, 0
          %s2148 = smul.addr %s2144, 6
          %s2149 = sadd.s32 %s2145, %s2148
          %s2150 = smul.addr %s2149, 8
          %s2151 = scalar_lea.hbm %s3, %s2150
          %s2152 = sshll.u32 %s2140, 4
          %s2153 = int_to_ptr.vmem [resolvable:$true] %s2152
          %s2154 = sshll.u32 %s2151, 4
          %s2155 = int_to_ptr.hbm [resolvable:$true] %s2154
          %2160 = dma.vmem_to_hbm [thread:$0]  %s2153, 4096, %s2155, %s2137, 256, 768, 16
        $region74: #{self_attention_forward.5} parent=65 // pred_fallthru
          _
      $region66: #{self_attention_forward.5} parent=5 // pred_fallthru
        _
      %p2161 = scmp.le.s32.totalorder 2, %s12
      // Predicated region
      $region75: #{self_attention_forward.5} parent=5 // pred_check
        %p2162 = pneg %p2161
      $region76: #{self_attention_forward.5} parent=5 // pred_check_branch
        %2164 = sbr.rel (%p2162) target = $region78
      $region77: #{self_attention_forward.5} parent=5 // pred_region
        %s2165 = ssub.s32 %s12, 2
        // Predicated region
        $region79: #{self_attention_forward.5} parent=77 // pred_check
          %p2166 = pneg %p133
        $region80: #{self_attention_forward.5} parent=77 // pred_check_branch
          %2168 = sbr.rel (%p2166) target = $region82
        $region81: #{self_attention_forward.5} parent=77 // pred_region
          %s2169 = sand.u32 %s118, 1
          %s2170 = scalar_lea.sflag [#allocation4], %s2169
          %s2171 = sand.u32 %s118, 1
          %s2172 = smul.addr %s2171, 256
          %s2173 = scalar_lea.vmem [#allocation3], %s2172
          %2175 = dma.done %s2170, 4096
        $region82: #{self_attention_forward.5} parent=77 // pred_fallthru
          _
      $region78: #{self_attention_forward.5} parent=5 // pred_fallthru
        _
    $region6: #{self_attention_forward.5} parent=1 // loop_footer
      %s16 = sadd.s32 1, %s12
    $region7: #{self_attention_forward.5} parent=1 // loop_footer_branch
      %11 = sbr.rel target = $region3
    $region8: #{self_attention_forward.5} parent=1 // loop_exit
      _
    %2176 = vsyncpa [#allocation4], 1
    %s2177 = scalar_lea.sflag [#allocation4], 1
    %2178 = vsyncpa %s2177, 1

</llo_original>
